<compile_context>
chip_gen: v7x
topology: tpu7x:2x2x1
jax: 0.10.0
libtpu: 0.0.40
codegen_flags: <defaults>
</compile_context>

<pallas_src>
import functools

import jax
import jax.numpy as jnp
from jax import lax
from jax.experimental import pallas as pl
from jax.experimental.pallas import tpu as pltpu


# -----------------------------------------------------------------------------
# VMEM budget / tiling helpers
# -----------------------------------------------------------------------------
def _vmem_limit_bytes():
    cap = 128 * 1024 * 1024
    try:
        info_fn = getattr(pltpu, "get_tpu_info", None)
        if info_fn is not None:
            cap = int(getattr(info_fn(), "vmem_capacity_bytes", cap))
    except Exception:
        pass
    # ~75% of physical VMEM, capped at 100 MiB: 96 MiB on v5e/v6e (128 MiB
    # chips), 48 MiB on v7x (64 MiB per TC) -> headroom for Mosaic scratch.
    return min(100 * 1024 * 1024, (cap * 3) // 4)


_VMEM_LIMIT = _vmem_limit_bytes()


def _compiler_params(n_axes=1):
    return pltpu.CompilerParams(
        dimension_semantics=("parallel",) * n_axes,
        vmem_limit_bytes=_VMEM_LIMIT,
    )


def _round_up(x, m):
    return ((x + m - 1) // m) * m


def _row_plan(M, target):
    """Row tile plan for an (M, ...) token matrix.

    Returns (tile, n_steps, padded_M).  The tile is a multiple of 8 (or == M),
    divides M exactly whenever M is a multiple of 8 (so no jnp.pad / out[:M]
    HBM passes), and we take >= 2 grid steps when possible so both v7x
    TensorCores get work.
    """
    if M <= 8:
        return M, 1, M
    min_steps = 2 if M >= 16 else 1
    n = max(min_steps, -(-M // max(target, 8)))
    if M % 8 == 0:
        while (M // 8) % n:
            n += 1
        return M // n, n, M
    t = _round_up(-(-M // n), 8)
    return t, n, n * t


def _pad_rows(x, Mp):
    if x.shape[0] == Mp:
        return x
    widths = [(0, Mp - x.shape[0])] + [(0, 0)] * (x.ndim - 1)
    return jnp.pad(x, widths)


def _choose_groups(n_windows, per_window_bytes, budget):
    """Windows per attention grid step; the group count always divides the
    window count (no padding) and is >= 2 when possible (megacore)."""
    g_cap = max(1, min(n_windows, budget // max(per_window_bytes, 1)))
    n = max(2 if n_windows >= 2 else 1, -(-n_windows // g_cap))
    while n_windows % n:
        n += 1
    return n_windows // n, n


def _erf_poly(x):
    # Abramowitz & Stegun 7.1.26 (max abs error 1.5e-7): exact-GELU erf built
    # from ops guaranteed to lower in Mosaic (mul/add/exp/where).
    a1, a2, a3, a4, a5 = (0.254829592, -0.284496736, 1.421413741,
                          -1.453152027, 1.061405429)
    p = 0.3275911
    s = jnp.where(x >= 0.0, 1.0, -1.0)
    ax = jnp.abs(x)
    t = 1.0 / (1.0 + p * ax)
    poly = t * (a1 + t * (a2 + t * (a3 + t * (a4 + t * a5))))
    return s * (1.0 - poly * jnp.exp(-ax * ax))


# -----------------------------------------------------------------------------
# Pallas kernels
# -----------------------------------------------------------------------------
def _linear_kernel(x_ref, w_ref, b_ref, o_ref):
    x = x_ref[...].astype(jnp.bfloat16)
    o_ref[...] = (jnp.dot(x, w_ref[...], preferred_element_type=jnp.float32)
                  + b_ref[...]).astype(o_ref.dtype)


def linear(x, w_bf16, b, out_dtype=jnp.float32, row_target=512):
    """y = x @ w + b.  x:(M,K) f32, w:(K,N) bf16, b:(N,) f32.  Row-tiled,
    weights VMEM-resident, bf16 MXU operands / f32 accumulation."""
    M, K = x.shape
    N = w_bf16.shape[1]
    t, n, Mp = _row_plan(M, row_target)
    xp = _pad_rows(x, Mp)
    out = pl.pallas_call(
        _linear_kernel,
        out_shape=jax.ShapeDtypeStruct((Mp, N), out_dtype),
        grid=(n,),
        in_specs=[
            pl.BlockSpec((t, K), lambda i: (i, 0)),
            pl.BlockSpec((K, N), lambda i: (0, 0)),
            pl.BlockSpec((1, N), lambda i: (0, 0)),
        ],
        out_specs=pl.BlockSpec((t, N), lambda i: (i, 0)),
        compiler_params=_compiler_params(1),
    )(xp, w_bf16, b.reshape(1, N))
    return out if Mp == M else out[:M]


def _layernorm_kernel(x_ref, g_ref, b_ref, o_ref, *, eps):
    x = x_ref[...]
    mean = jnp.mean(x, axis=-1, keepdims=True)
    xc = x - mean
    var = jnp.mean(xc * xc, axis=-1, keepdims=True)
    o_ref[...] = xc * lax.rsqrt(var + eps) * g_ref[...] + b_ref[...]


def layernorm(x, gamma, beta, eps=1e-5, row_target=1024):
    M, C = x.shape
    t, n, Mp = _row_plan(M, row_target)
    xp = _pad_rows(x, Mp)
    out = pl.pallas_call(
        functools.partial(_layernorm_kernel, eps=eps),
        out_shape=jax.ShapeDtypeStruct((Mp, C), jnp.float32),
        grid=(n,),
        in_specs=[
            pl.BlockSpec((t, C), lambda i: (i, 0)),
            pl.BlockSpec((1, C), lambda i: (0, 0)),
            pl.BlockSpec((1, C), lambda i: (0, 0)),
        ],
        out_specs=pl.BlockSpec((t, C), lambda i: (i, 0)),
        compiler_params=_compiler_params(1),
    )(xp, gamma.reshape(1, C), beta.reshape(1, C))
    return out if Mp == M else out[:M]


def _ln_qkv_kernel(x_ref, g_ref, b_ref, w_ref, bias_ref, o_ref, *, eps):
    """Fused LayerNorm1 + qkv projection (removes one HBM round trip)."""
    x = x_ref[...]
    mean = jnp.mean(x, axis=-1, keepdims=True)
    xc = x - mean
    var = jnp.mean(xc * xc, axis=-1, keepdims=True)
    y = (xc * lax.rsqrt(var + eps) * g_ref[...] + b_ref[...]).astype(jnp.bfloat16)
    o_ref[...] = (jnp.dot(y, w_ref[...], preferred_element_type=jnp.float32)
                  + bias_ref[...]).astype(o_ref.dtype)


def ln_qkv(x, gamma, beta, w_bf16, bias, eps=1e-5, row_target=512):
    M, C = x.shape
    N3 = w_bf16.shape[1]
    t, n, Mp = _row_plan(M, row_target)
    xp = _pad_rows(x, Mp)
    out = pl.pallas_call(
        functools.partial(_ln_qkv_kernel, eps=eps),
        out_shape=jax.ShapeDtypeStruct((Mp, N3), jnp.bfloat16),
        grid=(n,),
        in_specs=[
            pl.BlockSpec((t, C), lambda i: (i, 0)),
            pl.BlockSpec((1, C), lambda i: (0, 0)),
            pl.BlockSpec((1, C), lambda i: (0, 0)),
            pl.BlockSpec((C, N3), lambda i: (0, 0)),
            pl.BlockSpec((1, N3), lambda i: (0, 0)),
        ],
        out_specs=pl.BlockSpec((t, N3), lambda i: (i, 0)),
        compiler_params=_compiler_params(1),
    )(xp, gamma.reshape(1, C), beta.reshape(1, C), w_bf16, bias.reshape(1, N3))
    return out if Mp == M else out[:M]


def _window_attn_kernel(qkv_ref, o_ref, *, num_heads, scale):
    """Cosine window attention for a group of g windows.

    qkv_ref: (g, N, 3C) bf16, per-token layout [q | k | v], each head-major.
    o_ref  : (g, N, C) bf16 with heads concatenated on the lane axis and
             written by a SINGLE lane-dense store (no per-head masked stores).
    """
    qkv = qkv_ref[...]                       # one full-lane load
    C = qkv.shape[-1] // 3
    hd = C // num_heads
    outs = []
    # TODO(synk): batch the per-head matmuls over an explicit head axis once
    # the (g,N,H,hd) in-kernel transpose is cheap; the store is already fused.
    for h in range(num_heads):
        q = qkv[:, :, h * hd:(h + 1) * hd].astype(jnp.float32)
        k = qkv[:, :, C + h * hd:C + (h + 1) * hd].astype(jnp.float32)
        v = qkv[:, :, 2 * C + h * hd:2 * C + (h + 1) * hd]
        # F.normalize(p=2, dim=-1): x / max(||x||, 1e-12)
        qn = q * lax.rsqrt(jnp.maximum(jnp.sum(q * q, -1, keepdims=True), 1e-24))
        kn = k * lax.rsqrt(jnp.maximum(jnp.sum(k * k, -1, keepdims=True), 1e-24))
        attn = jnp.einsum("gqd,gkd->gqk", qn.astype(jnp.bfloat16),
                          kn.astype(jnp.bfloat16),
                          preferred_element_type=jnp.float32) * scale
        attn = jnp.exp(attn - jnp.max(attn, axis=-1, keepdims=True))
        attn = attn * pl.reciprocal(jnp.sum(attn, axis=-1, keepdims=True),
                                    approx=True)           # EUP, not VPU divide
        attn = jnp.clip(attn, 1e-6, 1.0)
        outs.append(jnp.einsum("gqk,gkd->gqd", attn.astype(jnp.bfloat16), v,
                               preferred_element_type=jnp.float32))
    o_ref[...] = jnp.concatenate(outs, axis=-1).astype(o_ref.dtype)


def window_attention_core(qkv_windows, num_heads):
    """qkv_windows: (B_, N, 3C) bf16 -> (B_, N, C) bf16 (pre-proj, head concat)."""
    B_, N, C3 = qkv_windows.shape
    C = C3 // 3
    scale = (C // num_heads) ** (-0.5)
    # Real per-window VMEM footprint: double-buffered bf16 in/out + f32 temps.
    per_window = 2 * 2 * N * (C3 + C) + 4 * N * (3 * C + 2 * N)
    budget = max(2 << 20, min(16 << 20, _VMEM_LIMIT // 6))
    g, n_groups = _choose_groups(B_, per_window, budget)
    out = pl.pallas_call(
        functools.partial(_window_attn_kernel, num_heads=num_heads, scale=scale),
        out_shape=jax.ShapeDtypeStruct((B_, N, C), jnp.bfloat16),
        grid=(n_groups,),
        in_specs=[pl.BlockSpec((g, N, C3), lambda i: (i, 0, 0))],
        out_specs=pl.BlockSpec((g, N, C), lambda i: (i, 0, 0)),
        compiler_params=_compiler_params(1),
    )(qkv_windows)
    return out


def _block_tail_kernel(s_ref, a_ref, pw_ref, pb_ref, g_ref, b_ref,
                       w1_ref, b1_ref, w2_ref, b2_ref, o_ref, *, eps):
    """Fused: x = shortcut + proj(attn_heads); x + MLP(LN2(x)) (exact GELU)."""
    x = s_ref[...] + (jnp.dot(a_ref[...], pw_ref[...],
                              preferred_element_type=jnp.float32) + pb_ref[...])
    mean = jnp.mean(x, axis=-1, keepdims=True)
    xc = x - mean
    var = jnp.mean(xc * xc, axis=-1, keepdims=True)
    y = (xc * lax.rsqrt(var + eps) * g_ref[...] + b_ref[...]).astype(jnp.bfloat16)
    h = jnp.dot(y, w1_ref[...], preferred_element_type=jnp.float32) + b1_ref[...]
    h = 0.5 * h * (1.0 + _erf_poly(h * 0.7071067811865476))   # nn.GELU (erf)
    y2 = (jnp.dot(h.astype(jnp.bfloat16), w2_ref[...],
                  preferred_element_type=jnp.float32) + b2_ref[...])
    o_ref[...] = x + y2


def block_tail(shortcut, attn_heads, p, eps=1e-5):
    """shortcut:(M,C) f32, attn_heads:(M,C) bf16 (pre-proj) -> (M,C) f32."""
    M, C = shortcut.shape
    Hd = p["mlp_w1"].shape[1]
    # Activation-tile budget after accounting for the (double-buffered, bf16)
    # resident proj / mlp weights; aim for >=256-512 rows to fill the MXU.
    weight_bytes = 2 * 2 * (C * C + 2 * C * Hd)
    per_row = 4 * (6 * C + 2 * Hd)
    avail = max(4 << 20, _VMEM_LIMIT // 2 - weight_bytes)
    row_target = int(max(128, min(512, avail // max(per_row, 1))))
    t, n, Mp = _row_plan(M, row_target)
    sp = _pad_rows(shortcut, Mp)
    ap = _pad_rows(attn_heads, Mp)
    out = pl.pallas_call(
        functools.partial(_block_tail_kernel, eps=eps),
        out_shape=jax.ShapeDtypeStruct((Mp, C), jnp.float32),
        grid=(n,),
        in_specs=[
            pl.BlockSpec((t, C), lambda i: (i, 0)),
            pl.BlockSpec((t, C), lambda i: (i, 0)),
            pl.BlockSpec((C, C), lambda i: (0, 0)),
            pl.BlockSpec((1, C), lambda i: (0, 0)),
            pl.BlockSpec((1, C), lambda i: (0, 0)),
            pl.BlockSpec((1, C), lambda i: (0, 0)),
            pl.BlockSpec((C, Hd), lambda i: (0, 0)),
            pl.BlockSpec((1, Hd), lambda i: (0, 0)),
            pl.BlockSpec((Hd, C), lambda i: (0, 0)),
            pl.BlockSpec((1, C), lambda i: (0, 0)),
        ],
        out_specs=pl.BlockSpec((t, C), lambda i: (i, 0)),
        compiler_params=_compiler_params(1),
    )(sp, ap,
      p["proj_w"], p["proj_b"].reshape(1, C),
      p["norm2_g"].reshape(1, C), p["norm2_b"].reshape(1, C),
      p["mlp_w1"], p["mlp_b1"].reshape(1, Hd),
      p["mlp_w2"], p["mlp_b2"].reshape(1, C))
    return out if Mp == M else out[:M]


# -----------------------------------------------------------------------------
# JAX glue (patchify conv, window partition / reverse, block & backbone)
# -----------------------------------------------------------------------------
def conv_as_patch_matmul(x_nhwc, w_oikk, b, k):
    """kernel-size == stride == k Conv2d as patchify + matmul (channels-last)."""
    B, H, W, Cin = x_nhwc.shape
    Ho, Wo = H // k, W // k
    p = x_nhwc.reshape(B, Ho, k, Wo, k, Cin).transpose(0, 1, 3, 5, 2, 4)
    p = p.reshape(B * Ho * Wo, Cin * k * k)
    O = w_oikk.shape[0]
    w_mat = w_oikk.reshape(O, Cin * k * k).T.astype(jnp.bfloat16)  # (c,kh,kw) order
    y = linear(p, w_mat, b)
    return y.reshape(B, Ho, Wo, O)


def window_partition(x, ws, pad_vec=None):
    """x:(B,H,W,C) -> windows:(B*nWin, ws*ws, C), Hp, Wp.

    Padded tokens are filled with `pad_vec` (= qkv bias = qkv(0)) so they match
    the reference, which zero-pads *before* the qkv projection.
    """
    B, H, W, C = x.shape
    pad_h = (-H) % ws
    pad_w = (-W) % ws
    if pad_h or pad_w:
        pv = (jnp.zeros((C,), x.dtype) if pad_vec is None
              else pad_vec.astype(x.dtype))
        if pad_h:
            x = jnp.concatenate(
                [x, jnp.broadcast_to(pv, (B, pad_h, W, C))], axis=1)
        if pad_w:
            x = jnp.concatenate(
                [x, jnp.broadcast_to(pv, (B, H + pad_h, pad_w, C))], axis=2)
    Hp, Wp = H + pad_h, W + pad_w
    x = x.reshape(B, Hp // ws, ws, Wp // ws, ws, C).transpose(0, 1, 3, 2, 4, 5)
    return x.reshape(B * (Hp // ws) * (Wp // ws), ws * ws, C), Hp, Wp


def window_reverse(windows, ws, Hp, Wp, H, W, B):
    C = windows.shape[-1]
    x = windows.reshape(B, Hp // ws, Wp // ws, ws, ws, C)
    x = x.transpose(0, 1, 3, 2, 4, 5).reshape(B, Hp, Wp, C)
    return x[:, :H, :W, :]


def swin_block(x_flat, B, H, W, p, num_heads, window_size, shift_size):
    """x_flat: (B*H*W, C) token matrix -> same shape."""
    C = x_flat.shape[-1]
    shortcut = x_flat
    # Fused LayerNorm1 + qkv (per-token linear commutes with roll / partition).
    qkv = ln_qkv(x_flat, p["norm1_g"], p["norm1_b"], p["qkv_w"], p["qkv_b"])
    qkv = qkv.reshape(B, H, W, 3 * C)
    if shift_size > 0:
        qkv = jnp.roll(qkv, shift=(-shift_size, -shift_size), axis=(1, 2))
    win, Hp, Wp = window_partition(qkv, window_size, pad_vec=p["qkv_b"])
    attn_w = window_attention_core(win, num_heads)        # (B_, N, C) bf16
    x = window_reverse(attn_w, window_size, Hp, Wp, H, W, B)
    if shift_size > 0:
        x = jnp.roll(x, shift=(shift_size, shift_size), axis=(1, 2))
    attn_flat = x.reshape(B * H * W, C)
    # Fused: shortcut + proj(attn) -> LayerNorm2 -> MLP(GELU) -> + residual.
    return block_tail(shortcut, attn_flat, p)


def swin_backbone_forward(x_nchw, params, cfg):
    x = jnp.transpose(x_nchw, (0, 2, 3, 1))               # NCHW -> NHWC
    x = conv_as_patch_matmul(x, params["patch_w"], params["patch_b"],
                             cfg["patch_size"])
    B, H, W, C = x.shape
    ws = cfg["window_size"]
    ss_cfg = cfg["shift_size"] if cfg["shift_size"] < ws else ws // 2
    features = []
    for i in range(cfg["num_stages"]):
        x_flat = x.reshape(B * H * W, C)
        ss = ss_cfg if i > 0 else 0
        for bp in params["stages"][i]:
            x_flat = swin_block(x_flat, B, H, W, bp, cfg["num_heads"], ws, ss)
        xn = layernorm(x_flat, params["norms"][i]["g"], params["norms"][i]["b"])
        x = xn.reshape(B, H, W, C)
        features.append(jnp.transpose(x, (0, 3, 1, 2)))   # back to NCHW
        if i < cfg["num_stages"] - 1:
            x = conv_as_patch_matmul(x, params["ds"][i]["w"],
                                     params["ds"][i]["b"], 2)
            B, H, W, C = x.shape
    return features


# -----------------------------------------------------------------------------
# Pure-JAX f32 reference (follows the PyTorch module op-for-op)
# -----------------------------------------------------------------------------
def _ref_forward(x_nchw, params, cfg):
    def ln(x, g, b, eps=1e-5):
        m = jnp.mean(x, -1, keepdims=True)
        v = jnp.mean((x - m) ** 2, -1, keepdims=True)
        return (x - m) * lax.rsqrt(v + eps) * g + b

    def conv(x_nhwc, w_oikk, b, k):
        Bb, Hh, Ww, Ci = x_nhwc.shape
        pch = x_nhwc.reshape(Bb, Hh // k, k, Ww // k, k, Ci)
        pch = pch.transpose(0, 1, 3, 5, 2, 4).reshape(Bb, Hh // k, Ww // k, Ci * k * k)
        return pch @ w_oikk.reshape(w_oikk.shape[0], -1).T.astype(jnp.float32) + b

    def attn(xw, p, heads):
        B_, N, C = xw.shape
        hd = C // heads
        qkv = xw @ p["qkv_w"].astype(jnp.float32) + p["qkv_b"]
        qkv = qkv.reshape(B_, N, 3, heads, hd).transpose(2, 0, 3, 1, 4)
        q, k, v = qkv[0], qkv[1], qkv[2]
        q = q / jnp.maximum(jnp.sqrt(jnp.sum(q * q, -1, keepdims=True)), 1e-12)
        k = k / jnp.maximum(jnp.sqrt(jnp.sum(k * k, -1, keepdims=True)), 1e-12)
        a = jnp.einsum("bhqd,bhkd->bhqk", q, k) * hd ** (-0.5)
        a = a - jnp.max(a, -1, keepdims=True)
        a = jax.nn.softmax(a, -1)
        a = jnp.clip(a, 1e-6, 1.0)
        o = jnp.einsum("bhqk,bhkd->bqhd", a, v).reshape(B_, N, C)
        return o @ p["proj_w"].astype(jnp.float32) + p["proj_b"]

    def block(xf, Bb, Hh, Ww, p, heads, ws, ss):
        C = xf.shape[-1]
        shortcut = xf
        x = ln(xf, p["norm1_g"], p["norm1_b"]).reshape(Bb, Hh, Ww, C)
        if ss > 0:
            x = jnp.roll(x, (-ss, -ss), (1, 2))
        ph, pw = (-Hh) % ws, (-Ww) % ws
        x = jnp.pad(x, ((0, 0), (0, ph), (0, pw), (0, 0)))
        Hp, Wp = Hh + ph, Ww + pw
        win = x.reshape(Bb, Hp // ws, ws, Wp // ws, ws, C)
        win = win.transpose(0, 1, 3, 2, 4, 5).reshape(-1, ws * ws, C)
        aw = attn(win, p, heads)
        x = aw.reshape(Bb, Hp // ws, Wp // ws, ws, ws, C)
        x = x.transpose(0, 1, 3, 2, 4, 5).reshape(Bb, Hp, Wp, C)[:, :Hh, :Ww]
        if ss > 0:
            x = jnp.roll(x, (ss, ss), (1, 2))
        x = shortcut + x.reshape(Bb * Hh * Ww, C)
        y = ln(x, p["norm2_g"], p["norm2_b"])
        h = y @ p["mlp_w1"].astype(jnp.float32) + p["mlp_b1"]
        h = 0.5 * h * (1.0 + lax.erf(h * 0.7071067811865476))
        return x + (h @ p["mlp_w2"].astype(jnp.float32) + p["mlp_b2"])

    x = jnp.transpose(x_nchw, (0, 2, 3, 1))
    x = conv(x, params["patch_w"], params["patch_b"], cfg["patch_size"])
    B, H, W, C = x.shape
    ws = cfg["window_size"]
    ss_cfg = cfg["shift_size"] if cfg["shift_size"] < ws else ws // 2
    feats = []
    for i in range(cfg["num_stages"]):
        xf = x.reshape(B * H * W, C)
        for bp in params["stages"][i]:
            xf = block(xf, B, H, W, bp, cfg["num_heads"], ws,
                       ss_cfg if i > 0 else 0)
        xn = ln(xf, params["norms"][i]["g"], params["norms"][i]["b"])
        x = xn.reshape(B, H, W, C)
        feats.append(jnp.transpose(x, (0, 3, 1, 2)))
        if i < cfg["num_stages"] - 1:
            x = conv(x, params["ds"][i]["w"], params["ds"][i]["b"], 2)
            B, H, W, C = x.shape
    return feats


# -----------------------------------------------------------------------------
# Deterministic synthetic parameter init (shapes follow the nn.Module __init__)
# -----------------------------------------------------------------------------
def init_params(key, cfg):
    keys = iter(jax.random.split(key, 1024))

    def nrm(shape, dtype=jnp.float32):
        return (0.02 * jax.random.normal(next(keys), shape, jnp.float32)).astype(dtype)

    p_sz, cin, ed = cfg["patch_size"], cfg["in_chans"], cfg["embed_dim"]
    params = {
        "patch_w": nrm((ed, cin, p_sz, p_sz)),
        "patch_b": jnp.zeros((ed,), jnp.float32),
        "stages": [],
        "norms": [],
        "ds": [],
    }
    dim = ed
    for i in range(cfg["num_stages"]):
        blocks = []
        for _ in range(cfg["depth"]):
            blocks.append({
                "norm1_g": jnp.ones((dim,), jnp.float32),
                "norm1_b": jnp.zeros((dim,), jnp.float32),
                "qkv_w": nrm((dim, 3 * dim), jnp.bfloat16),
                "qkv_b": jnp.zeros((3 * dim,), jnp.float32),
                "proj_w": nrm((dim, dim), jnp.bfloat16),
                "proj_b": jnp.zeros((dim,), jnp.float32),
                "norm2_g": jnp.ones((dim,), jnp.float32),
                "norm2_b": jnp.zeros((dim,), jnp.float32),
                "mlp_w1": nrm((dim, 4 * dim), jnp.bfloat16),
                "mlp_b1": jnp.zeros((4 * dim,), jnp.float32),
                "mlp_w2": nrm((4 * dim, dim), jnp.bfloat16),
                "mlp_b2": jnp.zeros((dim,), jnp.float32),
            })
        params["stages"].append(blocks)
        params["norms"].append(
            {"g": jnp.ones((dim,), jnp.float32), "b": jnp.zeros((dim,), jnp.float32)}
        )
        if i < cfg["num_stages"] - 1:
            params["ds"].append(
                {"w": nrm((2 * dim, dim, 2, 2)),
                 "b": jnp.zeros((2 * dim,), jnp.float32)}
            )
            dim *= 2
    return params


# -----------------------------------------------------------------------------
if __name__ == "__main__":
    cfg = dict(
        img_size=16,
        patch_size=4,
        in_chans=3,
        embed_dim=32,
        depth=2,
        num_heads=4,
        window_size=2,
        shift_size=1,      # shifted windows are exercised in stages > 0
        num_stages=2,
    )
    key = jax.random.PRNGKey(0)
    kx, kp = jax.random.split(key)
    x = jax.random.normal(
        kx, (2, cfg["in_chans"], cfg["img_size"], cfg["img_size"]), jnp.float32
    )
    params = init_params(kp, cfg)

    fwd = jax.jit(functools.partial(swin_backbone_forward, cfg=cfg))
    feats = jax.block_until_ready(fwd(x, params))

    assert feats[0].shape == (2, 32, 4, 4), feats[0].shape
    assert feats[1].shape == (2, 64, 2, 2), feats[1].shape
    assert all(bool(jnp.all(jnp.isfinite(f))) for f in feats)

    # Correctness vs. a pure-JAX f32 reference of the PyTorch module (loose
    # tolerance: kernels use bf16 MXU operands + approx softmax reciprocal).
    ref = _ref_forward(x, params, cfg)
    for f, r in zip(feats, ref):
        err = float(jnp.max(jnp.abs(f - r)))
        assert err < 0.15, f"max abs err vs reference: {err}"

    print("KERNEL_OK")
</pallas_src>

<mosaic_0001>
module attributes {stable_mosaic.version = 11 : i64} {
  func.func @_linear_kernel(%arg0: i32, %arg1: memref<16x48xf32, #tpu.memory_space<vmem>>, %arg2: memref<48x32xbf16, #tpu.memory_space<vmem>>, %arg3: memref<1x32xf32, #tpu.memory_space<vmem>>, %arg4: memref<16x32xf32, #tpu.memory_space<vmem>>) attributes {dimension_semantics = [#tpu.dimension_semantics<parallel>], iteration_bounds = array<i64: 2>, scalar_prefetch = 0 : i64, scratch_operands = 0 : i64, tpu.core_type = #tpu.core_type<tc>, window_params = [{transform_indices = @transform_0, window_bounds = array<i64: 16, 48>}, {pipeline_mode = #tpu.pipeline_mode<synchronous>, transform_indices = @transform_1, window_bounds = array<i64: 48, 32>}, {pipeline_mode = #tpu.pipeline_mode<synchronous>, transform_indices = @transform_2, window_bounds = array<i64: 1, 32>}, {transform_indices = @transform_3, window_bounds = array<i64: 16, 32>}]} {
    %c0 = arith.constant 0 : index
    %c0_0 = arith.constant 0 : index
    %0 = vector.load %arg1[%c0, %c0_0] : memref<16x48xf32, #tpu.memory_space<vmem>>, vector<16x48xf32>
    %1 = arith.truncf %0 : vector<16x48xf32> to vector<16x48xbf16>
    %c0_1 = arith.constant 0 : index
    %c0_2 = arith.constant 0 : index
    %2 = vector.load %arg2[%c0_1, %c0_2] : memref<48x32xbf16, #tpu.memory_space<vmem>>, vector<48x32xbf16>
    %cst = arith.constant dense<0.000000e+00> : vector<16x32xf32>
    %3 = tpu.matmul %1, %2, %cst {dimension_numbers = #tpu.dot_dimension_numbers<[1], [0], [0], [1], [0, 0, 1, 1], [], []>} : vector<16x48xbf16>, vector<48x32xbf16>, vector<16x32xf32> -> vector<16x32xf32>
    %c0_3 = arith.constant 0 : index
    %c0_4 = arith.constant 0 : index
    %4 = vector.load %arg3[%c0_3, %c0_4] : memref<1x32xf32, #tpu.memory_space<vmem>>, vector<1x32xf32>
    %5 = vector.broadcast %4 : vector<1x32xf32> to vector<16x32xf32>
    %6 = arith.addf %3, %5 : vector<16x32xf32>
    %c0_5 = arith.constant 0 : index
    %c0_6 = arith.constant 0 : index
    %7 = vector.load %arg4[%c0_5, %c0_6] : memref<16x32xf32, #tpu.memory_space<vmem>>, vector<16x32xf32>
    tpu.vector_store %arg4[%c0_5, %c0_6], %6 {strides = array<i32>} : memref<16x32xf32, #tpu.memory_space<vmem>>, vector<16x32xf32>,
    return
  }
  func.func @transform_0(%arg0: i32) -> (i32, i32) {
    %c0_i32 = arith.constant 0 : i32
    %c0_i32_0 = arith.constant 0 : i32
    return %arg0, %c0_i32 : i32, i32
  }
  func.func @transform_1(%arg0: i32) -> (i32, i32) {
    %c0_i32 = arith.constant 0 : i32
    %c0_i32_0 = arith.constant 0 : i32
    %c0_i32_1 = arith.constant 0 : i32
    return %c0_i32, %c0_i32_0 : i32, i32
  }
  func.func @transform_2(%arg0: i32) -> (i32, i32) {
    %c0_i32 = arith.constant 0 : i32
    %c0_i32_0 = arith.constant 0 : i32
    %c0_i32_1 = arith.constant 0 : i32
    return %c0_i32, %c0_i32_0 : i32, i32
  }
  func.func @transform_3(%arg0: i32) -> (i32, i32) {
    %c0_i32 = arith.constant 0 : i32
    %c0_i32_0 = arith.constant 0 : i32
    return %arg0, %c0_i32 : i32, i32
  }
}

module attributes {stable_mosaic.version = 11 : i64} {
  func.func @_ln_qkv_kernel(%arg0: i32, %arg1: memref<16x32xf32, #tpu.memory_space<vmem>>, %arg2: memref<1x32xf32, #tpu.memory_space<vmem>>, %arg3: memref<1x32xf32, #tpu.memory_space<vmem>>, %arg4: memref<32x96xbf16, #tpu.memory_space<vmem>>, %arg5: memref<1x96xf32, #tpu.memory_space<vmem>>, %arg6: memref<16x96xbf16, #tpu.memory_space<vmem>>) attributes {dimension_semantics = [#tpu.dimension_semantics<parallel>], iteration_bounds = array<i64: 2>, scalar_prefetch = 0 : i64, scratch_operands = 0 : i64, tpu.core_type = #tpu.core_type<tc>, window_params = [{transform_indices = @transform_0, window_bounds = array<i64: 16, 32>}, {pipeline_mode = #tpu.pipeline_mode<synchronous>, transform_indices = @transform_1, window_bounds = array<i64: 1, 32>}, {pipeline_mode = #tpu.pipeline_mode<synchronous>, transform_indices = @transform_2, window_bounds = array<i64: 1, 32>}, {pipeline_mode = #tpu.pipeline_mode<synchronous>, transform_indices = @transform_3, window_bounds = array<i64: 32, 96>}, {pipeline_mode = #tpu.pipeline_mode<synchronous>, transform_indices = @transform_4, window_bounds = array<i64: 1, 96>}, {transform_indices = @transform_5, window_bounds = array<i64: 16, 96>}]} {
    %c0 = arith.constant 0 : index
    %c0_0 = arith.constant 0 : index
    %0 = vector.load %arg1[%c0, %c0_0] : memref<16x32xf32, #tpu.memory_space<vmem>>, vector<16x32xf32>
    %cst = arith.constant dense<0.000000e+00> : vector<16xf32>
    %1 = vector.multi_reduction <add>, %0, %cst [1] : vector<16x32xf32> to vector<16xf32>
    %2 = vector.shape_cast %1 : vector<16xf32> to vector<16x1xf32>
    %cst_1 = arith.constant 3.200000e+01 : f32
    %3 = vector.broadcast %cst_1 : f32 to vector<16x1xf32>
    %4 = arith.divf %2, %3 : vector<16x1xf32>
    %5 = vector.broadcast %4 : vector<16x1xf32> to vector<16x32xf32>
    %6 = arith.subf %0, %5 : vector<16x32xf32>
    %7 = arith.mulf %6, %6 : vector<16x32xf32>
    %cst_2 = arith.constant dense<0.000000e+00> : vector<16xf32>
    %8 = vector.multi_reduction <add>, %7, %cst_2 [1] : vector<16x32xf32> to vector<16xf32>
    %9 = vector.shape_cast %8 : vector<16xf32> to vector<16x1xf32>
    %cst_3 = arith.constant 3.200000e+01 : f32
    %10 = vector.broadcast %cst_3 : f32 to vector<16x1xf32>
    %11 = arith.divf %9, %10 : vector<16x1xf32>
    %cst_4 = arith.constant 9.99999974E-6 : f32
    %12 = vector.broadcast %cst_4 : f32 to vector<16x1xf32>
    %13 = arith.addf %11, %12 : vector<16x1xf32>
    %14 = math.rsqrt %13 : vector<16x1xf32>
    %15 = vector.broadcast %14 : vector<16x1xf32> to vector<16x32xf32>
    %16 = arith.mulf %6, %15 : vector<16x32xf32>
    %c0_5 = arith.constant 0 : index
    %c0_6 = arith.constant 0 : index
    %17 = vector.load %arg2[%c0_5, %c0_6] : memref<1x32xf32, #tpu.memory_space<vmem>>, vector<1x32xf32>
    %18 = vector.broadcast %17 : vector<1x32xf32> to vector<16x32xf32>
    %19 = arith.mulf %16, %18 : vector<16x32xf32>
    %c0_7 = arith.constant 0 : index
    %c0_8 = arith.constant 0 : index
    %20 = vector.load %arg3[%c0_7, %c0_8] : memref<1x32xf32, #tpu.memory_space<vmem>>, vector<1x32xf32>
    %21 = vector.broadcast %20 : vector<1x32xf32> to vector<16x32xf32>
    %22 = arith.addf %19, %21 : vector<16x32xf32>
    %23 = arith.truncf %22 : vector<16x32xf32> to vector<16x32xbf16>
    %c0_9 = arith.constant 0 : index
    %c0_10 = arith.constant 0 : index
    %24 = vector.load %arg4[%c0_9, %c0_10] : memref<32x96xbf16, #tpu.memory_space<vmem>>, vector<32x96xbf16>
    %cst_11 = arith.constant dense<0.000000e+00> : vector<16x96xf32>
    %25 = tpu.matmul %23, %24, %cst_11 {dimension_numbers = #tpu.dot_dimension_numbers<[1], [0], [0], [1], [0, 0, 1, 1], [], []>} : vector<16x32xbf16>, vector<32x96xbf16>, vector<16x96xf32> -> vector<16x96xf32>
    %c0_12 = arith.constant 0 : index
    %c0_13 = arith.constant 0 : index
    %26 = vector.load %arg5[%c0_12, %c0_13] : memref<1x96xf32, #tpu.memory_space<vmem>>, vector<1x96xf32>
    %27 = vector.broadcast %26 : vector<1x96xf32> to vector<16x96xf32>
    %28 = arith.addf %25, %27 : vector<16x96xf32>
    %29 = arith.truncf %28 : vector<16x96xf32> to vector<16x96xbf16>
    %c0_14 = arith.constant 0 : index
    %c0_15 = arith.constant 0 : index
    %30 = vector.load %arg6[%c0_14, %c0_15] : memref<16x96xbf16, #tpu.memory_space<vmem>>, vector<16x96xbf16>
    tpu.vector_store %arg6[%c0_14, %c0_15], %29 {strides = array<i32>} : memref<16x96xbf16, #tpu.memory_space<vmem>>, vector<16x96xbf16>,
    return
  }
  func.func @transform_0(%arg0: i32) -> (i32, i32) {
    %c0_i32 = arith.constant 0 : i32
    %c0_i32_0 = arith.constant 0 : i32
    return %arg0, %c0_i32 : i32, i32
  }
  func.func @transform_1(%arg0: i32) -> (i32, i32) {
    %c0_i32 = arith.constant 0 : i32
    %c0_i32_0 = arith.constant 0 : i32
    %c0_i32_1 = arith.constant 0 : i32
    return %c0_i32, %c0_i32_0 : i32, i32
  }
  func.func @transform_2(%arg0: i32) -> (i32, i32) {
    %c0_i32 = arith.constant 0 : i32
    %c0_i32_0 = arith.constant 0 : i32
    %c0_i32_1 = arith.constant 0 : i32
    return %c0_i32, %c0_i32_0 : i32, i32
  }
  func.func @transform_3(%arg0: i32) -> (i32, i32) {
    %c0_i32 = arith.constant 0 : i32
    %c0_i32_0 = arith.constant 0 : i32
    %c0_i32_1 = arith.constant 0 : i32
    return %c0_i32, %c0_i32_0 : i32, i32
  }
  func.func @transform_4(%arg0: i32) -> (i32, i32) {
    %c0_i32 = arith.constant 0 : i32
    %c0_i32_0 = arith.constant 0 : i32
    %c0_i32_1 = arith.constant 0 : i32
    return %c0_i32, %c0_i32_0 : i32, i32
  }
  func.func @transform_5(%arg0: i32) -> (i32, i32) {
    %c0_i32 = arith.constant 0 : i32
    %c0_i32_0 = arith.constant 0 : i32
    return %arg0, %c0_i32 : i32, i32
  }
}

module attributes {stable_mosaic.version = 11 : i64} {
  func.func @_window_attn_kernel(%arg0: i32, %arg1: memref<4x4x96xbf16, #tpu.memory_space<vmem>>, %arg2: memref<4x4x32xbf16, #tpu.memory_space<vmem>>) attributes {dimension_semantics = [#tpu.dimension_semantics<parallel>], iteration_bounds = array<i64: 2>, scalar_prefetch = 0 : i64, scratch_operands = 0 : i64, tpu.core_type = #tpu.core_type<tc>, window_params = [{transform_indices = @transform_0, window_bounds = array<i64: 4, 4, 96>}, {transform_indices = @transform_1, window_bounds = array<i64: 4, 4, 32>}]} {
    %c0 = arith.constant 0 : index
    %c0_0 = arith.constant 0 : index
    %c0_1 = arith.constant 0 : index
    %0 = vector.load %arg1[%c0, %c0_0, %c0_1] : memref<4x4x96xbf16, #tpu.memory_space<vmem>>, vector<4x4x96xbf16>
    %1 = vector.extract_strided_slice %0 {offsets = [0, 0, 0], sizes = [4, 4, 8], strides = [1, 1, 1]} : vector<4x4x96xbf16> to vector<4x4x8xbf16>
    %2 = arith.extf %1 : vector<4x4x8xbf16> to vector<4x4x8xf32>
    %3 = vector.extract_strided_slice %0 {offsets = [0, 0, 32], sizes = [4, 4, 8], strides = [1, 1, 1]} : vector<4x4x96xbf16> to vector<4x4x8xbf16>
    %4 = arith.extf %3 : vector<4x4x8xbf16> to vector<4x4x8xf32>
    %5 = vector.extract_strided_slice %0 {offsets = [0, 0, 64], sizes = [4, 4, 8], strides = [1, 1, 1]} : vector<4x4x96xbf16> to vector<4x4x8xbf16>
    %6 = arith.mulf %2, %2 : vector<4x4x8xf32>
    %cst = arith.constant dense<0.000000e+00> : vector<4x4xf32>
    %7 = vector.multi_reduction <add>, %6, %cst [2] : vector<4x4x8xf32> to vector<4x4xf32>
    %8 = vector.shape_cast %7 : vector<4x4xf32> to vector<4x4x1xf32>
    %cst_2 = arith.constant 1.000000e-24 : f32
    %9 = vector.broadcast %cst_2 : f32 to vector<4x4x1xf32>
    %10 = arith.maximumf %8, %9 : vector<4x4x1xf32>
    %11 = math.rsqrt %10 : vector<4x4x1xf32>
    %12 = vector.broadcast %11 : vector<4x4x1xf32> to vector<4x4x8xf32>
    %13 = arith.mulf %2, %12 : vector<4x4x8xf32>
    %14 = arith.mulf %4, %4 : vector<4x4x8xf32>
    %cst_3 = arith.constant dense<0.000000e+00> : vector<4x4xf32>
    %15 = vector.multi_reduction <add>, %14, %cst_3 [2] : vector<4x4x8xf32> to vector<4x4xf32>
    %16 = vector.shape_cast %15 : vector<4x4xf32> to vector<4x4x1xf32>
    %cst_4 = arith.constant 1.000000e-24 : f32
    %17 = vector.broadcast %cst_4 : f32 to vector<4x4x1xf32>
    %18 = arith.maximumf %16, %17 : vector<4x4x1xf32>
    %19 = math.rsqrt %18 : vector<4x4x1xf32>
    %20 = vector.broadcast %19 : vector<4x4x1xf32> to vector<4x4x8xf32>
    %21 = arith.mulf %4, %20 : vector<4x4x8xf32>
    %22 = arith.truncf %13 : vector<4x4x8xf32> to vector<4x4x8xbf16>
    %23 = arith.truncf %21 : vector<4x4x8xf32> to vector<4x4x8xbf16>
    "tpu.trace_start"() <{level = 10 : i32, message = "gqd,gkd->gqk"}> : () -> ()
    %cst_5 = arith.constant dense<0.000000e+00> : vector<4x4x4xf32>
    %24 = tpu.matmul %22, %23, %cst_5 {dimension_numbers = #tpu.dot_dimension_numbers<[2], [2], [1], [1], [0, 0, 0, 1, 1, 1], [0], [0]>} : vector<4x4x8xbf16>, vector<4x4x8xbf16>, vector<4x4x4xf32> -> vector<4x4x4xf32>
    "tpu.trace_stop"() : () -> ()
    %cst_6 = arith.constant 0.353553385 : f32
    %25 = vector.broadcast %cst_6 : f32 to vector<4x4x4xf32>
    %26 = arith.mulf %24, %25 : vector<4x4x4xf32>
    %cst_7 = arith.constant dense<0xFF800000> : vector<4x4xf32>
    %27 = vector.multi_reduction <maximumf>, %26, %cst_7 [2] : vector<4x4x4xf32> to vector<4x4xf32>
    %28 = vector.shape_cast %27 : vector<4x4xf32> to vector<4x4x1xf32>
    %29 = vector.broadcast %28 : vector<4x4x1xf32> to vector<4x4x4xf32>
    %30 = arith.subf %26, %29 : vector<4x4x4xf32>
    %31 = math.exp %30 : vector<4x4x4xf32>
    %cst_8 = arith.constant dense<0.000000e+00> : vector<4x4xf32>
    %32 = vector.multi_reduction <add>, %31, %cst_8 [2] : vector<4x4x4xf32> to vector<4x4xf32>
    %33 = vector.shape_cast %32 : vector<4x4xf32> to vector<4x4x1xf32>
    %34 = tpu.reciprocal %33 {approx = true} : vector<4x4x1xf32> -> vector<4x4x1xf32>
    %35 = vector.broadcast %34 : vector<4x4x1xf32> to vector<4x4x4xf32>
    %36 = arith.mulf %31, %35 : vector<4x4x4xf32>
    %cst_9 = arith.constant 9.99999997E-7 : f32
    %cst_10 = arith.constant 1.000000e+00 : f32
    %37 = vector.broadcast %cst_9 : f32 to vector<4x4x4xf32>
    %38 = arith.maximumf %37, %36 : vector<4x4x4xf32>
    %39 = vector.broadcast %cst_10 : f32 to vector<4x4x4xf32>
    %40 = arith.minimumf %39, %38 : vector<4x4x4xf32>
    %41 = arith.truncf %40 : vector<4x4x4xf32> to vector<4x4x4xbf16>
    "tpu.trace_start"() <{level = 10 : i32, message = "gqk,gkd->gqd"}> : () -> ()
    %cst_11 = arith.constant dense<0.000000e+00> : vector<4x4x8xf32>
    %42 = tpu.matmul %41, %5, %cst_11 {dimension_numbers = #tpu.dot_dimension_numbers<[2], [1], [1], [2], [0, 0, 0, 1, 1, 2], [0], [0]>} : vector<4x4x4xbf16>, vector<4x4x8xbf16>, vector<4x4x8xf32> -> vector<4x4x8xf32>
    "tpu.trace_stop"() : () -> ()
    %43 = vector.extract_strided_slice %0 {offsets = [0, 0, 8], sizes = [4, 4, 8], strides = [1, 1, 1]} : vector<4x4x96xbf16> to vector<4x4x8xbf16>
    %44 = arith.extf %43 : vector<4x4x8xbf16> to vector<4x4x8xf32>
    %45 = vector.extract_strided_slice %0 {offsets = [0, 0, 40], sizes = [4, 4, 8], strides = [1, 1, 1]} : vector<4x4x96xbf16> to vector<4x4x8xbf16>
    %46 = arith.extf %45 : vector<4x4x8xbf16> to vector<4x4x8xf32>
    %47 = vector.extract_strided_slice %0 {offsets = [0, 0, 72], sizes = [4, 4, 8], strides = [1, 1, 1]} : vector<4x4x96xbf16> to vector<4x4x8xbf16>
    %48 = arith.mulf %44, %44 : vector<4x4x8xf32>
    %cst_12 = arith.constant dense<0.000000e+00> : vector<4x4xf32>
    %49 = vector.multi_reduction <add>, %48, %cst_12 [2] : vector<4x4x8xf32> to vector<4x4xf32>
    %50 = vector.shape_cast %49 : vector<4x4xf32> to vector<4x4x1xf32>
    %cst_13 = arith.constant 1.000000e-24 : f32
    %51 = vector.broadcast %cst_13 : f32 to vector<4x4x1xf32>
    %52 = arith.maximumf %50, %51 : vector<4x4x1xf32>
    %53 = math.rsqrt %52 : vector<4x4x1xf32>
    %54 = vector.broadcast %53 : vector<4x4x1xf32> to vector<4x4x8xf32>
    %55 = arith.mulf %44, %54 : vector<4x4x8xf32>
    %56 = arith.mulf %46, %46 : vector<4x4x8xf32>
    %cst_14 = arith.constant dense<0.000000e+00> : vector<4x4xf32>
    %57 = vector.multi_reduction <add>, %56, %cst_14 [2] : vector<4x4x8xf32> to vector<4x4xf32>
    %58 = vector.shape_cast %57 : vector<4x4xf32> to vector<4x4x1xf32>
    %cst_15 = arith.constant 1.000000e-24 : f32
    %59 = vector.broadcast %cst_15 : f32 to vector<4x4x1xf32>
    %60 = arith.maximumf %58, %59 : vector<4x4x1xf32>
    %61 = math.rsqrt %60 : vector<4x4x1xf32>
    %62 = vector.broadcast %61 : vector<4x4x1xf32> to vector<4x4x8xf32>
    %63 = arith.mulf %46, %62 : vector<4x4x8xf32>
    %64 = arith.truncf %55 : vector<4x4x8xf32> to vector<4x4x8xbf16>
    %65 = arith.truncf %63 : vector<4x4x8xf32> to vector<4x4x8xbf16>
    "tpu.trace_start"() <{level = 10 : i32, message = "gqd,gkd->gqk"}> : () -> ()
    %cst_16 = arith.constant dense<0.000000e+00> : vector<4x4x4xf32>
    %66 = tpu.matmul %64, %65, %cst_16 {dimension_numbers = #tpu.dot_dimension_numbers<[2], [2], [1], [1], [0, 0, 0, 1, 1, 1], [0], [0]>} : vector<4x4x8xbf16>, vector<4x4x8xbf16>, vector<4x4x4xf32> -> vector<4x4x4xf32>
    "tpu.trace_stop"() : () -> ()
    %cst_17 = arith.constant 0.353553385 : f32
    %67 = vector.broadcast %cst_17 : f32 to vector<4x4x4xf32>
    %68 = arith.mulf %66, %67 : vector<4x4x4xf32>
    %cst_18 = arith.constant dense<0xFF800000> : vector<4x4xf32>
    %69 = vector.multi_reduction <maximumf>, %68, %cst_18 [2] : vector<4x4x4xf32> to vector<4x4xf32>
    %70 = vector.shape_cast %69 : vector<4x4xf32> to vector<4x4x1xf32>
    %71 = vector.broadcast %70 : vector<4x4x1xf32> to vector<4x4x4xf32>
    %72 = arith.subf %68, %71 : vector<4x4x4xf32>
    %73 = math.exp %72 : vector<4x4x4xf32>
    %cst_19 = arith.constant dense<0.000000e+00> : vector<4x4xf32>
    %74 = vector.multi_reduction <add>, %73, %cst_19 [2] : vector<4x4x4xf32> to vector<4x4xf32>
    %75 = vector.shape_cast %74 : vector<4x4xf32> to vector<4x4x1xf32>
    %76 = tpu.reciprocal %75 {approx = true} : vector<4x4x1xf32> -> vector<4x4x1xf32>
    %77 = vector.broadcast %76 : vector<4x4x1xf32> to vector<4x4x4xf32>
    %78 = arith.mulf %73, %77 : vector<4x4x4xf32>
    %cst_20 = arith.constant 9.99999997E-7 : f32
    %cst_21 = arith.constant 1.000000e+00 : f32
    %79 = vector.broadcast %cst_20 : f32 to vector<4x4x4xf32>
    %80 = arith.maximumf %79, %78 : vector<4x4x4xf32>
    %81 = vector.broadcast %cst_21 : f32 to vector<4x4x4xf32>
    %82 = arith.minimumf %81, %80 : vector<4x4x4xf32>
    %83 = arith.truncf %82 : vector<4x4x4xf32> to vector<4x4x4xbf16>
    "tpu.trace_start"() <{level = 10 : i32, message = "gqk,gkd->gqd"}> : () -> ()
    %cst_22 = arith.constant dense<0.000000e+00> : vector<4x4x8xf32>
    %84 = tpu.matmul %83, %47, %cst_22 {dimension_numbers = #tpu.dot_dimension_numbers<[2], [1], [1], [2], [0, 0, 0, 1, 1, 2], [0], [0]>} : vector<4x4x4xbf16>, vector<4x4x8xbf16>, vector<4x4x8xf32> -> vector<4x4x8xf32>
    "tpu.trace_stop"() : () -> ()
    %85 = vector.extract_strided_slice %0 {offsets = [0, 0, 16], sizes = [4, 4, 8], strides = [1, 1, 1]} : vector<4x4x96xbf16> to vector<4x4x8xbf16>
    %86 = arith.extf %85 : vector<4x4x8xbf16> to vector<4x4x8xf32>
    %87 = vector.extract_strided_slice %0 {offsets = [0, 0, 48], sizes = [4, 4, 8], strides = [1, 1, 1]} : vector<4x4x96xbf16> to vector<4x4x8xbf16>
    %88 = arith.extf %87 : vector<4x4x8xbf16> to vector<4x4x8xf32>
    %89 = vector.extract_strided_slice %0 {offsets = [0, 0, 80], sizes = [4, 4, 8], strides = [1, 1, 1]} : vector<4x4x96xbf16> to vector<4x4x8xbf16>
    %90 = arith.mulf %86, %86 : vector<4x4x8xf32>
    %cst_23 = arith.constant dense<0.000000e+00> : vector<4x4xf32>
    %91 = vector.multi_reduction <add>, %90, %cst_23 [2] : vector<4x4x8xf32> to vector<4x4xf32>
    %92 = vector.shape_cast %91 : vector<4x4xf32> to vector<4x4x1xf32>
    %cst_24 = arith.constant 1.000000e-24 : f32
    %93 = vector.broadcast %cst_24 : f32 to vector<4x4x1xf32>
    %94 = arith.maximumf %92, %93 : vector<4x4x1xf32>
    %95 = math.rsqrt %94 : vector<4x4x1xf32>
    %96 = vector.broadcast %95 : vector<4x4x1xf32> to vector<4x4x8xf32>
    %97 = arith.mulf %86, %96 : vector<4x4x8xf32>
    %98 = arith.mulf %88, %88 : vector<4x4x8xf32>
    %cst_25 = arith.constant dense<0.000000e+00> : vector<4x4xf32>
    %99 = vector.multi_reduction <add>, %98, %cst_25 [2] : vector<4x4x8xf32> to vector<4x4xf32>
    %100 = vector.shape_cast %99 : vector<4x4xf32> to vector<4x4x1xf32>
    %cst_26 = arith.constant 1.000000e-24 : f32
    %101 = vector.broadcast %cst_26 : f32 to vector<4x4x1xf32>
    %102 = arith.maximumf %100, %101 : vector<4x4x1xf32>
    %103 = math.rsqrt %102 : vector<4x4x1xf32>
    %104 = vector.broadcast %103 : vector<4x4x1xf32> to vector<4x4x8xf32>
    %105 = arith.mulf %88, %104 : vector<4x4x8xf32>
    %106 = arith.truncf %97 : vector<4x4x8xf32> to vector<4x4x8xbf16>
    %107 = arith.truncf %105 : vector<4x4x8xf32> to vector<4x4x8xbf16>
    "tpu.trace_start"() <{level = 10 : i32, message = "gqd,gkd->gqk"}> : () -> ()
    %cst_27 = arith.constant dense<0.000000e+00> : vector<4x4x4xf32>
    %108 = tpu.matmul %106, %107, %cst_27 {dimension_numbers = #tpu.dot_dimension_numbers<[2], [2], [1], [1], [0, 0, 0, 1, 1, 1], [0], [0]>} : vector<4x4x8xbf16>, vector<4x4x8xbf16>, vector<4x4x4xf32> -> vector<4x4x4xf32>
    "tpu.trace_stop"() : () -> ()
    %cst_28 = arith.constant 0.353553385 : f32
    %109 = vector.broadcast %cst_28 : f32 to vector<4x4x4xf32>
    %110 = arith.mulf %108, %109 : vector<4x4x4xf32>
    %cst_29 = arith.constant dense<0xFF800000> : vector<4x4xf32>
    %111 = vector.multi_reduction <maximumf>, %110, %cst_29 [2] : vector<4x4x4xf32> to vector<4x4xf32>
    %112 = vector.shape_cast %111 : vector<4x4xf32> to vector<4x4x1xf32>
    %113 = vector.broadcast %112 : vector<4x4x1xf32> to vector<4x4x4xf32>
    %114 = arith.subf %110, %113 : vector<4x4x4xf32>
    %115 = math.exp %114 : vector<4x4x4xf32>
    %cst_30 = arith.constant dense<0.000000e+00> : vector<4x4xf32>
    %116 = vector.multi_reduction <add>, %115, %cst_30 [2] : vector<4x4x4xf32> to vector<4x4xf32>
    %117 = vector.shape_cast %116 : vector<4x4xf32> to vector<4x4x1xf32>
    %118 = tpu.reciprocal %117 {approx = true} : vector<4x4x1xf32> -> vector<4x4x1xf32>
    %119 = vector.broadcast %118 : vector<4x4x1xf32> to vector<4x4x4xf32>
    %120 = arith.mulf %115, %119 : vector<4x4x4xf32>
    %cst_31 = arith.constant 9.99999997E-7 : f32
    %cst_32 = arith.constant 1.000000e+00 : f32
    %121 = vector.broadcast %cst_31 : f32 to vector<4x4x4xf32>
    %122 = arith.maximumf %121, %120 : vector<4x4x4xf32>
    %123 = vector.broadcast %cst_32 : f32 to vector<4x4x4xf32>
    %124 = arith.minimumf %123, %122 : vector<4x4x4xf32>
    %125 = arith.truncf %124 : vector<4x4x4xf32> to vector<4x4x4xbf16>
    "tpu.trace_start"() <{level = 10 : i32, message = "gqk,gkd->gqd"}> : () -> ()
    %cst_33 = arith.constant dense<0.000000e+00> : vector<4x4x8xf32>
    %126 = tpu.matmul %125, %89, %cst_33 {dimension_numbers = #tpu.dot_dimension_numbers<[2], [1], [1], [2], [0, 0, 0, 1, 1, 2], [0], [0]>} : vector<4x4x4xbf16>, vector<4x4x8xbf16>, vector<4x4x8xf32> -> vector<4x4x8xf32>
    "tpu.trace_stop"() : () -> ()
    %127 = vector.extract_strided_slice %0 {offsets = [0, 0, 24], sizes = [4, 4, 8], strides = [1, 1, 1]} : vector<4x4x96xbf16> to vector<4x4x8xbf16>
    %128 = arith.extf %127 : vector<4x4x8xbf16> to vector<4x4x8xf32>
    %129 = vector.extract_strided_slice %0 {offsets = [0, 0, 56], sizes = [4, 4, 8], strides = [1, 1, 1]} : vector<4x4x96xbf16> to vector<4x4x8xbf16>
    %130 = arith.extf %129 : vector<4x4x8xbf16> to vector<4x4x8xf32>
    %131 = vector.extract_strided_slice %0 {offsets = [0, 0, 88], sizes = [4, 4, 8], strides = [1, 1, 1]} : vector<4x4x96xbf16> to vector<4x4x8xbf16>
    %132 = arith.mulf %128, %128 : vector<4x4x8xf32>
    %cst_34 = arith.constant dense<0.000000e+00> : vector<4x4xf32>
    %133 = vector.multi_reduction <add>, %132, %cst_34 [2] : vector<4x4x8xf32> to vector<4x4xf32>
    %134 = vector.shape_cast %133 : vector<4x4xf32> to vector<4x4x1xf32>
    %cst_35 = arith.constant 1.000000e-24 : f32
    %135 = vector.broadcast %cst_35 : f32 to vector<4x4x1xf32>
    %136 = arith.maximumf %134, %135 : vector<4x4x1xf32>
    %137 = math.rsqrt %136 : vector<4x4x1xf32>
    %138 = vector.broadcast %137 : vector<4x4x1xf32> to vector<4x4x8xf32>
    %139 = arith.mulf %128, %138 : vector<4x4x8xf32>
    %140 = arith.mulf %130, %130 : vector<4x4x8xf32>
    %cst_36 = arith.constant dense<0.000000e+00> : vector<4x4xf32>
    %141 = vector.multi_reduction <add>, %140, %cst_36 [2] : vector<4x4x8xf32> to vector<4x4xf32>
    %142 = vector.shape_cast %141 : vector<4x4xf32> to vector<4x4x1xf32>
    %cst_37 = arith.constant 1.000000e-24 : f32
    %143 = vector.broadcast %cst_37 : f32 to vector<4x4x1xf32>
    %144 = arith.maximumf %142, %143 : vector<4x4x1xf32>
    %145 = math.rsqrt %144 : vector<4x4x1xf32>
    %146 = vector.broadcast %145 : vector<4x4x1xf32> to vector<4x4x8xf32>
    %147 = arith.mulf %130, %146 : vector<4x4x8xf32>
    %148 = arith.truncf %139 : vector<4x4x8xf32> to vector<4x4x8xbf16>
    %149 = arith.truncf %147 : vector<4x4x8xf32> to vector<4x4x8xbf16>
    "tpu.trace_start"() <{level = 10 : i32, message = "gqd,gkd->gqk"}> : () -> ()
    %cst_38 = arith.constant dense<0.000000e+00> : vector<4x4x4xf32>
    %150 = tpu.matmul %148, %149, %cst_38 {dimension_numbers = #tpu.dot_dimension_numbers<[2], [2], [1], [1], [0, 0, 0, 1, 1, 1], [0], [0]>} : vector<4x4x8xbf16>, vector<4x4x8xbf16>, vector<4x4x4xf32> -> vector<4x4x4xf32>
    "tpu.trace_stop"() : () -> ()
    %cst_39 = arith.constant 0.353553385 : f32
    %151 = vector.broadcast %cst_39 : f32 to vector<4x4x4xf32>
    %152 = arith.mulf %150, %151 : vector<4x4x4xf32>
    %cst_40 = arith.constant dense<0xFF800000> : vector<4x4xf32>
    %153 = vector.multi_reduction <maximumf>, %152, %cst_40 [2] : vector<4x4x4xf32> to vector<4x4xf32>
    %154 = vector.shape_cast %153 : vector<4x4xf32> to vector<4x4x1xf32>
    %155 = vector.broadcast %154 : vector<4x4x1xf32> to vector<4x4x4xf32>
    %156 = arith.subf %152, %155 : vector<4x4x4xf32>
    %157 = math.exp %156 : vector<4x4x4xf32>
    %cst_41 = arith.constant dense<0.000000e+00> : vector<4x4xf32>
    %158 = vector.multi_reduction <add>, %157, %cst_41 [2] : vector<4x4x4xf32> to vector<4x4xf32>
    %159 = vector.shape_cast %158 : vector<4x4xf32> to vector<4x4x1xf32>
    %160 = tpu.reciprocal %159 {approx = true} : vector<4x4x1xf32> -> vector<4x4x1xf32>
    %161 = vector.broadcast %160 : vector<4x4x1xf32> to vector<4x4x4xf32>
    %162 = arith.mulf %157, %161 : vector<4x4x4xf32>
    %cst_42 = arith.constant 9.99999997E-7 : f32
    %cst_43 = arith.constant 1.000000e+00 : f32
    %163 = vector.broadcast %cst_42 : f32 to vector<4x4x4xf32>
    %164 = arith.maximumf %163, %162 : vector<4x4x4xf32>
    %165 = vector.broadcast %cst_43 : f32 to vector<4x4x4xf32>
    %166 = arith.minimumf %165, %164 : vector<4x4x4xf32>
    %167 = arith.truncf %166 : vector<4x4x4xf32> to vector<4x4x4xbf16>
    "tpu.trace_start"() <{level = 10 : i32, message = "gqk,gkd->gqd"}> : () -> ()
    %cst_44 = arith.constant dense<0.000000e+00> : vector<4x4x8xf32>
    %168 = tpu.matmul %167, %131, %cst_44 {dimension_numbers = #tpu.dot_dimension_numbers<[2], [1], [1], [2], [0, 0, 0, 1, 1, 2], [0], [0]>} : vector<4x4x4xbf16>, vector<4x4x8xbf16>, vector<4x4x8xf32> -> vector<4x4x8xf32>
    "tpu.trace_stop"() : () -> ()
    %169 = tpu.concatenate %42, %84, %126, %168 in 2 : vector<4x4x8xf32>, vector<4x4x8xf32>, vector<4x4x8xf32>, vector<4x4x8xf32> -> vector<4x4x32xf32>
    %170 = arith.truncf %169 : vector<4x4x32xf32> to vector<4x4x32xbf16>
    %c0_45 = arith.constant 0 : index
    %c0_46 = arith.constant 0 : index
    %c0_47 = arith.constant 0 : index
    %171 = vector.load %arg2[%c0_45, %c0_46, %c0_47] : memref<4x4x32xbf16, #tpu.memory_space<vmem>>, vector<4x4x32xbf16>
    tpu.vector_store %arg2[%c0_45, %c0_46, %c0_47], %170 {strides = array<i32>} : memref<4x4x32xbf16, #tpu.memory_space<vmem>>, vector<4x4x32xbf16>,
    return
  }
  func.func @transform_0(%arg0: i32) -> (i32, i32, i32) {
    %c0_i32 = arith.constant 0 : i32
    %c0_i32_0 = arith.constant 0 : i32
    %c0_i32_1 = arith.constant 0 : i32
    return %arg0, %c0_i32, %c0_i32_0 : i32, i32, i32
  }
  func.func @transform_1(%arg0: i32) -> (i32, i32, i32) {
    %c0_i32 = arith.constant 0 : i32
    %c0_i32_0 = arith.constant 0 : i32
    %c0_i32_1 = arith.constant 0 : i32
    return %arg0, %c0_i32, %c0_i32_0 : i32, i32, i32
  }
}

module attributes {stable_mosaic.version = 11 : i64} {
  func.func @_block_tail_kernel(%arg0: i32, %arg1: memref<16x32xf32, #tpu.memory_space<vmem>>, %arg2: memref<16x32xbf16, #tpu.memory_space<vmem>>, %arg3: memref<32x32xbf16, #tpu.memory_space<vmem>>, %arg4: memref<1x32xf32, #tpu.memory_space<vmem>>, %arg5: memref<1x32xf32, #tpu.memory_space<vmem>>, %arg6: memref<1x32xf32, #tpu.memory_space<vmem>>, %arg7: memref<32x128xbf16, #tpu.memory_space<vmem>>, %arg8: memref<1x128xf32, #tpu.memory_space<vmem>>, %arg9: memref<128x32xbf16, #tpu.memory_space<vmem>>, %arg10: memref<1x32xf32, #tpu.memory_space<vmem>>, %arg11: memref<16x32xf32, #tpu.memory_space<vmem>>) attributes {dimension_semantics = [#tpu.dimension_semantics<parallel>], iteration_bounds = array<i64: 2>, scalar_prefetch = 0 : i64, scratch_operands = 0 : i64, tpu.core_type = #tpu.core_type<tc>, window_params = [{transform_indices = @transform_0, window_bounds = array<i64: 16, 32>}, {transform_indices = @transform_1, window_bounds = array<i64: 16, 32>}, {pipeline_mode = #tpu.pipeline_mode<synchronous>, transform_indices = @transform_2, window_bounds = array<i64: 32, 32>}, {pipeline_mode = #tpu.pipeline_mode<synchronous>, transform_indices = @transform_3, window_bounds = array<i64: 1, 32>}, {pipeline_mode = #tpu.pipeline_mode<synchronous>, transform_indices = @transform_4, window_bounds = array<i64: 1, 32>}, {pipeline_mode = #tpu.pipeline_mode<synchronous>, transform_indices = @transform_5, window_bounds = array<i64: 1, 32>}, {pipeline_mode = #tpu.pipeline_mode<synchronous>, transform_indices = @transform_6, window_bounds = array<i64: 32, 128>}, {pipeline_mode = #tpu.pipeline_mode<synchronous>, transform_indices = @transform_7, window_bounds = array<i64: 1, 128>}, {pipeline_mode = #tpu.pipeline_mode<synchronous>, transform_indices = @transform_8, window_bounds = array<i64: 128, 32>}, {pipeline_mode = #tpu.pipeline_mode<synchronous>, transform_indices = @transform_9, window_bounds = array<i64: 1, 32>}, {transform_indices = @transform_10, window_bounds = array<i64: 16, 32>}]} {
    %c0 = arith.constant 0 : index
    %c0_0 = arith.constant 0 : index
    %0 = vector.load %arg1[%c0, %c0_0] : memref<16x32xf32, #tpu.memory_space<vmem>>, vector<16x32xf32>
    %c0_1 = arith.constant 0 : index
    %c0_2 = arith.constant 0 : index
    %1 = vector.load %arg2[%c0_1, %c0_2] : memref<16x32xbf16, #tpu.memory_space<vmem>>, vector<16x32xbf16>
    %c0_3 = arith.constant 0 : index
    %c0_4 = arith.constant 0 : index
    %2 = vector.load %arg3[%c0_3, %c0_4] : memref<32x32xbf16, #tpu.memory_space<vmem>>, vector<32x32xbf16>
    %cst = arith.constant dense<0.000000e+00> : vector<16x32xf32>
    %3 = tpu.matmul %1, %2, %cst {dimension_numbers = #tpu.dot_dimension_numbers<[1], [0], [0], [1], [0, 0, 1, 1], [], []>} : vector<16x32xbf16>, vector<32x32xbf16>, vector<16x32xf32> -> vector<16x32xf32>
    %c0_5 = arith.constant 0 : index
    %c0_6 = arith.constant 0 : index
    %4 = vector.load %arg4[%c0_5, %c0_6] : memref<1x32xf32, #tpu.memory_space<vmem>>, vector<1x32xf32>
    %5 = vector.broadcast %4 : vector<1x32xf32> to vector<16x32xf32>
    %6 = arith.addf %3, %5 : vector<16x32xf32>
    %7 = arith.addf %0, %6 : vector<16x32xf32>
    %cst_7 = arith.constant dense<0.000000e+00> : vector<16xf32>
    %8 = vector.multi_reduction <add>, %7, %cst_7 [1] : vector<16x32xf32> to vector<16xf32>
    %9 = vector.shape_cast %8 : vector<16xf32> to vector<16x1xf32>
    %cst_8 = arith.constant 3.200000e+01 : f32
    %10 = vector.broadcast %cst_8 : f32 to vector<16x1xf32>
    %11 = arith.divf %9, %10 : vector<16x1xf32>
    %12 = vector.broadcast %11 : vector<16x1xf32> to vector<16x32xf32>
    %13 = arith.subf %7, %12 : vector<16x32xf32>
    %14 = arith.mulf %13, %13 : vector<16x32xf32>
    %cst_9 = arith.constant dense<0.000000e+00> : vector<16xf32>
    %15 = vector.multi_reduction <add>, %14, %cst_9 [1] : vector<16x32xf32> to vector<16xf32>
    %16 = vector.shape_cast %15 : vector<16xf32> to vector<16x1xf32>
    %cst_10 = arith.constant 3.200000e+01 : f32
    %17 = vector.broadcast %cst_10 : f32 to vector<16x1xf32>
    %18 = arith.divf %16, %17 : vector<16x1xf32>
    %cst_11 = arith.constant 9.99999974E-6 : f32
    %19 = vector.broadcast %cst_11 : f32 to vector<16x1xf32>
    %20 = arith.addf %18, %19 : vector<16x1xf32>
    %21 = math.rsqrt %20 : vector<16x1xf32>
    %22 = vector.broadcast %21 : vector<16x1xf32> to vector<16x32xf32>
    %23 = arith.mulf %13, %22 : vector<16x32xf32>
    %c0_12 = arith.constant 0 : index
    %c0_13 = arith.constant 0 : index
    %24 = vector.load %arg5[%c0_12, %c0_13] : memref<1x32xf32, #tpu.memory_space<vmem>>, vector<1x32xf32>
    %25 = vector.broadcast %24 : vector<1x32xf32> to vector<16x32xf32>
    %26 = arith.mulf %23, %25 : vector<16x32xf32>
    %c0_14 = arith.constant 0 : index
    %c0_15 = arith.constant 0 : index
    %27 = vector.load %arg6[%c0_14, %c0_15] : memref<1x32xf32, #tpu.memory_space<vmem>>, vector<1x32xf32>
    %28 = vector.broadcast %27 : vector<1x32xf32> to vector<16x32xf32>
    %29 = arith.addf %26, %28 : vector<16x32xf32>
    %30 = arith.truncf %29 : vector<16x32xf32> to vector<16x32xbf16>
    %c0_16 = arith.constant 0 : index
    %c0_17 = arith.constant 0 : index
    %31 = vector.load %arg7[%c0_16, %c0_17] : memref<32x128xbf16, #tpu.memory_space<vmem>>, vector<32x128xbf16>
    %cst_18 = arith.constant dense<0.000000e+00> : vector<16x128xf32>
    %32 = tpu.matmul %30, %31, %cst_18 {dimension_numbers = #tpu.dot_dimension_numbers<[1], [0], [0], [1], [0, 0, 1, 1], [], []>} : vector<16x32xbf16>, vector<32x128xbf16>, vector<16x128xf32> -> vector<16x128xf32>
    %c0_19 = arith.constant 0 : index
    %c0_20 = arith.constant 0 : index
    %33 = vector.load %arg8[%c0_19, %c0_20] : memref<1x128xf32, #tpu.memory_space<vmem>>, vector<1x128xf32>
    %34 = vector.broadcast %33 : vector<1x128xf32> to vector<16x128xf32>
    %35 = arith.addf %32, %34 : vector<16x128xf32>
    %cst_21 = arith.constant 5.000000e-01 : f32
    %36 = vector.broadcast %cst_21 : f32 to vector<16x128xf32>
    %37 = arith.mulf %36, %35 : vector<16x128xf32>
    %cst_22 = arith.constant 0.707106769 : f32
    %38 = vector.broadcast %cst_22 : f32 to vector<16x128xf32>
    %39 = arith.mulf %35, %38 : vector<16x128xf32>
    %cst_23 = arith.constant 0.000000e+00 : f32
    %40 = vector.broadcast %cst_23 : f32 to vector<16x128xf32>
    %41 = arith.cmpf oge, %39, %40 : vector<16x128xf32>
    %cst_24 = arith.constant 1.000000e+00 : f32
    %cst_25 = arith.constant -1.000000e+00 : f32
    %42 = vector.broadcast %cst_24 : f32 to vector<16x128xf32>
    %43 = vector.broadcast %cst_25 : f32 to vector<16x128xf32>
    %44 = arith.select %41, %42, %43 : vector<16x128xi1>, vector<16x128xf32>
    %45 = math.absf %39 : vector<16x128xf32>
    %cst_26 = arith.constant 0.327591091 : f32
    %46 = vector.broadcast %cst_26 : f32 to vector<16x128xf32>
    %47 = arith.mulf %46, %45 : vector<16x128xf32>
    %cst_27 = arith.constant 1.000000e+00 : f32
    %48 = vector.broadcast %cst_27 : f32 to vector<16x128xf32>
    %49 = arith.addf %48, %47 : vector<16x128xf32>
    %cst_28 = arith.constant 1.000000e+00 : f32
    %50 = vector.broadcast %cst_28 : f32 to vector<16x128xf32>
    %51 = arith.divf %50, %49 : vector<16x128xf32>
    %cst_29 = arith.constant 1.06140542 : f32
    %52 = vector.broadcast %cst_29 : f32 to vector<16x128xf32>
    %53 = arith.mulf %51, %52 : vector<16x128xf32>
    %cst_30 = arith.constant -1.45315206 : f32
    %54 = vector.broadcast %cst_30 : f32 to vector<16x128xf32>
    %55 = arith.addf %54, %53 : vector<16x128xf32>
    %56 = arith.mulf %51, %55 : vector<16x128xf32>
    %cst_31 = arith.constant 1.42141378 : f32
    %57 = vector.broadcast %cst_31 : f32 to vector<16x128xf32>
    %58 = arith.addf %57, %56 : vector<16x128xf32>
    %59 = arith.mulf %51, %58 : vector<16x128xf32>
    %cst_32 = arith.constant -0.284496725 : f32
    %60 = vector.broadcast %cst_32 : f32 to vector<16x128xf32>
    %61 = arith.addf %60, %59 : vector<16x128xf32>
    %62 = arith.mulf %51, %61 : vector<16x128xf32>
    %cst_33 = arith.constant 0.254829586 : f32
    %63 = vector.broadcast %cst_33 : f32 to vector<16x128xf32>
    %64 = arith.addf %63, %62 : vector<16x128xf32>
    %65 = arith.mulf %51, %64 : vector<16x128xf32>
    %cst_34 = arith.constant 0.000000e+00 : f32
    %66 = vector.broadcast %cst_34 : f32 to vector<16x128xf32>
    %67 = arith.subf %66, %45 : vector<16x128xf32>
    %68 = arith.mulf %67, %45 : vector<16x128xf32>
    %69 = math.exp %68 : vector<16x128xf32>
    %70 = arith.mulf %65, %69 : vector<16x128xf32>
    %cst_35 = arith.constant 1.000000e+00 : f32
    %71 = vector.broadcast %cst_35 : f32 to vector<16x128xf32>
    %72 = arith.subf %71, %70 : vector<16x128xf32>
    %73 = arith.mulf %44, %72 : vector<16x128xf32>
    %cst_36 = arith.constant 1.000000e+00 : f32
    %74 = vector.broadcast %cst_36 : f32 to vector<16x128xf32>
    %75 = arith.addf %74, %73 : vector<16x128xf32>
    %76 = arith.mulf %37, %75 : vector<16x128xf32>
    %77 = arith.truncf %76 : vector<16x128xf32> to vector<16x128xbf16>
    %c0_37 = arith.constant 0 : index
    %c0_38 = arith.constant 0 : index
    %78 = vector.load %arg9[%c0_37, %c0_38] : memref<128x32xbf16, #tpu.memory_space<vmem>>, vector<128x32xbf16>
    %cst_39 = arith.constant dense<0.000000e+00> : vector<16x32xf32>
    %79 = tpu.matmul %77, %78, %cst_39 {dimension_numbers = #tpu.dot_dimension_numbers<[1], [0], [0], [1], [0, 0, 1, 1], [], []>} : vector<16x128xbf16>, vector<128x32xbf16>, vector<16x32xf32> -> vector<16x32xf32>
    %c0_40 = arith.constant 0 : index
    %c0_41 = arith.constant 0 : index
    %80 = vector.load %arg10[%c0_40, %c0_41] : memref<1x32xf32, #tpu.memory_space<vmem>>, vector<1x32xf32>
    %81 = vector.broadcast %80 : vector<1x32xf32> to vector<16x32xf32>
    %82 = arith.addf %79, %81 : vector<16x32xf32>
    %83 = arith.addf %7, %82 : vector<16x32xf32>
    %c0_42 = arith.constant 0 : index
    %c0_43 = arith.constant 0 : index
    %84 = vector.load %arg11[%c0_42, %c0_43] : memref<16x32xf32, #tpu.memory_space<vmem>>, vector<16x32xf32>
    tpu.vector_store %arg11[%c0_42, %c0_43], %83 {strides = array<i32>} : memref<16x32xf32, #tpu.memory_space<vmem>>, vector<16x32xf32>,
    return
  }
  func.func @transform_0(%arg0: i32) -> (i32, i32) {
    %c0_i32 = arith.constant 0 : i32
    %c0_i32_0 = arith.constant 0 : i32
    return %arg0, %c0_i32 : i32, i32
  }
  func.func @transform_1(%arg0: i32) -> (i32, i32) {
    %c0_i32 = arith.constant 0 : i32
    %c0_i32_0 = arith.constant 0 : i32
    return %arg0, %c0_i32 : i32, i32
  }
  func.func @transform_2(%arg0: i32) -> (i32, i32) {
    %c0_i32 = arith.constant 0 : i32
    %c0_i32_0 = arith.constant 0 : i32
    %c0_i32_1 = arith.constant 0 : i32
    return %c0_i32, %c0_i32_0 : i32, i32
  }
  func.func @transform_3(%arg0: i32) -> (i32, i32) {
    %c0_i32 = arith.constant 0 : i32
    %c0_i32_0 = arith.constant 0 : i32
    %c0_i32_1 = arith.constant 0 : i32
    return %c0_i32, %c0_i32_0 : i32, i32
  }
  func.func @transform_4(%arg0: i32) -> (i32, i32) {
    %c0_i32 = arith.constant 0 : i32
    %c0_i32_0 = arith.constant 0 : i32
    %c0_i32_1 = arith.constant 0 : i32
    return %c0_i32, %c0_i32_0 : i32, i32
  }
  func.func @transform_5(%arg0: i32) -> (i32, i32) {
    %c0_i32 = arith.constant 0 : i32
    %c0_i32_0 = arith.constant 0 : i32
    %c0_i32_1 = arith.constant 0 : i32
    return %c0_i32, %c0_i32_0 : i32, i32
  }
  func.func @transform_6(%arg0: i32) -> (i32, i32) {
    %c0_i32 = arith.constant 0 : i32
    %c0_i32_0 = arith.constant 0 : i32
    %c0_i32_1 = arith.constant 0 : i32
    return %c0_i32, %c0_i32_0 : i32, i32
  }
  func.func @transform_7(%arg0: i32) -> (i32, i32) {
    %c0_i32 = arith.constant 0 : i32
    %c0_i32_0 = arith.constant 0 : i32
    %c0_i32_1 = arith.constant 0 : i32
    return %c0_i32, %c0_i32_0 : i32, i32
  }
  func.func @transform_8(%arg0: i32) -> (i32, i32) {
    %c0_i32 = arith.constant 0 : i32
    %c0_i32_0 = arith.constant 0 : i32
    %c0_i32_1 = arith.constant 0 : i32
    return %c0_i32, %c0_i32_0 : i32, i32
  }
  func.func @transform_9(%arg0: i32) -> (i32, i32) {
    %c0_i32 = arith.constant 0 : i32
    %c0_i32_0 = arith.constant 0 : i32
    %c0_i32_1 = arith.constant 0 : i32
    return %c0_i32, %c0_i32_0 : i32, i32
  }
  func.func @transform_10(%arg0: i32) -> (i32, i32) {
    %c0_i32 = arith.constant 0 : i32
    %c0_i32_0 = arith.constant 0 : i32
    return %arg0, %c0_i32 : i32, i32
  }
}

module attributes {stable_mosaic.version = 11 : i64} {
  func.func @_layernorm_kernel(%arg0: i32, %arg1: memref<16x32xf32, #tpu.memory_space<vmem>>, %arg2: memref<1x32xf32, #tpu.memory_space<vmem>>, %arg3: memref<1x32xf32, #tpu.memory_space<vmem>>, %arg4: memref<16x32xf32, #tpu.memory_space<vmem>>) attributes {dimension_semantics = [#tpu.dimension_semantics<parallel>], iteration_bounds = array<i64: 2>, scalar_prefetch = 0 : i64, scratch_operands = 0 : i64, tpu.core_type = #tpu.core_type<tc>, window_params = [{transform_indices = @transform_0, window_bounds = array<i64: 16, 32>}, {pipeline_mode = #tpu.pipeline_mode<synchronous>, transform_indices = @transform_1, window_bounds = array<i64: 1, 32>}, {pipeline_mode = #tpu.pipeline_mode<synchronous>, transform_indices = @transform_2, window_bounds = array<i64: 1, 32>}, {transform_indices = @transform_3, window_bounds = array<i64: 16, 32>}]} {
    %c0 = arith.constant 0 : index
    %c0_0 = arith.constant 0 : index
    %0 = vector.load %arg1[%c0, %c0_0] : memref<16x32xf32, #tpu.memory_space<vmem>>, vector<16x32xf32>
    %cst = arith.constant dense<0.000000e+00> : vector<16xf32>
    %1 = vector.multi_reduction <add>, %0, %cst [1] : vector<16x32xf32> to vector<16xf32>
    %2 = vector.shape_cast %1 : vector<16xf32> to vector<16x1xf32>
    %cst_1 = arith.constant 3.200000e+01 : f32
    %3 = vector.broadcast %cst_1 : f32 to vector<16x1xf32>
    %4 = arith.divf %2, %3 : vector<16x1xf32>
    %5 = vector.broadcast %4 : vector<16x1xf32> to vector<16x32xf32>
    %6 = arith.subf %0, %5 : vector<16x32xf32>
    %7 = arith.mulf %6, %6 : vector<16x32xf32>
    %cst_2 = arith.constant dense<0.000000e+00> : vector<16xf32>
    %8 = vector.multi_reduction <add>, %7, %cst_2 [1] : vector<16x32xf32> to vector<16xf32>
    %9 = vector.shape_cast %8 : vector<16xf32> to vector<16x1xf32>
    %cst_3 = arith.constant 3.200000e+01 : f32
    %10 = vector.broadcast %cst_3 : f32 to vector<16x1xf32>
    %11 = arith.divf %9, %10 : vector<16x1xf32>
    %cst_4 = arith.constant 9.99999974E-6 : f32
    %12 = vector.broadcast %cst_4 : f32 to vector<16x1xf32>
    %13 = arith.addf %11, %12 : vector<16x1xf32>
    %14 = math.rsqrt %13 : vector<16x1xf32>
    %15 = vector.broadcast %14 : vector<16x1xf32> to vector<16x32xf32>
    %16 = arith.mulf %6, %15 : vector<16x32xf32>
    %c0_5 = arith.constant 0 : index
    %c0_6 = arith.constant 0 : index
    %17 = vector.load %arg2[%c0_5, %c0_6] : memref<1x32xf32, #tpu.memory_space<vmem>>, vector<1x32xf32>
    %18 = vector.broadcast %17 : vector<1x32xf32> to vector<16x32xf32>
    %19 = arith.mulf %16, %18 : vector<16x32xf32>
    %c0_7 = arith.constant 0 : index
    %c0_8 = arith.constant 0 : index
    %20 = vector.load %arg3[%c0_7, %c0_8] : memref<1x32xf32, #tpu.memory_space<vmem>>, vector<1x32xf32>
    %21 = vector.broadcast %20 : vector<1x32xf32> to vector<16x32xf32>
    %22 = arith.addf %19, %21 : vector<16x32xf32>
    %c0_9 = arith.constant 0 : index
    %c0_10 = arith.constant 0 : index
    %23 = vector.load %arg4[%c0_9, %c0_10] : memref<16x32xf32, #tpu.memory_space<vmem>>, vector<16x32xf32>
    tpu.vector_store %arg4[%c0_9, %c0_10], %22 {strides = array<i32>} : memref<16x32xf32, #tpu.memory_space<vmem>>, vector<16x32xf32>,
    return
  }
  func.func @transform_0(%arg0: i32) -> (i32, i32) {
    %c0_i32 = arith.constant 0 : i32
    %c0_i32_0 = arith.constant 0 : i32
    return %arg0, %c0_i32 : i32, i32
  }
  func.func @transform_1(%arg0: i32) -> (i32, i32) {
    %c0_i32 = arith.constant 0 : i32
    %c0_i32_0 = arith.constant 0 : i32
    %c0_i32_1 = arith.constant 0 : i32
    return %c0_i32, %c0_i32_0 : i32, i32
  }
  func.func @transform_2(%arg0: i32) -> (i32, i32) {
    %c0_i32 = arith.constant 0 : i32
    %c0_i32_0 = arith.constant 0 : i32
    %c0_i32_1 = arith.constant 0 : i32
    return %c0_i32, %c0_i32_0 : i32, i32
  }
  func.func @transform_3(%arg0: i32) -> (i32, i32) {
    %c0_i32 = arith.constant 0 : i32
    %c0_i32_0 = arith.constant 0 : i32
    return %arg0, %c0_i32 : i32, i32
  }
}

module attributes {stable_mosaic.version = 11 : i64} {
  func.func @_linear_kernel(%arg0: i32, %arg1: memref<8x128xf32, #tpu.memory_space<vmem>>, %arg2: memref<128x64xbf16, #tpu.memory_space<vmem>>, %arg3: memref<1x64xf32, #tpu.memory_space<vmem>>, %arg4: memref<8x64xf32, #tpu.memory_space<vmem>>) attributes {dimension_semantics = [#tpu.dimension_semantics<parallel>], iteration_bounds = array<i64: 1>, scalar_prefetch = 0 : i64, scratch_operands = 0 : i64, tpu.core_type = #tpu.core_type<tc>, window_params = [{transform_indices = @transform_0, window_bounds = array<i64: 8, 128>}, {pipeline_mode = #tpu.pipeline_mode<synchronous>, transform_indices = @transform_1, window_bounds = array<i64: 128, 64>}, {pipeline_mode = #tpu.pipeline_mode<synchronous>, transform_indices = @transform_2, window_bounds = array<i64: 1, 64>}, {transform_indices = @transform_3, window_bounds = array<i64: 8, 64>}]} {
    %c0 = arith.constant 0 : index
    %c0_0 = arith.constant 0 : index
    %0 = vector.load %arg1[%c0, %c0_0] : memref<8x128xf32, #tpu.memory_space<vmem>>, vector<8x128xf32>
    %1 = arith.truncf %0 : vector<8x128xf32> to vector<8x128xbf16>
    %c0_1 = arith.constant 0 : index
    %c0_2 = arith.constant 0 : index
    %2 = vector.load %arg2[%c0_1, %c0_2] : memref<128x64xbf16, #tpu.memory_space<vmem>>, vector<128x64xbf16>
    %cst = arith.constant dense<0.000000e+00> : vector<8x64xf32>
    %3 = tpu.matmul %1, %2, %cst {dimension_numbers = #tpu.dot_dimension_numbers<[1], [0], [0], [1], [0, 0, 1, 1], [], []>} : vector<8x128xbf16>, vector<128x64xbf16>, vector<8x64xf32> -> vector<8x64xf32>
    %c0_3 = arith.constant 0 : index
    %c0_4 = arith.constant 0 : index
    %4 = vector.load %arg3[%c0_3, %c0_4] : memref<1x64xf32, #tpu.memory_space<vmem>>, vector<1x64xf32>
    %5 = vector.broadcast %4 : vector<1x64xf32> to vector<8x64xf32>
    %6 = arith.addf %3, %5 : vector<8x64xf32>
    %c0_5 = arith.constant 0 : index
    %c0_6 = arith.constant 0 : index
    %7 = vector.load %arg4[%c0_5, %c0_6] : memref<8x64xf32, #tpu.memory_space<vmem>>, vector<8x64xf32>
    tpu.vector_store %arg4[%c0_5, %c0_6], %6 {strides = array<i32>} : memref<8x64xf32, #tpu.memory_space<vmem>>, vector<8x64xf32>,
    return
  }
  func.func @transform_0(%arg0: i32) -> (i32, i32) {
    %c0_i32 = arith.constant 0 : i32
    %c0_i32_0 = arith.constant 0 : i32
    return %arg0, %c0_i32 : i32, i32
  }
  func.func @transform_1(%arg0: i32) -> (i32, i32) {
    %c0_i32 = arith.constant 0 : i32
    %c0_i32_0 = arith.constant 0 : i32
    %c0_i32_1 = arith.constant 0 : i32
    return %c0_i32, %c0_i32_0 : i32, i32
  }
  func.func @transform_2(%arg0: i32) -> (i32, i32) {
    %c0_i32 = arith.constant 0 : i32
    %c0_i32_0 = arith.constant 0 : i32
    %c0_i32_1 = arith.constant 0 : i32
    return %c0_i32, %c0_i32_0 : i32, i32
  }
  func.func @transform_3(%arg0: i32) -> (i32, i32) {
    %c0_i32 = arith.constant 0 : i32
    %c0_i32_0 = arith.constant 0 : i32
    return %arg0, %c0_i32 : i32, i32
  }
}

module attributes {stable_mosaic.version = 11 : i64} {
  func.func @_ln_qkv_kernel(%arg0: i32, %arg1: memref<8x64xf32, #tpu.memory_space<vmem>>, %arg2: memref<1x64xf32, #tpu.memory_space<vmem>>, %arg3: memref<1x64xf32, #tpu.memory_space<vmem>>, %arg4: memref<64x192xbf16, #tpu.memory_space<vmem>>, %arg5: memref<1x192xf32, #tpu.memory_space<vmem>>, %arg6: memref<8x192xbf16, #tpu.memory_space<vmem>>) attributes {dimension_semantics = [#tpu.dimension_semantics<parallel>], iteration_bounds = array<i64: 1>, scalar_prefetch = 0 : i64, scratch_operands = 0 : i64, tpu.core_type = #tpu.core_type<tc>, window_params = [{transform_indices = @transform_0, window_bounds = array<i64: 8, 64>}, {pipeline_mode = #tpu.pipeline_mode<synchronous>, transform_indices = @transform_1, window_bounds = array<i64: 1, 64>}, {pipeline_mode = #tpu.pipeline_mode<synchronous>, transform_indices = @transform_2, window_bounds = array<i64: 1, 64>}, {pipeline_mode = #tpu.pipeline_mode<synchronous>, transform_indices = @transform_3, window_bounds = array<i64: 64, 192>}, {pipeline_mode = #tpu.pipeline_mode<synchronous>, transform_indices = @transform_4, window_bounds = array<i64: 1, 192>}, {transform_indices = @transform_5, window_bounds = array<i64: 8, 192>}]} {
    %c0 = arith.constant 0 : index
    %c0_0 = arith.constant 0 : index
    %0 = vector.load %arg1[%c0, %c0_0] : memref<8x64xf32, #tpu.memory_space<vmem>>, vector<8x64xf32>
    %cst = arith.constant dense<0.000000e+00> : vector<8xf32>
    %1 = vector.multi_reduction <add>, %0, %cst [1] : vector<8x64xf32> to vector<8xf32>
    %2 = vector.shape_cast %1 : vector<8xf32> to vector<8x1xf32>
    %cst_1 = arith.constant 6.400000e+01 : f32
    %3 = vector.broadcast %cst_1 : f32 to vector<8x1xf32>
    %4 = arith.divf %2, %3 : vector<8x1xf32>
    %5 = vector.broadcast %4 : vector<8x1xf32> to vector<8x64xf32>
    %6 = arith.subf %0, %5 : vector<8x64xf32>
    %7 = arith.mulf %6, %6 : vector<8x64xf32>
    %cst_2 = arith.constant dense<0.000000e+00> : vector<8xf32>
    %8 = vector.multi_reduction <add>, %7, %cst_2 [1] : vector<8x64xf32> to vector<8xf32>
    %9 = vector.shape_cast %8 : vector<8xf32> to vector<8x1xf32>
    %cst_3 = arith.constant 6.400000e+01 : f32
    %10 = vector.broadcast %cst_3 : f32 to vector<8x1xf32>
    %11 = arith.divf %9, %10 : vector<8x1xf32>
    %cst_4 = arith.constant 9.99999974E-6 : f32
    %12 = vector.broadcast %cst_4 : f32 to vector<8x1xf32>
    %13 = arith.addf %11, %12 : vector<8x1xf32>
    %14 = math.rsqrt %13 : vector<8x1xf32>
    %15 = vector.broadcast %14 : vector<8x1xf32> to vector<8x64xf32>
    %16 = arith.mulf %6, %15 : vector<8x64xf32>
    %c0_5 = arith.constant 0 : index
    %c0_6 = arith.constant 0 : index
    %17 = vector.load %arg2[%c0_5, %c0_6] : memref<1x64xf32, #tpu.memory_space<vmem>>, vector<1x64xf32>
    %18 = vector.broadcast %17 : vector<1x64xf32> to vector<8x64xf32>
    %19 = arith.mulf %16, %18 : vector<8x64xf32>
    %c0_7 = arith.constant 0 : index
    %c0_8 = arith.constant 0 : index
    %20 = vector.load %arg3[%c0_7, %c0_8] : memref<1x64xf32, #tpu.memory_space<vmem>>, vector<1x64xf32>
    %21 = vector.broadcast %20 : vector<1x64xf32> to vector<8x64xf32>
    %22 = arith.addf %19, %21 : vector<8x64xf32>
    %23 = arith.truncf %22 : vector<8x64xf32> to vector<8x64xbf16>
    %c0_9 = arith.constant 0 : index
    %c0_10 = arith.constant 0 : index
    %24 = vector.load %arg4[%c0_9, %c0_10] : memref<64x192xbf16, #tpu.memory_space<vmem>>, vector<64x192xbf16>
    %cst_11 = arith.constant dense<0.000000e+00> : vector<8x192xf32>
    %25 = tpu.matmul %23, %24, %cst_11 {dimension_numbers = #tpu.dot_dimension_numbers<[1], [0], [0], [1], [0, 0, 1, 1], [], []>} : vector<8x64xbf16>, vector<64x192xbf16>, vector<8x192xf32> -> vector<8x192xf32>
    %c0_12 = arith.constant 0 : index
    %c0_13 = arith.constant 0 : index
    %26 = vector.load %arg5[%c0_12, %c0_13] : memref<1x192xf32, #tpu.memory_space<vmem>>, vector<1x192xf32>
    %27 = vector.broadcast %26 : vector<1x192xf32> to vector<8x192xf32>
    %28 = arith.addf %25, %27 : vector<8x192xf32>
    %29 = arith.truncf %28 : vector<8x192xf32> to vector<8x192xbf16>
    %c0_14 = arith.constant 0 : index
    %c0_15 = arith.constant 0 : index
    %30 = vector.load %arg6[%c0_14, %c0_15] : memref<8x192xbf16, #tpu.memory_space<vmem>>, vector<8x192xbf16>
    tpu.vector_store %arg6[%c0_14, %c0_15], %29 {strides = array<i32>} : memref<8x192xbf16, #tpu.memory_space<vmem>>, vector<8x192xbf16>,
    return
  }
  func.func @transform_0(%arg0: i32) -> (i32, i32) {
    %c0_i32 = arith.constant 0 : i32
    %c0_i32_0 = arith.constant 0 : i32
    return %arg0, %c0_i32 : i32, i32
  }
  func.func @transform_1(%arg0: i32) -> (i32, i32) {
    %c0_i32 = arith.constant 0 : i32
    %c0_i32_0 = arith.constant 0 : i32
    %c0_i32_1 = arith.constant 0 : i32
    return %c0_i32, %c0_i32_0 : i32, i32
  }
  func.func @transform_2(%arg0: i32) -> (i32, i32) {
    %c0_i32 = arith.constant 0 : i32
    %c0_i32_0 = arith.constant 0 : i32
    %c0_i32_1 = arith.constant 0 : i32
    return %c0_i32, %c0_i32_0 : i32, i32
  }
  func.func @transform_3(%arg0: i32) -> (i32, i32) {
    %c0_i32 = arith.constant 0 : i32
    %c0_i32_0 = arith.constant 0 : i32
    %c0_i32_1 = arith.constant 0 : i32
    return %c0_i32, %c0_i32_0 : i32, i32
  }
  func.func @transform_4(%arg0: i32) -> (i32, i32) {
    %c0_i32 = arith.constant 0 : i32
    %c0_i32_0 = arith.constant 0 : i32
    %c0_i32_1 = arith.constant 0 : i32
    return %c0_i32, %c0_i32_0 : i32, i32
  }
  func.func @transform_5(%arg0: i32) -> (i32, i32) {
    %c0_i32 = arith.constant 0 : i32
    %c0_i32_0 = arith.constant 0 : i32
    return %arg0, %c0_i32 : i32, i32
  }
}

module attributes {stable_mosaic.version = 11 : i64} {
  func.func @_window_attn_kernel(%arg0: i32, %arg1: memref<1x4x192xbf16, #tpu.memory_space<vmem>>, %arg2: memref<1x4x64xbf16, #tpu.memory_space<vmem>>) attributes {dimension_semantics = [#tpu.dimension_semantics<parallel>], iteration_bounds = array<i64: 2>, scalar_prefetch = 0 : i64, scratch_operands = 0 : i64, tpu.core_type = #tpu.core_type<tc>, window_params = [{transform_indices = @transform_0, window_bounds = array<i64: 1, 4, 192>}, {transform_indices = @transform_1, window_bounds = array<i64: 1, 4, 64>}]} {
    %c0 = arith.constant 0 : index
    %c0_0 = arith.constant 0 : index
    %c0_1 = arith.constant 0 : index
    %0 = vector.load %arg1[%c0, %c0_0, %c0_1] : memref<1x4x192xbf16, #tpu.memory_space<vmem>>, vector<1x4x192xbf16>
    %1 = vector.extract_strided_slice %0 {offsets = [0, 0, 0], sizes = [1, 4, 16], strides = [1, 1, 1]} : vector<1x4x192xbf16> to vector<1x4x16xbf16>
    %2 = arith.extf %1 : vector<1x4x16xbf16> to vector<1x4x16xf32>
    %3 = vector.extract_strided_slice %0 {offsets = [0, 0, 64], sizes = [1, 4, 16], strides = [1, 1, 1]} : vector<1x4x192xbf16> to vector<1x4x16xbf16>
    %4 = arith.extf %3 : vector<1x4x16xbf16> to vector<1x4x16xf32>
    %5 = vector.extract_strided_slice %0 {offsets = [0, 0, 128], sizes = [1, 4, 16], strides = [1, 1, 1]} : vector<1x4x192xbf16> to vector<1x4x16xbf16>
    %6 = arith.mulf %2, %2 : vector<1x4x16xf32>
    %cst = arith.constant dense<0.000000e+00> : vector<1x4xf32>
    %7 = vector.multi_reduction <add>, %6, %cst [2] : vector<1x4x16xf32> to vector<1x4xf32>
    %8 = vector.shape_cast %7 : vector<1x4xf32> to vector<1x4x1xf32>
    %cst_2 = arith.constant 1.000000e-24 : f32
    %9 = vector.broadcast %cst_2 : f32 to vector<1x4x1xf32>
    %10 = arith.maximumf %8, %9 : vector<1x4x1xf32>
    %11 = math.rsqrt %10 : vector<1x4x1xf32>
    %12 = vector.broadcast %11 : vector<1x4x1xf32> to vector<1x4x16xf32>
    %13 = arith.mulf %2, %12 : vector<1x4x16xf32>
    %14 = arith.mulf %4, %4 : vector<1x4x16xf32>
    %cst_3 = arith.constant dense<0.000000e+00> : vector<1x4xf32>
    %15 = vector.multi_reduction <add>, %14, %cst_3 [2] : vector<1x4x16xf32> to vector<1x4xf32>
    %16 = vector.shape_cast %15 : vector<1x4xf32> to vector<1x4x1xf32>
    %cst_4 = arith.constant 1.000000e-24 : f32
    %17 = vector.broadcast %cst_4 : f32 to vector<1x4x1xf32>
    %18 = arith.maximumf %16, %17 : vector<1x4x1xf32>
    %19 = math.rsqrt %18 : vector<1x4x1xf32>
    %20 = vector.broadcast %19 : vector<1x4x1xf32> to vector<1x4x16xf32>
    %21 = arith.mulf %4, %20 : vector<1x4x16xf32>
    %22 = arith.truncf %13 : vector<1x4x16xf32> to vector<1x4x16xbf16>
    %23 = arith.truncf %21 : vector<1x4x16xf32> to vector<1x4x16xbf16>
    "tpu.trace_start"() <{level = 10 : i32, message = "gqd,gkd->gqk"}> : () -> ()
    %cst_5 = arith.constant dense<0.000000e+00> : vector<1x4x4xf32>
    %24 = tpu.matmul %22, %23, %cst_5 {dimension_numbers = #tpu.dot_dimension_numbers<[2], [2], [1], [1], [0, 0, 0, 1, 1, 1], [0], [0]>} : vector<1x4x16xbf16>, vector<1x4x16xbf16>, vector<1x4x4xf32> -> vector<1x4x4xf32>
    "tpu.trace_stop"() : () -> ()
    %cst_6 = arith.constant 2.500000e-01 : f32
    %25 = vector.broadcast %cst_6 : f32 to vector<1x4x4xf32>
    %26 = arith.mulf %24, %25 : vector<1x4x4xf32>
    %cst_7 = arith.constant dense<0xFF800000> : vector<1x4xf32>
    %27 = vector.multi_reduction <maximumf>, %26, %cst_7 [2] : vector<1x4x4xf32> to vector<1x4xf32>
    %28 = vector.shape_cast %27 : vector<1x4xf32> to vector<1x4x1xf32>
    %29 = vector.broadcast %28 : vector<1x4x1xf32> to vector<1x4x4xf32>
    %30 = arith.subf %26, %29 : vector<1x4x4xf32>
    %31 = math.exp %30 : vector<1x4x4xf32>
    %cst_8 = arith.constant dense<0.000000e+00> : vector<1x4xf32>
    %32 = vector.multi_reduction <add>, %31, %cst_8 [2] : vector<1x4x4xf32> to vector<1x4xf32>
    %33 = vector.shape_cast %32 : vector<1x4xf32> to vector<1x4x1xf32>
    %34 = tpu.reciprocal %33 {approx = true} : vector<1x4x1xf32> -> vector<1x4x1xf32>
    %35 = vector.broadcast %34 : vector<1x4x1xf32> to vector<1x4x4xf32>
    %36 = arith.mulf %31, %35 : vector<1x4x4xf32>
    %cst_9 = arith.constant 9.99999997E-7 : f32
    %cst_10 = arith.constant 1.000000e+00 : f32
    %37 = vector.broadcast %cst_9 : f32 to vector<1x4x4xf32>
    %38 = arith.maximumf %37, %36 : vector<1x4x4xf32>
    %39 = vector.broadcast %cst_10 : f32 to vector<1x4x4xf32>
    %40 = arith.minimumf %39, %38 : vector<1x4x4xf32>
    %41 = arith.truncf %40 : vector<1x4x4xf32> to vector<1x4x4xbf16>
    "tpu.trace_start"() <{level = 10 : i32, message = "gqk,gkd->gqd"}> : () -> ()
    %cst_11 = arith.constant dense<0.000000e+00> : vector<1x4x16xf32>
    %42 = tpu.matmul %41, %5, %cst_11 {dimension_numbers = #tpu.dot_dimension_numbers<[2], [1], [1], [2], [0, 0, 0, 1, 1, 2], [0], [0]>} : vector<1x4x4xbf16>, vector<1x4x16xbf16>, vector<1x4x16xf32> -> vector<1x4x16xf32>
    "tpu.trace_stop"() : () -> ()
    %43 = vector.extract_strided_slice %0 {offsets = [0, 0, 16], sizes = [1, 4, 16], strides = [1, 1, 1]} : vector<1x4x192xbf16> to vector<1x4x16xbf16>
    %44 = arith.extf %43 : vector<1x4x16xbf16> to vector<1x4x16xf32>
    %45 = vector.extract_strided_slice %0 {offsets = [0, 0, 80], sizes = [1, 4, 16], strides = [1, 1, 1]} : vector<1x4x192xbf16> to vector<1x4x16xbf16>
    %46 = arith.extf %45 : vector<1x4x16xbf16> to vector<1x4x16xf32>
    %47 = vector.extract_strided_slice %0 {offsets = [0, 0, 144], sizes = [1, 4, 16], strides = [1, 1, 1]} : vector<1x4x192xbf16> to vector<1x4x16xbf16>
    %48 = arith.mulf %44, %44 : vector<1x4x16xf32>
    %cst_12 = arith.constant dense<0.000000e+00> : vector<1x4xf32>
    %49 = vector.multi_reduction <add>, %48, %cst_12 [2] : vector<1x4x16xf32> to vector<1x4xf32>
    %50 = vector.shape_cast %49 : vector<1x4xf32> to vector<1x4x1xf32>
    %cst_13 = arith.constant 1.000000e-24 : f32
    %51 = vector.broadcast %cst_13 : f32 to vector<1x4x1xf32>
    %52 = arith.maximumf %50, %51 : vector<1x4x1xf32>
    %53 = math.rsqrt %52 : vector<1x4x1xf32>
    %54 = vector.broadcast %53 : vector<1x4x1xf32> to vector<1x4x16xf32>
    %55 = arith.mulf %44, %54 : vector<1x4x16xf32>
    %56 = arith.mulf %46, %46 : vector<1x4x16xf32>
    %cst_14 = arith.constant dense<0.000000e+00> : vector<1x4xf32>
    %57 = vector.multi_reduction <add>, %56, %cst_14 [2] : vector<1x4x16xf32> to vector<1x4xf32>
    %58 = vector.shape_cast %57 : vector<1x4xf32> to vector<1x4x1xf32>
    %cst_15 = arith.constant 1.000000e-24 : f32
    %59 = vector.broadcast %cst_15 : f32 to vector<1x4x1xf32>
    %60 = arith.maximumf %58, %59 : vector<1x4x1xf32>
    %61 = math.rsqrt %60 : vector<1x4x1xf32>
    %62 = vector.broadcast %61 : vector<1x4x1xf32> to vector<1x4x16xf32>
    %63 = arith.mulf %46, %62 : vector<1x4x16xf32>
    %64 = arith.truncf %55 : vector<1x4x16xf32> to vector<1x4x16xbf16>
    %65 = arith.truncf %63 : vector<1x4x16xf32> to vector<1x4x16xbf16>
    "tpu.trace_start"() <{level = 10 : i32, message = "gqd,gkd->gqk"}> : () -> ()
    %cst_16 = arith.constant dense<0.000000e+00> : vector<1x4x4xf32>
    %66 = tpu.matmul %64, %65, %cst_16 {dimension_numbers = #tpu.dot_dimension_numbers<[2], [2], [1], [1], [0, 0, 0, 1, 1, 1], [0], [0]>} : vector<1x4x16xbf16>, vector<1x4x16xbf16>, vector<1x4x4xf32> -> vector<1x4x4xf32>
    "tpu.trace_stop"() : () -> ()
    %cst_17 = arith.constant 2.500000e-01 : f32
    %67 = vector.broadcast %cst_17 : f32 to vector<1x4x4xf32>
    %68 = arith.mulf %66, %67 : vector<1x4x4xf32>
    %cst_18 = arith.constant dense<0xFF800000> : vector<1x4xf32>
    %69 = vector.multi_reduction <maximumf>, %68, %cst_18 [2] : vector<1x4x4xf32> to vector<1x4xf32>
    %70 = vector.shape_cast %69 : vector<1x4xf32> to vector<1x4x1xf32>
    %71 = vector.broadcast %70 : vector<1x4x1xf32> to vector<1x4x4xf32>
    %72 = arith.subf %68, %71 : vector<1x4x4xf32>
    %73 = math.exp %72 : vector<1x4x4xf32>
    %cst_19 = arith.constant dense<0.000000e+00> : vector<1x4xf32>
    %74 = vector.multi_reduction <add>, %73, %cst_19 [2] : vector<1x4x4xf32> to vector<1x4xf32>
    %75 = vector.shape_cast %74 : vector<1x4xf32> to vector<1x4x1xf32>
    %76 = tpu.reciprocal %75 {approx = true} : vector<1x4x1xf32> -> vector<1x4x1xf32>
    %77 = vector.broadcast %76 : vector<1x4x1xf32> to vector<1x4x4xf32>
    %78 = arith.mulf %73, %77 : vector<1x4x4xf32>
    %cst_20 = arith.constant 9.99999997E-7 : f32
    %cst_21 = arith.constant 1.000000e+00 : f32
    %79 = vector.broadcast %cst_20 : f32 to vector<1x4x4xf32>
    %80 = arith.maximumf %79, %78 : vector<1x4x4xf32>
    %81 = vector.broadcast %cst_21 : f32 to vector<1x4x4xf32>
    %82 = arith.minimumf %81, %80 : vector<1x4x4xf32>
    %83 = arith.truncf %82 : vector<1x4x4xf32> to vector<1x4x4xbf16>
    "tpu.trace_start"() <{level = 10 : i32, message = "gqk,gkd->gqd"}> : () -> ()
    %cst_22 = arith.constant dense<0.000000e+00> : vector<1x4x16xf32>
    %84 = tpu.matmul %83, %47, %cst_22 {dimension_numbers = #tpu.dot_dimension_numbers<[2], [1], [1], [2], [0, 0, 0, 1, 1, 2], [0], [0]>} : vector<1x4x4xbf16>, vector<1x4x16xbf16>, vector<1x4x16xf32> -> vector<1x4x16xf32>
    "tpu.trace_stop"() : () -> ()
    %85 = vector.extract_strided_slice %0 {offsets = [0, 0, 32], sizes = [1, 4, 16], strides = [1, 1, 1]} : vector<1x4x192xbf16> to vector<1x4x16xbf16>
    %86 = arith.extf %85 : vector<1x4x16xbf16> to vector<1x4x16xf32>
    %87 = vector.extract_strided_slice %0 {offsets = [0, 0, 96], sizes = [1, 4, 16], strides = [1, 1, 1]} : vector<1x4x192xbf16> to vector<1x4x16xbf16>
    %88 = arith.extf %87 : vector<1x4x16xbf16> to vector<1x4x16xf32>
    %89 = vector.extract_strided_slice %0 {offsets = [0, 0, 160], sizes = [1, 4, 16], strides = [1, 1, 1]} : vector<1x4x192xbf16> to vector<1x4x16xbf16>
    %90 = arith.mulf %86, %86 : vector<1x4x16xf32>
    %cst_23 = arith.constant dense<0.000000e+00> : vector<1x4xf32>
    %91 = vector.multi_reduction <add>, %90, %cst_23 [2] : vector<1x4x16xf32> to vector<1x4xf32>
    %92 = vector.shape_cast %91 : vector<1x4xf32> to vector<1x4x1xf32>
    %cst_24 = arith.constant 1.000000e-24 : f32
    %93 = vector.broadcast %cst_24 : f32 to vector<1x4x1xf32>
    %94 = arith.maximumf %92, %93 : vector<1x4x1xf32>
    %95 = math.rsqrt %94 : vector<1x4x1xf32>
    %96 = vector.broadcast %95 : vector<1x4x1xf32> to vector<1x4x16xf32>
    %97 = arith.mulf %86, %96 : vector<1x4x16xf32>
    %98 = arith.mulf %88, %88 : vector<1x4x16xf32>
    %cst_25 = arith.constant dense<0.000000e+00> : vector<1x4xf32>
    %99 = vector.multi_reduction <add>, %98, %cst_25 [2] : vector<1x4x16xf32> to vector<1x4xf32>
    %100 = vector.shape_cast %99 : vector<1x4xf32> to vector<1x4x1xf32>
    %cst_26 = arith.constant 1.000000e-24 : f32
    %101 = vector.broadcast %cst_26 : f32 to vector<1x4x1xf32>
    %102 = arith.maximumf %100, %101 : vector<1x4x1xf32>
    %103 = math.rsqrt %102 : vector<1x4x1xf32>
    %104 = vector.broadcast %103 : vector<1x4x1xf32> to vector<1x4x16xf32>
    %105 = arith.mulf %88, %104 : vector<1x4x16xf32>
    %106 = arith.truncf %97 : vector<1x4x16xf32> to vector<1x4x16xbf16>
    %107 = arith.truncf %105 : vector<1x4x16xf32> to vector<1x4x16xbf16>
    "tpu.trace_start"() <{level = 10 : i32, message = "gqd,gkd->gqk"}> : () -> ()
    %cst_27 = arith.constant dense<0.000000e+00> : vector<1x4x4xf32>
    %108 = tpu.matmul %106, %107, %cst_27 {dimension_numbers = #tpu.dot_dimension_numbers<[2], [2], [1], [1], [0, 0, 0, 1, 1, 1], [0], [0]>} : vector<1x4x16xbf16>, vector<1x4x16xbf16>, vector<1x4x4xf32> -> vector<1x4x4xf32>
    "tpu.trace_stop"() : () -> ()
    %cst_28 = arith.constant 2.500000e-01 : f32
    %109 = vector.broadcast %cst_28 : f32 to vector<1x4x4xf32>
    %110 = arith.mulf %108, %109 : vector<1x4x4xf32>
    %cst_29 = arith.constant dense<0xFF800000> : vector<1x4xf32>
    %111 = vector.multi_reduction <maximumf>, %110, %cst_29 [2] : vector<1x4x4xf32> to vector<1x4xf32>
    %112 = vector.shape_cast %111 : vector<1x4xf32> to vector<1x4x1xf32>
    %113 = vector.broadcast %112 : vector<1x4x1xf32> to vector<1x4x4xf32>
    %114 = arith.subf %110, %113 : vector<1x4x4xf32>
    %115 = math.exp %114 : vector<1x4x4xf32>
    %cst_30 = arith.constant dense<0.000000e+00> : vector<1x4xf32>
    %116 = vector.multi_reduction <add>, %115, %cst_30 [2] : vector<1x4x4xf32> to vector<1x4xf32>
    %117 = vector.shape_cast %116 : vector<1x4xf32> to vector<1x4x1xf32>
    %118 = tpu.reciprocal %117 {approx = true} : vector<1x4x1xf32> -> vector<1x4x1xf32>
    %119 = vector.broadcast %118 : vector<1x4x1xf32> to vector<1x4x4xf32>
    %120 = arith.mulf %115, %119 : vector<1x4x4xf32>
    %cst_31 = arith.constant 9.99999997E-7 : f32
    %cst_32 = arith.constant 1.000000e+00 : f32
    %121 = vector.broadcast %cst_31 : f32 to vector<1x4x4xf32>
    %122 = arith.maximumf %121, %120 : vector<1x4x4xf32>
    %123 = vector.broadcast %cst_32 : f32 to vector<1x4x4xf32>
    %124 = arith.minimumf %123, %122 : vector<1x4x4xf32>
    %125 = arith.truncf %124 : vector<1x4x4xf32> to vector<1x4x4xbf16>
    "tpu.trace_start"() <{level = 10 : i32, message = "gqk,gkd->gqd"}> : () -> ()
    %cst_33 = arith.constant dense<0.000000e+00> : vector<1x4x16xf32>
    %126 = tpu.matmul %125, %89, %cst_33 {dimension_numbers = #tpu.dot_dimension_numbers<[2], [1], [1], [2], [0, 0, 0, 1, 1, 2], [0], [0]>} : vector<1x4x4xbf16>, vector<1x4x16xbf16>, vector<1x4x16xf32> -> vector<1x4x16xf32>
    "tpu.trace_stop"() : () -> ()
    %127 = vector.extract_strided_slice %0 {offsets = [0, 0, 48], sizes = [1, 4, 16], strides = [1, 1, 1]} : vector<1x4x192xbf16> to vector<1x4x16xbf16>
    %128 = arith.extf %127 : vector<1x4x16xbf16> to vector<1x4x16xf32>
    %129 = vector.extract_strided_slice %0 {offsets = [0, 0, 112], sizes = [1, 4, 16], strides = [1, 1, 1]} : vector<1x4x192xbf16> to vector<1x4x16xbf16>
    %130 = arith.extf %129 : vector<1x4x16xbf16> to vector<1x4x16xf32>
    %131 = vector.extract_strided_slice %0 {offsets = [0, 0, 176], sizes = [1, 4, 16], strides = [1, 1, 1]} : vector<1x4x192xbf16> to vector<1x4x16xbf16>
    %132 = arith.mulf %128, %128 : vector<1x4x16xf32>
    %cst_34 = arith.constant dense<0.000000e+00> : vector<1x4xf32>
    %133 = vector.multi_reduction <add>, %132, %cst_34 [2] : vector<1x4x16xf32> to vector<1x4xf32>
    %134 = vector.shape_cast %133 : vector<1x4xf32> to vector<1x4x1xf32>
    %cst_35 = arith.constant 1.000000e-24 : f32
    %135 = vector.broadcast %cst_35 : f32 to vector<1x4x1xf32>
    %136 = arith.maximumf %134, %135 : vector<1x4x1xf32>
    %137 = math.rsqrt %136 : vector<1x4x1xf32>
    %138 = vector.broadcast %137 : vector<1x4x1xf32> to vector<1x4x16xf32>
    %139 = arith.mulf %128, %138 : vector<1x4x16xf32>
    %140 = arith.mulf %130, %130 : vector<1x4x16xf32>
    %cst_36 = arith.constant dense<0.000000e+00> : vector<1x4xf32>
    %141 = vector.multi_reduction <add>, %140, %cst_36 [2] : vector<1x4x16xf32> to vector<1x4xf32>
    %142 = vector.shape_cast %141 : vector<1x4xf32> to vector<1x4x1xf32>
    %cst_37 = arith.constant 1.000000e-24 : f32
    %143 = vector.broadcast %cst_37 : f32 to vector<1x4x1xf32>
    %144 = arith.maximumf %142, %143 : vector<1x4x1xf32>
    %145 = math.rsqrt %144 : vector<1x4x1xf32>
    %146 = vector.broadcast %145 : vector<1x4x1xf32> to vector<1x4x16xf32>
    %147 = arith.mulf %130, %146 : vector<1x4x16xf32>
    %148 = arith.truncf %139 : vector<1x4x16xf32> to vector<1x4x16xbf16>
    %149 = arith.truncf %147 : vector<1x4x16xf32> to vector<1x4x16xbf16>
    "tpu.trace_start"() <{level = 10 : i32, message = "gqd,gkd->gqk"}> : () -> ()
    %cst_38 = arith.constant dense<0.000000e+00> : vector<1x4x4xf32>
    %150 = tpu.matmul %148, %149, %cst_38 {dimension_numbers = #tpu.dot_dimension_numbers<[2], [2], [1], [1], [0, 0, 0, 1, 1, 1], [0], [0]>} : vector<1x4x16xbf16>, vector<1x4x16xbf16>, vector<1x4x4xf32> -> vector<1x4x4xf32>
    "tpu.trace_stop"() : () -> ()
    %cst_39 = arith.constant 2.500000e-01 : f32
    %151 = vector.broadcast %cst_39 : f32 to vector<1x4x4xf32>
    %152 = arith.mulf %150, %151 : vector<1x4x4xf32>
    %cst_40 = arith.constant dense<0xFF800000> : vector<1x4xf32>
    %153 = vector.multi_reduction <maximumf>, %152, %cst_40 [2] : vector<1x4x4xf32> to vector<1x4xf32>
    %154 = vector.shape_cast %153 : vector<1x4xf32> to vector<1x4x1xf32>
    %155 = vector.broadcast %154 : vector<1x4x1xf32> to vector<1x4x4xf32>
    %156 = arith.subf %152, %155 : vector<1x4x4xf32>
    %157 = math.exp %156 : vector<1x4x4xf32>
    %cst_41 = arith.constant dense<0.000000e+00> : vector<1x4xf32>
    %158 = vector.multi_reduction <add>, %157, %cst_41 [2] : vector<1x4x4xf32> to vector<1x4xf32>
    %159 = vector.shape_cast %158 : vector<1x4xf32> to vector<1x4x1xf32>
    %160 = tpu.reciprocal %159 {approx = true} : vector<1x4x1xf32> -> vector<1x4x1xf32>
    %161 = vector.broadcast %160 : vector<1x4x1xf32> to vector<1x4x4xf32>
    %162 = arith.mulf %157, %161 : vector<1x4x4xf32>
    %cst_42 = arith.constant 9.99999997E-7 : f32
    %cst_43 = arith.constant 1.000000e+00 : f32
    %163 = vector.broadcast %cst_42 : f32 to vector<1x4x4xf32>
    %164 = arith.maximumf %163, %162 : vector<1x4x4xf32>
    %165 = vector.broadcast %cst_43 : f32 to vector<1x4x4xf32>
    %166 = arith.minimumf %165, %164 : vector<1x4x4xf32>
    %167 = arith.truncf %166 : vector<1x4x4xf32> to vector<1x4x4xbf16>
    "tpu.trace_start"() <{level = 10 : i32, message = "gqk,gkd->gqd"}> : () -> ()
    %cst_44 = arith.constant dense<0.000000e+00> : vector<1x4x16xf32>
    %168 = tpu.matmul %167, %131, %cst_44 {dimension_numbers = #tpu.dot_dimension_numbers<[2], [1], [1], [2], [0, 0, 0, 1, 1, 2], [0], [0]>} : vector<1x4x4xbf16>, vector<1x4x16xbf16>, vector<1x4x16xf32> -> vector<1x4x16xf32>
    "tpu.trace_stop"() : () -> ()
    %169 = tpu.concatenate %42, %84, %126, %168 in 2 : vector<1x4x16xf32>, vector<1x4x16xf32>, vector<1x4x16xf32>, vector<1x4x16xf32> -> vector<1x4x64xf32>
    %170 = arith.truncf %169 : vector<1x4x64xf32> to vector<1x4x64xbf16>
    %c0_45 = arith.constant 0 : index
    %c0_46 = arith.constant 0 : index
    %c0_47 = arith.constant 0 : index
    %171 = vector.load %arg2[%c0_45, %c0_46, %c0_47] : memref<1x4x64xbf16, #tpu.memory_space<vmem>>, vector<1x4x64xbf16>
    tpu.vector_store %arg2[%c0_45, %c0_46, %c0_47], %170 {strides = array<i32>} : memref<1x4x64xbf16, #tpu.memory_space<vmem>>, vector<1x4x64xbf16>,
    return
  }
  func.func @transform_0(%arg0: i32) -> (i32, i32, i32) {
    %c0_i32 = arith.constant 0 : i32
    %c0_i32_0 = arith.constant 0 : i32
    %c0_i32_1 = arith.constant 0 : i32
    return %arg0, %c0_i32, %c0_i32_0 : i32, i32, i32
  }
  func.func @transform_1(%arg0: i32) -> (i32, i32, i32) {
    %c0_i32 = arith.constant 0 : i32
    %c0_i32_0 = arith.constant 0 : i32
    %c0_i32_1 = arith.constant 0 : i32
    return %arg0, %c0_i32, %c0_i32_0 : i32, i32, i32
  }
}

module attributes {stable_mosaic.version = 11 : i64} {
  func.func @_block_tail_kernel(%arg0: i32, %arg1: memref<8x64xf32, #tpu.memory_space<vmem>>, %arg2: memref<8x64xbf16, #tpu.memory_space<vmem>>, %arg3: memref<64x64xbf16, #tpu.memory_space<vmem>>, %arg4: memref<1x64xf32, #tpu.memory_space<vmem>>, %arg5: memref<1x64xf32, #tpu.memory_space<vmem>>, %arg6: memref<1x64xf32, #tpu.memory_space<vmem>>, %arg7: memref<64x256xbf16, #tpu.memory_space<vmem>>, %arg8: memref<1x256xf32, #tpu.memory_space<vmem>>, %arg9: memref<256x64xbf16, #tpu.memory_space<vmem>>, %arg10: memref<1x64xf32, #tpu.memory_space<vmem>>, %arg11: memref<8x64xf32, #tpu.memory_space<vmem>>) attributes {dimension_semantics = [#tpu.dimension_semantics<parallel>], iteration_bounds = array<i64: 1>, scalar_prefetch = 0 : i64, scratch_operands = 0 : i64, tpu.core_type = #tpu.core_type<tc>, window_params = [{transform_indices = @transform_0, window_bounds = array<i64: 8, 64>}, {transform_indices = @transform_1, window_bounds = array<i64: 8, 64>}, {pipeline_mode = #tpu.pipeline_mode<synchronous>, transform_indices = @transform_2, window_bounds = array<i64: 64, 64>}, {pipeline_mode = #tpu.pipeline_mode<synchronous>, transform_indices = @transform_3, window_bounds = array<i64: 1, 64>}, {pipeline_mode = #tpu.pipeline_mode<synchronous>, transform_indices = @transform_4, window_bounds = array<i64: 1, 64>}, {pipeline_mode = #tpu.pipeline_mode<synchronous>, transform_indices = @transform_5, window_bounds = array<i64: 1, 64>}, {pipeline_mode = #tpu.pipeline_mode<synchronous>, transform_indices = @transform_6, window_bounds = array<i64: 64, 256>}, {pipeline_mode = #tpu.pipeline_mode<synchronous>, transform_indices = @transform_7, window_bounds = array<i64: 1, 256>}, {pipeline_mode = #tpu.pipeline_mode<synchronous>, transform_indices = @transform_8, window_bounds = array<i64: 256, 64>}, {pipeline_mode = #tpu.pipeline_mode<synchronous>, transform_indices = @transform_9, window_bounds = array<i64: 1, 64>}, {transform_indices = @transform_10, window_bounds = array<i64: 8, 64>}]} {
    %c0 = arith.constant 0 : index
    %c0_0 = arith.constant 0 : index
    %0 = vector.load %arg1[%c0, %c0_0] : memref<8x64xf32, #tpu.memory_space<vmem>>, vector<8x64xf32>
    %c0_1 = arith.constant 0 : index
    %c0_2 = arith.constant 0 : index
    %1 = vector.load %arg2[%c0_1, %c0_2] : memref<8x64xbf16, #tpu.memory_space<vmem>>, vector<8x64xbf16>
    %c0_3 = arith.constant 0 : index
    %c0_4 = arith.constant 0 : index
    %2 = vector.load %arg3[%c0_3, %c0_4] : memref<64x64xbf16, #tpu.memory_space<vmem>>, vector<64x64xbf16>
    %cst = arith.constant dense<0.000000e+00> : vector<8x64xf32>
    %3 = tpu.matmul %1, %2, %cst {dimension_numbers = #tpu.dot_dimension_numbers<[1], [0], [0], [1], [0, 0, 1, 1], [], []>} : vector<8x64xbf16>, vector<64x64xbf16>, vector<8x64xf32> -> vector<8x64xf32>
    %c0_5 = arith.constant 0 : index
    %c0_6 = arith.constant 0 : index
    %4 = vector.load %arg4[%c0_5, %c0_6] : memref<1x64xf32, #tpu.memory_space<vmem>>, vector<1x64xf32>
    %5 = vector.broadcast %4 : vector<1x64xf32> to vector<8x64xf32>
    %6 = arith.addf %3, %5 : vector<8x64xf32>
    %7 = arith.addf %0, %6 : vector<8x64xf32>
    %cst_7 = arith.constant dense<0.000000e+00> : vector<8xf32>
    %8 = vector.multi_reduction <add>, %7, %cst_7 [1] : vector<8x64xf32> to vector<8xf32>
    %9 = vector.shape_cast %8 : vector<8xf32> to vector<8x1xf32>
    %cst_8 = arith.constant 6.400000e+01 : f32
    %10 = vector.broadcast %cst_8 : f32 to vector<8x1xf32>
    %11 = arith.divf %9, %10 : vector<8x1xf32>
    %12 = vector.broadcast %11 : vector<8x1xf32> to vector<8x64xf32>
    %13 = arith.subf %7, %12 : vector<8x64xf32>
    %14 = arith.mulf %13, %13 : vector<8x64xf32>
    %cst_9 = arith.constant dense<0.000000e+00> : vector<8xf32>
    %15 = vector.multi_reduction <add>, %14, %cst_9 [1] : vector<8x64xf32> to vector<8xf32>
    %16 = vector.shape_cast %15 : vector<8xf32> to vector<8x1xf32>
    %cst_10 = arith.constant 6.400000e+01 : f32
    %17 = vector.broadcast %cst_10 : f32 to vector<8x1xf32>
    %18 = arith.divf %16, %17 : vector<8x1xf32>
    %cst_11 = arith.constant 9.99999974E-6 : f32
    %19 = vector.broadcast %cst_11 : f32 to vector<8x1xf32>
    %20 = arith.addf %18, %19 : vector<8x1xf32>
    %21 = math.rsqrt %20 : vector<8x1xf32>
    %22 = vector.broadcast %21 : vector<8x1xf32> to vector<8x64xf32>
    %23 = arith.mulf %13, %22 : vector<8x64xf32>
    %c0_12 = arith.constant 0 : index
    %c0_13 = arith.constant 0 : index
    %24 = vector.load %arg5[%c0_12, %c0_13] : memref<1x64xf32, #tpu.memory_space<vmem>>, vector<1x64xf32>
    %25 = vector.broadcast %24 : vector<1x64xf32> to vector<8x64xf32>
    %26 = arith.mulf %23, %25 : vector<8x64xf32>
    %c0_14 = arith.constant 0 : index
    %c0_15 = arith.constant 0 : index
    %27 = vector.load %arg6[%c0_14, %c0_15] : memref<1x64xf32, #tpu.memory_space<vmem>>, vector<1x64xf32>
    %28 = vector.broadcast %27 : vector<1x64xf32> to vector<8x64xf32>
    %29 = arith.addf %26, %28 : vector<8x64xf32>
    %30 = arith.truncf %29 : vector<8x64xf32> to vector<8x64xbf16>
    %c0_16 = arith.constant 0 : index
    %c0_17 = arith.constant 0 : index
    %31 = vector.load %arg7[%c0_16, %c0_17] : memref<64x256xbf16, #tpu.memory_space<vmem>>, vector<64x256xbf16>
    %cst_18 = arith.constant dense<0.000000e+00> : vector<8x256xf32>
    %32 = tpu.matmul %30, %31, %cst_18 {dimension_numbers = #tpu.dot_dimension_numbers<[1], [0], [0], [1], [0, 0, 1, 1], [], []>} : vector<8x64xbf16>, vector<64x256xbf16>, vector<8x256xf32> -> vector<8x256xf32>
    %c0_19 = arith.constant 0 : index
    %c0_20 = arith.constant 0 : index
    %33 = vector.load %arg8[%c0_19, %c0_20] : memref<1x256xf32, #tpu.memory_space<vmem>>, vector<1x256xf32>
    %34 = vector.broadcast %33 : vector<1x256xf32> to vector<8x256xf32>
    %35 = arith.addf %32, %34 : vector<8x256xf32>
    %cst_21 = arith.constant 5.000000e-01 : f32
    %36 = vector.broadcast %cst_21 : f32 to vector<8x256xf32>
    %37 = arith.mulf %36, %35 : vector<8x256xf32>
    %cst_22 = arith.constant 0.707106769 : f32
    %38 = vector.broadcast %cst_22 : f32 to vector<8x256xf32>
    %39 = arith.mulf %35, %38 : vector<8x256xf32>
    %cst_23 = arith.constant 0.000000e+00 : f32
    %40 = vector.broadcast %cst_23 : f32 to vector<8x256xf32>
    %41 = arith.cmpf oge, %39, %40 : vector<8x256xf32>
    %cst_24 = arith.constant 1.000000e+00 : f32
    %cst_25 = arith.constant -1.000000e+00 : f32
    %42 = vector.broadcast %cst_24 : f32 to vector<8x256xf32>
    %43 = vector.broadcast %cst_25 : f32 to vector<8x256xf32>
    %44 = arith.select %41, %42, %43 : vector<8x256xi1>, vector<8x256xf32>
    %45 = math.absf %39 : vector<8x256xf32>
    %cst_26 = arith.constant 0.327591091 : f32
    %46 = vector.broadcast %cst_26 : f32 to vector<8x256xf32>
    %47 = arith.mulf %46, %45 : vector<8x256xf32>
    %cst_27 = arith.constant 1.000000e+00 : f32
    %48 = vector.broadcast %cst_27 : f32 to vector<8x256xf32>
    %49 = arith.addf %48, %47 : vector<8x256xf32>
    %cst_28 = arith.constant 1.000000e+00 : f32
    %50 = vector.broadcast %cst_28 : f32 to vector<8x256xf32>
    %51 = arith.divf %50, %49 : vector<8x256xf32>
    %cst_29 = arith.constant 1.06140542 : f32
    %52 = vector.broadcast %cst_29 : f32 to vector<8x256xf32>
    %53 = arith.mulf %51, %52 : vector<8x256xf32>
    %cst_30 = arith.constant -1.45315206 : f32
    %54 = vector.broadcast %cst_30 : f32 to vector<8x256xf32>
    %55 = arith.addf %54, %53 : vector<8x256xf32>
    %56 = arith.mulf %51, %55 : vector<8x256xf32>
    %cst_31 = arith.constant 1.42141378 : f32
    %57 = vector.broadcast %cst_31 : f32 to vector<8x256xf32>
    %58 = arith.addf %57, %56 : vector<8x256xf32>
    %59 = arith.mulf %51, %58 : vector<8x256xf32>
    %cst_32 = arith.constant -0.284496725 : f32
    %60 = vector.broadcast %cst_32 : f32 to vector<8x256xf32>
    %61 = arith.addf %60, %59 : vector<8x256xf32>
    %62 = arith.mulf %51, %61 : vector<8x256xf32>
    %cst_33 = arith.constant 0.254829586 : f32
    %63 = vector.broadcast %cst_33 : f32 to vector<8x256xf32>
    %64 = arith.addf %63, %62 : vector<8x256xf32>
    %65 = arith.mulf %51, %64 : vector<8x256xf32>
    %cst_34 = arith.constant 0.000000e+00 : f32
    %66 = vector.broadcast %cst_34 : f32 to vector<8x256xf32>
    %67 = arith.subf %66, %45 : vector<8x256xf32>
    %68 = arith.mulf %67, %45 : vector<8x256xf32>
    %69 = math.exp %68 : vector<8x256xf32>
    %70 = arith.mulf %65, %69 : vector<8x256xf32>
    %cst_35 = arith.constant 1.000000e+00 : f32
    %71 = vector.broadcast %cst_35 : f32 to vector<8x256xf32>
    %72 = arith.subf %71, %70 : vector<8x256xf32>
    %73 = arith.mulf %44, %72 : vector<8x256xf32>
    %cst_36 = arith.constant 1.000000e+00 : f32
    %74 = vector.broadcast %cst_36 : f32 to vector<8x256xf32>
    %75 = arith.addf %74, %73 : vector<8x256xf32>
    %76 = arith.mulf %37, %75 : vector<8x256xf32>
    %77 = arith.truncf %76 : vector<8x256xf32> to vector<8x256xbf16>
    %c0_37 = arith.constant 0 : index
    %c0_38 = arith.constant 0 : index
    %78 = vector.load %arg9[%c0_37, %c0_38] : memref<256x64xbf16, #tpu.memory_space<vmem>>, vector<256x64xbf16>
    %cst_39 = arith.constant dense<0.000000e+00> : vector<8x64xf32>
    %79 = tpu.matmul %77, %78, %cst_39 {dimension_numbers = #tpu.dot_dimension_numbers<[1], [0], [0], [1], [0, 0, 1, 1], [], []>} : vector<8x256xbf16>, vector<256x64xbf16>, vector<8x64xf32> -> vector<8x64xf32>
    %c0_40 = arith.constant 0 : index
    %c0_41 = arith.constant 0 : index
    %80 = vector.load %arg10[%c0_40, %c0_41] : memref<1x64xf32, #tpu.memory_space<vmem>>, vector<1x64xf32>
    %81 = vector.broadcast %80 : vector<1x64xf32> to vector<8x64xf32>
    %82 = arith.addf %79, %81 : vector<8x64xf32>
    %83 = arith.addf %7, %82 : vector<8x64xf32>
    %c0_42 = arith.constant 0 : index
    %c0_43 = arith.constant 0 : index
    %84 = vector.load %arg11[%c0_42, %c0_43] : memref<8x64xf32, #tpu.memory_space<vmem>>, vector<8x64xf32>
    tpu.vector_store %arg11[%c0_42, %c0_43], %83 {strides = array<i32>} : memref<8x64xf32, #tpu.memory_space<vmem>>, vector<8x64xf32>,
    return
  }
  func.func @transform_0(%arg0: i32) -> (i32, i32) {
    %c0_i32 = arith.constant 0 : i32
    %c0_i32_0 = arith.constant 0 : i32
    return %arg0, %c0_i32 : i32, i32
  }
  func.func @transform_1(%arg0: i32) -> (i32, i32) {
    %c0_i32 = arith.constant 0 : i32
    %c0_i32_0 = arith.constant 0 : i32
    return %arg0, %c0_i32 : i32, i32
  }
  func.func @transform_2(%arg0: i32) -> (i32, i32) {
    %c0_i32 = arith.constant 0 : i32
    %c0_i32_0 = arith.constant 0 : i32
    %c0_i32_1 = arith.constant 0 : i32
    return %c0_i32, %c0_i32_0 : i32, i32
  }
  func.func @transform_3(%arg0: i32) -> (i32, i32) {
    %c0_i32 = arith.constant 0 : i32
    %c0_i32_0 = arith.constant 0 : i32
    %c0_i32_1 = arith.constant 0 : i32
    return %c0_i32, %c0_i32_0 : i32, i32
  }
  func.func @transform_4(%arg0: i32) -> (i32, i32) {
    %c0_i32 = arith.constant 0 : i32
    %c0_i32_0 = arith.constant 0 : i32
    %c0_i32_1 = arith.constant 0 : i32
    return %c0_i32, %c0_i32_0 : i32, i32
  }
  func.func @transform_5(%arg0: i32) -> (i32, i32) {
    %c0_i32 = arith.constant 0 : i32
    %c0_i32_0 = arith.constant 0 : i32
    %c0_i32_1 = arith.constant 0 : i32
    return %c0_i32, %c0_i32_0 : i32, i32
  }
  func.func @transform_6(%arg0: i32) -> (i32, i32) {
    %c0_i32 = arith.constant 0 : i32
    %c0_i32_0 = arith.constant 0 : i32
    %c0_i32_1 = arith.constant 0 : i32
    return %c0_i32, %c0_i32_0 : i32, i32
  }
  func.func @transform_7(%arg0: i32) -> (i32, i32) {
    %c0_i32 = arith.constant 0 : i32
    %c0_i32_0 = arith.constant 0 : i32
    %c0_i32_1 = arith.constant 0 : i32
    return %c0_i32, %c0_i32_0 : i32, i32
  }
  func.func @transform_8(%arg0: i32) -> (i32, i32) {
    %c0_i32 = arith.constant 0 : i32
    %c0_i32_0 = arith.constant 0 : i32
    %c0_i32_1 = arith.constant 0 : i32
    return %c0_i32, %c0_i32_0 : i32, i32
  }
  func.func @transform_9(%arg0: i32) -> (i32, i32) {
    %c0_i32 = arith.constant 0 : i32
    %c0_i32_0 = arith.constant 0 : i32
    %c0_i32_1 = arith.constant 0 : i32
    return %c0_i32, %c0_i32_0 : i32, i32
  }
  func.func @transform_10(%arg0: i32) -> (i32, i32) {
    %c0_i32 = arith.constant 0 : i32
    %c0_i32_0 = arith.constant 0 : i32
    return %arg0, %c0_i32 : i32, i32
  }
}

module attributes {stable_mosaic.version = 11 : i64} {
  func.func @_layernorm_kernel(%arg0: i32, %arg1: memref<8x64xf32, #tpu.memory_space<vmem>>, %arg2: memref<1x64xf32, #tpu.memory_space<vmem>>, %arg3: memref<1x64xf32, #tpu.memory_space<vmem>>, %arg4: memref<8x64xf32, #tpu.memory_space<vmem>>) attributes {dimension_semantics = [#tpu.dimension_semantics<parallel>], iteration_bounds = array<i64: 1>, scalar_prefetch = 0 : i64, scratch_operands = 0 : i64, tpu.core_type = #tpu.core_type<tc>, window_params = [{transform_indices = @transform_0, window_bounds = array<i64: 8, 64>}, {pipeline_mode = #tpu.pipeline_mode<synchronous>, transform_indices = @transform_1, window_bounds = array<i64: 1, 64>}, {pipeline_mode = #tpu.pipeline_mode<synchronous>, transform_indices = @transform_2, window_bounds = array<i64: 1, 64>}, {transform_indices = @transform_3, window_bounds = array<i64: 8, 64>}]} {
    %c0 = arith.constant 0 : index
    %c0_0 = arith.constant 0 : index
    %0 = vector.load %arg1[%c0, %c0_0] : memref<8x64xf32, #tpu.memory_space<vmem>>, vector<8x64xf32>
    %cst = arith.constant dense<0.000000e+00> : vector<8xf32>
    %1 = vector.multi_reduction <add>, %0, %cst [1] : vector<8x64xf32> to vector<8xf32>
    %2 = vector.shape_cast %1 : vector<8xf32> to vector<8x1xf32>
    %cst_1 = arith.constant 6.400000e+01 : f32
    %3 = vector.broadcast %cst_1 : f32 to vector<8x1xf32>
    %4 = arith.divf %2, %3 : vector<8x1xf32>
    %5 = vector.broadcast %4 : vector<8x1xf32> to vector<8x64xf32>
    %6 = arith.subf %0, %5 : vector<8x64xf32>
    %7 = arith.mulf %6, %6 : vector<8x64xf32>
    %cst_2 = arith.constant dense<0.000000e+00> : vector<8xf32>
    %8 = vector.multi_reduction <add>, %7, %cst_2 [1] : vector<8x64xf32> to vector<8xf32>
    %9 = vector.shape_cast %8 : vector<8xf32> to vector<8x1xf32>
    %cst_3 = arith.constant 6.400000e+01 : f32
    %10 = vector.broadcast %cst_3 : f32 to vector<8x1xf32>
    %11 = arith.divf %9, %10 : vector<8x1xf32>
    %cst_4 = arith.constant 9.99999974E-6 : f32
    %12 = vector.broadcast %cst_4 : f32 to vector<8x1xf32>
    %13 = arith.addf %11, %12 : vector<8x1xf32>
    %14 = math.rsqrt %13 : vector<8x1xf32>
    %15 = vector.broadcast %14 : vector<8x1xf32> to vector<8x64xf32>
    %16 = arith.mulf %6, %15 : vector<8x64xf32>
    %c0_5 = arith.constant 0 : index
    %c0_6 = arith.constant 0 : index
    %17 = vector.load %arg2[%c0_5, %c0_6] : memref<1x64xf32, #tpu.memory_space<vmem>>, vector<1x64xf32>
    %18 = vector.broadcast %17 : vector<1x64xf32> to vector<8x64xf32>
    %19 = arith.mulf %16, %18 : vector<8x64xf32>
    %c0_7 = arith.constant 0 : index
    %c0_8 = arith.constant 0 : index
    %20 = vector.load %arg3[%c0_7, %c0_8] : memref<1x64xf32, #tpu.memory_space<vmem>>, vector<1x64xf32>
    %21 = vector.broadcast %20 : vector<1x64xf32> to vector<8x64xf32>
    %22 = arith.addf %19, %21 : vector<8x64xf32>
    %c0_9 = arith.constant 0 : index
    %c0_10 = arith.constant 0 : index
    %23 = vector.load %arg4[%c0_9, %c0_10] : memref<8x64xf32, #tpu.memory_space<vmem>>, vector<8x64xf32>
    tpu.vector_store %arg4[%c0_9, %c0_10], %22 {strides = array<i32>} : memref<8x64xf32, #tpu.memory_space<vmem>>, vector<8x64xf32>,
    return
  }
  func.func @transform_0(%arg0: i32) -> (i32, i32) {
    %c0_i32 = arith.constant 0 : i32
    %c0_i32_0 = arith.constant 0 : i32
    return %arg0, %c0_i32 : i32, i32
  }
  func.func @transform_1(%arg0: i32) -> (i32, i32) {
    %c0_i32 = arith.constant 0 : i32
    %c0_i32_0 = arith.constant 0 : i32
    %c0_i32_1 = arith.constant 0 : i32
    return %c0_i32, %c0_i32_0 : i32, i32
  }
  func.func @transform_2(%arg0: i32) -> (i32, i32) {
    %c0_i32 = arith.constant 0 : i32
    %c0_i32_0 = arith.constant 0 : i32
    %c0_i32_1 = arith.constant 0 : i32
    return %c0_i32, %c0_i32_0 : i32, i32
  }
  func.func @transform_3(%arg0: i32) -> (i32, i32) {
    %c0_i32 = arith.constant 0 : i32
    %c0_i32_0 = arith.constant 0 : i32
    return %arg0, %c0_i32 : i32, i32
  }
}

</mosaic_0001>

<llo_original>
// kernel: swin_backbone_forward.16
$region0: #{swin_backbone_forward.16}
  #allocation0 [shape = 'u32[]', space=smem, size = 0x4, offset = 0x4, fixed_abs, tag = 'smem constant byte address 0x4 - core index']
  #allocation1 [shape = 'u32[144,128]{1,0:T(1,128)}', space=vmem, size = 0x12000, scoped, tag = 'internal scratch']
  %s0 = inlined_call_operand.hbm [shape: f32[32,48], index: 0, kind: input, shape index: {}]
  %s1 = inlined_call_operand.hbm [shape: bf16[48,32], index: 1, kind: input, shape index: {}]
  %s2 = inlined_call_operand.hbm [shape: f32[1,32], index: 2, kind: input, shape index: {}]
  %s3 = inlined_call_operand.hbm [shape: f32[32,32], index: 3, kind: output, shape index: {}]
  %s4 = sld [smem:[#allocation0]]
  $region57: #{swin_backbone_forward.16} parent=0
    _
  %s6 = ssub.s32 1, %s4
  %s7 = scalar_select 0, %s6, %s4
  $region1: #{swin_backbone_forward.16} parent=0
    #allocation2 [shape = 'u8[16384]{0}', space=vmem, size = 0x4000, scoped, tag = 'input window, operand 0']
    #allocation3 [shape = 's32[2]{0}', space=sflag, size = 0x8, scoped, tag = 'scoped memory for swin_backbone_forward.16']
    #allocation4 [shape = 's32[2]{0}', space=sflag, size = 0x8, scoped, tag = 'scoped memory for swin_backbone_forward.16']
    #allocation5 [shape = 'u8[12288]{0}', space=vmem, size = 0x3000, scoped, tag = 'input window, operand 1, single buffered']
    #allocation6 [shape = 's32[1]{0}', space=sflag, size = 0x4, scoped, tag = 'scoped memory for swin_backbone_forward.16']
    #allocation7 [shape = 'u8[512]{0}', space=vmem, size = 0x400, scoped, tag = 'input window, operand 2, single buffered']
    #allocation8 [shape = 'u8[16384]{0}', space=vmem, size = 0x4000, scoped, tag = 'output window, operand 0']
    %8 = vsyncpa [#allocation3], 0
    %s9 = scalar_lea.sflag [#allocation3], 1
    %10 = vsyncpa %s9, 0
    %11 = vsyncpa [#allocation6], 0
    %12 = vsyncpa [#allocation4], 0
    %s13 = scalar_lea.sflag [#allocation4], 1
    %14 = vsyncpa %s13, 0
    loop: start=0, step=1, limit=4
    $region2: #{swin_backbone_forward.16} parent=1 // loop_pre_header
      _
    $region3: #{swin_backbone_forward.16} parent=1 // loop_header
      %s16 = sphi 0, %s20
      %p17 = scmp.ge.s32.totalorder %s16, 4
      %s26 = sphi 0, %s28
      %s29 = sphi 0, %s26
      %s30 = sphi 0, %s29
      %s46 = sphi 0, %s30
      %s50 = sphi 0, %s50
      %s52 = sphi 0, %s50
      %s53 = sphi 0, %s52
      %s67 = sphi 0, %s53
      %s71 = sphi 0, %s71
      %s73 = sphi 0, %s71
      %s74 = sphi 0, %s73
      %s88 = sphi 0, %s74
      %s94 = sphi 0, %s96
      %s97 = sphi 0, %s94
      %s98 = sphi 0, %s97
      %s114 = sphi 0, %s98
    $region4: #{swin_backbone_forward.16} parent=1 // loop_header_branch
      %19 = sbr.rel (%p17) target = $region8
    $region5: #{swin_backbone_forward.16} parent=1 // loop_body
      %s21 = ssub.s32 %s16, 1
      %s22 = ssub.s32 %s16, 2
      %s23 = sadd.s32 %s16, 1
      %s24 = ssub.s32 %s16, %s23
      %p25 = scmp.eq.s32.totalorder %s24, 0
      %s27 = sadd.s32 %s26, 1
      %s28 = scalar_select %p25, %s26, %s27
      %p31 = pneg %p25
      %p32 = scmp.eq.s32.totalorder %s16, 1
      %p33 = por %p31, %p32
      %p34 = scmp.ne.s32.totalorder %s26, %s29
      %p35 = scmp.eq.s32.totalorder %s16, 0
      %p36 = por %p34, %p35
      %p37 = scmp.ne.s32.totalorder %s26, %s29
      %p38 = scmp.eq.s32.totalorder %s21, 1
      %p39 = por %p37, %p38
      %p40 = scmp.ne.s32.totalorder %s29, %s30
      %p41 = scmp.eq.s32.totalorder %s21, 0
      %p42 = por %p40, %p41
      %p43 = scmp.ne.s32.totalorder %s29, %s30
      %p44 = scmp.eq.s32.totalorder %s22, 1
      %p45 = por %p43, %p44
      %p47 = scmp.ne.s32.totalorder %s30, %s46
      %p48 = scmp.eq.s32.totalorder %s22, 0
      %p49 = por %p47, %p48
      %s51 = sadd.s32 %s50, 1
      %p54 = scmp.eq.s32.totalorder %s16, 1
      %p55 = scmp.ne.s32.totalorder %s50, %s52
      %p56 = scmp.eq.s32.totalorder %s16, 0
      %p57 = por %p55, %p56
      %p58 = scmp.ne.s32.totalorder %s50, %s52
      %p59 = scmp.eq.s32.totalorder %s21, 1
      %p60 = por %p58, %p59
      %p61 = scmp.ne.s32.totalorder %s52, %s53
      %p62 = scmp.eq.s32.totalorder %s21, 0
      %p63 = por %p61, %p62
      %p64 = scmp.ne.s32.totalorder %s52, %s53
      %p65 = scmp.eq.s32.totalorder %s22, 1
      %p66 = por %p64, %p65
      %p68 = scmp.ne.s32.totalorder %s53, %s67
      %p69 = scmp.eq.s32.totalorder %s22, 0
      %p70 = por %p68, %p69
      %s72 = sadd.s32 %s71, 1
      %p75 = scmp.eq.s32.totalorder %s16, 1
      %p76 = scmp.ne.s32.totalorder %s71, %s73
      %p77 = scmp.eq.s32.totalorder %s16, 0
      %p78 = por %p76, %p77
      %p79 = scmp.ne.s32.totalorder %s71, %s73
      %p80 = scmp.eq.s32.totalorder %s21, 1
      %p81 = por %p79, %p80
      %p82 = scmp.ne.s32.totalorder %s73, %s74
      %p83 = scmp.eq.s32.totalorder %s21, 0
      %p84 = por %p82, %p83
      %p85 = scmp.ne.s32.totalorder %s73, %s74
      %p86 = scmp.eq.s32.totalorder %s22, 1
      %p87 = por %p85, %p86
      %p89 = scmp.ne.s32.totalorder %s74, %s88
      %p90 = scmp.eq.s32.totalorder %s22, 0
      %p91 = por %p89, %p90
      %s92 = ssub.s32 %s16, %s23
      %p93 = scmp.eq.s32.totalorder %s92, 0
      %s95 = sadd.s32 %s94, 1
      %s96 = scalar_select %p93, %s94, %s95
      %p99 = pneg %p93
      %p100 = scmp.eq.s32.totalorder %s16, 1
      %p101 = por %p99, %p100
      %p102 = scmp.ne.s32.totalorder %s94, %s97
      %p103 = scmp.eq.s32.totalorder %s16, 0
      %p104 = por %p102, %p103
      %p105 = scmp.ne.s32.totalorder %s94, %s97
      %p106 = scmp.eq.s32.totalorder %s21, 1
      %p107 = por %p105, %p106
      %p108 = scmp.ne.s32.totalorder %s97, %s98
      %p109 = scmp.eq.s32.totalorder %s21, 0
      %p110 = por %p108, %p109
      %p111 = scmp.ne.s32.totalorder %s97, %s98
      %p112 = scmp.eq.s32.totalorder %s22, 1
      %p113 = por %p111, %p112
      %p115 = scmp.ne.s32.totalorder %s98, %s114
      %p116 = scmp.eq.s32.totalorder %s22, 0
      %p117 = por %p115, %p116
      %p118 = scmp.le.s32.totalorder 1, %s16
      %p119 = scmp.lt.s32.totalorder %s16, 3
      %p120 = pnand %p118, %p119
      %p121 = pneg %p120
      // Predicated region
      $region9: #{swin_backbone_forward.16} parent=5 // pred_check
        _
      $region10: #{swin_backbone_forward.16} parent=5 // pred_check_branch
        %123 = sbr.rel (%p120) target = $region12
      $region11: #{swin_backbone_forward.16} parent=5 // pred_region
        %s124 = ssub.s32 %s16, 1
        // Predicated region
        $region13: #{swin_backbone_forward.16} parent=11 // pred_check
          %p125 = pneg %p63
        $region14: #{swin_backbone_forward.16} parent=11 // pred_check_branch
          %127 = sbr.rel (%p125) target = $region16
        $region15: #{swin_backbone_forward.16} parent=11 // pred_region
          %s129 = ssub.s32 384, 384
          %130 = vsyncadd [#allocation6], %s129
          %s131 = sshll.u32 [#allocation5], 4
          %s132 = int_to_ptr.vmem [resolvable:$true] %s131
          %137 = dma.hbm_to_vmem [thread:$0]  %s1, 384, %s132, [#allocation6], 64, 64, 4
        $region16: #{swin_backbone_forward.16} parent=11 // pred_fallthru
          _
        // Predicated region
        $region17: #{swin_backbone_forward.16} parent=11 // pred_check
          %p138 = pneg %p84
        $region18: #{swin_backbone_forward.16} parent=11 // pred_check_branch
          %140 = sbr.rel (%p138) target = $region20
        $region19: #{swin_backbone_forward.16} parent=11 // pred_region
          %s142 = ssub.s32 16, 16
          %143 = vsyncadd [#allocation6], %s142
          %s145 = sshll.u32 [#allocation7], 4
          %s146 = int_to_ptr.vmem [resolvable:$true] %s145
          %148 = dma.hbm_to_vmem [thread:$0]  %s2, 16, %s146, [#allocation6]
        $region20: #{swin_backbone_forward.16} parent=11 // pred_fallthru
          _
      $region12: #{swin_backbone_forward.16} parent=5 // pred_fallthru
        _
      %p149 = scmp.lt.s32.totalorder %s16, 2
      // Predicated region
      $region21: #{swin_backbone_forward.16} parent=5 // pred_check
        %p150 = pneg %p149
      $region22: #{swin_backbone_forward.16} parent=5 // pred_check_branch
        %152 = sbr.rel (%p150) target = $region24
      $region23: #{swin_backbone_forward.16} parent=5 // pred_region
        // Predicated region
        $region25: #{swin_backbone_forward.16} parent=23 // pred_check
          %p153 = pneg %p36
        $region26: #{swin_backbone_forward.16} parent=23 // pred_check_branch
          %155 = sbr.rel (%p153) target = $region28
        $region27: #{swin_backbone_forward.16} parent=23 // pred_region
          %s156 = sand.u32 %s26, 1
          %s157 = scalar_lea.sflag [#allocation3], %s156
          %s158 = sand.u32 %s26, 1
          %s159 = smul.addr %s158, 16
          %s160 = scalar_lea.vmem [#allocation2], %s159
          %s161 = smul.u32 2, %s16
          %s163 = ssub.s32 256, 256
          %164 = vsyncadd %s157, %s163
          %s165 = smul.addr %s161, 128
          %s166 = scalar_lea.hbm %s0, %s165
          %s167 = sshll.u32 %s160, 4
          %s168 = int_to_ptr.vmem [resolvable:$true] %s167
          %173 = dma.hbm_to_vmem [thread:$0]  %s166, 256, %s168, %s157, 128, 128, 8
        $region28: #{swin_backbone_forward.16} parent=23 // pred_fallthru
          _
      $region24: #{swin_backbone_forward.16} parent=5 // pred_fallthru
        _
      %p174 = scmp.le.s32.totalorder 1, %s16
      %p175 = scmp.lt.s32.totalorder %s16, 3
      %p176 = pnand %p174, %p175
      %p177 = pneg %p176
      // Predicated region
      $region29: #{swin_backbone_forward.16} parent=5 // pred_check
        _
      $region30: #{swin_backbone_forward.16} parent=5 // pred_check_branch
        %179 = sbr.rel (%p176) target = $region32
      $region31: #{swin_backbone_forward.16} parent=5 // pred_region
        %s180 = ssub.s32 %s16, 1
        %s181 = sand.u32 %s29, 1
        %s182 = scalar_lea.sflag [#allocation3], %s181
        %s183 = sand.u32 %s29, 1
        %s184 = smul.addr %s183, 16
        %s185 = scalar_lea.vmem [#allocation2], %s184
        // Predicated region
        $region33: #{swin_backbone_forward.16} parent=31 // pred_check
          %p186 = pneg %p42
        $region34: #{swin_backbone_forward.16} parent=31 // pred_check_branch
          %188 = sbr.rel (%p186) target = $region36
        $region35: #{swin_backbone_forward.16} parent=31 // pred_region
          %189 = dma.done %s182, 256
        $region36: #{swin_backbone_forward.16} parent=31 // pred_fallthru
          _
        // Predicated region
        $region37: #{swin_backbone_forward.16} parent=31 // pred_check
          %p190 = pneg %p63
        $region38: #{swin_backbone_forward.16} parent=31 // pred_check_branch
          %192 = sbr.rel (%p190) target = $region40
        $region39: #{swin_backbone_forward.16} parent=31 // pred_region
          %193 = dma.done [#allocation6], 384
        $region40: #{swin_backbone_forward.16} parent=31 // pred_fallthru
          _
        // Predicated region
        $region41: #{swin_backbone_forward.16} parent=31 // pred_check
          %p194 = pneg %p84
        $region42: #{swin_backbone_forward.16} parent=31 // pred_check_branch
          %196 = sbr.rel (%p194) target = $region44
        $region43: #{swin_backbone_forward.16} parent=31 // pred_region
          %197 = dma.done [#allocation6], 16
        $region44: #{swin_backbone_forward.16} parent=31 // pred_fallthru
          _
        %s198 = sand.u32 %s29, 1
        %s199 = scalar_lea.sflag [#allocation3], %s198
        %s200 = sand.u32 %s29, 1
        %s201 = smul.addr %s200, 16
        %s202 = scalar_lea.vmem [#allocation2], %s201
        %p203 = pneg %p42
        %p204 = pneg %p39
        %p205 = pneg %p63
        %p206 = pneg %p60
        %p207 = pneg %p84
        %p208 = pneg %p81
        %p209 = pneg %p110
        %p210 = pneg %p107
        %s211 = sand.u32 %s97, 1
        %s212 = scalar_lea.sflag [#allocation4], %s211
        %s213 = sand.u32 %s97, 1
        %s214 = smul.addr %s213, 16
        %s215 = scalar_lea.vmem [#allocation8], %s214
        %s216 = smul.u32 2, %s21
        %s217 = smul.u32 2, %s21
        %v219 = vld [vmem:[%s185] sm:$0xff]
        %v220 = vld [vmem:[%s185 + $0x8] sm:$0xff]
        %v221 = vpack.c.bf16 %v220, %v219
        %v222 = vld [vmem:[#allocation5] sm:$0xf]
        %v223 = vld [vmem:[#allocation5 + $0x4] sm:$0xf]
        %v224 = vld [vmem:[#allocation5 + $0x8] sm:$0xf]
        %v225 = vld [vmem:[#allocation5 + $0xc] sm:$0xf]
        %v226 = vld [vmem:[#allocation5 + $0x10] sm:$0xf]
        %v227 = vld [vmem:[#allocation5 + $0x14] sm:$0xf]
        %v228 = vld [vmem:[#allocation7] sm:$0x1]
        %v230 = vlaneseq
        %v231 = vshrl.u32 %v230, 7
        %v232 = vsub.s32 0, %v231
        %v233 = vrot.slane %v228, %v232
        %v241 = vunpack.c.l.b16 %v222
        %v242 = vunpack.c.l.b16 %v223
        %v243 = vunpack.c.l.b16 %v224
        %v244 = vunpack.c.l.b16 %v225
        %v245 = vunpack.c.l.b16 %v226
        %v246 = vunpack.c.l.b16 %v227
        %v247 = vpack.c.b16 %v242, %v241
        %v248 = vpack.c.b16 %v244, %v243
        %v249 = vpack.c.b16 %v246, %v245
        %vm253 = vcmask 392192
        %v255 = vsel %vm253, %v221, 0
        %257 = vmatprep.subr.bf16.mxu0 0
        %258 = vmatpush1.bf16.msra.mxu0 %v247
        %259 = vmatprep.subr.bf16.mxu0 0
        %260 = vmatpush1.bf16.msra.mxu0 %v248
        %261 = vmatprep.subr.bf16.mxu0 0
        %262 = vmatpush1.bf16.msra.mxu0 %v249
        %263 = vmatprep.subr.bf16.mxu0 0
        %264 = vmatpush1.bf16.msra.mxu0 0
        %265 = vmatprep.subr.bf16.mxu0 0
        %266 = vmatpush1.bf16.msra.mxu0 0
        %267 = vmatprep.subr.bf16.mxu0 0
        %268 = vmatpush1.bf16.msra.mxu0 0
        %269 = vmatprep.subr.bf16.mxu0 0
        %270 = vmatpush1.bf16.msra.mxu0 0
        %271 = vmatprep.subr.bf16.mxu0 0
        %272 = vmatpush1.bf16.msra.mxu0 0
        %273 = vmatprep.subr.bf16.mxu0 0
        %274 = vmatpush1.bf16.msra.mxu0 0
        %275 = vmatprep.subr.bf16.mxu0 0
        %276 = vmatpush1.bf16.msra.mxu0 0
        %277 = vmatprep.subr.bf16.mxu0 0
        %278 = vmatpush1.bf16.msra.mxu0 0
        %279 = vmatprep.subr.bf16.mxu0 0
        %280 = vmatpush1.bf16.msra.mxu0 0
        %281 = vmatprep.subr.bf16.mxu0 0
        %282 = vmatpush1.bf16.msra.mxu0 0
        %283 = vmatprep.subr.bf16.mxu0 0
        %284 = vmatpush1.bf16.msra.mxu0 0
        %285 = vmatprep.subr.bf16.mxu0 0
        %286 = vmatpush1.bf16.msra.mxu0 0
        %287 = vmatprep.subr.bf16.mxu0 0
        %288 = vmatpush1.bf16.msra.mxu0 0
        %289 = vmatprep.mubr.bf16.mxu0 0
        %290 = vmatmul.mubr.bf16.gmra.mrb[0].mxu0 %v255
        %v291 = vpop.f32.mrb[0].mxu0
        %v292 = vadd.f32 %v233, %v291
        %v293 = vpop.f32.mrb[0].mxu0
        %v294 = vpop.f32.mrb[0].mxu0
        %v295 = vadd.f32 %v233, %v294
        %v296 = vpop.f32.mrb[0].mxu0
        %297 = vdwg.mxu0
        %vm298 = vcmask 261120
        %299 = vst.msk [vmem:[%s215] sm:$0xff] %vm298, %v292
        %300 = vst.msk [vmem:[%s215 + $0x8] sm:$0xff] %vm298, %v295
        %s301 = sand.u32 %s97, 1
        %s302 = scalar_lea.sflag [#allocation4], %s301
        %s303 = sand.u32 %s97, 1
        %s304 = smul.addr %s303, 16
        %s305 = scalar_lea.vmem [#allocation8], %s304
        // Predicated region
        $region45: #{swin_backbone_forward.16} parent=31 // pred_check
          %p306 = pneg %p107
        $region46: #{swin_backbone_forward.16} parent=31 // pred_check_branch
          %308 = sbr.rel (%p306) target = $region48
        $region47: #{swin_backbone_forward.16} parent=31 // pred_region
          %s309 = smul.u32 2, %s21
          %s311 = ssub.s32 256, 256
          %312 = vsyncadd %s302, %s311
          %s313 = smul.addr %s309, 128
          %s314 = scalar_lea.hbm %s3, %s313
          %s315 = sshll.u32 %s305, 4
          %s316 = int_to_ptr.vmem [resolvable:$true] %s315
          %321 = dma.vmem_to_hbm [thread:$0]  %s316, 256, %s314, %s302, 128, 128, 8
        $region48: #{swin_backbone_forward.16} parent=31 // pred_fallthru
          _
      $region32: #{swin_backbone_forward.16} parent=5 // pred_fallthru
        _
      %p322 = scmp.le.s32.totalorder 2, %s16
      // Predicated region
      $region49: #{swin_backbone_forward.16} parent=5 // pred_check
        %p323 = pneg %p322
      $region50: #{swin_backbone_forward.16} parent=5 // pred_check_branch
        %325 = sbr.rel (%p323) target = $region52
      $region51: #{swin_backbone_forward.16} parent=5 // pred_region
        %s326 = ssub.s32 %s16, 2
        // Predicated region
        $region53: #{swin_backbone_forward.16} parent=51 // pred_check
          %p327 = pneg %p113
        $region54: #{swin_backbone_forward.16} parent=51 // pred_check_branch
          %329 = sbr.rel (%p327) target = $region56
        $region55: #{swin_backbone_forward.16} parent=51 // pred_region
          %s330 = sand.u32 %s98, 1
          %s331 = scalar_lea.sflag [#allocation4], %s330
          %s332 = sand.u32 %s98, 1
          %s333 = smul.addr %s332, 16
          %s334 = scalar_lea.vmem [#allocation8], %s333
          %335 = dma.done %s331, 256
        $region56: #{swin_backbone_forward.16} parent=51 // pred_fallthru
          _
      $region52: #{swin_backbone_forward.16} parent=5 // pred_fallthru
        _
    $region6: #{swin_backbone_forward.16} parent=1 // loop_footer
      %s20 = sadd.s32 1, %s16
    $region7: #{swin_backbone_forward.16} parent=1 // loop_footer_branch
      %15 = sbr.rel target = $region3
    $region8: #{swin_backbone_forward.16} parent=1 // loop_exit
      _
    %336 = vsyncpa [#allocation3], 1
    %s337 = scalar_lea.sflag [#allocation3], 1
    %338 = vsyncpa %s337, 1
    %339 = vsyncpa [#allocation6], 1
    %340 = vsyncpa [#allocation4], 1
    %s341 = scalar_lea.sflag [#allocation4], 1
    %342 = vsyncpa %s341, 1

// kernel: swin_backbone_forward.17
$region0: #{swin_backbone_forward.17}
  #allocation0 [shape = 'u32[]', space=smem, size = 0x4, offset = 0x4, fixed_abs, tag = 'smem constant byte address 0x4 - core index']
  #allocation1 [shape = 'u32[144,128]{1,0:T(1,128)}', space=vmem, size = 0x12000, scoped, tag = 'internal scratch']
  %s0 = inlined_call_operand.hbm [shape: f32[32,32], index: 0, kind: input, shape index: {}]
  %s1 = inlined_call_operand.hbm [shape: f32[1,32], index: 1, kind: input, shape index: {}]
  %s2 = inlined_call_operand.hbm [shape: f32[1,32], index: 2, kind: input, shape index: {}]
  %s3 = inlined_call_operand.hbm [shape: bf16[32,96], index: 3, kind: input, shape index: {}]
  %s4 = inlined_call_operand.hbm [shape: f32[1,96], index: 4, kind: input, shape index: {}]
  %s5 = inlined_call_operand.hbm [shape: bf16[32,96], index: 5, kind: output, shape index: {}]
  %s6 = sld [smem:[#allocation0]]
  $region73: #{swin_backbone_forward.17} parent=0
    _
  %s8 = ssub.s32 1, %s6
  %s9 = scalar_select 0, %s8, %s6
  $region1: #{swin_backbone_forward.17} parent=0
    #allocation2 [shape = 'u8[16384]{0}', space=vmem, size = 0x4000, scoped, tag = 'input window, operand 0']
    #allocation3 [shape = 's32[2]{0}', space=sflag, size = 0x8, scoped, tag = 'scoped memory for swin_backbone_forward.17']
    #allocation4 [shape = 's32[2]{0}', space=sflag, size = 0x8, scoped, tag = 'scoped memory for swin_backbone_forward.17']
    #allocation5 [shape = 'u8[512]{0}', space=vmem, size = 0x400, scoped, tag = 'input window, operand 1, single buffered']
    #allocation6 [shape = 's32[1]{0}', space=sflag, size = 0x4, scoped, tag = 'scoped memory for swin_backbone_forward.17']
    #allocation7 [shape = 'u8[512]{0}', space=vmem, size = 0x400, scoped, tag = 'input window, operand 2, single buffered']
    #allocation8 [shape = 'u8[8192]{0}', space=vmem, size = 0x2000, scoped, tag = 'input window, operand 3, single buffered']
    #allocation9 [shape = 's32[1]{0}', space=sflag, size = 0x4, scoped, tag = 'scoped memory for swin_backbone_forward.17']
    #allocation10 [shape = 'u8[512]{0}', space=vmem, size = 0x400, scoped, tag = 'input window, operand 4, single buffered']
    #allocation11 [shape = 'u8[8192]{0}', space=vmem, size = 0x2000, scoped, tag = 'output window, operand 0']
    %10 = vsyncpa [#allocation3], 0
    %s11 = scalar_lea.sflag [#allocation3], 1
    %12 = vsyncpa %s11, 0
    %13 = vsyncpa [#allocation6], 0
    %14 = vsyncpa [#allocation9], 0
    %15 = vsyncpa [#allocation4], 0
    %s16 = scalar_lea.sflag [#allocation4], 1
    %17 = vsyncpa %s16, 0
    loop: start=0, step=1, limit=4
    $region2: #{swin_backbone_forward.17} parent=1 // loop_pre_header
      _
    $region3: #{swin_backbone_forward.17} parent=1 // loop_header
      %s19 = sphi 0, %s23
      %p20 = scmp.ge.s32.totalorder %s19, 4
      %s29 = sphi 0, %s31
      %s32 = sphi 0, %s29
      %s33 = sphi 0, %s32
      %s49 = sphi 0, %s33
      %s53 = sphi 0, %s53
      %s55 = sphi 0, %s53
      %s56 = sphi 0, %s55
      %s70 = sphi 0, %s56
      %s74 = sphi 0, %s74
      %s76 = sphi 0, %s74
      %s77 = sphi 0, %s76
      %s91 = sphi 0, %s77
      %s95 = sphi 0, %s95
      %s97 = sphi 0, %s95
      %s98 = sphi 0, %s97
      %s112 = sphi 0, %s98
      %s116 = sphi 0, %s116
      %s118 = sphi 0, %s116
      %s119 = sphi 0, %s118
      %s133 = sphi 0, %s119
      %s139 = sphi 0, %s141
      %s142 = sphi 0, %s139
      %s143 = sphi 0, %s142
      %s159 = sphi 0, %s143
    $region4: #{swin_backbone_forward.17} parent=1 // loop_header_branch
      %22 = sbr.rel (%p20) target = $region8
    $region5: #{swin_backbone_forward.17} parent=1 // loop_body
      %s24 = ssub.s32 %s19, 1
      %s25 = ssub.s32 %s19, 2
      %s26 = sadd.s32 %s19, 1
      %s27 = ssub.s32 %s19, %s26
      %p28 = scmp.eq.s32.totalorder %s27, 0
      %s30 = sadd.s32 %s29, 1
      %s31 = scalar_select %p28, %s29, %s30
      %p34 = pneg %p28
      %p35 = scmp.eq.s32.totalorder %s19, 1
      %p36 = por %p34, %p35
      %p37 = scmp.ne.s32.totalorder %s29, %s32
      %p38 = scmp.eq.s32.totalorder %s19, 0
      %p39 = por %p37, %p38
      %p40 = scmp.ne.s32.totalorder %s29, %s32
      %p41 = scmp.eq.s32.totalorder %s24, 1
      %p42 = por %p40, %p41
      %p43 = scmp.ne.s32.totalorder %s32, %s33
      %p44 = scmp.eq.s32.totalorder %s24, 0
      %p45 = por %p43, %p44
      %p46 = scmp.ne.s32.totalorder %s32, %s33
      %p47 = scmp.eq.s32.totalorder %s25, 1
      %p48 = por %p46, %p47
      %p50 = scmp.ne.s32.totalorder %s33, %s49
      %p51 = scmp.eq.s32.totalorder %s25, 0
      %p52 = por %p50, %p51
      %s54 = sadd.s32 %s53, 1
      %p57 = scmp.eq.s32.totalorder %s19, 1
      %p58 = scmp.ne.s32.totalorder %s53, %s55
      %p59 = scmp.eq.s32.totalorder %s19, 0
      %p60 = por %p58, %p59
      %p61 = scmp.ne.s32.totalorder %s53, %s55
      %p62 = scmp.eq.s32.totalorder %s24, 1
      %p63 = por %p61, %p62
      %p64 = scmp.ne.s32.totalorder %s55, %s56
      %p65 = scmp.eq.s32.totalorder %s24, 0
      %p66 = por %p64, %p65
      %p67 = scmp.ne.s32.totalorder %s55, %s56
      %p68 = scmp.eq.s32.totalorder %s25, 1
      %p69 = por %p67, %p68
      %p71 = scmp.ne.s32.totalorder %s56, %s70
      %p72 = scmp.eq.s32.totalorder %s25, 0
      %p73 = por %p71, %p72
      %s75 = sadd.s32 %s74, 1
      %p78 = scmp.eq.s32.totalorder %s19, 1
      %p79 = scmp.ne.s32.totalorder %s74, %s76
      %p80 = scmp.eq.s32.totalorder %s19, 0
      %p81 = por %p79, %p80
      %p82 = scmp.ne.s32.totalorder %s74, %s76
      %p83 = scmp.eq.s32.totalorder %s24, 1
      %p84 = por %p82, %p83
      %p85 = scmp.ne.s32.totalorder %s76, %s77
      %p86 = scmp.eq.s32.totalorder %s24, 0
      %p87 = por %p85, %p86
      %p88 = scmp.ne.s32.totalorder %s76, %s77
      %p89 = scmp.eq.s32.totalorder %s25, 1
      %p90 = por %p88, %p89
      %p92 = scmp.ne.s32.totalorder %s77, %s91
      %p93 = scmp.eq.s32.totalorder %s25, 0
      %p94 = por %p92, %p93
      %s96 = sadd.s32 %s95, 1
      %p99 = scmp.eq.s32.totalorder %s19, 1
      %p100 = scmp.ne.s32.totalorder %s95, %s97
      %p101 = scmp.eq.s32.totalorder %s19, 0
      %p102 = por %p100, %p101
      %p103 = scmp.ne.s32.totalorder %s95, %s97
      %p104 = scmp.eq.s32.totalorder %s24, 1
      %p105 = por %p103, %p104
      %p106 = scmp.ne.s32.totalorder %s97, %s98
      %p107 = scmp.eq.s32.totalorder %s24, 0
      %p108 = por %p106, %p107
      %p109 = scmp.ne.s32.totalorder %s97, %s98
      %p110 = scmp.eq.s32.totalorder %s25, 1
      %p111 = por %p109, %p110
      %p113 = scmp.ne.s32.totalorder %s98, %s112
      %p114 = scmp.eq.s32.totalorder %s25, 0
      %p115 = por %p113, %p114
      %s117 = sadd.s32 %s116, 1
      %p120 = scmp.eq.s32.totalorder %s19, 1
      %p121 = scmp.ne.s32.totalorder %s116, %s118
      %p122 = scmp.eq.s32.totalorder %s19, 0
      %p123 = por %p121, %p122
      %p124 = scmp.ne.s32.totalorder %s116, %s118
      %p125 = scmp.eq.s32.totalorder %s24, 1
      %p126 = por %p124, %p125
      %p127 = scmp.ne.s32.totalorder %s118, %s119
      %p128 = scmp.eq.s32.totalorder %s24, 0
      %p129 = por %p127, %p128
      %p130 = scmp.ne.s32.totalorder %s118, %s119
      %p131 = scmp.eq.s32.totalorder %s25, 1
      %p132 = por %p130, %p131
      %p134 = scmp.ne.s32.totalorder %s119, %s133
      %p135 = scmp.eq.s32.totalorder %s25, 0
      %p136 = por %p134, %p135
      %s137 = ssub.s32 %s19, %s26
      %p138 = scmp.eq.s32.totalorder %s137, 0
      %s140 = sadd.s32 %s139, 1
      %s141 = scalar_select %p138, %s139, %s140
      %p144 = pneg %p138
      %p145 = scmp.eq.s32.totalorder %s19, 1
      %p146 = por %p144, %p145
      %p147 = scmp.ne.s32.totalorder %s139, %s142
      %p148 = scmp.eq.s32.totalorder %s19, 0
      %p149 = por %p147, %p148
      %p150 = scmp.ne.s32.totalorder %s139, %s142
      %p151 = scmp.eq.s32.totalorder %s24, 1
      %p152 = por %p150, %p151
      %p153 = scmp.ne.s32.totalorder %s142, %s143
      %p154 = scmp.eq.s32.totalorder %s24, 0
      %p155 = por %p153, %p154
      %p156 = scmp.ne.s32.totalorder %s142, %s143
      %p157 = scmp.eq.s32.totalorder %s25, 1
      %p158 = por %p156, %p157
      %p160 = scmp.ne.s32.totalorder %s143, %s159
      %p161 = scmp.eq.s32.totalorder %s25, 0
      %p162 = por %p160, %p161
      %p163 = scmp.le.s32.totalorder 1, %s19
      %p164 = scmp.lt.s32.totalorder %s19, 3
      %p165 = pnand %p163, %p164
      %p166 = pneg %p165
      // Predicated region
      $region9: #{swin_backbone_forward.17} parent=5 // pred_check
        _
      $region10: #{swin_backbone_forward.17} parent=5 // pred_check_branch
        %168 = sbr.rel (%p165) target = $region12
      $region11: #{swin_backbone_forward.17} parent=5 // pred_region
        %s169 = ssub.s32 %s19, 1
        // Predicated region
        $region13: #{swin_backbone_forward.17} parent=11 // pred_check
          %p170 = pneg %p66
        $region14: #{swin_backbone_forward.17} parent=11 // pred_check_branch
          %172 = sbr.rel (%p170) target = $region16
        $region15: #{swin_backbone_forward.17} parent=11 // pred_region
          %s174 = ssub.s32 16, 16
          %175 = vsyncadd [#allocation6], %s174
          %s177 = sshll.u32 [#allocation5], 4
          %s178 = int_to_ptr.vmem [resolvable:$true] %s177
          %180 = dma.hbm_to_vmem [thread:$0]  %s1, 16, %s178, [#allocation6]
        $region16: #{swin_backbone_forward.17} parent=11 // pred_fallthru
          _
        // Predicated region
        $region17: #{swin_backbone_forward.17} parent=11 // pred_check
          %p181 = pneg %p87
        $region18: #{swin_backbone_forward.17} parent=11 // pred_check_branch
          %183 = sbr.rel (%p181) target = $region20
        $region19: #{swin_backbone_forward.17} parent=11 // pred_region
          %s185 = ssub.s32 16, 16
          %186 = vsyncadd [#allocation6], %s185
          %s188 = sshll.u32 [#allocation7], 4
          %s189 = int_to_ptr.vmem [resolvable:$true] %s188
          %191 = dma.hbm_to_vmem [thread:$0]  %s2, 16, %s189, [#allocation6]
        $region20: #{swin_backbone_forward.17} parent=11 // pred_fallthru
          _
        // Predicated region
        $region21: #{swin_backbone_forward.17} parent=11 // pred_check
          %p192 = pneg %p108
        $region22: #{swin_backbone_forward.17} parent=11 // pred_check_branch
          %194 = sbr.rel (%p192) target = $region24
        $region23: #{swin_backbone_forward.17} parent=11 // pred_region
          %s196 = ssub.s32 256, 256
          %197 = vsyncadd [#allocation9], %s196
          %s198 = sshll.u32 [#allocation8], 4
          %s199 = int_to_ptr.vmem [resolvable:$true] %s198
          %204 = dma.hbm_to_vmem [thread:$0]  %s3, 256, %s199, [#allocation9], 64, 64, 4
        $region24: #{swin_backbone_forward.17} parent=11 // pred_fallthru
          _
        // Predicated region
        $region25: #{swin_backbone_forward.17} parent=11 // pred_check
          %p205 = pneg %p129
        $region26: #{swin_backbone_forward.17} parent=11 // pred_check_branch
          %207 = sbr.rel (%p205) target = $region28
        $region27: #{swin_backbone_forward.17} parent=11 // pred_region
          %s209 = ssub.s32 16, 16
          %210 = vsyncadd [#allocation9], %s209
          %s212 = sshll.u32 [#allocation10], 4
          %s213 = int_to_ptr.vmem [resolvable:$true] %s212
          %215 = dma.hbm_to_vmem [thread:$0]  %s4, 16, %s213, [#allocation9]
        $region28: #{swin_backbone_forward.17} parent=11 // pred_fallthru
          _
      $region12: #{swin_backbone_forward.17} parent=5 // pred_fallthru
        _
      %p216 = scmp.lt.s32.totalorder %s19, 2
      // Predicated region
      $region29: #{swin_backbone_forward.17} parent=5 // pred_check
        %p217 = pneg %p216
      $region30: #{swin_backbone_forward.17} parent=5 // pred_check_branch
        %219 = sbr.rel (%p217) target = $region32
      $region31: #{swin_backbone_forward.17} parent=5 // pred_region
        // Predicated region
        $region33: #{swin_backbone_forward.17} parent=31 // pred_check
          %p220 = pneg %p39
        $region34: #{swin_backbone_forward.17} parent=31 // pred_check_branch
          %222 = sbr.rel (%p220) target = $region36
        $region35: #{swin_backbone_forward.17} parent=31 // pred_region
          %s223 = sand.u32 %s29, 1
          %s224 = scalar_lea.sflag [#allocation3], %s223
          %s225 = sand.u32 %s29, 1
          %s226 = smul.addr %s225, 16
          %s227 = scalar_lea.vmem [#allocation2], %s226
          %s228 = smul.u32 2, %s19
          %s230 = ssub.s32 256, 256
          %231 = vsyncadd %s224, %s230
          %s232 = smul.addr %s228, 128
          %s233 = scalar_lea.hbm %s0, %s232
          %s234 = sshll.u32 %s227, 4
          %s235 = int_to_ptr.vmem [resolvable:$true] %s234
          %240 = dma.hbm_to_vmem [thread:$0]  %s233, 256, %s235, %s224, 128, 128, 8
        $region36: #{swin_backbone_forward.17} parent=31 // pred_fallthru
          _
      $region32: #{swin_backbone_forward.17} parent=5 // pred_fallthru
        _
      %p241 = scmp.le.s32.totalorder 1, %s19
      %p242 = scmp.lt.s32.totalorder %s19, 3
      %p243 = pnand %p241, %p242
      %p244 = pneg %p243
      // Predicated region
      $region37: #{swin_backbone_forward.17} parent=5 // pred_check
        _
      $region38: #{swin_backbone_forward.17} parent=5 // pred_check_branch
        %246 = sbr.rel (%p243) target = $region40
      $region39: #{swin_backbone_forward.17} parent=5 // pred_region
        %s247 = ssub.s32 %s19, 1
        %s248 = sand.u32 %s32, 1
        %s249 = scalar_lea.sflag [#allocation3], %s248
        %s250 = sand.u32 %s32, 1
        %s251 = smul.addr %s250, 16
        %s252 = scalar_lea.vmem [#allocation2], %s251
        // Predicated region
        $region41: #{swin_backbone_forward.17} parent=39 // pred_check
          %p253 = pneg %p45
        $region42: #{swin_backbone_forward.17} parent=39 // pred_check_branch
          %255 = sbr.rel (%p253) target = $region44
        $region43: #{swin_backbone_forward.17} parent=39 // pred_region
          %256 = dma.done %s249, 256
        $region44: #{swin_backbone_forward.17} parent=39 // pred_fallthru
          _
        // Predicated region
        $region45: #{swin_backbone_forward.17} parent=39 // pred_check
          %p257 = pneg %p66
        $region46: #{swin_backbone_forward.17} parent=39 // pred_check_branch
          %259 = sbr.rel (%p257) target = $region48
        $region47: #{swin_backbone_forward.17} parent=39 // pred_region
          %260 = dma.done [#allocation6], 16
        $region48: #{swin_backbone_forward.17} parent=39 // pred_fallthru
          _
        // Predicated region
        $region49: #{swin_backbone_forward.17} parent=39 // pred_check
          %p261 = pneg %p87
        $region50: #{swin_backbone_forward.17} parent=39 // pred_check_branch
          %263 = sbr.rel (%p261) target = $region52
        $region51: #{swin_backbone_forward.17} parent=39 // pred_region
          %264 = dma.done [#allocation6], 16
        $region52: #{swin_backbone_forward.17} parent=39 // pred_fallthru
          _
        // Predicated region
        $region53: #{swin_backbone_forward.17} parent=39 // pred_check
          %p265 = pneg %p108
        $region54: #{swin_backbone_forward.17} parent=39 // pred_check_branch
          %267 = sbr.rel (%p265) target = $region56
        $region55: #{swin_backbone_forward.17} parent=39 // pred_region
          %268 = dma.done [#allocation9], 256
        $region56: #{swin_backbone_forward.17} parent=39 // pred_fallthru
          _
        // Predicated region
        $region57: #{swin_backbone_forward.17} parent=39 // pred_check
          %p269 = pneg %p129
        $region58: #{swin_backbone_forward.17} parent=39 // pred_check_branch
          %271 = sbr.rel (%p269) target = $region60
        $region59: #{swin_backbone_forward.17} parent=39 // pred_region
          %272 = dma.done [#allocation9], 16
        $region60: #{swin_backbone_forward.17} parent=39 // pred_fallthru
          _
        %s273 = sand.u32 %s32, 1
        %s274 = scalar_lea.sflag [#allocation3], %s273
        %s275 = sand.u32 %s32, 1
        %s276 = smul.addr %s275, 16
        %s277 = scalar_lea.vmem [#allocation2], %s276
        %p278 = pneg %p45
        %p279 = pneg %p42
        %p280 = pneg %p66
        %p281 = pneg %p63
        %p282 = pneg %p87
        %p283 = pneg %p84
        %p284 = pneg %p108
        %p285 = pneg %p105
        %p286 = pneg %p129
        %p287 = pneg %p126
        %p288 = pneg %p155
        %p289 = pneg %p152
        %s290 = sand.u32 %s142, 1
        %s291 = scalar_lea.sflag [#allocation4], %s290
        %s292 = sand.u32 %s142, 1
        %s293 = smul.addr %s292, 8
        %s294 = scalar_lea.vmem [#allocation11], %s293
        %s295 = smul.u32 2, %s24
        %s296 = smul.u32 2, %s24
        %v298 = vld [vmem:[%s252] sm:$0xff]
        %v299 = vld [vmem:[%s252 + $0x8] sm:$0xff]
        %vm300 = vcmask 261120
        %v301 = vsel %vm300, %v298, 0.0
        %302 = vadd.xlane.f32.xlu0 %v301
        %v303 = vpop.xlane.xlu0 %302
        %v304 = vsel %vm300, %v299, 0.0
        %305 = vadd.xlane.f32.xlu0 %v304
        %v306 = vpop.xlane.xlu0 %305
        %v307 = vrcp.pop 32.0
        %v308 = vmul.f32 %v303, %v307
        %v309 = vmul.f32 %v306, %v307
        %v310 = vsub.f32 %v298, %v308
        %v311 = vsub.f32 %v299, %v309
        %v312 = vmul.f32 %v310, %v310
        %v313 = vmul.f32 %v311, %v311
        %v314 = vsel %vm300, %v312, 0.0
        %315 = vadd.xlane.f32.xlu0 %v314
        %v316 = vpop.xlane.xlu0 %315
        %v317 = vsel %vm300, %v313, 0.0
        %318 = vadd.xlane.f32.xlu0 %v317
        %v319 = vpop.xlane.xlu0 %318
        %v320 = vmul.f32 %v316, %v307
        %v321 = vmul.f32 %v319, %v307
        %v322 = vadd.f32 %v320, 1e-05
        %v323 = vadd.f32 %v321, 1e-05
        %v324 = vrsqrt.pop %v322
        %v325 = vrsqrt.pop %v323
        %v326 = vmul.f32 %v310, %v324
        %v327 = vmul.f32 %v311, %v325
        %v328 = vld [vmem:[#allocation5] sm:$0x1]
        %v330 = vlaneseq
        %v331 = vshrl.u32 %v330, 7
        %v332 = vsub.s32 0, %v331
        %v333 = vrot.slane %v328, %v332
        %v335 = vmul.f32 %v326, %v333
        %v336 = vmul.f32 %v327, %v333
        %v337 = vld [vmem:[#allocation7] sm:$0x1]
        %v339 = vlaneseq
        %v340 = vshrl.u32 %v339, 7
        %v341 = vsub.s32 0, %v340
        %v342 = vrot.slane %v337, %v341
        %v344 = vadd.f32 %v335, %v342
        %v345 = vadd.f32 %v336, %v342
        %v346 = vpack.c.bf16 %v345, %v344
        %v347 = vld [vmem:[#allocation8] sm:$0xf]
        %v348 = vld [vmem:[#allocation8 + $0x4] sm:$0xf]
        %v349 = vld [vmem:[#allocation8 + $0x8] sm:$0xf]
        %v350 = vld [vmem:[#allocation8 + $0xc] sm:$0xf]
        %v351 = vld [vmem:[#allocation10] sm:$0x1]
        %v353 = vlaneseq
        %v354 = vshrl.u32 %v353, 7
        %v355 = vsub.s32 0, %v354
        %v356 = vrot.slane %v351, %v355
        %v362 = vunpack.c.l.b16 %v347
        %v363 = vunpack.c.l.b16 %v348
        %v364 = vunpack.c.l.b16 %v349
        %v365 = vunpack.c.l.b16 %v350
        %v366 = vpack.c.b16 %v363, %v362
        %v367 = vpack.c.b16 %v365, %v364
        %v371 = vsel %vm300, %v346, 0
        %373 = vmatprep.subr.bf16.mxu0 0
        %374 = vmatpush1.bf16.msra.mxu0 %v366
        %375 = vmatprep.subr.bf16.mxu0 0
        %376 = vmatpush1.bf16.msra.mxu0 %v367
        %377 = vmatprep.subr.bf16.mxu0 0
        %378 = vmatpush1.bf16.msra.mxu0 0
        %379 = vmatprep.subr.bf16.mxu0 0
        %380 = vmatpush1.bf16.msra.mxu0 0
        %381 = vmatprep.subr.bf16.mxu0 0
        %382 = vmatpush1.bf16.msra.mxu0 0
        %383 = vmatprep.subr.bf16.mxu0 0
        %384 = vmatpush1.bf16.msra.mxu0 0
        %385 = vmatprep.subr.bf16.mxu0 0
        %386 = vmatpush1.bf16.msra.mxu0 0
        %387 = vmatprep.subr.bf16.mxu0 0
        %388 = vmatpush1.bf16.msra.mxu0 0
        %389 = vmatprep.subr.bf16.mxu0 0
        %390 = vmatpush1.bf16.msra.mxu0 0
        %391 = vmatprep.subr.bf16.mxu0 0
        %392 = vmatpush1.bf16.msra.mxu0 0
        %393 = vmatprep.subr.bf16.mxu0 0
        %394 = vmatpush1.bf16.msra.mxu0 0
        %395 = vmatprep.subr.bf16.mxu0 0
        %396 = vmatpush1.bf16.msra.mxu0 0
        %397 = vmatprep.subr.bf16.mxu0 0
        %398 = vmatpush1.bf16.msra.mxu0 0
        %399 = vmatprep.subr.bf16.mxu0 0
        %400 = vmatpush1.bf16.msra.mxu0 0
        %401 = vmatprep.subr.bf16.mxu0 0
        %402 = vmatpush1.bf16.msra.mxu0 0
        %403 = vmatprep.subr.bf16.mxu0 0
        %404 = vmatpush1.bf16.msra.mxu0 0
        %405 = vmatprep.mubr.bf16.mxu0 0
        %406 = vmatmul.mubr.bf16.gmra.mrb[0].mxu0 %v371
        %v407 = vpop.f32.mrb[0].mxu0
        %v408 = vadd.f32 %v356, %v407
        %v409 = vpop.f32.mrb[0].mxu0
        %v410 = vpop.f32.mrb[0].mxu0
        %v411 = vadd.f32 %v356, %v410
        %v412 = vpop.f32.mrb[0].mxu0
        %413 = vdwg.mxu0
        %v414 = vpack.c.bf16 %v411, %v408
        %v416 = vunpack.c.l.b16 %v414
        %v417 = vunpack.c.h.b16 %v414
        %v418 = vpack.c.b16 %v416, %v416
        %v419 = vpack.c.b16 %v417, %v417
        %vm422 = vcmask 781312
        %423 = vst.msk [vmem:[%s294] sm:$0xf] %vm422, %v418
        %424 = vst.msk [vmem:[%s294 + $0x4] sm:$0xf] %vm422, %v419
        %s425 = sand.u32 %s142, 1
        %s426 = scalar_lea.sflag [#allocation4], %s425
        %s427 = sand.u32 %s142, 1
        %s428 = smul.addr %s427, 8
        %s429 = scalar_lea.vmem [#allocation11], %s428
        // Predicated region
        $region61: #{swin_backbone_forward.17} parent=39 // pred_check
          %p430 = pneg %p152
        $region62: #{swin_backbone_forward.17} parent=39 // pred_check_branch
          %432 = sbr.rel (%p430) target = $region64
        $region63: #{swin_backbone_forward.17} parent=39 // pred_region
          %s433 = smul.u32 2, %s24
          %s435 = ssub.s32 128, 128
          %436 = vsyncadd %s426, %s435
          %s437 = smul.addr %s433, 64
          %s438 = scalar_lea.hbm %s5, %s437
          %s439 = sshll.u32 %s429, 4
          %s440 = int_to_ptr.vmem [resolvable:$true] %s439
          %445 = dma.vmem_to_hbm [thread:$0]  %s440, 128, %s438, %s426, 64, 64, 4
        $region64: #{swin_backbone_forward.17} parent=39 // pred_fallthru
          _
      $region40: #{swin_backbone_forward.17} parent=5 // pred_fallthru
        _
      %p446 = scmp.le.s32.totalorder 2, %s19
      // Predicated region
      $region65: #{swin_backbone_forward.17} parent=5 // pred_check
        %p447 = pneg %p446
      $region66: #{swin_backbone_forward.17} parent=5 // pred_check_branch
        %449 = sbr.rel (%p447) target = $region68
      $region67: #{swin_backbone_forward.17} parent=5 // pred_region
        %s450 = ssub.s32 %s19, 2
        // Predicated region
        $region69: #{swin_backbone_forward.17} parent=67 // pred_check
          %p451 = pneg %p158
        $region70: #{swin_backbone_forward.17} parent=67 // pred_check_branch
          %453 = sbr.rel (%p451) target = $region72
        $region71: #{swin_backbone_forward.17} parent=67 // pred_region
          %s454 = sand.u32 %s143, 1
          %s455 = scalar_lea.sflag [#allocation4], %s454
          %s456 = sand.u32 %s143, 1
          %s457 = smul.addr %s456, 8
          %s458 = scalar_lea.vmem [#allocation11], %s457
          %459 = dma.done %s455, 128
        $region72: #{swin_backbone_forward.17} parent=67 // pred_fallthru
          _
      $region68: #{swin_backbone_forward.17} parent=5 // pred_fallthru
        _
    $region6: #{swin_backbone_forward.17} parent=1 // loop_footer
      %s23 = sadd.s32 1, %s19
    $region7: #{swin_backbone_forward.17} parent=1 // loop_footer_branch
      %18 = sbr.rel target = $region3
    $region8: #{swin_backbone_forward.17} parent=1 // loop_exit
      _
    %460 = vsyncpa [#allocation3], 1
    %s461 = scalar_lea.sflag [#allocation3], 1
    %462 = vsyncpa %s461, 1
    %463 = vsyncpa [#allocation6], 1
    %464 = vsyncpa [#allocation9], 1
    %465 = vsyncpa [#allocation4], 1
    %s466 = scalar_lea.sflag [#allocation4], 1
    %467 = vsyncpa %s466, 1

// kernel: swin_backbone_forward.19
$region0: #{swin_backbone_forward.19}
  #allocation0 [shape = 'u32[]', space=smem, size = 0x4, offset = 0x4, fixed_abs, tag = 'smem constant byte address 0x4 - core index']
  #allocation1 [shape = 'u32[144,128]{1,0:T(1,128)}', space=vmem, size = 0x12000, scoped, tag = 'internal scratch']
  %s0 = inlined_call_operand.hbm [shape: f32[32,32], index: 0, kind: input, shape index: {}]
  %s1 = inlined_call_operand.hbm [shape: bf16[32,32], index: 1, kind: input, shape index: {}]
  %s2 = inlined_call_operand.hbm [shape: bf16[32,32], index: 2, kind: input, shape index: {}]
  %s3 = inlined_call_operand.hbm [shape: f32[1,32], index: 3, kind: input, shape index: {}]
  %s4 = inlined_call_operand.hbm [shape: f32[1,32], index: 4, kind: input, shape index: {}]
  %s5 = inlined_call_operand.hbm [shape: f32[1,32], index: 5, kind: input, shape index: {}]
  %s6 = inlined_call_operand.hbm [shape: bf16[32,128], index: 6, kind: input, shape index: {}]
  %s7 = inlined_call_operand.hbm [shape: f32[1,128], index: 7, kind: input, shape index: {}]
  %s8 = inlined_call_operand.hbm [shape: bf16[128,32], index: 8, kind: input, shape index: {}]
  %s9 = inlined_call_operand.hbm [shape: f32[1,32], index: 9, kind: input, shape index: {}]
  %s10 = inlined_call_operand.hbm [shape: f32[32,32], index: 10, kind: output, shape index: {}]
  %s11 = sld [smem:[#allocation0]]
  $region113: #{swin_backbone_forward.19} parent=0
    _
  %s13 = ssub.s32 1, %s11
  %s14 = scalar_select 0, %s13, %s11
  $region1: #{swin_backbone_forward.19} parent=0
    #allocation2 [shape = 'u8[16384]{0}', space=vmem, size = 0x4000, scoped, tag = 'input window, operand 0']
    #allocation3 [shape = 's32[2]{0}', space=sflag, size = 0x8, scoped, tag = 'scoped memory for swin_backbone_forward.19']
    #allocation4 [shape = 's32[2]{0}', space=sflag, size = 0x8, scoped, tag = 'scoped memory for swin_backbone_forward.19']
    #allocation5 [shape = 'u8[8192]{0}', space=vmem, size = 0x2000, scoped, tag = 'input window, operand 1']
    #allocation6 [shape = 's32[2]{0}', space=sflag, size = 0x8, scoped, tag = 'scoped memory for swin_backbone_forward.19']
    #allocation7 [shape = 'u8[8192]{0}', space=vmem, size = 0x2000, scoped, tag = 'input window, operand 2, single buffered']
    #allocation8 [shape = 'u8[512]{0}', space=vmem, size = 0x400, scoped, tag = 'input window, operand 3, single buffered']
    #allocation9 [shape = 's32[1]{0}', space=sflag, size = 0x4, scoped, tag = 'scoped memory for swin_backbone_forward.19']
    #allocation10 [shape = 'u8[512]{0}', space=vmem, size = 0x400, scoped, tag = 'input window, operand 4, single buffered']
    #allocation11 [shape = 'u8[512]{0}', space=vmem, size = 0x400, scoped, tag = 'input window, operand 5, single buffered']
    #allocation12 [shape = 's32[1]{0}', space=sflag, size = 0x4, scoped, tag = 'scoped memory for swin_backbone_forward.19']
    #allocation13 [shape = 'u8[8192]{0}', space=vmem, size = 0x2000, scoped, tag = 'input window, operand 6, single buffered']
    #allocation14 [shape = 'u8[512]{0}', space=vmem, size = 0x400, scoped, tag = 'input window, operand 7, single buffered']
    #allocation15 [shape = 's32[1]{0}', space=sflag, size = 0x4, scoped, tag = 'scoped memory for swin_backbone_forward.19']
    #allocation16 [shape = 'u8[32768]{0}', space=vmem, size = 0x8000, scoped, tag = 'input window, operand 8, single buffered']
    #allocation17 [shape = 'u8[512]{0}', space=vmem, size = 0x400, scoped, tag = 'input window, operand 9, single buffered']
    #allocation18 [shape = 's32[1]{0}', space=sflag, size = 0x4, scoped, tag = 'scoped memory for swin_backbone_forward.19']
    #allocation19 [shape = 'u8[16384]{0}', space=vmem, size = 0x4000, scoped, tag = 'output window, operand 0']
    %15 = vsyncpa [#allocation3], 0
    %s16 = scalar_lea.sflag [#allocation3], 1
    %17 = vsyncpa %s16, 0
    %18 = vsyncpa [#allocation6], 0
    %s19 = scalar_lea.sflag [#allocation6], 1
    %20 = vsyncpa %s19, 0
    %21 = vsyncpa [#allocation9], 0
    %22 = vsyncpa [#allocation12], 0
    %23 = vsyncpa [#allocation15], 0
    %24 = vsyncpa [#allocation18], 0
    %25 = vsyncpa [#allocation4], 0
    %s26 = scalar_lea.sflag [#allocation4], 1
    %27 = vsyncpa %s26, 0
    loop: start=0, step=1, limit=4
    $region2: #{swin_backbone_forward.19} parent=1 // loop_pre_header
      _
    $region3: #{swin_backbone_forward.19} parent=1 // loop_header
      %s29 = sphi 0, %s33
      %p30 = scmp.ge.s32.totalorder %s29, 4
      %s39 = sphi 0, %s41
      %s42 = sphi 0, %s39
      %s43 = sphi 0, %s42
      %s59 = sphi 0, %s43
      %s65 = sphi 0, %s67
      %s68 = sphi 0, %s65
      %s69 = sphi 0, %s68
      %s85 = sphi 0, %s69
      %s89 = sphi 0, %s89
      %s91 = sphi 0, %s89
      %s92 = sphi 0, %s91
      %s106 = sphi 0, %s92
      %s110 = sphi 0, %s110
      %s112 = sphi 0, %s110
      %s113 = sphi 0, %s112
      %s127 = sphi 0, %s113
      %s131 = sphi 0, %s131
      %s133 = sphi 0, %s131
      %s134 = sphi 0, %s133
      %s148 = sphi 0, %s134
      %s152 = sphi 0, %s152
      %s154 = sphi 0, %s152
      %s155 = sphi 0, %s154
      %s169 = sphi 0, %s155
      %s173 = sphi 0, %s173
      %s175 = sphi 0, %s173
      %s176 = sphi 0, %s175
      %s190 = sphi 0, %s176
      %s194 = sphi 0, %s194
      %s196 = sphi 0, %s194
      %s197 = sphi 0, %s196
      %s211 = sphi 0, %s197
      %s215 = sphi 0, %s215
      %s217 = sphi 0, %s215
      %s218 = sphi 0, %s217
      %s232 = sphi 0, %s218
      %s236 = sphi 0, %s236
      %s238 = sphi 0, %s236
      %s239 = sphi 0, %s238
      %s253 = sphi 0, %s239
      %s259 = sphi 0, %s261
      %s262 = sphi 0, %s259
      %s263 = sphi 0, %s262
      %s279 = sphi 0, %s263
    $region4: #{swin_backbone_forward.19} parent=1 // loop_header_branch
      %32 = sbr.rel (%p30) target = $region8
    $region5: #{swin_backbone_forward.19} parent=1 // loop_body
      %s34 = ssub.s32 %s29, 1
      %s35 = ssub.s32 %s29, 2
      %s36 = sadd.s32 %s29, 1
      %s37 = ssub.s32 %s29, %s36
      %p38 = scmp.eq.s32.totalorder %s37, 0
      %s40 = sadd.s32 %s39, 1
      %s41 = scalar_select %p38, %s39, %s40
      %p44 = pneg %p38
      %p45 = scmp.eq.s32.totalorder %s29, 1
      %p46 = por %p44, %p45
      %p47 = scmp.ne.s32.totalorder %s39, %s42
      %p48 = scmp.eq.s32.totalorder %s29, 0
      %p49 = por %p47, %p48
      %p50 = scmp.ne.s32.totalorder %s39, %s42
      %p51 = scmp.eq.s32.totalorder %s34, 1
      %p52 = por %p50, %p51
      %p53 = scmp.ne.s32.totalorder %s42, %s43
      %p54 = scmp.eq.s32.totalorder %s34, 0
      %p55 = por %p53, %p54
      %p56 = scmp.ne.s32.totalorder %s42, %s43
      %p57 = scmp.eq.s32.totalorder %s35, 1
      %p58 = por %p56, %p57
      %p60 = scmp.ne.s32.totalorder %s43, %s59
      %p61 = scmp.eq.s32.totalorder %s35, 0
      %p62 = por %p60, %p61
      %s63 = ssub.s32 %s29, %s36
      %p64 = scmp.eq.s32.totalorder %s63, 0
      %s66 = sadd.s32 %s65, 1
      %s67 = scalar_select %p64, %s65, %s66
      %p70 = pneg %p64
      %p71 = scmp.eq.s32.totalorder %s29, 1
      %p72 = por %p70, %p71
      %p73 = scmp.ne.s32.totalorder %s65, %s68
      %p74 = scmp.eq.s32.totalorder %s29, 0
      %p75 = por %p73, %p74
      %p76 = scmp.ne.s32.totalorder %s65, %s68
      %p77 = scmp.eq.s32.totalorder %s34, 1
      %p78 = por %p76, %p77
      %p79 = scmp.ne.s32.totalorder %s68, %s69
      %p80 = scmp.eq.s32.totalorder %s34, 0
      %p81 = por %p79, %p80
      %p82 = scmp.ne.s32.totalorder %s68, %s69
      %p83 = scmp.eq.s32.totalorder %s35, 1
      %p84 = por %p82, %p83
      %p86 = scmp.ne.s32.totalorder %s69, %s85
      %p87 = scmp.eq.s32.totalorder %s35, 0
      %p88 = por %p86, %p87
      %s90 = sadd.s32 %s89, 1
      %p93 = scmp.eq.s32.totalorder %s29, 1
      %p94 = scmp.ne.s32.totalorder %s89, %s91
      %p95 = scmp.eq.s32.totalorder %s29, 0
      %p96 = por %p94, %p95
      %p97 = scmp.ne.s32.totalorder %s89, %s91
      %p98 = scmp.eq.s32.totalorder %s34, 1
      %p99 = por %p97, %p98
      %p100 = scmp.ne.s32.totalorder %s91, %s92
      %p101 = scmp.eq.s32.totalorder %s34, 0
      %p102 = por %p100, %p101
      %p103 = scmp.ne.s32.totalorder %s91, %s92
      %p104 = scmp.eq.s32.totalorder %s35, 1
      %p105 = por %p103, %p104
      %p107 = scmp.ne.s32.totalorder %s92, %s106
      %p108 = scmp.eq.s32.totalorder %s35, 0
      %p109 = por %p107, %p108
      %s111 = sadd.s32 %s110, 1
      %p114 = scmp.eq.s32.totalorder %s29, 1
      %p115 = scmp.ne.s32.totalorder %s110, %s112
      %p116 = scmp.eq.s32.totalorder %s29, 0
      %p117 = por %p115, %p116
      %p118 = scmp.ne.s32.totalorder %s110, %s112
      %p119 = scmp.eq.s32.totalorder %s34, 1
      %p120 = por %p118, %p119
      %p121 = scmp.ne.s32.totalorder %s112, %s113
      %p122 = scmp.eq.s32.totalorder %s34, 0
      %p123 = por %p121, %p122
      %p124 = scmp.ne.s32.totalorder %s112, %s113
      %p125 = scmp.eq.s32.totalorder %s35, 1
      %p126 = por %p124, %p125
      %p128 = scmp.ne.s32.totalorder %s113, %s127
      %p129 = scmp.eq.s32.totalorder %s35, 0
      %p130 = por %p128, %p129
      %s132 = sadd.s32 %s131, 1
      %p135 = scmp.eq.s32.totalorder %s29, 1
      %p136 = scmp.ne.s32.totalorder %s131, %s133
      %p137 = scmp.eq.s32.totalorder %s29, 0
      %p138 = por %p136, %p137
      %p139 = scmp.ne.s32.totalorder %s131, %s133
      %p140 = scmp.eq.s32.totalorder %s34, 1
      %p141 = por %p139, %p140
      %p142 = scmp.ne.s32.totalorder %s133, %s134
      %p143 = scmp.eq.s32.totalorder %s34, 0
      %p144 = por %p142, %p143
      %p145 = scmp.ne.s32.totalorder %s133, %s134
      %p146 = scmp.eq.s32.totalorder %s35, 1
      %p147 = por %p145, %p146
      %p149 = scmp.ne.s32.totalorder %s134, %s148
      %p150 = scmp.eq.s32.totalorder %s35, 0
      %p151 = por %p149, %p150
      %s153 = sadd.s32 %s152, 1
      %p156 = scmp.eq.s32.totalorder %s29, 1
      %p157 = scmp.ne.s32.totalorder %s152, %s154
      %p158 = scmp.eq.s32.totalorder %s29, 0
      %p159 = por %p157, %p158
      %p160 = scmp.ne.s32.totalorder %s152, %s154
      %p161 = scmp.eq.s32.totalorder %s34, 1
      %p162 = por %p160, %p161
      %p163 = scmp.ne.s32.totalorder %s154, %s155
      %p164 = scmp.eq.s32.totalorder %s34, 0
      %p165 = por %p163, %p164
      %p166 = scmp.ne.s32.totalorder %s154, %s155
      %p167 = scmp.eq.s32.totalorder %s35, 1
      %p168 = por %p166, %p167
      %p170 = scmp.ne.s32.totalorder %s155, %s169
      %p171 = scmp.eq.s32.totalorder %s35, 0
      %p172 = por %p170, %p171
      %s174 = sadd.s32 %s173, 1
      %p177 = scmp.eq.s32.totalorder %s29, 1
      %p178 = scmp.ne.s32.totalorder %s173, %s175
      %p179 = scmp.eq.s32.totalorder %s29, 0
      %p180 = por %p178, %p179
      %p181 = scmp.ne.s32.totalorder %s173, %s175
      %p182 = scmp.eq.s32.totalorder %s34, 1
      %p183 = por %p181, %p182
      %p184 = scmp.ne.s32.totalorder %s175, %s176
      %p185 = scmp.eq.s32.totalorder %s34, 0
      %p186 = por %p184, %p185
      %p187 = scmp.ne.s32.totalorder %s175, %s176
      %p188 = scmp.eq.s32.totalorder %s35, 1
      %p189 = por %p187, %p188
      %p191 = scmp.ne.s32.totalorder %s176, %s190
      %p192 = scmp.eq.s32.totalorder %s35, 0
      %p193 = por %p191, %p192
      %s195 = sadd.s32 %s194, 1
      %p198 = scmp.eq.s32.totalorder %s29, 1
      %p199 = scmp.ne.s32.totalorder %s194, %s196
      %p200 = scmp.eq.s32.totalorder %s29, 0
      %p201 = por %p199, %p200
      %p202 = scmp.ne.s32.totalorder %s194, %s196
      %p203 = scmp.eq.s32.totalorder %s34, 1
      %p204 = por %p202, %p203
      %p205 = scmp.ne.s32.totalorder %s196, %s197
      %p206 = scmp.eq.s32.totalorder %s34, 0
      %p207 = por %p205, %p206
      %p208 = scmp.ne.s32.totalorder %s196, %s197
      %p209 = scmp.eq.s32.totalorder %s35, 1
      %p210 = por %p208, %p209
      %p212 = scmp.ne.s32.totalorder %s197, %s211
      %p213 = scmp.eq.s32.totalorder %s35, 0
      %p214 = por %p212, %p213
      %s216 = sadd.s32 %s215, 1
      %p219 = scmp.eq.s32.totalorder %s29, 1
      %p220 = scmp.ne.s32.totalorder %s215, %s217
      %p221 = scmp.eq.s32.totalorder %s29, 0
      %p222 = por %p220, %p221
      %p223 = scmp.ne.s32.totalorder %s215, %s217
      %p224 = scmp.eq.s32.totalorder %s34, 1
      %p225 = por %p223, %p224
      %p226 = scmp.ne.s32.totalorder %s217, %s218
      %p227 = scmp.eq.s32.totalorder %s34, 0
      %p228 = por %p226, %p227
      %p229 = scmp.ne.s32.totalorder %s217, %s218
      %p230 = scmp.eq.s32.totalorder %s35, 1
      %p231 = por %p229, %p230
      %p233 = scmp.ne.s32.totalorder %s218, %s232
      %p234 = scmp.eq.s32.totalorder %s35, 0
      %p235 = por %p233, %p234
      %s237 = sadd.s32 %s236, 1
      %p240 = scmp.eq.s32.totalorder %s29, 1
      %p241 = scmp.ne.s32.totalorder %s236, %s238
      %p242 = scmp.eq.s32.totalorder %s29, 0
      %p243 = por %p241, %p242
      %p244 = scmp.ne.s32.totalorder %s236, %s238
      %p245 = scmp.eq.s32.totalorder %s34, 1
      %p246 = por %p244, %p245
      %p247 = scmp.ne.s32.totalorder %s238, %s239
      %p248 = scmp.eq.s32.totalorder %s34, 0
      %p249 = por %p247, %p248
      %p250 = scmp.ne.s32.totalorder %s238, %s239
      %p251 = scmp.eq.s32.totalorder %s35, 1
      %p252 = por %p250, %p251
      %p254 = scmp.ne.s32.totalorder %s239, %s253
      %p255 = scmp.eq.s32.totalorder %s35, 0
      %p256 = por %p254, %p255
      %s257 = ssub.s32 %s29, %s36
      %p258 = scmp.eq.s32.totalorder %s257, 0
      %s260 = sadd.s32 %s259, 1
      %s261 = scalar_select %p258, %s259, %s260
      %p264 = pneg %p258
      %p265 = scmp.eq.s32.totalorder %s29, 1
      %p266 = por %p264, %p265
      %p267 = scmp.ne.s32.totalorder %s259, %s262
      %p268 = scmp.eq.s32.totalorder %s29, 0
      %p269 = por %p267, %p268
      %p270 = scmp.ne.s32.totalorder %s259, %s262
      %p271 = scmp.eq.s32.totalorder %s34, 1
      %p272 = por %p270, %p271
      %p273 = scmp.ne.s32.totalorder %s262, %s263
      %p274 = scmp.eq.s32.totalorder %s34, 0
      %p275 = por %p273, %p274
      %p276 = scmp.ne.s32.totalorder %s262, %s263
      %p277 = scmp.eq.s32.totalorder %s35, 1
      %p278 = por %p276, %p277
      %p280 = scmp.ne.s32.totalorder %s263, %s279
      %p281 = scmp.eq.s32.totalorder %s35, 0
      %p282 = por %p280, %p281
      %p283 = scmp.le.s32.totalorder 1, %s29
      %p284 = scmp.lt.s32.totalorder %s29, 3
      %p285 = pnand %p283, %p284
      %p286 = pneg %p285
      // Predicated region
      $region9: #{swin_backbone_forward.19} parent=5 // pred_check
        _
      $region10: #{swin_backbone_forward.19} parent=5 // pred_check_branch
        %288 = sbr.rel (%p285) target = $region12
      $region11: #{swin_backbone_forward.19} parent=5 // pred_region
        %s289 = ssub.s32 %s29, 1
        // Predicated region
        $region13: #{swin_backbone_forward.19} parent=11 // pred_check
          %p290 = pneg %p102
        $region14: #{swin_backbone_forward.19} parent=11 // pred_check_branch
          %292 = sbr.rel (%p290) target = $region16
        $region15: #{swin_backbone_forward.19} parent=11 // pred_region
          %s294 = ssub.s32 256, 256
          %295 = vsyncadd [#allocation6], %s294
          %s296 = sshll.u32 [#allocation7], 4
          %s297 = int_to_ptr.vmem [resolvable:$true] %s296
          %302 = dma.hbm_to_vmem [thread:$0]  %s2, 256, %s297, [#allocation6], 64, 64, 4
        $region16: #{swin_backbone_forward.19} parent=11 // pred_fallthru
          _
        // Predicated region
        $region17: #{swin_backbone_forward.19} parent=11 // pred_check
          %p303 = pneg %p123
        $region18: #{swin_backbone_forward.19} parent=11 // pred_check_branch
          %305 = sbr.rel (%p303) target = $region20
        $region19: #{swin_backbone_forward.19} parent=11 // pred_region
          %s307 = ssub.s32 16, 16
          %308 = vsyncadd [#allocation9], %s307
          %s310 = sshll.u32 [#allocation8], 4
          %s311 = int_to_ptr.vmem [resolvable:$true] %s310
          %313 = dma.hbm_to_vmem [thread:$0]  %s3, 16, %s311, [#allocation9]
        $region20: #{swin_backbone_forward.19} parent=11 // pred_fallthru
          _
        // Predicated region
        $region21: #{swin_backbone_forward.19} parent=11 // pred_check
          %p314 = pneg %p144
        $region22: #{swin_backbone_forward.19} parent=11 // pred_check_branch
          %316 = sbr.rel (%p314) target = $region24
        $region23: #{swin_backbone_forward.19} parent=11 // pred_region
          %s318 = ssub.s32 16, 16
          %319 = vsyncadd [#allocation9], %s318
          %s321 = sshll.u32 [#allocation10], 4
          %s322 = int_to_ptr.vmem [resolvable:$true] %s321
          %324 = dma.hbm_to_vmem [thread:$0]  %s4, 16, %s322, [#allocation9]
        $region24: #{swin_backbone_forward.19} parent=11 // pred_fallthru
          _
        // Predicated region
        $region25: #{swin_backbone_forward.19} parent=11 // pred_check
          %p325 = pneg %p165
        $region26: #{swin_backbone_forward.19} parent=11 // pred_check_branch
          %327 = sbr.rel (%p325) target = $region28
        $region27: #{swin_backbone_forward.19} parent=11 // pred_region
          %s329 = ssub.s32 16, 16
          %330 = vsyncadd [#allocation12], %s329
          %s332 = sshll.u32 [#allocation11], 4
          %s333 = int_to_ptr.vmem [resolvable:$true] %s332
          %335 = dma.hbm_to_vmem [thread:$0]  %s5, 16, %s333, [#allocation12]
        $region28: #{swin_backbone_forward.19} parent=11 // pred_fallthru
          _
        // Predicated region
        $region29: #{swin_backbone_forward.19} parent=11 // pred_check
          %p336 = pneg %p186
        $region30: #{swin_backbone_forward.19} parent=11 // pred_check_branch
          %338 = sbr.rel (%p336) target = $region32
        $region31: #{swin_backbone_forward.19} parent=11 // pred_region
          %s340 = ssub.s32 256, 256
          %341 = vsyncadd [#allocation12], %s340
          %s342 = sshll.u32 [#allocation13], 4
          %s343 = int_to_ptr.vmem [resolvable:$true] %s342
          %348 = dma.hbm_to_vmem [thread:$0]  %s6, 256, %s343, [#allocation12], 64, 64, 4
        $region32: #{swin_backbone_forward.19} parent=11 // pred_fallthru
          _
        // Predicated region
        $region33: #{swin_backbone_forward.19} parent=11 // pred_check
          %p349 = pneg %p207
        $region34: #{swin_backbone_forward.19} parent=11 // pred_check_branch
          %351 = sbr.rel (%p349) target = $region36
        $region35: #{swin_backbone_forward.19} parent=11 // pred_region
          %s353 = ssub.s32 16, 16
          %354 = vsyncadd [#allocation15], %s353
          %s356 = sshll.u32 [#allocation14], 4
          %s357 = int_to_ptr.vmem [resolvable:$true] %s356
          %359 = dma.hbm_to_vmem [thread:$0]  %s7, 16, %s357, [#allocation15]
        $region36: #{swin_backbone_forward.19} parent=11 // pred_fallthru
          _
        // Predicated region
        $region37: #{swin_backbone_forward.19} parent=11 // pred_check
          %p360 = pneg %p228
        $region38: #{swin_backbone_forward.19} parent=11 // pred_check_branch
          %362 = sbr.rel (%p360) target = $region40
        $region39: #{swin_backbone_forward.19} parent=11 // pred_region
          %s364 = ssub.s32 1024, 1024
          %365 = vsyncadd [#allocation15], %s364
          %s366 = sshll.u32 [#allocation16], 4
          %s367 = int_to_ptr.vmem [resolvable:$true] %s366
          %372 = dma.hbm_to_vmem [thread:$0]  %s8, 1024, %s367, [#allocation15], 64, 64, 4
        $region40: #{swin_backbone_forward.19} parent=11 // pred_fallthru
          _
        // Predicated region
        $region41: #{swin_backbone_forward.19} parent=11 // pred_check
          %p373 = pneg %p249
        $region42: #{swin_backbone_forward.19} parent=11 // pred_check_branch
          %375 = sbr.rel (%p373) target = $region44
        $region43: #{swin_backbone_forward.19} parent=11 // pred_region
          %s377 = ssub.s32 16, 16
          %378 = vsyncadd [#allocation18], %s377
          %s380 = sshll.u32 [#allocation17], 4
          %s381 = int_to_ptr.vmem [resolvable:$true] %s380
          %383 = dma.hbm_to_vmem [thread:$0]  %s9, 16, %s381, [#allocation18]
        $region44: #{swin_backbone_forward.19} parent=11 // pred_fallthru
          _
      $region12: #{swin_backbone_forward.19} parent=5 // pred_fallthru
        _
      %p384 = scmp.lt.s32.totalorder %s29, 2
      // Predicated region
      $region45: #{swin_backbone_forward.19} parent=5 // pred_check
        %p385 = pneg %p384
      $region46: #{swin_backbone_forward.19} parent=5 // pred_check_branch
        %387 = sbr.rel (%p385) target = $region48
      $region47: #{swin_backbone_forward.19} parent=5 // pred_region
        // Predicated region
        $region49: #{swin_backbone_forward.19} parent=47 // pred_check
          %p388 = pneg %p49
        $region50: #{swin_backbone_forward.19} parent=47 // pred_check_branch
          %390 = sbr.rel (%p388) target = $region52
        $region51: #{swin_backbone_forward.19} parent=47 // pred_region
          %s391 = sand.u32 %s39, 1
          %s392 = scalar_lea.sflag [#allocation3], %s391
          %s393 = sand.u32 %s39, 1
          %s394 = smul.addr %s393, 16
          %s395 = scalar_lea.vmem [#allocation2], %s394
          %s396 = smul.u32 2, %s29
          %s398 = ssub.s32 256, 256
          %399 = vsyncadd %s392, %s398
          %s400 = smul.addr %s396, 128
          %s401 = scalar_lea.hbm %s0, %s400
          %s402 = sshll.u32 %s395, 4
          %s403 = int_to_ptr.vmem [resolvable:$true] %s402
          %408 = dma.hbm_to_vmem [thread:$0]  %s401, 256, %s403, %s392, 128, 128, 8
        $region52: #{swin_backbone_forward.19} parent=47 // pred_fallthru
          _
        // Predicated region
        $region53: #{swin_backbone_forward.19} parent=47 // pred_check
          %p409 = pneg %p75
        $region54: #{swin_backbone_forward.19} parent=47 // pred_check_branch
          %411 = sbr.rel (%p409) target = $region56
        $region55: #{swin_backbone_forward.19} parent=47 // pred_region
          %s412 = sand.u32 %s29, 1
          %s413 = scalar_lea.sflag [#allocation6], %s412
          %s414 = sand.u32 %s65, 1
          %s415 = smul.addr %s414, 8
          %s416 = scalar_lea.vmem [#allocation5], %s415
          %s417 = smul.u32 2, %s29
          %s419 = ssub.s32 128, 128
          %420 = vsyncadd %s413, %s419
          %s421 = smul.addr %s417, 64
          %s422 = scalar_lea.hbm %s1, %s421
          %s423 = sshll.u32 %s416, 4
          %s424 = int_to_ptr.vmem [resolvable:$true] %s423
          %429 = dma.hbm_to_vmem [thread:$0]  %s422, 128, %s424, %s413, 64, 64, 4
        $region56: #{swin_backbone_forward.19} parent=47 // pred_fallthru
          _
      $region48: #{swin_backbone_forward.19} parent=5 // pred_fallthru
        _
      %p430 = scmp.le.s32.totalorder 1, %s29
      %p431 = scmp.lt.s32.totalorder %s29, 3
      %p432 = pnand %p430, %p431
      %p433 = pneg %p432
      // Predicated region
      $region57: #{swin_backbone_forward.19} parent=5 // pred_check
        _
      $region58: #{swin_backbone_forward.19} parent=5 // pred_check_branch
        %435 = sbr.rel (%p432) target = $region60
      $region59: #{swin_backbone_forward.19} parent=5 // pred_region
        %s436 = ssub.s32 %s29, 1
        %s437 = sand.u32 %s42, 1
        %s438 = scalar_lea.sflag [#allocation3], %s437
        %s439 = sand.u32 %s42, 1
        %s440 = smul.addr %s439, 16
        %s441 = scalar_lea.vmem [#allocation2], %s440
        // Predicated region
        $region61: #{swin_backbone_forward.19} parent=59 // pred_check
          %p442 = pneg %p55
        $region62: #{swin_backbone_forward.19} parent=59 // pred_check_branch
          %444 = sbr.rel (%p442) target = $region64
        $region63: #{swin_backbone_forward.19} parent=59 // pred_region
          %445 = dma.done %s438, 256
        $region64: #{swin_backbone_forward.19} parent=59 // pred_fallthru
          _
        %s446 = sand.u32 %s34, 1
        %s447 = scalar_lea.sflag [#allocation6], %s446
        %s448 = sand.u32 %s68, 1
        %s449 = smul.addr %s448, 8
        %s450 = scalar_lea.vmem [#allocation5], %s449
        // Predicated region
        $region65: #{swin_backbone_forward.19} parent=59 // pred_check
          %p451 = pneg %p81
        $region66: #{swin_backbone_forward.19} parent=59 // pred_check_branch
          %453 = sbr.rel (%p451) target = $region68
        $region67: #{swin_backbone_forward.19} parent=59 // pred_region
          %454 = dma.done %s447, 128
        $region68: #{swin_backbone_forward.19} parent=59 // pred_fallthru
          _
        // Predicated region
        $region69: #{swin_backbone_forward.19} parent=59 // pred_check
          %p455 = pneg %p102
        $region70: #{swin_backbone_forward.19} parent=59 // pred_check_branch
          %457 = sbr.rel (%p455) target = $region72
        $region71: #{swin_backbone_forward.19} parent=59 // pred_region
          %458 = dma.done [#allocation6], 256
        $region72: #{swin_backbone_forward.19} parent=59 // pred_fallthru
          _
        // Predicated region
        $region73: #{swin_backbone_forward.19} parent=59 // pred_check
          %p459 = pneg %p123
        $region74: #{swin_backbone_forward.19} parent=59 // pred_check_branch
          %461 = sbr.rel (%p459) target = $region76
        $region75: #{swin_backbone_forward.19} parent=59 // pred_region
          %462 = dma.done [#allocation9], 16
        $region76: #{swin_backbone_forward.19} parent=59 // pred_fallthru
          _
        // Predicated region
        $region77: #{swin_backbone_forward.19} parent=59 // pred_check
          %p463 = pneg %p144
        $region78: #{swin_backbone_forward.19} parent=59 // pred_check_branch
          %465 = sbr.rel (%p463) target = $region80
        $region79: #{swin_backbone_forward.19} parent=59 // pred_region
          %466 = dma.done [#allocation9], 16
        $region80: #{swin_backbone_forward.19} parent=59 // pred_fallthru
          _
        // Predicated region
        $region81: #{swin_backbone_forward.19} parent=59 // pred_check
          %p467 = pneg %p165
        $region82: #{swin_backbone_forward.19} parent=59 // pred_check_branch
          %469 = sbr.rel (%p467) target = $region84
        $region83: #{swin_backbone_forward.19} parent=59 // pred_region
          %470 = dma.done [#allocation12], 16
        $region84: #{swin_backbone_forward.19} parent=59 // pred_fallthru
          _
        // Predicated region
        $region85: #{swin_backbone_forward.19} parent=59 // pred_check
          %p471 = pneg %p186
        $region86: #{swin_backbone_forward.19} parent=59 // pred_check_branch
          %473 = sbr.rel (%p471) target = $region88
        $region87: #{swin_backbone_forward.19} parent=59 // pred_region
          %474 = dma.done [#allocation12], 256
        $region88: #{swin_backbone_forward.19} parent=59 // pred_fallthru
          _
        // Predicated region
        $region89: #{swin_backbone_forward.19} parent=59 // pred_check
          %p475 = pneg %p207
        $region90: #{swin_backbone_forward.19} parent=59 // pred_check_branch
          %477 = sbr.rel (%p475) target = $region92
        $region91: #{swin_backbone_forward.19} parent=59 // pred_region
          %478 = dma.done [#allocation15], 16
        $region92: #{swin_backbone_forward.19} parent=59 // pred_fallthru
          _
        // Predicated region
        $region93: #{swin_backbone_forward.19} parent=59 // pred_check
          %p479 = pneg %p228
        $region94: #{swin_backbone_forward.19} parent=59 // pred_check_branch
          %481 = sbr.rel (%p479) target = $region96
        $region95: #{swin_backbone_forward.19} parent=59 // pred_region
          %482 = dma.done [#allocation15], 1024
        $region96: #{swin_backbone_forward.19} parent=59 // pred_fallthru
          _
        // Predicated region
        $region97: #{swin_backbone_forward.19} parent=59 // pred_check
          %p483 = pneg %p249
        $region98: #{swin_backbone_forward.19} parent=59 // pred_check_branch
          %485 = sbr.rel (%p483) target = $region100
        $region99: #{swin_backbone_forward.19} parent=59 // pred_region
          %486 = dma.done [#allocation18], 16
        $region100: #{swin_backbone_forward.19} parent=59 // pred_fallthru
          _
        %s487 = sand.u32 %s42, 1
        %s488 = scalar_lea.sflag [#allocation3], %s487
        %s489 = sand.u32 %s42, 1
        %s490 = smul.addr %s489, 16
        %s491 = scalar_lea.vmem [#allocation2], %s490
        %p492 = pneg %p55
        %p493 = pneg %p52
        %s494 = sand.u32 %s34, 1
        %s495 = scalar_lea.sflag [#allocation6], %s494
        %s496 = sand.u32 %s68, 1
        %s497 = smul.addr %s496, 8
        %s498 = scalar_lea.vmem [#allocation5], %s497
        %p499 = pneg %p81
        %p500 = pneg %p78
        %p501 = pneg %p102
        %p502 = pneg %p99
        %p503 = pneg %p123
        %p504 = pneg %p120
        %p505 = pneg %p144
        %p506 = pneg %p141
        %p507 = pneg %p165
        %p508 = pneg %p162
        %p509 = pneg %p186
        %p510 = pneg %p183
        %p511 = pneg %p207
        %p512 = pneg %p204
        %p513 = pneg %p228
        %p514 = pneg %p225
        %p515 = pneg %p249
        %p516 = pneg %p246
        %p517 = pneg %p275
        %p518 = pneg %p272
        %s519 = sand.u32 %s262, 1
        %s520 = scalar_lea.sflag [#allocation4], %s519
        %s521 = sand.u32 %s262, 1
        %s522 = smul.addr %s521, 16
        %s523 = scalar_lea.vmem [#allocation19], %s522
        %s524 = smul.u32 2, %s34
        %s525 = smul.u32 2, %s34
        %s526 = smul.u32 2, %s34
        %v528 = vld [vmem:[%s441] sm:$0xff]
        %v529 = vld [vmem:[%s441 + $0x8] sm:$0xff]
        %v530 = vld [vmem:[%s450] sm:$0xf]
        %v531 = vld [vmem:[%s450 + $0x4] sm:$0xf]
        %v532 = vld [vmem:[#allocation7] sm:$0xf]
        %v533 = vld [vmem:[#allocation7 + $0x4] sm:$0xf]
        %v534 = vld [vmem:[#allocation7 + $0x8] sm:$0xf]
        %v535 = vld [vmem:[#allocation7 + $0xc] sm:$0xf]
        %v536 = vld [vmem:[#allocation8] sm:$0x1]
        %v538 = vlaneseq
        %v539 = vshrl.u32 %v538, 7
        %v540 = vsub.s32 0, %v539
        %v541 = vrot.slane %v536, %v540
        %v545 = vunpack.c.l.b16 %v530
        %v546 = vunpack.c.l.b16 %v531
        %v547 = vpack.c.b16 %v546, %v545
        %v552 = vunpack.c.l.b16 %v532
        %v553 = vunpack.c.l.b16 %v533
        %v554 = vunpack.c.l.b16 %v534
        %v555 = vunpack.c.l.b16 %v535
        %v556 = vpack.c.b16 %v553, %v552
        %v557 = vpack.c.b16 %v555, %v554
        %vm560 = vcmask 261120
        %v562 = vsel %vm560, %v547, 0
        %564 = vmatprep.subr.bf16.mxu0 0
        %565 = vmatpush1.bf16.msra.mxu0 %v556
        %566 = vmatprep.subr.bf16.mxu0 0
        %567 = vmatpush1.bf16.msra.mxu0 %v557
        %568 = vmatprep.subr.bf16.mxu0 0
        %569 = vmatpush1.bf16.msra.mxu0 0
        %570 = vmatprep.subr.bf16.mxu0 0
        %571 = vmatpush1.bf16.msra.mxu0 0
        %572 = vmatprep.subr.bf16.mxu0 0
        %573 = vmatpush1.bf16.msra.mxu0 0
        %574 = vmatprep.subr.bf16.mxu0 0
        %575 = vmatpush1.bf16.msra.mxu0 0
        %576 = vmatprep.subr.bf16.mxu0 0
        %577 = vmatpush1.bf16.msra.mxu0 0
        %578 = vmatprep.subr.bf16.mxu0 0
        %579 = vmatpush1.bf16.msra.mxu0 0
        %580 = vmatprep.subr.bf16.mxu0 0
        %581 = vmatpush1.bf16.msra.mxu0 0
        %582 = vmatprep.subr.bf16.mxu0 0
        %583 = vmatpush1.bf16.msra.mxu0 0
        %584 = vmatprep.subr.bf16.mxu0 0
        %585 = vmatpush1.bf16.msra.mxu0 0
        %586 = vmatprep.subr.bf16.mxu0 0
        %587 = vmatpush1.bf16.msra.mxu0 0
        %588 = vmatprep.subr.bf16.mxu0 0
        %589 = vmatpush1.bf16.msra.mxu0 0
        %590 = vmatprep.subr.bf16.mxu0 0
        %591 = vmatpush1.bf16.msra.mxu0 0
        %592 = vmatprep.subr.bf16.mxu0 0
        %593 = vmatpush1.bf16.msra.mxu0 0
        %594 = vmatprep.subr.bf16.mxu0 0
        %595 = vmatpush1.bf16.msra.mxu0 0
        %596 = vmatprep.mubr.bf16.mxu0 0
        %597 = vmatmul.mubr.bf16.gmra.mrb[0].mxu0 %v562
        %v598 = vpop.f32.mrb[0].mxu0
        %v599 = vadd.f32 %v541, %v598
        %v600 = vpop.f32.mrb[0].mxu0
        %v601 = vpop.f32.mrb[0].mxu0
        %v602 = vadd.f32 %v541, %v601
        %v603 = vpop.f32.mrb[0].mxu0
        %604 = vdwg.mxu0
        %v605 = vadd.f32 %v528, %v599
        %v606 = vadd.f32 %v529, %v602
        %v607 = vsel %vm560, %v605, 0.0
        %608 = vadd.xlane.f32.xlu0 %v607
        %v609 = vpop.xlane.xlu0 %608
        %v610 = vsel %vm560, %v606, 0.0
        %611 = vadd.xlane.f32.xlu0 %v610
        %v612 = vpop.xlane.xlu0 %611
        %v613 = vrcp.pop 32.0
        %v614 = vmul.f32 %v609, %v613
        %v615 = vmul.f32 %v612, %v613
        %v616 = vsub.f32 %v605, %v614
        %v617 = vsub.f32 %v606, %v615
        %v618 = vmul.f32 %v616, %v616
        %v619 = vmul.f32 %v617, %v617
        %v620 = vsel %vm560, %v618, 0.0
        %621 = vadd.xlane.f32.xlu0 %v620
        %v622 = vpop.xlane.xlu0 %621
        %v623 = vsel %vm560, %v619, 0.0
        %624 = vadd.xlane.f32.xlu0 %v623
        %v625 = vpop.xlane.xlu0 %624
        %v626 = vmul.f32 %v622, %v613
        %v627 = vmul.f32 %v625, %v613
        %v628 = vadd.f32 %v626, 1e-05
        %v629 = vadd.f32 %v627, 1e-05
        %v630 = vrsqrt.pop %v628
        %v631 = vrsqrt.pop %v629
        %v632 = vmul.f32 %v616, %v630
        %v633 = vmul.f32 %v617, %v631
        %v634 = vld [vmem:[#allocation10] sm:$0x1]
        %v636 = vlaneseq
        %v637 = vshrl.u32 %v636, 7
        %v638 = vsub.s32 0, %v637
        %v639 = vrot.slane %v634, %v638
        %v641 = vmul.f32 %v632, %v639
        %v642 = vmul.f32 %v633, %v639
        %v643 = vld [vmem:[#allocation11] sm:$0x1]
        %v645 = vlaneseq
        %v646 = vshrl.u32 %v645, 7
        %v647 = vsub.s32 0, %v646
        %v648 = vrot.slane %v643, %v647
        %v650 = vadd.f32 %v641, %v648
        %v651 = vadd.f32 %v642, %v648
        %v652 = vpack.c.bf16 %v651, %v650
        %v653 = vld [vmem:[#allocation13] sm:$0xf]
        %v654 = vld [vmem:[#allocation13 + $0x4] sm:$0xf]
        %v655 = vld [vmem:[#allocation13 + $0x8] sm:$0xf]
        %v656 = vld [vmem:[#allocation13 + $0xc] sm:$0xf]
        %v657 = vld [vmem:[#allocation14] sm:$0x1]
        %v659 = vlaneseq
        %v660 = vshrl.u32 %v659, 7
        %v661 = vsub.s32 0, %v660
        %v662 = vrot.slane %v657, %v661
        %v668 = vunpack.c.l.b16 %v653
        %v669 = vunpack.c.l.b16 %v654
        %v670 = vunpack.c.l.b16 %v655
        %v671 = vunpack.c.l.b16 %v656
        %v672 = vpack.c.b16 %v669, %v668
        %v673 = vpack.c.b16 %v671, %v670
        %v677 = vsel %vm560, %v652, 0
        %679 = vmatprep.subr.bf16.mxu0 0
        %680 = vmatpush1.bf16.msra.mxu0 %v672
        %681 = vmatprep.subr.bf16.mxu0 0
        %682 = vmatpush1.bf16.msra.mxu0 %v673
        %683 = vmatprep.subr.bf16.mxu0 0
        %684 = vmatpush1.bf16.msra.mxu0 0
        %685 = vmatprep.subr.bf16.mxu0 0
        %686 = vmatpush1.bf16.msra.mxu0 0
        %687 = vmatprep.subr.bf16.mxu0 0
        %688 = vmatpush1.bf16.msra.mxu0 0
        %689 = vmatprep.subr.bf16.mxu0 0
        %690 = vmatpush1.bf16.msra.mxu0 0
        %691 = vmatprep.subr.bf16.mxu0 0
        %692 = vmatpush1.bf16.msra.mxu0 0
        %693 = vmatprep.subr.bf16.mxu0 0
        %694 = vmatpush1.bf16.msra.mxu0 0
        %695 = vmatprep.subr.bf16.mxu0 0
        %696 = vmatpush1.bf16.msra.mxu0 0
        %697 = vmatprep.subr.bf16.mxu0 0
        %698 = vmatpush1.bf16.msra.mxu0 0
        %699 = vmatprep.subr.bf16.mxu0 0
        %700 = vmatpush1.bf16.msra.mxu0 0
        %701 = vmatprep.subr.bf16.mxu0 0
        %702 = vmatpush1.bf16.msra.mxu0 0
        %703 = vmatprep.subr.bf16.mxu0 0
        %704 = vmatpush1.bf16.msra.mxu0 0
        %705 = vmatprep.subr.bf16.mxu0 0
        %706 = vmatpush1.bf16.msra.mxu0 0
        %707 = vmatprep.subr.bf16.mxu0 0
        %708 = vmatpush1.bf16.msra.mxu0 0
        %709 = vmatprep.subr.bf16.mxu0 0
        %710 = vmatpush1.bf16.msra.mxu0 0
        %711 = vmatprep.mubr.bf16.mxu0 0
        %712 = vmatmul.mubr.bf16.gmra.mrb[0].mxu0 %v677
        %v713 = vpop.f32.mrb[0].mxu0
        %v714 = vadd.f32 %v662, %v713
        %v715 = vpop.f32.mrb[0].mxu0
        %v716 = vpop.f32.mrb[0].mxu0
        %v717 = vadd.f32 %v662, %v716
        %v718 = vpop.f32.mrb[0].mxu0
        %719 = vdwg.mxu0
        %v720 = vmul.f32 %v714, 0.5
        %v721 = vmul.f32 %v717, 0.5
        %v722 = vmul.f32 %v714, 0.70710677
        %v723 = vmul.f32 %v717, 0.70710677
        %vm724 = vcmp.ge.f32.partialorder %v722, 0.0
        %vm725 = vcmp.ge.f32.partialorder %v723, 0.0
        %v726 = vsel %vm724, 1.0, -1.0
        %v727 = vsel %vm725, 1.0, -1.0
        %v728 = vand.u32 2147483647, %v722
        %v729 = vand.u32 2147483647, %v723
        %v730 = vmul.f32 %v728, 0.3275911
        %v731 = vmul.f32 %v729, 0.3275911
        %v732 = vadd.f32 %v730, 1.0
        %v733 = vadd.f32 %v731, 1.0
        %v734 = vrcp.pop %v732
        %v735 = vmul.f32 1.0, %v734
        %v736 = vrcp.pop %v733
        %v737 = vmul.f32 1.0, %v736
        %v738 = vmul.f32 %v735, 1.0614054
        %v739 = vmul.f32 %v737, 1.0614054
        %v740 = vadd.f32 %v738, -1.4531521
        %v741 = vadd.f32 %v739, -1.4531521
        %v742 = vmul.f32 %v735, %v740
        %v743 = vmul.f32 %v737, %v741
        %v744 = vadd.f32 %v742, 1.4214138
        %v745 = vadd.f32 %v743, 1.4214138
        %v746 = vmul.f32 %v735, %v744
        %v747 = vmul.f32 %v737, %v745
        %v748 = vadd.f32 %v746, -0.28449672
        %v749 = vadd.f32 %v747, -0.28449672
        %v750 = vmul.f32 %v735, %v748
        %v751 = vmul.f32 %v737, %v749
        %v752 = vadd.f32 %v750, 0.2548296
        %v753 = vadd.f32 %v751, 0.2548296
        %v754 = vmul.f32 %v735, %v752
        %v755 = vmul.f32 %v737, %v753
        %v756 = vsub.f32 0.0, %v728
        %v757 = vsub.f32 0.0, %v729
        %v758 = vmul.f32 %v756, %v728
        %v759 = vmul.f32 %v757, %v729
        %v760 = vmul.f32 %v758, 1.442695
        %v761 = vpow.pop %v760
        %v762 = vmul.f32 %v759, 1.442695
        %v763 = vpow.pop %v762
        %v764 = vmul.f32 %v754, %v761
        %v765 = vmul.f32 %v755, %v763
        %v766 = vsub.f32 1.0, %v764
        %v767 = vsub.f32 1.0, %v765
        %v768 = vmul.f32 %v726, %v766
        %v769 = vmul.f32 %v727, %v767
        %v770 = vadd.f32 %v768, 1.0
        %v771 = vadd.f32 %v769, 1.0
        %v772 = vmul.f32 %v720, %v770
        %v773 = vmul.f32 %v721, %v771
        %v774 = vpack.c.bf16 %v773, %v772
        %v775 = vld [vmem:[#allocation16] sm:$0xf]
        %v776 = vld [vmem:[#allocation16 + $0x4] sm:$0xf]
        %v777 = vld [vmem:[#allocation16 + $0x8] sm:$0xf]
        %v778 = vld [vmem:[#allocation16 + $0xc] sm:$0xf]
        %v779 = vld [vmem:[#allocation16 + $0x10] sm:$0xf]
        %v780 = vld [vmem:[#allocation16 + $0x14] sm:$0xf]
        %v781 = vld [vmem:[#allocation16 + $0x18] sm:$0xf]
        %v782 = vld [vmem:[#allocation16 + $0x1c] sm:$0xf]
        %v783 = vld [vmem:[#allocation16 + $0x20] sm:$0xf]
        %v784 = vld [vmem:[#allocation16 + $0x24] sm:$0xf]
        %v785 = vld [vmem:[#allocation16 + $0x28] sm:$0xf]
        %v786 = vld [vmem:[#allocation16 + $0x2c] sm:$0xf]
        %v787 = vld [vmem:[#allocation16 + $0x30] sm:$0xf]
        %v788 = vld [vmem:[#allocation16 + $0x34] sm:$0xf]
        %v789 = vld [vmem:[#allocation16 + $0x38] sm:$0xf]
        %v790 = vld [vmem:[#allocation16 + $0x3c] sm:$0xf]
        %v791 = vld [vmem:[#allocation17] sm:$0x1]
        %v793 = vlaneseq
        %v794 = vshrl.u32 %v793, 7
        %v795 = vsub.s32 0, %v794
        %v796 = vrot.slane %v791, %v795
        %v814 = vunpack.c.l.b16 %v775
        %v815 = vunpack.c.l.b16 %v776
        %v816 = vunpack.c.l.b16 %v777
        %v817 = vunpack.c.l.b16 %v778
        %v818 = vunpack.c.l.b16 %v779
        %v819 = vunpack.c.l.b16 %v780
        %v820 = vunpack.c.l.b16 %v781
        %v821 = vunpack.c.l.b16 %v782
        %v822 = vunpack.c.l.b16 %v783
        %v823 = vunpack.c.l.b16 %v784
        %v824 = vunpack.c.l.b16 %v785
        %v825 = vunpack.c.l.b16 %v786
        %v826 = vunpack.c.l.b16 %v787
        %v827 = vunpack.c.l.b16 %v788
        %v828 = vunpack.c.l.b16 %v789
        %v829 = vunpack.c.l.b16 %v790
        %v830 = vpack.c.b16 %v815, %v814
        %v831 = vpack.c.b16 %v817, %v816
        %v832 = vpack.c.b16 %v819, %v818
        %v833 = vpack.c.b16 %v821, %v820
        %v834 = vpack.c.b16 %v823, %v822
        %v835 = vpack.c.b16 %v825, %v824
        %v836 = vpack.c.b16 %v827, %v826
        %v837 = vpack.c.b16 %v829, %v828
        %846 = vmatprep.subr.bf16.mxu0 0
        %847 = vmatpush1.bf16.msra.mxu0 %v830
        %848 = vmatprep.subr.bf16.mxu0 0
        %849 = vmatpush1.bf16.msra.mxu0 %v831
        %850 = vmatprep.subr.bf16.mxu0 0
        %851 = vmatpush1.bf16.msra.mxu0 %v832
        %852 = vmatprep.subr.bf16.mxu0 0
        %853 = vmatpush1.bf16.msra.mxu0 %v833
        %854 = vmatprep.subr.bf16.mxu0 0
        %855 = vmatpush1.bf16.msra.mxu0 %v834
        %856 = vmatprep.subr.bf16.mxu0 0
        %857 = vmatpush1.bf16.msra.mxu0 %v835
        %858 = vmatprep.subr.bf16.mxu0 0
        %859 = vmatpush1.bf16.msra.mxu0 %v836
        %860 = vmatprep.subr.bf16.mxu0 0
        %861 = vmatpush1.bf16.msra.mxu0 %v837
        %862 = vmatprep.subr.bf16.mxu0 0
        %863 = vmatpush1.bf16.msra.mxu0 0
        %864 = vmatprep.subr.bf16.mxu0 0
        %865 = vmatpush1.bf16.msra.mxu0 0
        %866 = vmatprep.subr.bf16.mxu0 0
        %867 = vmatpush1.bf16.msra.mxu0 0
        %868 = vmatprep.subr.bf16.mxu0 0
        %869 = vmatpush1.bf16.msra.mxu0 0
        %870 = vmatprep.subr.bf16.mxu0 0
        %871 = vmatpush1.bf16.msra.mxu0 0
        %872 = vmatprep.subr.bf16.mxu0 0
        %873 = vmatpush1.bf16.msra.mxu0 0
        %874 = vmatprep.subr.bf16.mxu0 0
        %875 = vmatpush1.bf16.msra.mxu0 0
        %876 = vmatprep.subr.bf16.mxu0 0
        %877 = vmatpush1.bf16.msra.mxu0 0
        %878 = vmatprep.mubr.bf16.mxu0 0
        %879 = vmatmul.mubr.bf16.gmra.mrb[0].mxu0 %v774
        %v880 = vpop.f32.mrb[0].mxu0
        %v881 = vadd.f32 %v796, %v880
        %v882 = vpop.f32.mrb[0].mxu0
        %v883 = vpop.f32.mrb[0].mxu0
        %v884 = vadd.f32 %v796, %v883
        %v885 = vpop.f32.mrb[0].mxu0
        %886 = vdwg.mxu0
        %v887 = vadd.f32 %v605, %v881
        %v888 = vadd.f32 %v606, %v884
        %889 = vst.msk [vmem:[%s523] sm:$0xff] %vm560, %v887
        %890 = vst.msk [vmem:[%s523 + $0x8] sm:$0xff] %vm560, %v888
        %s891 = sand.u32 %s262, 1
        %s892 = scalar_lea.sflag [#allocation4], %s891
        %s893 = sand.u32 %s262, 1
        %s894 = smul.addr %s893, 16
        %s895 = scalar_lea.vmem [#allocation19], %s894
        // Predicated region
        $region101: #{swin_backbone_forward.19} parent=59 // pred_check
          %p896 = pneg %p272
        $region102: #{swin_backbone_forward.19} parent=59 // pred_check_branch
          %898 = sbr.rel (%p896) target = $region104
        $region103: #{swin_backbone_forward.19} parent=59 // pred_region
          %s899 = smul.u32 2, %s34
          %s901 = ssub.s32 256, 256
          %902 = vsyncadd %s892, %s901
          %s903 = smul.addr %s899, 128
          %s904 = scalar_lea.hbm %s10, %s903
          %s905 = sshll.u32 %s895, 4
          %s906 = int_to_ptr.vmem [resolvable:$true] %s905
          %911 = dma.vmem_to_hbm [thread:$0]  %s906, 256, %s904, %s892, 128, 128, 8
        $region104: #{swin_backbone_forward.19} parent=59 // pred_fallthru
          _
      $region60: #{swin_backbone_forward.19} parent=5 // pred_fallthru
        _
      %p912 = scmp.le.s32.totalorder 2, %s29
      // Predicated region
      $region105: #{swin_backbone_forward.19} parent=5 // pred_check
        %p913 = pneg %p912
      $region106: #{swin_backbone_forward.19} parent=5 // pred_check_branch
        %915 = sbr.rel (%p913) target = $region108
      $region107: #{swin_backbone_forward.19} parent=5 // pred_region
        %s916 = ssub.s32 %s29, 2
        // Predicated region
        $region109: #{swin_backbone_forward.19} parent=107 // pred_check
          %p917 = pneg %p278
        $region110: #{swin_backbone_forward.19} parent=107 // pred_check_branch
          %919 = sbr.rel (%p917) target = $region112
        $region111: #{swin_backbone_forward.19} parent=107 // pred_region
          %s920 = sand.u32 %s263, 1
          %s921 = scalar_lea.sflag [#allocation4], %s920
          %s922 = sand.u32 %s263, 1
          %s923 = smul.addr %s922, 16
          %s924 = scalar_lea.vmem [#allocation19], %s923
          %925 = dma.done %s921, 256
        $region112: #{swin_backbone_forward.19} parent=107 // pred_fallthru
          _
      $region108: #{swin_backbone_forward.19} parent=5 // pred_fallthru
        _
    $region6: #{swin_backbone_forward.19} parent=1 // loop_footer
      %s33 = sadd.s32 1, %s29
    $region7: #{swin_backbone_forward.19} parent=1 // loop_footer_branch
      %28 = sbr.rel target = $region3
    $region8: #{swin_backbone_forward.19} parent=1 // loop_exit
      _
    %926 = vsyncpa [#allocation3], 1
    %s927 = scalar_lea.sflag [#allocation3], 1
    %928 = vsyncpa %s927, 1
    %929 = vsyncpa [#allocation6], 1
    %s930 = scalar_lea.sflag [#allocation6], 1
    %931 = vsyncpa %s930, 1
    %932 = vsyncpa [#allocation9], 1
    %933 = vsyncpa [#allocation12], 1
    %934 = vsyncpa [#allocation15], 1
    %935 = vsyncpa [#allocation18], 1
    %936 = vsyncpa [#allocation4], 1
    %s937 = scalar_lea.sflag [#allocation4], 1
    %938 = vsyncpa %s937, 1

// kernel: swin_backbone_forward.23
$region0: #{swin_backbone_forward.23}
  #allocation0 [shape = 'u32[]', space=smem, size = 0x4, offset = 0x4, fixed_abs, tag = 'smem constant byte address 0x4 - core index']
  #allocation1 [shape = 'u32[144,128]{1,0:T(1,128)}', space=vmem, size = 0x12000, scoped, tag = 'internal scratch']
  %s0 = inlined_call_operand.hbm [shape: f32[32,32], index: 0, kind: input, shape index: {}]
  %s1 = inlined_call_operand.hbm [shape: f32[1,32], index: 1, kind: input, shape index: {}]
  %s2 = inlined_call_operand.hbm [shape: f32[1,32], index: 2, kind: input, shape index: {}]
  %s3 = inlined_call_operand.hbm [shape: f32[32,32], index: 3, kind: output, shape index: {}]
  %s4 = sld [smem:[#allocation0]]
  $region57: #{swin_backbone_forward.23} parent=0
    _
  %s6 = ssub.s32 1, %s4
  %s7 = scalar_select 0, %s6, %s4
  $region1: #{swin_backbone_forward.23} parent=0
    #allocation2 [shape = 'u8[16384]{0}', space=vmem, size = 0x4000, scoped, tag = 'input window, operand 0']
    #allocation3 [shape = 's32[2]{0}', space=sflag, size = 0x8, scoped, tag = 'scoped memory for swin_backbone_forward.23']
    #allocation4 [shape = 's32[2]{0}', space=sflag, size = 0x8, scoped, tag = 'scoped memory for swin_backbone_forward.23']
    #allocation5 [shape = 'u8[512]{0}', space=vmem, size = 0x400, scoped, tag = 'input window, operand 1, single buffered']
    #allocation6 [shape = 's32[1]{0}', space=sflag, size = 0x4, scoped, tag = 'scoped memory for swin_backbone_forward.23']
    #allocation7 [shape = 'u8[512]{0}', space=vmem, size = 0x400, scoped, tag = 'input window, operand 2, single buffered']
    #allocation8 [shape = 'u8[16384]{0}', space=vmem, size = 0x4000, scoped, tag = 'output window, operand 0']
    %8 = vsyncpa [#allocation3], 0
    %s9 = scalar_lea.sflag [#allocation3], 1
    %10 = vsyncpa %s9, 0
    %11 = vsyncpa [#allocation6], 0
    %12 = vsyncpa [#allocation4], 0
    %s13 = scalar_lea.sflag [#allocation4], 1
    %14 = vsyncpa %s13, 0
    loop: start=0, step=1, limit=4
    $region2: #{swin_backbone_forward.23} parent=1 // loop_pre_header
      _
    $region3: #{swin_backbone_forward.23} parent=1 // loop_header
      %s16 = sphi 0, %s20
      %p17 = scmp.ge.s32.totalorder %s16, 4
      %s26 = sphi 0, %s28
      %s29 = sphi 0, %s26
      %s30 = sphi 0, %s29
      %s46 = sphi 0, %s30
      %s50 = sphi 0, %s50
      %s52 = sphi 0, %s50
      %s53 = sphi 0, %s52
      %s67 = sphi 0, %s53
      %s71 = sphi 0, %s71
      %s73 = sphi 0, %s71
      %s74 = sphi 0, %s73
      %s88 = sphi 0, %s74
      %s94 = sphi 0, %s96
      %s97 = sphi 0, %s94
      %s98 = sphi 0, %s97
      %s114 = sphi 0, %s98
    $region4: #{swin_backbone_forward.23} parent=1 // loop_header_branch
      %19 = sbr.rel (%p17) target = $region8
    $region5: #{swin_backbone_forward.23} parent=1 // loop_body
      %s21 = ssub.s32 %s16, 1
      %s22 = ssub.s32 %s16, 2
      %s23 = sadd.s32 %s16, 1
      %s24 = ssub.s32 %s16, %s23
      %p25 = scmp.eq.s32.totalorder %s24, 0
      %s27 = sadd.s32 %s26, 1
      %s28 = scalar_select %p25, %s26, %s27
      %p31 = pneg %p25
      %p32 = scmp.eq.s32.totalorder %s16, 1
      %p33 = por %p31, %p32
      %p34 = scmp.ne.s32.totalorder %s26, %s29
      %p35 = scmp.eq.s32.totalorder %s16, 0
      %p36 = por %p34, %p35
      %p37 = scmp.ne.s32.totalorder %s26, %s29
      %p38 = scmp.eq.s32.totalorder %s21, 1
      %p39 = por %p37, %p38
      %p40 = scmp.ne.s32.totalorder %s29, %s30
      %p41 = scmp.eq.s32.totalorder %s21, 0
      %p42 = por %p40, %p41
      %p43 = scmp.ne.s32.totalorder %s29, %s30
      %p44 = scmp.eq.s32.totalorder %s22, 1
      %p45 = por %p43, %p44
      %p47 = scmp.ne.s32.totalorder %s30, %s46
      %p48 = scmp.eq.s32.totalorder %s22, 0
      %p49 = por %p47, %p48
      %s51 = sadd.s32 %s50, 1
      %p54 = scmp.eq.s32.totalorder %s16, 1
      %p55 = scmp.ne.s32.totalorder %s50, %s52
      %p56 = scmp.eq.s32.totalorder %s16, 0
      %p57 = por %p55, %p56
      %p58 = scmp.ne.s32.totalorder %s50, %s52
      %p59 = scmp.eq.s32.totalorder %s21, 1
      %p60 = por %p58, %p59
      %p61 = scmp.ne.s32.totalorder %s52, %s53
      %p62 = scmp.eq.s32.totalorder %s21, 0
      %p63 = por %p61, %p62
      %p64 = scmp.ne.s32.totalorder %s52, %s53
      %p65 = scmp.eq.s32.totalorder %s22, 1
      %p66 = por %p64, %p65
      %p68 = scmp.ne.s32.totalorder %s53, %s67
      %p69 = scmp.eq.s32.totalorder %s22, 0
      %p70 = por %p68, %p69
      %s72 = sadd.s32 %s71, 1
      %p75 = scmp.eq.s32.totalorder %s16, 1
      %p76 = scmp.ne.s32.totalorder %s71, %s73
      %p77 = scmp.eq.s32.totalorder %s16, 0
      %p78 = por %p76, %p77
      %p79 = scmp.ne.s32.totalorder %s71, %s73
      %p80 = scmp.eq.s32.totalorder %s21, 1
      %p81 = por %p79, %p80
      %p82 = scmp.ne.s32.totalorder %s73, %s74
      %p83 = scmp.eq.s32.totalorder %s21, 0
      %p84 = por %p82, %p83
      %p85 = scmp.ne.s32.totalorder %s73, %s74
      %p86 = scmp.eq.s32.totalorder %s22, 1
      %p87 = por %p85, %p86
      %p89 = scmp.ne.s32.totalorder %s74, %s88
      %p90 = scmp.eq.s32.totalorder %s22, 0
      %p91 = por %p89, %p90
      %s92 = ssub.s32 %s16, %s23
      %p93 = scmp.eq.s32.totalorder %s92, 0
      %s95 = sadd.s32 %s94, 1
      %s96 = scalar_select %p93, %s94, %s95
      %p99 = pneg %p93
      %p100 = scmp.eq.s32.totalorder %s16, 1
      %p101 = por %p99, %p100
      %p102 = scmp.ne.s32.totalorder %s94, %s97
      %p103 = scmp.eq.s32.totalorder %s16, 0
      %p104 = por %p102, %p103
      %p105 = scmp.ne.s32.totalorder %s94, %s97
      %p106 = scmp.eq.s32.totalorder %s21, 1
      %p107 = por %p105, %p106
      %p108 = scmp.ne.s32.totalorder %s97, %s98
      %p109 = scmp.eq.s32.totalorder %s21, 0
      %p110 = por %p108, %p109
      %p111 = scmp.ne.s32.totalorder %s97, %s98
      %p112 = scmp.eq.s32.totalorder %s22, 1
      %p113 = por %p111, %p112
      %p115 = scmp.ne.s32.totalorder %s98, %s114
      %p116 = scmp.eq.s32.totalorder %s22, 0
      %p117 = por %p115, %p116
      %p118 = scmp.le.s32.totalorder 1, %s16
      %p119 = scmp.lt.s32.totalorder %s16, 3
      %p120 = pnand %p118, %p119
      %p121 = pneg %p120
      // Predicated region
      $region9: #{swin_backbone_forward.23} parent=5 // pred_check
        _
      $region10: #{swin_backbone_forward.23} parent=5 // pred_check_branch
        %123 = sbr.rel (%p120) target = $region12
      $region11: #{swin_backbone_forward.23} parent=5 // pred_region
        %s124 = ssub.s32 %s16, 1
        // Predicated region
        $region13: #{swin_backbone_forward.23} parent=11 // pred_check
          %p125 = pneg %p63
        $region14: #{swin_backbone_forward.23} parent=11 // pred_check_branch
          %127 = sbr.rel (%p125) target = $region16
        $region15: #{swin_backbone_forward.23} parent=11 // pred_region
          %s129 = ssub.s32 16, 16
          %130 = vsyncadd [#allocation6], %s129
          %s132 = sshll.u32 [#allocation5], 4
          %s133 = int_to_ptr.vmem [resolvable:$true] %s132
          %135 = dma.hbm_to_vmem [thread:$0]  %s1, 16, %s133, [#allocation6]
        $region16: #{swin_backbone_forward.23} parent=11 // pred_fallthru
          _
        // Predicated region
        $region17: #{swin_backbone_forward.23} parent=11 // pred_check
          %p136 = pneg %p84
        $region18: #{swin_backbone_forward.23} parent=11 // pred_check_branch
          %138 = sbr.rel (%p136) target = $region20
        $region19: #{swin_backbone_forward.23} parent=11 // pred_region
          %s140 = ssub.s32 16, 16
          %141 = vsyncadd [#allocation6], %s140
          %s143 = sshll.u32 [#allocation7], 4
          %s144 = int_to_ptr.vmem [resolvable:$true] %s143
          %146 = dma.hbm_to_vmem [thread:$0]  %s2, 16, %s144, [#allocation6]
        $region20: #{swin_backbone_forward.23} parent=11 // pred_fallthru
          _
      $region12: #{swin_backbone_forward.23} parent=5 // pred_fallthru
        _
      %p147 = scmp.lt.s32.totalorder %s16, 2
      // Predicated region
      $region21: #{swin_backbone_forward.23} parent=5 // pred_check
        %p148 = pneg %p147
      $region22: #{swin_backbone_forward.23} parent=5 // pred_check_branch
        %150 = sbr.rel (%p148) target = $region24
      $region23: #{swin_backbone_forward.23} parent=5 // pred_region
        // Predicated region
        $region25: #{swin_backbone_forward.23} parent=23 // pred_check
          %p151 = pneg %p36
        $region26: #{swin_backbone_forward.23} parent=23 // pred_check_branch
          %153 = sbr.rel (%p151) target = $region28
        $region27: #{swin_backbone_forward.23} parent=23 // pred_region
          %s154 = sand.u32 %s26, 1
          %s155 = scalar_lea.sflag [#allocation3], %s154
          %s156 = sand.u32 %s26, 1
          %s157 = smul.addr %s156, 16
          %s158 = scalar_lea.vmem [#allocation2], %s157
          %s159 = smul.u32 2, %s16
          %s161 = ssub.s32 256, 256
          %162 = vsyncadd %s155, %s161
          %s163 = smul.addr %s159, 128
          %s164 = scalar_lea.hbm %s0, %s163
          %s165 = sshll.u32 %s158, 4
          %s166 = int_to_ptr.vmem [resolvable:$true] %s165
          %171 = dma.hbm_to_vmem [thread:$0]  %s164, 256, %s166, %s155, 128, 128, 8
        $region28: #{swin_backbone_forward.23} parent=23 // pred_fallthru
          _
      $region24: #{swin_backbone_forward.23} parent=5 // pred_fallthru
        _
      %p172 = scmp.le.s32.totalorder 1, %s16
      %p173 = scmp.lt.s32.totalorder %s16, 3
      %p174 = pnand %p172, %p173
      %p175 = pneg %p174
      // Predicated region
      $region29: #{swin_backbone_forward.23} parent=5 // pred_check
        _
      $region30: #{swin_backbone_forward.23} parent=5 // pred_check_branch
        %177 = sbr.rel (%p174) target = $region32
      $region31: #{swin_backbone_forward.23} parent=5 // pred_region
        %s178 = ssub.s32 %s16, 1
        %s179 = sand.u32 %s29, 1
        %s180 = scalar_lea.sflag [#allocation3], %s179
        %s181 = sand.u32 %s29, 1
        %s182 = smul.addr %s181, 16
        %s183 = scalar_lea.vmem [#allocation2], %s182
        // Predicated region
        $region33: #{swin_backbone_forward.23} parent=31 // pred_check
          %p184 = pneg %p42
        $region34: #{swin_backbone_forward.23} parent=31 // pred_check_branch
          %186 = sbr.rel (%p184) target = $region36
        $region35: #{swin_backbone_forward.23} parent=31 // pred_region
          %187 = dma.done %s180, 256
        $region36: #{swin_backbone_forward.23} parent=31 // pred_fallthru
          _
        // Predicated region
        $region37: #{swin_backbone_forward.23} parent=31 // pred_check
          %p188 = pneg %p63
        $region38: #{swin_backbone_forward.23} parent=31 // pred_check_branch
          %190 = sbr.rel (%p188) target = $region40
        $region39: #{swin_backbone_forward.23} parent=31 // pred_region
          %191 = dma.done [#allocation6], 16
        $region40: #{swin_backbone_forward.23} parent=31 // pred_fallthru
          _
        // Predicated region
        $region41: #{swin_backbone_forward.23} parent=31 // pred_check
          %p192 = pneg %p84
        $region42: #{swin_backbone_forward.23} parent=31 // pred_check_branch
          %194 = sbr.rel (%p192) target = $region44
        $region43: #{swin_backbone_forward.23} parent=31 // pred_region
          %195 = dma.done [#allocation6], 16
        $region44: #{swin_backbone_forward.23} parent=31 // pred_fallthru
          _
        %s196 = sand.u32 %s29, 1
        %s197 = scalar_lea.sflag [#allocation3], %s196
        %s198 = sand.u32 %s29, 1
        %s199 = smul.addr %s198, 16
        %s200 = scalar_lea.vmem [#allocation2], %s199
        %p201 = pneg %p42
        %p202 = pneg %p39
        %p203 = pneg %p63
        %p204 = pneg %p60
        %p205 = pneg %p84
        %p206 = pneg %p81
        %p207 = pneg %p110
        %p208 = pneg %p107
        %s209 = sand.u32 %s97, 1
        %s210 = scalar_lea.sflag [#allocation4], %s209
        %s211 = sand.u32 %s97, 1
        %s212 = smul.addr %s211, 16
        %s213 = scalar_lea.vmem [#allocation8], %s212
        %s214 = smul.u32 2, %s21
        %s215 = smul.u32 2, %s21
        %v216 = vld [vmem:[%s183] sm:$0xff]
        %v217 = vld [vmem:[%s183 + $0x8] sm:$0xff]
        %vm218 = vcmask 261120
        %v219 = vsel %vm218, %v216, 0.0
        %220 = vadd.xlane.f32.xlu0 %v219
        %v221 = vpop.xlane.xlu0 %220
        %v222 = vsel %vm218, %v217, 0.0
        %223 = vadd.xlane.f32.xlu0 %v222
        %v224 = vpop.xlane.xlu0 %223
        %v225 = vrcp.pop 32.0
        %v226 = vmul.f32 %v221, %v225
        %v227 = vmul.f32 %v224, %v225
        %v228 = vsub.f32 %v216, %v226
        %v229 = vsub.f32 %v217, %v227
        %v230 = vmul.f32 %v228, %v228
        %v231 = vmul.f32 %v229, %v229
        %v232 = vsel %vm218, %v230, 0.0
        %233 = vadd.xlane.f32.xlu0 %v232
        %v234 = vpop.xlane.xlu0 %233
        %v235 = vsel %vm218, %v231, 0.0
        %236 = vadd.xlane.f32.xlu0 %v235
        %v237 = vpop.xlane.xlu0 %236
        %v238 = vmul.f32 %v234, %v225
        %v239 = vmul.f32 %v237, %v225
        %v240 = vadd.f32 %v238, 1e-05
        %v241 = vadd.f32 %v239, 1e-05
        %v242 = vrsqrt.pop %v240
        %v243 = vrsqrt.pop %v241
        %v244 = vmul.f32 %v228, %v242
        %v245 = vmul.f32 %v229, %v243
        %v246 = vld [vmem:[#allocation5] sm:$0x1]
        %v248 = vlaneseq
        %v249 = vshrl.u32 %v248, 7
        %v250 = vsub.s32 0, %v249
        %v251 = vrot.slane %v246, %v250
        %v253 = vmul.f32 %v244, %v251
        %v254 = vmul.f32 %v245, %v251
        %v255 = vld [vmem:[#allocation7] sm:$0x1]
        %v257 = vlaneseq
        %v258 = vshrl.u32 %v257, 7
        %v259 = vsub.s32 0, %v258
        %v260 = vrot.slane %v255, %v259
        %v262 = vadd.f32 %v253, %v260
        %v263 = vadd.f32 %v254, %v260
        %264 = vst.msk [vmem:[%s213] sm:$0xff] %vm218, %v262
        %265 = vst.msk [vmem:[%s213 + $0x8] sm:$0xff] %vm218, %v263
        %s266 = sand.u32 %s97, 1
        %s267 = scalar_lea.sflag [#allocation4], %s266
        %s268 = sand.u32 %s97, 1
        %s269 = smul.addr %s268, 16
        %s270 = scalar_lea.vmem [#allocation8], %s269
        // Predicated region
        $region45: #{swin_backbone_forward.23} parent=31 // pred_check
          %p271 = pneg %p107
        $region46: #{swin_backbone_forward.23} parent=31 // pred_check_branch
          %273 = sbr.rel (%p271) target = $region48
        $region47: #{swin_backbone_forward.23} parent=31 // pred_region
          %s274 = smul.u32 2, %s21
          %s276 = ssub.s32 256, 256
          %277 = vsyncadd %s267, %s276
          %s278 = smul.addr %s274, 128
          %s279 = scalar_lea.hbm %s3, %s278
          %s280 = sshll.u32 %s270, 4
          %s281 = int_to_ptr.vmem [resolvable:$true] %s280
          %286 = dma.vmem_to_hbm [thread:$0]  %s281, 256, %s279, %s267, 128, 128, 8
        $region48: #{swin_backbone_forward.23} parent=31 // pred_fallthru
          _
      $region32: #{swin_backbone_forward.23} parent=5 // pred_fallthru
        _
      %p287 = scmp.le.s32.totalorder 2, %s16
      // Predicated region
      $region49: #{swin_backbone_forward.23} parent=5 // pred_check
        %p288 = pneg %p287
      $region50: #{swin_backbone_forward.23} parent=5 // pred_check_branch
        %290 = sbr.rel (%p288) target = $region52
      $region51: #{swin_backbone_forward.23} parent=5 // pred_region
        %s291 = ssub.s32 %s16, 2
        // Predicated region
        $region53: #{swin_backbone_forward.23} parent=51 // pred_check
          %p292 = pneg %p113
        $region54: #{swin_backbone_forward.23} parent=51 // pred_check_branch
          %294 = sbr.rel (%p292) target = $region56
        $region55: #{swin_backbone_forward.23} parent=51 // pred_region
          %s295 = sand.u32 %s98, 1
          %s296 = scalar_lea.sflag [#allocation4], %s295
          %s297 = sand.u32 %s98, 1
          %s298 = smul.addr %s297, 16
          %s299 = scalar_lea.vmem [#allocation8], %s298
          %300 = dma.done %s296, 256
        $region56: #{swin_backbone_forward.23} parent=51 // pred_fallthru
          _
      $region52: #{swin_backbone_forward.23} parent=5 // pred_fallthru
        _
    $region6: #{swin_backbone_forward.23} parent=1 // loop_footer
      %s20 = sadd.s32 1, %s16
    $region7: #{swin_backbone_forward.23} parent=1 // loop_footer_branch
      %15 = sbr.rel target = $region3
    $region8: #{swin_backbone_forward.23} parent=1 // loop_exit
      _
    %301 = vsyncpa [#allocation3], 1
    %s302 = scalar_lea.sflag [#allocation3], 1
    %303 = vsyncpa %s302, 1
    %304 = vsyncpa [#allocation6], 1
    %305 = vsyncpa [#allocation4], 1
    %s306 = scalar_lea.sflag [#allocation4], 1
    %307 = vsyncpa %s306, 1

// kernel: swin_backbone_forward.18
$region0: #{swin_backbone_forward.18}
  #allocation0 [shape = 'u32[]', space=smem, size = 0x4, offset = 0x4, fixed_abs, tag = 'smem constant byte address 0x4 - core index']
  #allocation1 [shape = 'u32[144,128]{1,0:T(1,128)}', space=vmem, size = 0x12000, scoped, tag = 'internal scratch']
  %s0 = inlined_call_operand.hbm [shape: bf16[8,4,96], index: 0, kind: input, shape index: {}]
  %s1 = inlined_call_operand.hbm [shape: bf16[8,4,32], index: 1, kind: output, shape index: {}]
  %s2 = sld [smem:[#allocation0]]
  $region41: #{swin_backbone_forward.18} parent=0
    _
  %s4 = ssub.s32 1, %s2
  %s5 = scalar_select 0, %s4, %s2
  $region1: #{swin_backbone_forward.18} parent=0
    #allocation2 [shape = 'u8[8192]{0}', space=vmem, size = 0x2000, scoped, tag = 'input window, operand 0']
    #allocation3 [shape = 's32[2]{0}', space=sflag, size = 0x8, scoped, tag = 'scoped memory for swin_backbone_forward.18']
    #allocation4 [shape = 's32[2]{0}', space=sflag, size = 0x8, scoped, tag = 'scoped memory for swin_backbone_forward.18']
    #allocation5 [shape = 'u8[8192]{0}', space=vmem, size = 0x2000, scoped, tag = 'output window, operand 0']
    %6 = vsyncpa [#allocation3], 0
    %s7 = scalar_lea.sflag [#allocation3], 1
    %8 = vsyncpa %s7, 0
    %9 = vsyncpa [#allocation4], 0
    %s10 = scalar_lea.sflag [#allocation4], 1
    %11 = vsyncpa %s10, 0
    loop: start=0, step=1, limit=4
    $region2: #{swin_backbone_forward.18} parent=1 // loop_pre_header
      _
    $region3: #{swin_backbone_forward.18} parent=1 // loop_header
      %s13 = sphi 0, %s17
      %p14 = scmp.ge.s32.totalorder %s13, 4
      %s23 = sphi 0, %s25
      %s26 = sphi 0, %s23
      %s27 = sphi 0, %s26
      %s43 = sphi 0, %s27
      %s49 = sphi 0, %s51
      %s52 = sphi 0, %s49
      %s53 = sphi 0, %s52
      %s69 = sphi 0, %s53
    $region4: #{swin_backbone_forward.18} parent=1 // loop_header_branch
      %16 = sbr.rel (%p14) target = $region8
    $region5: #{swin_backbone_forward.18} parent=1 // loop_body
      %s18 = ssub.s32 %s13, 1
      %s19 = ssub.s32 %s13, 2
      %s20 = sadd.s32 %s13, 1
      %s21 = ssub.s32 %s13, %s20
      %p22 = scmp.eq.s32.totalorder %s21, 0
      %s24 = sadd.s32 %s23, 1
      %s25 = scalar_select %p22, %s23, %s24
      %p28 = pneg %p22
      %p29 = scmp.eq.s32.totalorder %s13, 1
      %p30 = por %p28, %p29
      %p31 = scmp.ne.s32.totalorder %s23, %s26
      %p32 = scmp.eq.s32.totalorder %s13, 0
      %p33 = por %p31, %p32
      %p34 = scmp.ne.s32.totalorder %s23, %s26
      %p35 = scmp.eq.s32.totalorder %s18, 1
      %p36 = por %p34, %p35
      %p37 = scmp.ne.s32.totalorder %s26, %s27
      %p38 = scmp.eq.s32.totalorder %s18, 0
      %p39 = por %p37, %p38
      %p40 = scmp.ne.s32.totalorder %s26, %s27
      %p41 = scmp.eq.s32.totalorder %s19, 1
      %p42 = por %p40, %p41
      %p44 = scmp.ne.s32.totalorder %s27, %s43
      %p45 = scmp.eq.s32.totalorder %s19, 0
      %p46 = por %p44, %p45
      %s47 = ssub.s32 %s13, %s20
      %p48 = scmp.eq.s32.totalorder %s47, 0
      %s50 = sadd.s32 %s49, 1
      %s51 = scalar_select %p48, %s49, %s50
      %p54 = pneg %p48
      %p55 = scmp.eq.s32.totalorder %s13, 1
      %p56 = por %p54, %p55
      %p57 = scmp.ne.s32.totalorder %s49, %s52
      %p58 = scmp.eq.s32.totalorder %s13, 0
      %p59 = por %p57, %p58
      %p60 = scmp.ne.s32.totalorder %s49, %s52
      %p61 = scmp.eq.s32.totalorder %s18, 1
      %p62 = por %p60, %p61
      %p63 = scmp.ne.s32.totalorder %s52, %s53
      %p64 = scmp.eq.s32.totalorder %s18, 0
      %p65 = por %p63, %p64
      %p66 = scmp.ne.s32.totalorder %s52, %s53
      %p67 = scmp.eq.s32.totalorder %s19, 1
      %p68 = por %p66, %p67
      %p70 = scmp.ne.s32.totalorder %s53, %s69
      %p71 = scmp.eq.s32.totalorder %s19, 0
      %p72 = por %p70, %p71
      %p73 = scmp.le.s32.totalorder 1, %s13
      %p74 = scmp.lt.s32.totalorder %s13, 3
      %p75 = pnand %p73, %p74
      %p76 = pneg %p75
      // Predicated region
      $region9: #{swin_backbone_forward.18} parent=5 // pred_check
        _
      $region10: #{swin_backbone_forward.18} parent=5 // pred_check_branch
        %78 = sbr.rel (%p75) target = $region12
      $region11: #{swin_backbone_forward.18} parent=5 // pred_region
        %s79 = ssub.s32 %s13, 1
      $region12: #{swin_backbone_forward.18} parent=5 // pred_fallthru
        _
      %p80 = scmp.lt.s32.totalorder %s13, 2
      // Predicated region
      $region13: #{swin_backbone_forward.18} parent=5 // pred_check
        %p81 = pneg %p80
      $region14: #{swin_backbone_forward.18} parent=5 // pred_check_branch
        %83 = sbr.rel (%p81) target = $region16
      $region15: #{swin_backbone_forward.18} parent=5 // pred_region
        // Predicated region
        $region17: #{swin_backbone_forward.18} parent=15 // pred_check
          %p84 = pneg %p33
        $region18: #{swin_backbone_forward.18} parent=15 // pred_check_branch
          %86 = sbr.rel (%p84) target = $region20
        $region19: #{swin_backbone_forward.18} parent=15 // pred_region
          %s87 = sand.u32 %s23, 1
          %s88 = scalar_lea.sflag [#allocation3], %s87
          %s89 = sand.u32 %s23, 1
          %s90 = smul.addr %s89, 8
          %s91 = scalar_lea.vmem [#allocation2], %s90
          %s92 = smul.u32 4, %s13
          %s94 = ssub.s32 128, 128
          %95 = vsyncadd %s88, %s94
          %s96 = smul.addr %s92, 32
          %s97 = scalar_lea.hbm %s0, %s96
          %s98 = sshll.u32 %s91, 4
          %s99 = int_to_ptr.vmem [resolvable:$true] %s98
          %104 = dma.hbm_to_vmem [thread:$0]  %s97, 128, %s99, %s88, 32, 32, 2
        $region20: #{swin_backbone_forward.18} parent=15 // pred_fallthru
          _
      $region16: #{swin_backbone_forward.18} parent=5 // pred_fallthru
        _
      %p105 = scmp.le.s32.totalorder 1, %s13
      %p106 = scmp.lt.s32.totalorder %s13, 3
      %p107 = pnand %p105, %p106
      %p108 = pneg %p107
      // Predicated region
      $region21: #{swin_backbone_forward.18} parent=5 // pred_check
        _
      $region22: #{swin_backbone_forward.18} parent=5 // pred_check_branch
        %110 = sbr.rel (%p107) target = $region24
      $region23: #{swin_backbone_forward.18} parent=5 // pred_region
        %s111 = ssub.s32 %s13, 1
        %s112 = sand.u32 %s26, 1
        %s113 = scalar_lea.sflag [#allocation3], %s112
        %s114 = sand.u32 %s26, 1
        %s115 = smul.addr %s114, 8
        %s116 = scalar_lea.vmem [#allocation2], %s115
        // Predicated region
        $region25: #{swin_backbone_forward.18} parent=23 // pred_check
          %p117 = pneg %p39
        $region26: #{swin_backbone_forward.18} parent=23 // pred_check_branch
          %119 = sbr.rel (%p117) target = $region28
        $region27: #{swin_backbone_forward.18} parent=23 // pred_region
          %120 = dma.done %s113, 128
        $region28: #{swin_backbone_forward.18} parent=23 // pred_fallthru
          _
        %s121 = sand.u32 %s26, 1
        %s122 = scalar_lea.sflag [#allocation3], %s121
        %s123 = sand.u32 %s26, 1
        %s124 = smul.addr %s123, 8
        %s125 = scalar_lea.vmem [#allocation2], %s124
        %p126 = pneg %p39
        %p127 = pneg %p36
        %p128 = pneg %p65
        %p129 = pneg %p62
        %s130 = sand.u32 %s52, 1
        %s131 = scalar_lea.sflag [#allocation4], %s130
        %s132 = sand.u32 %s52, 1
        %s133 = smul.addr %s132, 8
        %s134 = scalar_lea.vmem [#allocation5], %s133
        %s135 = smul.u32 4, %s18
        %s136 = smul.u32 4, %s18
        %v138 = vld [vmem:[%s116] sm:$0x3]
        %v139 = vld [vmem:[%s116 + $0x2] sm:$0x3]
        %v140 = vld [vmem:[%s116 + $0x4] sm:$0x3]
        %v141 = vld [vmem:[%s116 + $0x6] sm:$0x3]
        %v142 = vunpack.c.l.bf16 %v138
        %v143 = vunpack.c.l.bf16 %v139
        %v144 = vunpack.c.l.bf16 %v140
        %v145 = vunpack.c.l.bf16 %v141
        %v146 = vmul.f32 %v142, %v142
        %v147 = vmul.f32 %v143, %v143
        %v148 = vmul.f32 %v144, %v144
        %v149 = vmul.f32 %v145, %v145
        %vm150 = vcmask 60416
        %v151 = vsel %vm150, %v146, 0.0
        %152 = vadd.xlane.f32.xlu0 %v151
        %v153 = vpop.xlane.xlu0 %152
        %v154 = vsel %vm150, %v147, 0.0
        %155 = vadd.xlane.f32.xlu0 %v154
        %v156 = vpop.xlane.xlu0 %155
        %v157 = vsel %vm150, %v148, 0.0
        %158 = vadd.xlane.f32.xlu0 %v157
        %v159 = vpop.xlane.xlu0 %158
        %v160 = vsel %vm150, %v149, 0.0
        %161 = vadd.xlane.f32.xlu0 %v160
        %v162 = vpop.xlane.xlu0 %161
        %v163 = vmax.f32 %v153, 1e-24
        %v164 = vmax.f32 %v156, 1e-24
        %v165 = vmax.f32 %v159, 1e-24
        %v166 = vmax.f32 %v162, 1e-24
        %v167 = vrsqrt.pop %v163
        %v168 = vrsqrt.pop %v164
        %v169 = vrsqrt.pop %v165
        %v170 = vrsqrt.pop %v166
        %v171 = vmul.f32 %v142, %v167
        %v172 = vmul.f32 %v143, %v168
        %v173 = vmul.f32 %v144, %v169
        %v174 = vmul.f32 %v145, %v170
        %179 = vrot.lane.b32.xlu0 %v146, 96
        %v180 = vpop.permute.xlu0 %179
        %181 = vrot.lane.b32.xlu0 %v147, 96
        %v182 = vpop.permute.xlu0 %181
        %183 = vrot.lane.b32.xlu0 %v148, 96
        %v184 = vpop.permute.xlu0 %183
        %185 = vrot.lane.b32.xlu0 %v149, 96
        %v186 = vpop.permute.xlu0 %185
        %v191 = vsel %vm150, %v180, 0.0
        %192 = vadd.xlane.f32.xlu0 %v191
        %v193 = vpop.xlane.xlu0 %192
        %v194 = vsel %vm150, %v182, 0.0
        %195 = vadd.xlane.f32.xlu0 %v194
        %v196 = vpop.xlane.xlu0 %195
        %v197 = vsel %vm150, %v184, 0.0
        %198 = vadd.xlane.f32.xlu0 %v197
        %v199 = vpop.xlane.xlu0 %198
        %v200 = vsel %vm150, %v186, 0.0
        %201 = vadd.xlane.f32.xlu0 %v200
        %v202 = vpop.xlane.xlu0 %201
        %v203 = vmax.f32 %v193, 1e-24
        %v204 = vmax.f32 %v196, 1e-24
        %v205 = vmax.f32 %v199, 1e-24
        %v206 = vmax.f32 %v202, 1e-24
        %v207 = vrsqrt.pop %v203
        %v208 = vrsqrt.pop %v204
        %v209 = vrsqrt.pop %v205
        %v210 = vrsqrt.pop %v206
        %v211 = vmul.f32 %v142, %v207
        %v212 = vmul.f32 %v143, %v208
        %v213 = vmul.f32 %v144, %v209
        %v214 = vmul.f32 %v145, %v210
        %v215 = vpack.c.bf16 %v171, %v171
        %v216 = vpack.c.bf16 %v172, %v172
        %v217 = vpack.c.bf16 %v173, %v173
        %v218 = vpack.c.bf16 %v174, %v174
        %v219 = vpack.c.bf16 %v211, %v211
        %v220 = vpack.c.bf16 %v212, %v212
        %v221 = vpack.c.bf16 %v213, %v213
        %v222 = vpack.c.bf16 %v214, %v214
        %224 = vrot.lane.b32.xlu0 %v219, 96
        %v225 = vpop.permute.xlu0 %224
        %vm226 = vcmask 64512
        %v228 = vsel %vm226, %v215, 0
        %v231 = vsel %vm226, %v225, 0
        %233 = vmatprep.subr.bf16.mxu0 0
        %234 = vmatpush1.bf16.xpose.msra.mxu0 %v231
        %235 = vmatprep.subr.bf16.mxu0 0
        %236 = vmatpush1.bf16.xpose.msra.mxu0 0
        %237 = vmatprep.subr.bf16.mxu0 0
        %238 = vmatpush1.bf16.xpose.msra.mxu0 0
        %239 = vmatprep.subr.bf16.mxu0 0
        %240 = vmatpush1.bf16.xpose.msra.mxu0 0
        %241 = vmatprep.subr.bf16.mxu0 0
        %242 = vmatpush1.bf16.xpose.msra.mxu0 0
        %243 = vmatprep.subr.bf16.mxu0 0
        %244 = vmatpush1.bf16.xpose.msra.mxu0 0
        %245 = vmatprep.subr.bf16.mxu0 0
        %246 = vmatpush1.bf16.xpose.msra.mxu0 0
        %247 = vmatprep.subr.bf16.mxu0 0
        %248 = vmatpush1.bf16.xpose.msra.mxu0 0
        %249 = vmatprep.subr.bf16.mxu0 0
        %250 = vmatpush1.bf16.xpose.msra.mxu0 0
        %251 = vmatprep.subr.bf16.mxu0 0
        %252 = vmatpush1.bf16.xpose.msra.mxu0 0
        %253 = vmatprep.subr.bf16.mxu0 0
        %254 = vmatpush1.bf16.xpose.msra.mxu0 0
        %255 = vmatprep.subr.bf16.mxu0 0
        %256 = vmatpush1.bf16.xpose.msra.mxu0 0
        %257 = vmatprep.subr.bf16.mxu0 0
        %258 = vmatpush1.bf16.xpose.msra.mxu0 0
        %259 = vmatprep.subr.bf16.mxu0 0
        %260 = vmatpush1.bf16.xpose.msra.mxu0 0
        %261 = vmatprep.subr.bf16.mxu0 0
        %262 = vmatpush1.bf16.xpose.msra.mxu0 0
        %263 = vmatprep.subr.bf16.mxu0 0
        %264 = vmatpush1.bf16.xpose.msra.mxu0 0
        %265 = vmatprep.mubr.bf16.mxu0 0
        %266 = vmatmul.mubr.bf16.gmra.mrb[0].mxu0 %v228
        %v267 = vpop.f32.mrb[0].mxu0
        %v268 = vadd.f32 0.0, %v267
        %v269 = vpop.f32.mrb[0].mxu0
        %v270 = vpop.f32.mrb[0].mxu0
        %v271 = vpop.f32.mrb[0].mxu0
        %272 = vdwg.mxu0
        %274 = vrot.lane.b32.xlu0 %v220, 96
        %v275 = vpop.permute.xlu0 %274
        %v277 = vsel %vm226, %v216, 0
        %v280 = vsel %vm226, %v275, 0
        %282 = vmatprep.subr.bf16.mxu0 0
        %283 = vmatpush1.bf16.xpose.msra.mxu0 %v280
        %284 = vmatprep.subr.bf16.mxu0 0
        %285 = vmatpush1.bf16.xpose.msra.mxu0 0
        %286 = vmatprep.subr.bf16.mxu0 0
        %287 = vmatpush1.bf16.xpose.msra.mxu0 0
        %288 = vmatprep.subr.bf16.mxu0 0
        %289 = vmatpush1.bf16.xpose.msra.mxu0 0
        %290 = vmatprep.subr.bf16.mxu0 0
        %291 = vmatpush1.bf16.xpose.msra.mxu0 0
        %292 = vmatprep.subr.bf16.mxu0 0
        %293 = vmatpush1.bf16.xpose.msra.mxu0 0
        %294 = vmatprep.subr.bf16.mxu0 0
        %295 = vmatpush1.bf16.xpose.msra.mxu0 0
        %296 = vmatprep.subr.bf16.mxu0 0
        %297 = vmatpush1.bf16.xpose.msra.mxu0 0
        %298 = vmatprep.subr.bf16.mxu0 0
        %299 = vmatpush1.bf16.xpose.msra.mxu0 0
        %300 = vmatprep.subr.bf16.mxu0 0
        %301 = vmatpush1.bf16.xpose.msra.mxu0 0
        %302 = vmatprep.subr.bf16.mxu0 0
        %303 = vmatpush1.bf16.xpose.msra.mxu0 0
        %304 = vmatprep.subr.bf16.mxu0 0
        %305 = vmatpush1.bf16.xpose.msra.mxu0 0
        %306 = vmatprep.subr.bf16.mxu0 0
        %307 = vmatpush1.bf16.xpose.msra.mxu0 0
        %308 = vmatprep.subr.bf16.mxu0 0
        %309 = vmatpush1.bf16.xpose.msra.mxu0 0
        %310 = vmatprep.subr.bf16.mxu0 0
        %311 = vmatpush1.bf16.xpose.msra.mxu0 0
        %312 = vmatprep.subr.bf16.mxu0 0
        %313 = vmatpush1.bf16.xpose.msra.mxu0 0
        %314 = vmatprep.mubr.bf16.mxu0 0
        %315 = vmatmul.mubr.bf16.gmra.mrb[0].mxu0 %v277
        %v316 = vpop.f32.mrb[0].mxu0
        %v317 = vadd.f32 0.0, %v316
        %v318 = vpop.f32.mrb[0].mxu0
        %v319 = vpop.f32.mrb[0].mxu0
        %v320 = vpop.f32.mrb[0].mxu0
        %321 = vdwg.mxu0
        %323 = vrot.lane.b32.xlu0 %v221, 96
        %v324 = vpop.permute.xlu0 %323
        %v326 = vsel %vm226, %v217, 0
        %v329 = vsel %vm226, %v324, 0
        %331 = vmatprep.subr.bf16.mxu0 0
        %332 = vmatpush1.bf16.xpose.msra.mxu0 %v329
        %333 = vmatprep.subr.bf16.mxu0 0
        %334 = vmatpush1.bf16.xpose.msra.mxu0 0
        %335 = vmatprep.subr.bf16.mxu0 0
        %336 = vmatpush1.bf16.xpose.msra.mxu0 0
        %337 = vmatprep.subr.bf16.mxu0 0
        %338 = vmatpush1.bf16.xpose.msra.mxu0 0
        %339 = vmatprep.subr.bf16.mxu0 0
        %340 = vmatpush1.bf16.xpose.msra.mxu0 0
        %341 = vmatprep.subr.bf16.mxu0 0
        %342 = vmatpush1.bf16.xpose.msra.mxu0 0
        %343 = vmatprep.subr.bf16.mxu0 0
        %344 = vmatpush1.bf16.xpose.msra.mxu0 0
        %345 = vmatprep.subr.bf16.mxu0 0
        %346 = vmatpush1.bf16.xpose.msra.mxu0 0
        %347 = vmatprep.subr.bf16.mxu0 0
        %348 = vmatpush1.bf16.xpose.msra.mxu0 0
        %349 = vmatprep.subr.bf16.mxu0 0
        %350 = vmatpush1.bf16.xpose.msra.mxu0 0
        %351 = vmatprep.subr.bf16.mxu0 0
        %352 = vmatpush1.bf16.xpose.msra.mxu0 0
        %353 = vmatprep.subr.bf16.mxu0 0
        %354 = vmatpush1.bf16.xpose.msra.mxu0 0
        %355 = vmatprep.subr.bf16.mxu0 0
        %356 = vmatpush1.bf16.xpose.msra.mxu0 0
        %357 = vmatprep.subr.bf16.mxu0 0
        %358 = vmatpush1.bf16.xpose.msra.mxu0 0
        %359 = vmatprep.subr.bf16.mxu0 0
        %360 = vmatpush1.bf16.xpose.msra.mxu0 0
        %361 = vmatprep.subr.bf16.mxu0 0
        %362 = vmatpush1.bf16.xpose.msra.mxu0 0
        %363 = vmatprep.mubr.bf16.mxu0 0
        %364 = vmatmul.mubr.bf16.gmra.mrb[0].mxu0 %v326
        %v365 = vpop.f32.mrb[0].mxu0
        %v366 = vadd.f32 0.0, %v365
        %v367 = vpop.f32.mrb[0].mxu0
        %v368 = vpop.f32.mrb[0].mxu0
        %v369 = vpop.f32.mrb[0].mxu0
        %370 = vdwg.mxu0
        %372 = vrot.lane.b32.xlu0 %v222, 96
        %v373 = vpop.permute.xlu0 %372
        %v375 = vsel %vm226, %v218, 0
        %v378 = vsel %vm226, %v373, 0
        %380 = vmatprep.subr.bf16.mxu0 0
        %381 = vmatpush1.bf16.xpose.msra.mxu0 %v378
        %382 = vmatprep.subr.bf16.mxu0 0
        %383 = vmatpush1.bf16.xpose.msra.mxu0 0
        %384 = vmatprep.subr.bf16.mxu0 0
        %385 = vmatpush1.bf16.xpose.msra.mxu0 0
        %386 = vmatprep.subr.bf16.mxu0 0
        %387 = vmatpush1.bf16.xpose.msra.mxu0 0
        %388 = vmatprep.subr.bf16.mxu0 0
        %389 = vmatpush1.bf16.xpose.msra.mxu0 0
        %390 = vmatprep.subr.bf16.mxu0 0
        %391 = vmatpush1.bf16.xpose.msra.mxu0 0
        %392 = vmatprep.subr.bf16.mxu0 0
        %393 = vmatpush1.bf16.xpose.msra.mxu0 0
        %394 = vmatprep.subr.bf16.mxu0 0
        %395 = vmatpush1.bf16.xpose.msra.mxu0 0
        %396 = vmatprep.subr.bf16.mxu0 0
        %397 = vmatpush1.bf16.xpose.msra.mxu0 0
        %398 = vmatprep.subr.bf16.mxu0 0
        %399 = vmatpush1.bf16.xpose.msra.mxu0 0
        %400 = vmatprep.subr.bf16.mxu0 0
        %401 = vmatpush1.bf16.xpose.msra.mxu0 0
        %402 = vmatprep.subr.bf16.mxu0 0
        %403 = vmatpush1.bf16.xpose.msra.mxu0 0
        %404 = vmatprep.subr.bf16.mxu0 0
        %405 = vmatpush1.bf16.xpose.msra.mxu0 0
        %406 = vmatprep.subr.bf16.mxu0 0
        %407 = vmatpush1.bf16.xpose.msra.mxu0 0
        %408 = vmatprep.subr.bf16.mxu0 0
        %409 = vmatpush1.bf16.xpose.msra.mxu0 0
        %410 = vmatprep.subr.bf16.mxu0 0
        %411 = vmatpush1.bf16.xpose.msra.mxu0 0
        %412 = vmatprep.mubr.bf16.mxu0 0
        %413 = vmatmul.mubr.bf16.gmra.mrb[0].mxu0 %v375
        %v414 = vpop.f32.mrb[0].mxu0
        %v415 = vadd.f32 0.0, %v414
        %v416 = vpop.f32.mrb[0].mxu0
        %v417 = vpop.f32.mrb[0].mxu0
        %v418 = vpop.f32.mrb[0].mxu0
        %419 = vdwg.mxu0
        %v420 = vmul.f32 %v268, 0.35355338
        %v421 = vmul.f32 %v317, 0.35355338
        %v422 = vmul.f32 %v366, 0.35355338
        %v423 = vmul.f32 %v415, 0.35355338
        %vm424 = vcmask 27648
        %v425 = vsel %vm424, %v420, -inf
        %426 = vmax.xlane.f32.xlu0 %v425
        %v427 = vpop.xlane.xlu0 %426
        %v428 = vsel %vm424, %v421, -inf
        %429 = vmax.xlane.f32.xlu0 %v428
        %v430 = vpop.xlane.xlu0 %429
        %v431 = vsel %vm424, %v422, -inf
        %432 = vmax.xlane.f32.xlu0 %v431
        %v433 = vpop.xlane.xlu0 %432
        %v434 = vsel %vm424, %v423, -inf
        %435 = vmax.xlane.f32.xlu0 %v434
        %v436 = vpop.xlane.xlu0 %435
        %v437 = vsub.f32 %v420, %v427
        %v438 = vsub.f32 %v421, %v430
        %v439 = vsub.f32 %v422, %v433
        %v440 = vsub.f32 %v423, %v436
        %v441 = vmul.f32 %v437, 1.442695
        %v442 = vpow.pop %v441
        %v443 = vmul.f32 %v438, 1.442695
        %v444 = vpow.pop %v443
        %v445 = vmul.f32 %v439, 1.442695
        %v446 = vpow.pop %v445
        %v447 = vmul.f32 %v440, 1.442695
        %v448 = vpow.pop %v447
        %v449 = vsel %vm424, %v442, 0.0
        %450 = vadd.xlane.f32.xlu0 %v449
        %v451 = vpop.xlane.xlu0 %450
        %v452 = vsel %vm424, %v444, 0.0
        %453 = vadd.xlane.f32.xlu0 %v452
        %v454 = vpop.xlane.xlu0 %453
        %v455 = vsel %vm424, %v446, 0.0
        %456 = vadd.xlane.f32.xlu0 %v455
        %v457 = vpop.xlane.xlu0 %456
        %v458 = vsel %vm424, %v448, 0.0
        %459 = vadd.xlane.f32.xlu0 %v458
        %v460 = vpop.xlane.xlu0 %459
        %v461 = vrcp.pop %v451
        %v462 = vrcp.pop %v454
        %v463 = vrcp.pop %v457
        %v464 = vrcp.pop %v460
        %v465 = vmul.f32 %v442, %v461
        %v466 = vmul.f32 %v444, %v462
        %v467 = vmul.f32 %v446, %v463
        %v468 = vmul.f32 %v448, %v464
        %v469 = vmax.f32 %v465, 1e-06
        %v470 = vmax.f32 %v466, 1e-06
        %v471 = vmax.f32 %v467, 1e-06
        %v472 = vmax.f32 %v468, 1e-06
        %v473 = vmin.f32 %v469, 1.0
        %v474 = vmin.f32 %v470, 1.0
        %v475 = vmin.f32 %v471, 1.0
        %v476 = vmin.f32 %v472, 1.0
        %v477 = vpack.c.bf16 %v473, %v473
        %v478 = vpack.c.bf16 %v474, %v474
        %v479 = vpack.c.bf16 %v475, %v475
        %v480 = vpack.c.bf16 %v476, %v476
        %v483 = vunpack.c.l.s4 1983009808
        %v484 = vunpack.c.0.s8 %v483
        %v485 = vlaneseq
        %v486 = vshrl.u32 %v485, 7
        %v487 = vsub.s32 %v484, %v486
        %v488 = vrot.slane %v138, %v487
        %489 = vrot.lane.b32.xlu0 %v488, 64
        %v490 = vpop.permute.xlu0 %489
        %vm491 = vcmask 31744
        %v493 = vsel %vm491, %v477, 0
        %vm495 = vcmask 1041408
        %v497 = vsel %vm495, %v490, 0
        %499 = vmatprep.subr.bf16.mxu0 0
        %500 = vmatpush1.bf16.msra.mxu0 %v497
        %501 = vmatprep.subr.bf16.mxu0 0
        %502 = vmatpush1.bf16.msra.mxu0 0
        %503 = vmatprep.subr.bf16.mxu0 0
        %504 = vmatpush1.bf16.msra.mxu0 0
        %505 = vmatprep.subr.bf16.mxu0 0
        %506 = vmatpush1.bf16.msra.mxu0 0
        %507 = vmatprep.subr.bf16.mxu0 0
        %508 = vmatpush1.bf16.msra.mxu0 0
        %509 = vmatprep.subr.bf16.mxu0 0
        %510 = vmatpush1.bf16.msra.mxu0 0
        %511 = vmatprep.subr.bf16.mxu0 0
        %512 = vmatpush1.bf16.msra.mxu0 0
        %513 = vmatprep.subr.bf16.mxu0 0
        %514 = vmatpush1.bf16.msra.mxu0 0
        %515 = vmatprep.subr.bf16.mxu0 0
        %516 = vmatpush1.bf16.msra.mxu0 0
        %517 = vmatprep.subr.bf16.mxu0 0
        %518 = vmatpush1.bf16.msra.mxu0 0
        %519 = vmatprep.subr.bf16.mxu0 0
        %520 = vmatpush1.bf16.msra.mxu0 0
        %521 = vmatprep.subr.bf16.mxu0 0
        %522 = vmatpush1.bf16.msra.mxu0 0
        %523 = vmatprep.subr.bf16.mxu0 0
        %524 = vmatpush1.bf16.msra.mxu0 0
        %525 = vmatprep.subr.bf16.mxu0 0
        %526 = vmatpush1.bf16.msra.mxu0 0
        %527 = vmatprep.subr.bf16.mxu0 0
        %528 = vmatpush1.bf16.msra.mxu0 0
        %529 = vmatprep.subr.bf16.mxu0 0
        %530 = vmatpush1.bf16.msra.mxu0 0
        %531 = vmatprep.mubr.bf16.mxu0 0
        %532 = vmatmul.mubr.bf16.gmra.mrb[0].mxu0 %v493
        %v533 = vpop.f32.mrb[0].mxu0
        %v534 = vadd.f32 0.0, %v533
        %v535 = vpop.f32.mrb[0].mxu0
        %v536 = vpop.f32.mrb[0].mxu0
        %v537 = vpop.f32.mrb[0].mxu0
        %538 = vdwg.mxu0
        %v541 = vunpack.c.l.s4 1983009808
        %v542 = vunpack.c.0.s8 %v541
        %v543 = vlaneseq
        %v544 = vshrl.u32 %v543, 7
        %v545 = vsub.s32 %v542, %v544
        %v546 = vrot.slane %v139, %v545
        %547 = vrot.lane.b32.xlu0 %v546, 64
        %v548 = vpop.permute.xlu0 %547
        %v550 = vsel %vm491, %v478, 0
        %v553 = vsel %vm495, %v548, 0
        %555 = vmatprep.subr.bf16.mxu0 0
        %556 = vmatpush1.bf16.msra.mxu0 %v553
        %557 = vmatprep.subr.bf16.mxu0 0
        %558 = vmatpush1.bf16.msra.mxu0 0
        %559 = vmatprep.subr.bf16.mxu0 0
        %560 = vmatpush1.bf16.msra.mxu0 0
        %561 = vmatprep.subr.bf16.mxu0 0
        %562 = vmatpush1.bf16.msra.mxu0 0
        %563 = vmatprep.subr.bf16.mxu0 0
        %564 = vmatpush1.bf16.msra.mxu0 0
        %565 = vmatprep.subr.bf16.mxu0 0
        %566 = vmatpush1.bf16.msra.mxu0 0
        %567 = vmatprep.subr.bf16.mxu0 0
        %568 = vmatpush1.bf16.msra.mxu0 0
        %569 = vmatprep.subr.bf16.mxu0 0
        %570 = vmatpush1.bf16.msra.mxu0 0
        %571 = vmatprep.subr.bf16.mxu0 0
        %572 = vmatpush1.bf16.msra.mxu0 0
        %573 = vmatprep.subr.bf16.mxu0 0
        %574 = vmatpush1.bf16.msra.mxu0 0
        %575 = vmatprep.subr.bf16.mxu0 0
        %576 = vmatpush1.bf16.msra.mxu0 0
        %577 = vmatprep.subr.bf16.mxu0 0
        %578 = vmatpush1.bf16.msra.mxu0 0
        %579 = vmatprep.subr.bf16.mxu0 0
        %580 = vmatpush1.bf16.msra.mxu0 0
        %581 = vmatprep.subr.bf16.mxu0 0
        %582 = vmatpush1.bf16.msra.mxu0 0
        %583 = vmatprep.subr.bf16.mxu0 0
        %584 = vmatpush1.bf16.msra.mxu0 0
        %585 = vmatprep.subr.bf16.mxu0 0
        %586 = vmatpush1.bf16.msra.mxu0 0
        %587 = vmatprep.mubr.bf16.mxu0 0
        %588 = vmatmul.mubr.bf16.gmra.mrb[0].mxu0 %v550
        %v589 = vpop.f32.mrb[0].mxu0
        %v590 = vadd.f32 0.0, %v589
        %v591 = vpop.f32.mrb[0].mxu0
        %v592 = vpop.f32.mrb[0].mxu0
        %v593 = vpop.f32.mrb[0].mxu0
        %594 = vdwg.mxu0
        %v597 = vunpack.c.l.s4 1983009808
        %v598 = vunpack.c.0.s8 %v597
        %v599 = vlaneseq
        %v600 = vshrl.u32 %v599, 7
        %v601 = vsub.s32 %v598, %v600
        %v602 = vrot.slane %v140, %v601
        %603 = vrot.lane.b32.xlu0 %v602, 64
        %v604 = vpop.permute.xlu0 %603
        %v606 = vsel %vm491, %v479, 0
        %v609 = vsel %vm495, %v604, 0
        %611 = vmatprep.subr.bf16.mxu0 0
        %612 = vmatpush1.bf16.msra.mxu0 %v609
        %613 = vmatprep.subr.bf16.mxu0 0
        %614 = vmatpush1.bf16.msra.mxu0 0
        %615 = vmatprep.subr.bf16.mxu0 0
        %616 = vmatpush1.bf16.msra.mxu0 0
        %617 = vmatprep.subr.bf16.mxu0 0
        %618 = vmatpush1.bf16.msra.mxu0 0
        %619 = vmatprep.subr.bf16.mxu0 0
        %620 = vmatpush1.bf16.msra.mxu0 0
        %621 = vmatprep.subr.bf16.mxu0 0
        %622 = vmatpush1.bf16.msra.mxu0 0
        %623 = vmatprep.subr.bf16.mxu0 0
        %624 = vmatpush1.bf16.msra.mxu0 0
        %625 = vmatprep.subr.bf16.mxu0 0
        %626 = vmatpush1.bf16.msra.mxu0 0
        %627 = vmatprep.subr.bf16.mxu0 0
        %628 = vmatpush1.bf16.msra.mxu0 0
        %629 = vmatprep.subr.bf16.mxu0 0
        %630 = vmatpush1.bf16.msra.mxu0 0
        %631 = vmatprep.subr.bf16.mxu0 0
        %632 = vmatpush1.bf16.msra.mxu0 0
        %633 = vmatprep.subr.bf16.mxu0 0
        %634 = vmatpush1.bf16.msra.mxu0 0
        %635 = vmatprep.subr.bf16.mxu0 0
        %636 = vmatpush1.bf16.msra.mxu0 0
        %637 = vmatprep.subr.bf16.mxu0 0
        %638 = vmatpush1.bf16.msra.mxu0 0
        %639 = vmatprep.subr.bf16.mxu0 0
        %640 = vmatpush1.bf16.msra.mxu0 0
        %641 = vmatprep.subr.bf16.mxu0 0
        %642 = vmatpush1.bf16.msra.mxu0 0
        %643 = vmatprep.mubr.bf16.mxu0 0
        %644 = vmatmul.mubr.bf16.gmra.mrb[0].mxu0 %v606
        %v645 = vpop.f32.mrb[0].mxu0
        %v646 = vadd.f32 0.0, %v645
        %v647 = vpop.f32.mrb[0].mxu0
        %v648 = vpop.f32.mrb[0].mxu0
        %v649 = vpop.f32.mrb[0].mxu0
        %650 = vdwg.mxu0
        %v653 = vunpack.c.l.s4 1983009808
        %v654 = vunpack.c.0.s8 %v653
        %v655 = vlaneseq
        %v656 = vshrl.u32 %v655, 7
        %v657 = vsub.s32 %v654, %v656
        %v658 = vrot.slane %v141, %v657
        %659 = vrot.lane.b32.xlu0 %v658, 64
        %v660 = vpop.permute.xlu0 %659
        %v662 = vsel %vm491, %v480, 0
        %v665 = vsel %vm495, %v660, 0
        %667 = vmatprep.subr.bf16.mxu0 0
        %668 = vmatpush1.bf16.msra.mxu0 %v665
        %669 = vmatprep.subr.bf16.mxu0 0
        %670 = vmatpush1.bf16.msra.mxu0 0
        %671 = vmatprep.subr.bf16.mxu0 0
        %672 = vmatpush1.bf16.msra.mxu0 0
        %673 = vmatprep.subr.bf16.mxu0 0
        %674 = vmatpush1.bf16.msra.mxu0 0
        %675 = vmatprep.subr.bf16.mxu0 0
        %676 = vmatpush1.bf16.msra.mxu0 0
        %677 = vmatprep.subr.bf16.mxu0 0
        %678 = vmatpush1.bf16.msra.mxu0 0
        %679 = vmatprep.subr.bf16.mxu0 0
        %680 = vmatpush1.bf16.msra.mxu0 0
        %681 = vmatprep.subr.bf16.mxu0 0
        %682 = vmatpush1.bf16.msra.mxu0 0
        %683 = vmatprep.subr.bf16.mxu0 0
        %684 = vmatpush1.bf16.msra.mxu0 0
        %685 = vmatprep.subr.bf16.mxu0 0
        %686 = vmatpush1.bf16.msra.mxu0 0
        %687 = vmatprep.subr.bf16.mxu0 0
        %688 = vmatpush1.bf16.msra.mxu0 0
        %689 = vmatprep.subr.bf16.mxu0 0
        %690 = vmatpush1.bf16.msra.mxu0 0
        %691 = vmatprep.subr.bf16.mxu0 0
        %692 = vmatpush1.bf16.msra.mxu0 0
        %693 = vmatprep.subr.bf16.mxu0 0
        %694 = vmatpush1.bf16.msra.mxu0 0
        %695 = vmatprep.subr.bf16.mxu0 0
        %696 = vmatpush1.bf16.msra.mxu0 0
        %697 = vmatprep.subr.bf16.mxu0 0
        %698 = vmatpush1.bf16.msra.mxu0 0
        %699 = vmatprep.mubr.bf16.mxu0 0
        %700 = vmatmul.mubr.bf16.gmra.mrb[0].mxu0 %v662
        %v701 = vpop.f32.mrb[0].mxu0
        %v702 = vadd.f32 0.0, %v701
        %v703 = vpop.f32.mrb[0].mxu0
        %v704 = vpop.f32.mrb[0].mxu0
        %v705 = vpop.f32.mrb[0].mxu0
        %706 = vdwg.mxu0
        %707 = vrot.lane.b32.xlu0 %v146, 120
        %v708 = vpop.permute.xlu0 %707
        %709 = vrot.lane.b32.xlu0 %v147, 120
        %v710 = vpop.permute.xlu0 %709
        %711 = vrot.lane.b32.xlu0 %v148, 120
        %v712 = vpop.permute.xlu0 %711
        %713 = vrot.lane.b32.xlu0 %v149, 120
        %v714 = vpop.permute.xlu0 %713
        %v719 = vsel %vm150, %v708, 0.0
        %720 = vadd.xlane.f32.xlu0 %v719
        %v721 = vpop.xlane.xlu0 %720
        %v722 = vsel %vm150, %v710, 0.0
        %723 = vadd.xlane.f32.xlu0 %v722
        %v724 = vpop.xlane.xlu0 %723
        %v725 = vsel %vm150, %v712, 0.0
        %726 = vadd.xlane.f32.xlu0 %v725
        %v727 = vpop.xlane.xlu0 %726
        %v728 = vsel %vm150, %v714, 0.0
        %729 = vadd.xlane.f32.xlu0 %v728
        %v730 = vpop.xlane.xlu0 %729
        %v731 = vmax.f32 %v721, 1e-24
        %v732 = vmax.f32 %v724, 1e-24
        %v733 = vmax.f32 %v727, 1e-24
        %v734 = vmax.f32 %v730, 1e-24
        %v735 = vrsqrt.pop %v731
        %v736 = vrsqrt.pop %v732
        %v737 = vrsqrt.pop %v733
        %v738 = vrsqrt.pop %v734
        %v739 = vmul.f32 %v142, %v735
        %v740 = vmul.f32 %v143, %v736
        %v741 = vmul.f32 %v144, %v737
        %v742 = vmul.f32 %v145, %v738
        %743 = vrot.lane.b32.xlu0 %v146, 88
        %v744 = vpop.permute.xlu0 %743
        %745 = vrot.lane.b32.xlu0 %v147, 88
        %v746 = vpop.permute.xlu0 %745
        %747 = vrot.lane.b32.xlu0 %v148, 88
        %v748 = vpop.permute.xlu0 %747
        %749 = vrot.lane.b32.xlu0 %v149, 88
        %v750 = vpop.permute.xlu0 %749
        %v755 = vsel %vm150, %v744, 0.0
        %756 = vadd.xlane.f32.xlu0 %v755
        %v757 = vpop.xlane.xlu0 %756
        %v758 = vsel %vm150, %v746, 0.0
        %759 = vadd.xlane.f32.xlu0 %v758
        %v760 = vpop.xlane.xlu0 %759
        %v761 = vsel %vm150, %v748, 0.0
        %762 = vadd.xlane.f32.xlu0 %v761
        %v763 = vpop.xlane.xlu0 %762
        %v764 = vsel %vm150, %v750, 0.0
        %765 = vadd.xlane.f32.xlu0 %v764
        %v766 = vpop.xlane.xlu0 %765
        %v767 = vmax.f32 %v757, 1e-24
        %v768 = vmax.f32 %v760, 1e-24
        %v769 = vmax.f32 %v763, 1e-24
        %v770 = vmax.f32 %v766, 1e-24
        %v771 = vrsqrt.pop %v767
        %v772 = vrsqrt.pop %v768
        %v773 = vrsqrt.pop %v769
        %v774 = vrsqrt.pop %v770
        %v775 = vmul.f32 %v142, %v771
        %v776 = vmul.f32 %v143, %v772
        %v777 = vmul.f32 %v144, %v773
        %v778 = vmul.f32 %v145, %v774
        %v779 = vpack.c.bf16 %v739, %v739
        %v780 = vpack.c.bf16 %v740, %v740
        %v781 = vpack.c.bf16 %v741, %v741
        %v782 = vpack.c.bf16 %v742, %v742
        %v783 = vpack.c.bf16 %v775, %v775
        %v784 = vpack.c.bf16 %v776, %v776
        %v785 = vpack.c.bf16 %v777, %v777
        %v786 = vpack.c.bf16 %v778, %v778
        %788 = vrot.lane.b32.xlu0 %v779, 120
        %v789 = vpop.permute.xlu0 %788
        %791 = vrot.lane.b32.xlu0 %v783, 88
        %v792 = vpop.permute.xlu0 %791
        %v794 = vsel %vm226, %v789, 0
        %v797 = vsel %vm226, %v792, 0
        %799 = vmatprep.subr.bf16.mxu0 0
        %800 = vmatpush1.bf16.xpose.msra.mxu0 %v797
        %801 = vmatprep.subr.bf16.mxu0 0
        %802 = vmatpush1.bf16.xpose.msra.mxu0 0
        %803 = vmatprep.subr.bf16.mxu0 0
        %804 = vmatpush1.bf16.xpose.msra.mxu0 0
        %805 = vmatprep.subr.bf16.mxu0 0
        %806 = vmatpush1.bf16.xpose.msra.mxu0 0
        %807 = vmatprep.subr.bf16.mxu0 0
        %808 = vmatpush1.bf16.xpose.msra.mxu0 0
        %809 = vmatprep.subr.bf16.mxu0 0
        %810 = vmatpush1.bf16.xpose.msra.mxu0 0
        %811 = vmatprep.subr.bf16.mxu0 0
        %812 = vmatpush1.bf16.xpose.msra.mxu0 0
        %813 = vmatprep.subr.bf16.mxu0 0
        %814 = vmatpush1.bf16.xpose.msra.mxu0 0
        %815 = vmatprep.subr.bf16.mxu0 0
        %816 = vmatpush1.bf16.xpose.msra.mxu0 0
        %817 = vmatprep.subr.bf16.mxu0 0
        %818 = vmatpush1.bf16.xpose.msra.mxu0 0
        %819 = vmatprep.subr.bf16.mxu0 0
        %820 = vmatpush1.bf16.xpose.msra.mxu0 0
        %821 = vmatprep.subr.bf16.mxu0 0
        %822 = vmatpush1.bf16.xpose.msra.mxu0 0
        %823 = vmatprep.subr.bf16.mxu0 0
        %824 = vmatpush1.bf16.xpose.msra.mxu0 0
        %825 = vmatprep.subr.bf16.mxu0 0
        %826 = vmatpush1.bf16.xpose.msra.mxu0 0
        %827 = vmatprep.subr.bf16.mxu0 0
        %828 = vmatpush1.bf16.xpose.msra.mxu0 0
        %829 = vmatprep.subr.bf16.mxu0 0
        %830 = vmatpush1.bf16.xpose.msra.mxu0 0
        %831 = vmatprep.mubr.bf16.mxu0 0
        %832 = vmatmul.mubr.bf16.gmra.mrb[0].mxu0 %v794
        %v833 = vpop.f32.mrb[0].mxu0
        %v834 = vadd.f32 0.0, %v833
        %v835 = vpop.f32.mrb[0].mxu0
        %v836 = vpop.f32.mrb[0].mxu0
        %v837 = vpop.f32.mrb[0].mxu0
        %838 = vdwg.mxu0
        %840 = vrot.lane.b32.xlu0 %v780, 120
        %v841 = vpop.permute.xlu0 %840
        %843 = vrot.lane.b32.xlu0 %v784, 88
        %v844 = vpop.permute.xlu0 %843
        %v846 = vsel %vm226, %v841, 0
        %v849 = vsel %vm226, %v844, 0
        %851 = vmatprep.subr.bf16.mxu0 0
        %852 = vmatpush1.bf16.xpose.msra.mxu0 %v849
        %853 = vmatprep.subr.bf16.mxu0 0
        %854 = vmatpush1.bf16.xpose.msra.mxu0 0
        %855 = vmatprep.subr.bf16.mxu0 0
        %856 = vmatpush1.bf16.xpose.msra.mxu0 0
        %857 = vmatprep.subr.bf16.mxu0 0
        %858 = vmatpush1.bf16.xpose.msra.mxu0 0
        %859 = vmatprep.subr.bf16.mxu0 0
        %860 = vmatpush1.bf16.xpose.msra.mxu0 0
        %861 = vmatprep.subr.bf16.mxu0 0
        %862 = vmatpush1.bf16.xpose.msra.mxu0 0
        %863 = vmatprep.subr.bf16.mxu0 0
        %864 = vmatpush1.bf16.xpose.msra.mxu0 0
        %865 = vmatprep.subr.bf16.mxu0 0
        %866 = vmatpush1.bf16.xpose.msra.mxu0 0
        %867 = vmatprep.subr.bf16.mxu0 0
        %868 = vmatpush1.bf16.xpose.msra.mxu0 0
        %869 = vmatprep.subr.bf16.mxu0 0
        %870 = vmatpush1.bf16.xpose.msra.mxu0 0
        %871 = vmatprep.subr.bf16.mxu0 0
        %872 = vmatpush1.bf16.xpose.msra.mxu0 0
        %873 = vmatprep.subr.bf16.mxu0 0
        %874 = vmatpush1.bf16.xpose.msra.mxu0 0
        %875 = vmatprep.subr.bf16.mxu0 0
        %876 = vmatpush1.bf16.xpose.msra.mxu0 0
        %877 = vmatprep.subr.bf16.mxu0 0
        %878 = vmatpush1.bf16.xpose.msra.mxu0 0
        %879 = vmatprep.subr.bf16.mxu0 0
        %880 = vmatpush1.bf16.xpose.msra.mxu0 0
        %881 = vmatprep.subr.bf16.mxu0 0
        %882 = vmatpush1.bf16.xpose.msra.mxu0 0
        %883 = vmatprep.mubr.bf16.mxu0 0
        %884 = vmatmul.mubr.bf16.gmra.mrb[0].mxu0 %v846
        %v885 = vpop.f32.mrb[0].mxu0
        %v886 = vadd.f32 0.0, %v885
        %v887 = vpop.f32.mrb[0].mxu0
        %v888 = vpop.f32.mrb[0].mxu0
        %v889 = vpop.f32.mrb[0].mxu0
        %890 = vdwg.mxu0
        %892 = vrot.lane.b32.xlu0 %v781, 120
        %v893 = vpop.permute.xlu0 %892
        %895 = vrot.lane.b32.xlu0 %v785, 88
        %v896 = vpop.permute.xlu0 %895
        %v898 = vsel %vm226, %v893, 0
        %v901 = vsel %vm226, %v896, 0
        %903 = vmatprep.subr.bf16.mxu0 0
        %904 = vmatpush1.bf16.xpose.msra.mxu0 %v901
        %905 = vmatprep.subr.bf16.mxu0 0
        %906 = vmatpush1.bf16.xpose.msra.mxu0 0
        %907 = vmatprep.subr.bf16.mxu0 0
        %908 = vmatpush1.bf16.xpose.msra.mxu0 0
        %909 = vmatprep.subr.bf16.mxu0 0
        %910 = vmatpush1.bf16.xpose.msra.mxu0 0
        %911 = vmatprep.subr.bf16.mxu0 0
        %912 = vmatpush1.bf16.xpose.msra.mxu0 0
        %913 = vmatprep.subr.bf16.mxu0 0
        %914 = vmatpush1.bf16.xpose.msra.mxu0 0
        %915 = vmatprep.subr.bf16.mxu0 0
        %916 = vmatpush1.bf16.xpose.msra.mxu0 0
        %917 = vmatprep.subr.bf16.mxu0 0
        %918 = vmatpush1.bf16.xpose.msra.mxu0 0
        %919 = vmatprep.subr.bf16.mxu0 0
        %920 = vmatpush1.bf16.xpose.msra.mxu0 0
        %921 = vmatprep.subr.bf16.mxu0 0
        %922 = vmatpush1.bf16.xpose.msra.mxu0 0
        %923 = vmatprep.subr.bf16.mxu0 0
        %924 = vmatpush1.bf16.xpose.msra.mxu0 0
        %925 = vmatprep.subr.bf16.mxu0 0
        %926 = vmatpush1.bf16.xpose.msra.mxu0 0
        %927 = vmatprep.subr.bf16.mxu0 0
        %928 = vmatpush1.bf16.xpose.msra.mxu0 0
        %929 = vmatprep.subr.bf16.mxu0 0
        %930 = vmatpush1.bf16.xpose.msra.mxu0 0
        %931 = vmatprep.subr.bf16.mxu0 0
        %932 = vmatpush1.bf16.xpose.msra.mxu0 0
        %933 = vmatprep.subr.bf16.mxu0 0
        %934 = vmatpush1.bf16.xpose.msra.mxu0 0
        %935 = vmatprep.mubr.bf16.mxu0 0
        %936 = vmatmul.mubr.bf16.gmra.mrb[0].mxu0 %v898
        %v937 = vpop.f32.mrb[0].mxu0
        %v938 = vadd.f32 0.0, %v937
        %v939 = vpop.f32.mrb[0].mxu0
        %v940 = vpop.f32.mrb[0].mxu0
        %v941 = vpop.f32.mrb[0].mxu0
        %942 = vdwg.mxu0
        %944 = vrot.lane.b32.xlu0 %v782, 120
        %v945 = vpop.permute.xlu0 %944
        %947 = vrot.lane.b32.xlu0 %v786, 88
        %v948 = vpop.permute.xlu0 %947
        %v950 = vsel %vm226, %v945, 0
        %v953 = vsel %vm226, %v948, 0
        %955 = vmatprep.subr.bf16.mxu0 0
        %956 = vmatpush1.bf16.xpose.msra.mxu0 %v953
        %957 = vmatprep.subr.bf16.mxu0 0
        %958 = vmatpush1.bf16.xpose.msra.mxu0 0
        %959 = vmatprep.subr.bf16.mxu0 0
        %960 = vmatpush1.bf16.xpose.msra.mxu0 0
        %961 = vmatprep.subr.bf16.mxu0 0
        %962 = vmatpush1.bf16.xpose.msra.mxu0 0
        %963 = vmatprep.subr.bf16.mxu0 0
        %964 = vmatpush1.bf16.xpose.msra.mxu0 0
        %965 = vmatprep.subr.bf16.mxu0 0
        %966 = vmatpush1.bf16.xpose.msra.mxu0 0
        %967 = vmatprep.subr.bf16.mxu0 0
        %968 = vmatpush1.bf16.xpose.msra.mxu0 0
        %969 = vmatprep.subr.bf16.mxu0 0
        %970 = vmatpush1.bf16.xpose.msra.mxu0 0
        %971 = vmatprep.subr.bf16.mxu0 0
        %972 = vmatpush1.bf16.xpose.msra.mxu0 0
        %973 = vmatprep.subr.bf16.mxu0 0
        %974 = vmatpush1.bf16.xpose.msra.mxu0 0
        %975 = vmatprep.subr.bf16.mxu0 0
        %976 = vmatpush1.bf16.xpose.msra.mxu0 0
        %977 = vmatprep.subr.bf16.mxu0 0
        %978 = vmatpush1.bf16.xpose.msra.mxu0 0
        %979 = vmatprep.subr.bf16.mxu0 0
        %980 = vmatpush1.bf16.xpose.msra.mxu0 0
        %981 = vmatprep.subr.bf16.mxu0 0
        %982 = vmatpush1.bf16.xpose.msra.mxu0 0
        %983 = vmatprep.subr.bf16.mxu0 0
        %984 = vmatpush1.bf16.xpose.msra.mxu0 0
        %985 = vmatprep.subr.bf16.mxu0 0
        %986 = vmatpush1.bf16.xpose.msra.mxu0 0
        %987 = vmatprep.mubr.bf16.mxu0 0
        %988 = vmatmul.mubr.bf16.gmra.mrb[0].mxu0 %v950
        %v989 = vpop.f32.mrb[0].mxu0
        %v990 = vadd.f32 0.0, %v989
        %v991 = vpop.f32.mrb[0].mxu0
        %v992 = vpop.f32.mrb[0].mxu0
        %v993 = vpop.f32.mrb[0].mxu0
        %994 = vdwg.mxu0
        %v995 = vmul.f32 %v834, 0.35355338
        %v996 = vmul.f32 %v886, 0.35355338
        %v997 = vmul.f32 %v938, 0.35355338
        %v998 = vmul.f32 %v990, 0.35355338
        %v999 = vsel %vm424, %v995, -inf
        %1000 = vmax.xlane.f32.xlu0 %v999
        %v1001 = vpop.xlane.xlu0 %1000
        %v1002 = vsel %vm424, %v996, -inf
        %1003 = vmax.xlane.f32.xlu0 %v1002
        %v1004 = vpop.xlane.xlu0 %1003
        %v1005 = vsel %vm424, %v997, -inf
        %1006 = vmax.xlane.f32.xlu0 %v1005
        %v1007 = vpop.xlane.xlu0 %1006
        %v1008 = vsel %vm424, %v998, -inf
        %1009 = vmax.xlane.f32.xlu0 %v1008
        %v1010 = vpop.xlane.xlu0 %1009
        %v1011 = vsub.f32 %v995, %v1001
        %v1012 = vsub.f32 %v996, %v1004
        %v1013 = vsub.f32 %v997, %v1007
        %v1014 = vsub.f32 %v998, %v1010
        %v1015 = vmul.f32 %v1011, 1.442695
        %v1016 = vpow.pop %v1015
        %v1017 = vmul.f32 %v1012, 1.442695
        %v1018 = vpow.pop %v1017
        %v1019 = vmul.f32 %v1013, 1.442695
        %v1020 = vpow.pop %v1019
        %v1021 = vmul.f32 %v1014, 1.442695
        %v1022 = vpow.pop %v1021
        %v1023 = vsel %vm424, %v1016, 0.0
        %1024 = vadd.xlane.f32.xlu0 %v1023
        %v1025 = vpop.xlane.xlu0 %1024
        %v1026 = vsel %vm424, %v1018, 0.0
        %1027 = vadd.xlane.f32.xlu0 %v1026
        %v1028 = vpop.xlane.xlu0 %1027
        %v1029 = vsel %vm424, %v1020, 0.0
        %1030 = vadd.xlane.f32.xlu0 %v1029
        %v1031 = vpop.xlane.xlu0 %1030
        %v1032 = vsel %vm424, %v1022, 0.0
        %1033 = vadd.xlane.f32.xlu0 %v1032
        %v1034 = vpop.xlane.xlu0 %1033
        %v1035 = vrcp.pop %v1025
        %v1036 = vrcp.pop %v1028
        %v1037 = vrcp.pop %v1031
        %v1038 = vrcp.pop %v1034
        %v1039 = vmul.f32 %v1016, %v1035
        %v1040 = vmul.f32 %v1018, %v1036
        %v1041 = vmul.f32 %v1020, %v1037
        %v1042 = vmul.f32 %v1022, %v1038
        %v1043 = vmax.f32 %v1039, 1e-06
        %v1044 = vmax.f32 %v1040, 1e-06
        %v1045 = vmax.f32 %v1041, 1e-06
        %v1046 = vmax.f32 %v1042, 1e-06
        %v1047 = vmin.f32 %v1043, 1.0
        %v1048 = vmin.f32 %v1044, 1.0
        %v1049 = vmin.f32 %v1045, 1.0
        %v1050 = vmin.f32 %v1046, 1.0
        %v1051 = vpack.c.bf16 %v1047, %v1047
        %v1052 = vpack.c.bf16 %v1048, %v1048
        %v1053 = vpack.c.bf16 %v1049, %v1049
        %v1054 = vpack.c.bf16 %v1050, %v1050
        %1055 = vrot.lane.b32.xlu0 %v488, 56
        %v1056 = vpop.permute.xlu0 %1055
        %v1058 = vsel %vm491, %v1051, 0
        %v1061 = vsel %vm495, %v1056, 0
        %1063 = vmatprep.subr.bf16.mxu0 0
        %1064 = vmatpush1.bf16.msra.mxu0 %v1061
        %1065 = vmatprep.subr.bf16.mxu0 0
        %1066 = vmatpush1.bf16.msra.mxu0 0
        %1067 = vmatprep.subr.bf16.mxu0 0
        %1068 = vmatpush1.bf16.msra.mxu0 0
        %1069 = vmatprep.subr.bf16.mxu0 0
        %1070 = vmatpush1.bf16.msra.mxu0 0
        %1071 = vmatprep.subr.bf16.mxu0 0
        %1072 = vmatpush1.bf16.msra.mxu0 0
        %1073 = vmatprep.subr.bf16.mxu0 0
        %1074 = vmatpush1.bf16.msra.mxu0 0
        %1075 = vmatprep.subr.bf16.mxu0 0
        %1076 = vmatpush1.bf16.msra.mxu0 0
        %1077 = vmatprep.subr.bf16.mxu0 0
        %1078 = vmatpush1.bf16.msra.mxu0 0
        %1079 = vmatprep.subr.bf16.mxu0 0
        %1080 = vmatpush1.bf16.msra.mxu0 0
        %1081 = vmatprep.subr.bf16.mxu0 0
        %1082 = vmatpush1.bf16.msra.mxu0 0
        %1083 = vmatprep.subr.bf16.mxu0 0
        %1084 = vmatpush1.bf16.msra.mxu0 0
        %1085 = vmatprep.subr.bf16.mxu0 0
        %1086 = vmatpush1.bf16.msra.mxu0 0
        %1087 = vmatprep.subr.bf16.mxu0 0
        %1088 = vmatpush1.bf16.msra.mxu0 0
        %1089 = vmatprep.subr.bf16.mxu0 0
        %1090 = vmatpush1.bf16.msra.mxu0 0
        %1091 = vmatprep.subr.bf16.mxu0 0
        %1092 = vmatpush1.bf16.msra.mxu0 0
        %1093 = vmatprep.subr.bf16.mxu0 0
        %1094 = vmatpush1.bf16.msra.mxu0 0
        %1095 = vmatprep.mubr.bf16.mxu0 0
        %1096 = vmatmul.mubr.bf16.gmra.mrb[0].mxu0 %v1058
        %v1097 = vpop.f32.mrb[0].mxu0
        %v1098 = vadd.f32 0.0, %v1097
        %v1099 = vpop.f32.mrb[0].mxu0
        %v1100 = vpop.f32.mrb[0].mxu0
        %v1101 = vpop.f32.mrb[0].mxu0
        %1102 = vdwg.mxu0
        %1103 = vrot.lane.b32.xlu0 %v546, 56
        %v1104 = vpop.permute.xlu0 %1103
        %v1106 = vsel %vm491, %v1052, 0
        %v1109 = vsel %vm495, %v1104, 0
        %1111 = vmatprep.subr.bf16.mxu0 0
        %1112 = vmatpush1.bf16.msra.mxu0 %v1109
        %1113 = vmatprep.subr.bf16.mxu0 0
        %1114 = vmatpush1.bf16.msra.mxu0 0
        %1115 = vmatprep.subr.bf16.mxu0 0
        %1116 = vmatpush1.bf16.msra.mxu0 0
        %1117 = vmatprep.subr.bf16.mxu0 0
        %1118 = vmatpush1.bf16.msra.mxu0 0
        %1119 = vmatprep.subr.bf16.mxu0 0
        %1120 = vmatpush1.bf16.msra.mxu0 0
        %1121 = vmatprep.subr.bf16.mxu0 0
        %1122 = vmatpush1.bf16.msra.mxu0 0
        %1123 = vmatprep.subr.bf16.mxu0 0
        %1124 = vmatpush1.bf16.msra.mxu0 0
        %1125 = vmatprep.subr.bf16.mxu0 0
        %1126 = vmatpush1.bf16.msra.mxu0 0
        %1127 = vmatprep.subr.bf16.mxu0 0
        %1128 = vmatpush1.bf16.msra.mxu0 0
        %1129 = vmatprep.subr.bf16.mxu0 0
        %1130 = vmatpush1.bf16.msra.mxu0 0
        %1131 = vmatprep.subr.bf16.mxu0 0
        %1132 = vmatpush1.bf16.msra.mxu0 0
        %1133 = vmatprep.subr.bf16.mxu0 0
        %1134 = vmatpush1.bf16.msra.mxu0 0
        %1135 = vmatprep.subr.bf16.mxu0 0
        %1136 = vmatpush1.bf16.msra.mxu0 0
        %1137 = vmatprep.subr.bf16.mxu0 0
        %1138 = vmatpush1.bf16.msra.mxu0 0
        %1139 = vmatprep.subr.bf16.mxu0 0
        %1140 = vmatpush1.bf16.msra.mxu0 0
        %1141 = vmatprep.subr.bf16.mxu0 0
        %1142 = vmatpush1.bf16.msra.mxu0 0
        %1143 = vmatprep.mubr.bf16.mxu0 0
        %1144 = vmatmul.mubr.bf16.gmra.mrb[0].mxu0 %v1106
        %v1145 = vpop.f32.mrb[0].mxu0
        %v1146 = vadd.f32 0.0, %v1145
        %v1147 = vpop.f32.mrb[0].mxu0
        %v1148 = vpop.f32.mrb[0].mxu0
        %v1149 = vpop.f32.mrb[0].mxu0
        %1150 = vdwg.mxu0
        %1151 = vrot.lane.b32.xlu0 %v602, 56
        %v1152 = vpop.permute.xlu0 %1151
        %v1154 = vsel %vm491, %v1053, 0
        %v1157 = vsel %vm495, %v1152, 0
        %1159 = vmatprep.subr.bf16.mxu0 0
        %1160 = vmatpush1.bf16.msra.mxu0 %v1157
        %1161 = vmatprep.subr.bf16.mxu0 0
        %1162 = vmatpush1.bf16.msra.mxu0 0
        %1163 = vmatprep.subr.bf16.mxu0 0
        %1164 = vmatpush1.bf16.msra.mxu0 0
        %1165 = vmatprep.subr.bf16.mxu0 0
        %1166 = vmatpush1.bf16.msra.mxu0 0
        %1167 = vmatprep.subr.bf16.mxu0 0
        %1168 = vmatpush1.bf16.msra.mxu0 0
        %1169 = vmatprep.subr.bf16.mxu0 0
        %1170 = vmatpush1.bf16.msra.mxu0 0
        %1171 = vmatprep.subr.bf16.mxu0 0
        %1172 = vmatpush1.bf16.msra.mxu0 0
        %1173 = vmatprep.subr.bf16.mxu0 0
        %1174 = vmatpush1.bf16.msra.mxu0 0
        %1175 = vmatprep.subr.bf16.mxu0 0
        %1176 = vmatpush1.bf16.msra.mxu0 0
        %1177 = vmatprep.subr.bf16.mxu0 0
        %1178 = vmatpush1.bf16.msra.mxu0 0
        %1179 = vmatprep.subr.bf16.mxu0 0
        %1180 = vmatpush1.bf16.msra.mxu0 0
        %1181 = vmatprep.subr.bf16.mxu0 0
        %1182 = vmatpush1.bf16.msra.mxu0 0
        %1183 = vmatprep.subr.bf16.mxu0 0
        %1184 = vmatpush1.bf16.msra.mxu0 0
        %1185 = vmatprep.subr.bf16.mxu0 0
        %1186 = vmatpush1.bf16.msra.mxu0 0
        %1187 = vmatprep.subr.bf16.mxu0 0
        %1188 = vmatpush1.bf16.msra.mxu0 0
        %1189 = vmatprep.subr.bf16.mxu0 0
        %1190 = vmatpush1.bf16.msra.mxu0 0
        %1191 = vmatprep.mubr.bf16.mxu0 0
        %1192 = vmatmul.mubr.bf16.gmra.mrb[0].mxu0 %v1154
        %v1193 = vpop.f32.mrb[0].mxu0
        %v1194 = vadd.f32 0.0, %v1193
        %v1195 = vpop.f32.mrb[0].mxu0
        %v1196 = vpop.f32.mrb[0].mxu0
        %v1197 = vpop.f32.mrb[0].mxu0
        %1198 = vdwg.mxu0
        %1199 = vrot.lane.b32.xlu0 %v658, 56
        %v1200 = vpop.permute.xlu0 %1199
        %v1202 = vsel %vm491, %v1054, 0
        %v1205 = vsel %vm495, %v1200, 0
        %1207 = vmatprep.subr.bf16.mxu0 0
        %1208 = vmatpush1.bf16.msra.mxu0 %v1205
        %1209 = vmatprep.subr.bf16.mxu0 0
        %1210 = vmatpush1.bf16.msra.mxu0 0
        %1211 = vmatprep.subr.bf16.mxu0 0
        %1212 = vmatpush1.bf16.msra.mxu0 0
        %1213 = vmatprep.subr.bf16.mxu0 0
        %1214 = vmatpush1.bf16.msra.mxu0 0
        %1215 = vmatprep.subr.bf16.mxu0 0
        %1216 = vmatpush1.bf16.msra.mxu0 0
        %1217 = vmatprep.subr.bf16.mxu0 0
        %1218 = vmatpush1.bf16.msra.mxu0 0
        %1219 = vmatprep.subr.bf16.mxu0 0
        %1220 = vmatpush1.bf16.msra.mxu0 0
        %1221 = vmatprep.subr.bf16.mxu0 0
        %1222 = vmatpush1.bf16.msra.mxu0 0
        %1223 = vmatprep.subr.bf16.mxu0 0
        %1224 = vmatpush1.bf16.msra.mxu0 0
        %1225 = vmatprep.subr.bf16.mxu0 0
        %1226 = vmatpush1.bf16.msra.mxu0 0
        %1227 = vmatprep.subr.bf16.mxu0 0
        %1228 = vmatpush1.bf16.msra.mxu0 0
        %1229 = vmatprep.subr.bf16.mxu0 0
        %1230 = vmatpush1.bf16.msra.mxu0 0
        %1231 = vmatprep.subr.bf16.mxu0 0
        %1232 = vmatpush1.bf16.msra.mxu0 0
        %1233 = vmatprep.subr.bf16.mxu0 0
        %1234 = vmatpush1.bf16.msra.mxu0 0
        %1235 = vmatprep.subr.bf16.mxu0 0
        %1236 = vmatpush1.bf16.msra.mxu0 0
        %1237 = vmatprep.subr.bf16.mxu0 0
        %1238 = vmatpush1.bf16.msra.mxu0 0
        %1239 = vmatprep.mubr.bf16.mxu0 0
        %1240 = vmatmul.mubr.bf16.gmra.mrb[0].mxu0 %v1202
        %v1241 = vpop.f32.mrb[0].mxu0
        %v1242 = vadd.f32 0.0, %v1241
        %v1243 = vpop.f32.mrb[0].mxu0
        %v1244 = vpop.f32.mrb[0].mxu0
        %v1245 = vpop.f32.mrb[0].mxu0
        %1246 = vdwg.mxu0
        %1247 = vrot.lane.b32.xlu0 %v146, 112
        %v1248 = vpop.permute.xlu0 %1247
        %1249 = vrot.lane.b32.xlu0 %v147, 112
        %v1250 = vpop.permute.xlu0 %1249
        %1251 = vrot.lane.b32.xlu0 %v148, 112
        %v1252 = vpop.permute.xlu0 %1251
        %1253 = vrot.lane.b32.xlu0 %v149, 112
        %v1254 = vpop.permute.xlu0 %1253
        %v1259 = vsel %vm150, %v1248, 0.0
        %1260 = vadd.xlane.f32.xlu0 %v1259
        %v1261 = vpop.xlane.xlu0 %1260
        %v1262 = vsel %vm150, %v1250, 0.0
        %1263 = vadd.xlane.f32.xlu0 %v1262
        %v1264 = vpop.xlane.xlu0 %1263
        %v1265 = vsel %vm150, %v1252, 0.0
        %1266 = vadd.xlane.f32.xlu0 %v1265
        %v1267 = vpop.xlane.xlu0 %1266
        %v1268 = vsel %vm150, %v1254, 0.0
        %1269 = vadd.xlane.f32.xlu0 %v1268
        %v1270 = vpop.xlane.xlu0 %1269
        %v1271 = vmax.f32 %v1261, 1e-24
        %v1272 = vmax.f32 %v1264, 1e-24
        %v1273 = vmax.f32 %v1267, 1e-24
        %v1274 = vmax.f32 %v1270, 1e-24
        %v1275 = vrsqrt.pop %v1271
        %v1276 = vrsqrt.pop %v1272
        %v1277 = vrsqrt.pop %v1273
        %v1278 = vrsqrt.pop %v1274
        %v1279 = vmul.f32 %v142, %v1275
        %v1280 = vmul.f32 %v143, %v1276
        %v1281 = vmul.f32 %v144, %v1277
        %v1282 = vmul.f32 %v145, %v1278
        %1283 = vrot.lane.b32.xlu0 %v146, 80
        %v1284 = vpop.permute.xlu0 %1283
        %1285 = vrot.lane.b32.xlu0 %v147, 80
        %v1286 = vpop.permute.xlu0 %1285
        %1287 = vrot.lane.b32.xlu0 %v148, 80
        %v1288 = vpop.permute.xlu0 %1287
        %1289 = vrot.lane.b32.xlu0 %v149, 80
        %v1290 = vpop.permute.xlu0 %1289
        %v1295 = vsel %vm150, %v1284, 0.0
        %1296 = vadd.xlane.f32.xlu0 %v1295
        %v1297 = vpop.xlane.xlu0 %1296
        %v1298 = vsel %vm150, %v1286, 0.0
        %1299 = vadd.xlane.f32.xlu0 %v1298
        %v1300 = vpop.xlane.xlu0 %1299
        %v1301 = vsel %vm150, %v1288, 0.0
        %1302 = vadd.xlane.f32.xlu0 %v1301
        %v1303 = vpop.xlane.xlu0 %1302
        %v1304 = vsel %vm150, %v1290, 0.0
        %1305 = vadd.xlane.f32.xlu0 %v1304
        %v1306 = vpop.xlane.xlu0 %1305
        %v1307 = vmax.f32 %v1297, 1e-24
        %v1308 = vmax.f32 %v1300, 1e-24
        %v1309 = vmax.f32 %v1303, 1e-24
        %v1310 = vmax.f32 %v1306, 1e-24
        %v1311 = vrsqrt.pop %v1307
        %v1312 = vrsqrt.pop %v1308
        %v1313 = vrsqrt.pop %v1309
        %v1314 = vrsqrt.pop %v1310
        %v1315 = vmul.f32 %v142, %v1311
        %v1316 = vmul.f32 %v143, %v1312
        %v1317 = vmul.f32 %v144, %v1313
        %v1318 = vmul.f32 %v145, %v1314
        %v1319 = vpack.c.bf16 %v1279, %v1279
        %v1320 = vpack.c.bf16 %v1280, %v1280
        %v1321 = vpack.c.bf16 %v1281, %v1281
        %v1322 = vpack.c.bf16 %v1282, %v1282
        %v1323 = vpack.c.bf16 %v1315, %v1315
        %v1324 = vpack.c.bf16 %v1316, %v1316
        %v1325 = vpack.c.bf16 %v1317, %v1317
        %v1326 = vpack.c.bf16 %v1318, %v1318
        %1328 = vrot.lane.b32.xlu0 %v1319, 112
        %v1329 = vpop.permute.xlu0 %1328
        %1331 = vrot.lane.b32.xlu0 %v1323, 80
        %v1332 = vpop.permute.xlu0 %1331
        %v1334 = vsel %vm226, %v1329, 0
        %v1337 = vsel %vm226, %v1332, 0
        %1339 = vmatprep.subr.bf16.mxu0 0
        %1340 = vmatpush1.bf16.xpose.msra.mxu0 %v1337
        %1341 = vmatprep.subr.bf16.mxu0 0
        %1342 = vmatpush1.bf16.xpose.msra.mxu0 0
        %1343 = vmatprep.subr.bf16.mxu0 0
        %1344 = vmatpush1.bf16.xpose.msra.mxu0 0
        %1345 = vmatprep.subr.bf16.mxu0 0
        %1346 = vmatpush1.bf16.xpose.msra.mxu0 0
        %1347 = vmatprep.subr.bf16.mxu0 0
        %1348 = vmatpush1.bf16.xpose.msra.mxu0 0
        %1349 = vmatprep.subr.bf16.mxu0 0
        %1350 = vmatpush1.bf16.xpose.msra.mxu0 0
        %1351 = vmatprep.subr.bf16.mxu0 0
        %1352 = vmatpush1.bf16.xpose.msra.mxu0 0
        %1353 = vmatprep.subr.bf16.mxu0 0
        %1354 = vmatpush1.bf16.xpose.msra.mxu0 0
        %1355 = vmatprep.subr.bf16.mxu0 0
        %1356 = vmatpush1.bf16.xpose.msra.mxu0 0
        %1357 = vmatprep.subr.bf16.mxu0 0
        %1358 = vmatpush1.bf16.xpose.msra.mxu0 0
        %1359 = vmatprep.subr.bf16.mxu0 0
        %1360 = vmatpush1.bf16.xpose.msra.mxu0 0
        %1361 = vmatprep.subr.bf16.mxu0 0
        %1362 = vmatpush1.bf16.xpose.msra.mxu0 0
        %1363 = vmatprep.subr.bf16.mxu0 0
        %1364 = vmatpush1.bf16.xpose.msra.mxu0 0
        %1365 = vmatprep.subr.bf16.mxu0 0
        %1366 = vmatpush1.bf16.xpose.msra.mxu0 0
        %1367 = vmatprep.subr.bf16.mxu0 0
        %1368 = vmatpush1.bf16.xpose.msra.mxu0 0
        %1369 = vmatprep.subr.bf16.mxu0 0
        %1370 = vmatpush1.bf16.xpose.msra.mxu0 0
        %1371 = vmatprep.mubr.bf16.mxu0 0
        %1372 = vmatmul.mubr.bf16.gmra.mrb[0].mxu0 %v1334
        %v1373 = vpop.f32.mrb[0].mxu0
        %v1374 = vadd.f32 0.0, %v1373
        %v1375 = vpop.f32.mrb[0].mxu0
        %v1376 = vpop.f32.mrb[0].mxu0
        %v1377 = vpop.f32.mrb[0].mxu0
        %1378 = vdwg.mxu0
        %1380 = vrot.lane.b32.xlu0 %v1320, 112
        %v1381 = vpop.permute.xlu0 %1380
        %1383 = vrot.lane.b32.xlu0 %v1324, 80
        %v1384 = vpop.permute.xlu0 %1383
        %v1386 = vsel %vm226, %v1381, 0
        %v1389 = vsel %vm226, %v1384, 0
        %1391 = vmatprep.subr.bf16.mxu0 0
        %1392 = vmatpush1.bf16.xpose.msra.mxu0 %v1389
        %1393 = vmatprep.subr.bf16.mxu0 0
        %1394 = vmatpush1.bf16.xpose.msra.mxu0 0
        %1395 = vmatprep.subr.bf16.mxu0 0
        %1396 = vmatpush1.bf16.xpose.msra.mxu0 0
        %1397 = vmatprep.subr.bf16.mxu0 0
        %1398 = vmatpush1.bf16.xpose.msra.mxu0 0
        %1399 = vmatprep.subr.bf16.mxu0 0
        %1400 = vmatpush1.bf16.xpose.msra.mxu0 0
        %1401 = vmatprep.subr.bf16.mxu0 0
        %1402 = vmatpush1.bf16.xpose.msra.mxu0 0
        %1403 = vmatprep.subr.bf16.mxu0 0
        %1404 = vmatpush1.bf16.xpose.msra.mxu0 0
        %1405 = vmatprep.subr.bf16.mxu0 0
        %1406 = vmatpush1.bf16.xpose.msra.mxu0 0
        %1407 = vmatprep.subr.bf16.mxu0 0
        %1408 = vmatpush1.bf16.xpose.msra.mxu0 0
        %1409 = vmatprep.subr.bf16.mxu0 0
        %1410 = vmatpush1.bf16.xpose.msra.mxu0 0
        %1411 = vmatprep.subr.bf16.mxu0 0
        %1412 = vmatpush1.bf16.xpose.msra.mxu0 0
        %1413 = vmatprep.subr.bf16.mxu0 0
        %1414 = vmatpush1.bf16.xpose.msra.mxu0 0
        %1415 = vmatprep.subr.bf16.mxu0 0
        %1416 = vmatpush1.bf16.xpose.msra.mxu0 0
        %1417 = vmatprep.subr.bf16.mxu0 0
        %1418 = vmatpush1.bf16.xpose.msra.mxu0 0
        %1419 = vmatprep.subr.bf16.mxu0 0
        %1420 = vmatpush1.bf16.xpose.msra.mxu0 0
        %1421 = vmatprep.subr.bf16.mxu0 0
        %1422 = vmatpush1.bf16.xpose.msra.mxu0 0
        %1423 = vmatprep.mubr.bf16.mxu0 0
        %1424 = vmatmul.mubr.bf16.gmra.mrb[0].mxu0 %v1386
        %v1425 = vpop.f32.mrb[0].mxu0
        %v1426 = vadd.f32 0.0, %v1425
        %v1427 = vpop.f32.mrb[0].mxu0
        %v1428 = vpop.f32.mrb[0].mxu0
        %v1429 = vpop.f32.mrb[0].mxu0
        %1430 = vdwg.mxu0
        %1432 = vrot.lane.b32.xlu0 %v1321, 112
        %v1433 = vpop.permute.xlu0 %1432
        %1435 = vrot.lane.b32.xlu0 %v1325, 80
        %v1436 = vpop.permute.xlu0 %1435
        %v1438 = vsel %vm226, %v1433, 0
        %v1441 = vsel %vm226, %v1436, 0
        %1443 = vmatprep.subr.bf16.mxu0 0
        %1444 = vmatpush1.bf16.xpose.msra.mxu0 %v1441
        %1445 = vmatprep.subr.bf16.mxu0 0
        %1446 = vmatpush1.bf16.xpose.msra.mxu0 0
        %1447 = vmatprep.subr.bf16.mxu0 0
        %1448 = vmatpush1.bf16.xpose.msra.mxu0 0
        %1449 = vmatprep.subr.bf16.mxu0 0
        %1450 = vmatpush1.bf16.xpose.msra.mxu0 0
        %1451 = vmatprep.subr.bf16.mxu0 0
        %1452 = vmatpush1.bf16.xpose.msra.mxu0 0
        %1453 = vmatprep.subr.bf16.mxu0 0
        %1454 = vmatpush1.bf16.xpose.msra.mxu0 0
        %1455 = vmatprep.subr.bf16.mxu0 0
        %1456 = vmatpush1.bf16.xpose.msra.mxu0 0
        %1457 = vmatprep.subr.bf16.mxu0 0
        %1458 = vmatpush1.bf16.xpose.msra.mxu0 0
        %1459 = vmatprep.subr.bf16.mxu0 0
        %1460 = vmatpush1.bf16.xpose.msra.mxu0 0
        %1461 = vmatprep.subr.bf16.mxu0 0
        %1462 = vmatpush1.bf16.xpose.msra.mxu0 0
        %1463 = vmatprep.subr.bf16.mxu0 0
        %1464 = vmatpush1.bf16.xpose.msra.mxu0 0
        %1465 = vmatprep.subr.bf16.mxu0 0
        %1466 = vmatpush1.bf16.xpose.msra.mxu0 0
        %1467 = vmatprep.subr.bf16.mxu0 0
        %1468 = vmatpush1.bf16.xpose.msra.mxu0 0
        %1469 = vmatprep.subr.bf16.mxu0 0
        %1470 = vmatpush1.bf16.xpose.msra.mxu0 0
        %1471 = vmatprep.subr.bf16.mxu0 0
        %1472 = vmatpush1.bf16.xpose.msra.mxu0 0
        %1473 = vmatprep.subr.bf16.mxu0 0
        %1474 = vmatpush1.bf16.xpose.msra.mxu0 0
        %1475 = vmatprep.mubr.bf16.mxu0 0
        %1476 = vmatmul.mubr.bf16.gmra.mrb[0].mxu0 %v1438
        %v1477 = vpop.f32.mrb[0].mxu0
        %v1478 = vadd.f32 0.0, %v1477
        %v1479 = vpop.f32.mrb[0].mxu0
        %v1480 = vpop.f32.mrb[0].mxu0
        %v1481 = vpop.f32.mrb[0].mxu0
        %1482 = vdwg.mxu0
        %1484 = vrot.lane.b32.xlu0 %v1322, 112
        %v1485 = vpop.permute.xlu0 %1484
        %1487 = vrot.lane.b32.xlu0 %v1326, 80
        %v1488 = vpop.permute.xlu0 %1487
        %v1490 = vsel %vm226, %v1485, 0
        %v1493 = vsel %vm226, %v1488, 0
        %1495 = vmatprep.subr.bf16.mxu0 0
        %1496 = vmatpush1.bf16.xpose.msra.mxu0 %v1493
        %1497 = vmatprep.subr.bf16.mxu0 0
        %1498 = vmatpush1.bf16.xpose.msra.mxu0 0
        %1499 = vmatprep.subr.bf16.mxu0 0
        %1500 = vmatpush1.bf16.xpose.msra.mxu0 0
        %1501 = vmatprep.subr.bf16.mxu0 0
        %1502 = vmatpush1.bf16.xpose.msra.mxu0 0
        %1503 = vmatprep.subr.bf16.mxu0 0
        %1504 = vmatpush1.bf16.xpose.msra.mxu0 0
        %1505 = vmatprep.subr.bf16.mxu0 0
        %1506 = vmatpush1.bf16.xpose.msra.mxu0 0
        %1507 = vmatprep.subr.bf16.mxu0 0
        %1508 = vmatpush1.bf16.xpose.msra.mxu0 0
        %1509 = vmatprep.subr.bf16.mxu0 0
        %1510 = vmatpush1.bf16.xpose.msra.mxu0 0
        %1511 = vmatprep.subr.bf16.mxu0 0
        %1512 = vmatpush1.bf16.xpose.msra.mxu0 0
        %1513 = vmatprep.subr.bf16.mxu0 0
        %1514 = vmatpush1.bf16.xpose.msra.mxu0 0
        %1515 = vmatprep.subr.bf16.mxu0 0
        %1516 = vmatpush1.bf16.xpose.msra.mxu0 0
        %1517 = vmatprep.subr.bf16.mxu0 0
        %1518 = vmatpush1.bf16.xpose.msra.mxu0 0
        %1519 = vmatprep.subr.bf16.mxu0 0
        %1520 = vmatpush1.bf16.xpose.msra.mxu0 0
        %1521 = vmatprep.subr.bf16.mxu0 0
        %1522 = vmatpush1.bf16.xpose.msra.mxu0 0
        %1523 = vmatprep.subr.bf16.mxu0 0
        %1524 = vmatpush1.bf16.xpose.msra.mxu0 0
        %1525 = vmatprep.subr.bf16.mxu0 0
        %1526 = vmatpush1.bf16.xpose.msra.mxu0 0
        %1527 = vmatprep.mubr.bf16.mxu0 0
        %1528 = vmatmul.mubr.bf16.gmra.mrb[0].mxu0 %v1490
        %v1529 = vpop.f32.mrb[0].mxu0
        %v1530 = vadd.f32 0.0, %v1529
        %v1531 = vpop.f32.mrb[0].mxu0
        %v1532 = vpop.f32.mrb[0].mxu0
        %v1533 = vpop.f32.mrb[0].mxu0
        %1534 = vdwg.mxu0
        %v1535 = vmul.f32 %v1374, 0.35355338
        %v1536 = vmul.f32 %v1426, 0.35355338
        %v1537 = vmul.f32 %v1478, 0.35355338
        %v1538 = vmul.f32 %v1530, 0.35355338
        %v1539 = vsel %vm424, %v1535, -inf
        %1540 = vmax.xlane.f32.xlu0 %v1539
        %v1541 = vpop.xlane.xlu0 %1540
        %v1542 = vsel %vm424, %v1536, -inf
        %1543 = vmax.xlane.f32.xlu0 %v1542
        %v1544 = vpop.xlane.xlu0 %1543
        %v1545 = vsel %vm424, %v1537, -inf
        %1546 = vmax.xlane.f32.xlu0 %v1545
        %v1547 = vpop.xlane.xlu0 %1546
        %v1548 = vsel %vm424, %v1538, -inf
        %1549 = vmax.xlane.f32.xlu0 %v1548
        %v1550 = vpop.xlane.xlu0 %1549
        %v1551 = vsub.f32 %v1535, %v1541
        %v1552 = vsub.f32 %v1536, %v1544
        %v1553 = vsub.f32 %v1537, %v1547
        %v1554 = vsub.f32 %v1538, %v1550
        %v1555 = vmul.f32 %v1551, 1.442695
        %v1556 = vpow.pop %v1555
        %v1557 = vmul.f32 %v1552, 1.442695
        %v1558 = vpow.pop %v1557
        %v1559 = vmul.f32 %v1553, 1.442695
        %v1560 = vpow.pop %v1559
        %v1561 = vmul.f32 %v1554, 1.442695
        %v1562 = vpow.pop %v1561
        %v1563 = vsel %vm424, %v1556, 0.0
        %1564 = vadd.xlane.f32.xlu0 %v1563
        %v1565 = vpop.xlane.xlu0 %1564
        %v1566 = vsel %vm424, %v1558, 0.0
        %1567 = vadd.xlane.f32.xlu0 %v1566
        %v1568 = vpop.xlane.xlu0 %1567
        %v1569 = vsel %vm424, %v1560, 0.0
        %1570 = vadd.xlane.f32.xlu0 %v1569
        %v1571 = vpop.xlane.xlu0 %1570
        %v1572 = vsel %vm424, %v1562, 0.0
        %1573 = vadd.xlane.f32.xlu0 %v1572
        %v1574 = vpop.xlane.xlu0 %1573
        %v1575 = vrcp.pop %v1565
        %v1576 = vrcp.pop %v1568
        %v1577 = vrcp.pop %v1571
        %v1578 = vrcp.pop %v1574
        %v1579 = vmul.f32 %v1556, %v1575
        %v1580 = vmul.f32 %v1558, %v1576
        %v1581 = vmul.f32 %v1560, %v1577
        %v1582 = vmul.f32 %v1562, %v1578
        %v1583 = vmax.f32 %v1579, 1e-06
        %v1584 = vmax.f32 %v1580, 1e-06
        %v1585 = vmax.f32 %v1581, 1e-06
        %v1586 = vmax.f32 %v1582, 1e-06
        %v1587 = vmin.f32 %v1583, 1.0
        %v1588 = vmin.f32 %v1584, 1.0
        %v1589 = vmin.f32 %v1585, 1.0
        %v1590 = vmin.f32 %v1586, 1.0
        %v1591 = vpack.c.bf16 %v1587, %v1587
        %v1592 = vpack.c.bf16 %v1588, %v1588
        %v1593 = vpack.c.bf16 %v1589, %v1589
        %v1594 = vpack.c.bf16 %v1590, %v1590
        %1595 = vrot.lane.b32.xlu0 %v488, 48
        %v1596 = vpop.permute.xlu0 %1595
        %v1598 = vsel %vm491, %v1591, 0
        %v1601 = vsel %vm495, %v1596, 0
        %1603 = vmatprep.subr.bf16.mxu0 0
        %1604 = vmatpush1.bf16.msra.mxu0 %v1601
        %1605 = vmatprep.subr.bf16.mxu0 0
        %1606 = vmatpush1.bf16.msra.mxu0 0
        %1607 = vmatprep.subr.bf16.mxu0 0
        %1608 = vmatpush1.bf16.msra.mxu0 0
        %1609 = vmatprep.subr.bf16.mxu0 0
        %1610 = vmatpush1.bf16.msra.mxu0 0
        %1611 = vmatprep.subr.bf16.mxu0 0
        %1612 = vmatpush1.bf16.msra.mxu0 0
        %1613 = vmatprep.subr.bf16.mxu0 0
        %1614 = vmatpush1.bf16.msra.mxu0 0
        %1615 = vmatprep.subr.bf16.mxu0 0
        %1616 = vmatpush1.bf16.msra.mxu0 0
        %1617 = vmatprep.subr.bf16.mxu0 0
        %1618 = vmatpush1.bf16.msra.mxu0 0
        %1619 = vmatprep.subr.bf16.mxu0 0
        %1620 = vmatpush1.bf16.msra.mxu0 0
        %1621 = vmatprep.subr.bf16.mxu0 0
        %1622 = vmatpush1.bf16.msra.mxu0 0
        %1623 = vmatprep.subr.bf16.mxu0 0
        %1624 = vmatpush1.bf16.msra.mxu0 0
        %1625 = vmatprep.subr.bf16.mxu0 0
        %1626 = vmatpush1.bf16.msra.mxu0 0
        %1627 = vmatprep.subr.bf16.mxu0 0
        %1628 = vmatpush1.bf16.msra.mxu0 0
        %1629 = vmatprep.subr.bf16.mxu0 0
        %1630 = vmatpush1.bf16.msra.mxu0 0
        %1631 = vmatprep.subr.bf16.mxu0 0
        %1632 = vmatpush1.bf16.msra.mxu0 0
        %1633 = vmatprep.subr.bf16.mxu0 0
        %1634 = vmatpush1.bf16.msra.mxu0 0
        %1635 = vmatprep.mubr.bf16.mxu0 0
        %1636 = vmatmul.mubr.bf16.gmra.mrb[0].mxu0 %v1598
        %v1637 = vpop.f32.mrb[0].mxu0
        %v1638 = vadd.f32 0.0, %v1637
        %v1639 = vpop.f32.mrb[0].mxu0
        %v1640 = vpop.f32.mrb[0].mxu0
        %v1641 = vpop.f32.mrb[0].mxu0
        %1642 = vdwg.mxu0
        %1643 = vrot.lane.b32.xlu0 %v546, 48
        %v1644 = vpop.permute.xlu0 %1643
        %v1646 = vsel %vm491, %v1592, 0
        %v1649 = vsel %vm495, %v1644, 0
        %1651 = vmatprep.subr.bf16.mxu0 0
        %1652 = vmatpush1.bf16.msra.mxu0 %v1649
        %1653 = vmatprep.subr.bf16.mxu0 0
        %1654 = vmatpush1.bf16.msra.mxu0 0
        %1655 = vmatprep.subr.bf16.mxu0 0
        %1656 = vmatpush1.bf16.msra.mxu0 0
        %1657 = vmatprep.subr.bf16.mxu0 0
        %1658 = vmatpush1.bf16.msra.mxu0 0
        %1659 = vmatprep.subr.bf16.mxu0 0
        %1660 = vmatpush1.bf16.msra.mxu0 0
        %1661 = vmatprep.subr.bf16.mxu0 0
        %1662 = vmatpush1.bf16.msra.mxu0 0
        %1663 = vmatprep.subr.bf16.mxu0 0
        %1664 = vmatpush1.bf16.msra.mxu0 0
        %1665 = vmatprep.subr.bf16.mxu0 0
        %1666 = vmatpush1.bf16.msra.mxu0 0
        %1667 = vmatprep.subr.bf16.mxu0 0
        %1668 = vmatpush1.bf16.msra.mxu0 0
        %1669 = vmatprep.subr.bf16.mxu0 0
        %1670 = vmatpush1.bf16.msra.mxu0 0
        %1671 = vmatprep.subr.bf16.mxu0 0
        %1672 = vmatpush1.bf16.msra.mxu0 0
        %1673 = vmatprep.subr.bf16.mxu0 0
        %1674 = vmatpush1.bf16.msra.mxu0 0
        %1675 = vmatprep.subr.bf16.mxu0 0
        %1676 = vmatpush1.bf16.msra.mxu0 0
        %1677 = vmatprep.subr.bf16.mxu0 0
        %1678 = vmatpush1.bf16.msra.mxu0 0
        %1679 = vmatprep.subr.bf16.mxu0 0
        %1680 = vmatpush1.bf16.msra.mxu0 0
        %1681 = vmatprep.subr.bf16.mxu0 0
        %1682 = vmatpush1.bf16.msra.mxu0 0
        %1683 = vmatprep.mubr.bf16.mxu0 0
        %1684 = vmatmul.mubr.bf16.gmra.mrb[0].mxu0 %v1646
        %v1685 = vpop.f32.mrb[0].mxu0
        %v1686 = vadd.f32 0.0, %v1685
        %v1687 = vpop.f32.mrb[0].mxu0
        %v1688 = vpop.f32.mrb[0].mxu0
        %v1689 = vpop.f32.mrb[0].mxu0
        %1690 = vdwg.mxu0
        %1691 = vrot.lane.b32.xlu0 %v602, 48
        %v1692 = vpop.permute.xlu0 %1691
        %v1694 = vsel %vm491, %v1593, 0
        %v1697 = vsel %vm495, %v1692, 0
        %1699 = vmatprep.subr.bf16.mxu0 0
        %1700 = vmatpush1.bf16.msra.mxu0 %v1697
        %1701 = vmatprep.subr.bf16.mxu0 0
        %1702 = vmatpush1.bf16.msra.mxu0 0
        %1703 = vmatprep.subr.bf16.mxu0 0
        %1704 = vmatpush1.bf16.msra.mxu0 0
        %1705 = vmatprep.subr.bf16.mxu0 0
        %1706 = vmatpush1.bf16.msra.mxu0 0
        %1707 = vmatprep.subr.bf16.mxu0 0
        %1708 = vmatpush1.bf16.msra.mxu0 0
        %1709 = vmatprep.subr.bf16.mxu0 0
        %1710 = vmatpush1.bf16.msra.mxu0 0
        %1711 = vmatprep.subr.bf16.mxu0 0
        %1712 = vmatpush1.bf16.msra.mxu0 0
        %1713 = vmatprep.subr.bf16.mxu0 0
        %1714 = vmatpush1.bf16.msra.mxu0 0
        %1715 = vmatprep.subr.bf16.mxu0 0
        %1716 = vmatpush1.bf16.msra.mxu0 0
        %1717 = vmatprep.subr.bf16.mxu0 0
        %1718 = vmatpush1.bf16.msra.mxu0 0
        %1719 = vmatprep.subr.bf16.mxu0 0
        %1720 = vmatpush1.bf16.msra.mxu0 0
        %1721 = vmatprep.subr.bf16.mxu0 0
        %1722 = vmatpush1.bf16.msra.mxu0 0
        %1723 = vmatprep.subr.bf16.mxu0 0
        %1724 = vmatpush1.bf16.msra.mxu0 0
        %1725 = vmatprep.subr.bf16.mxu0 0
        %1726 = vmatpush1.bf16.msra.mxu0 0
        %1727 = vmatprep.subr.bf16.mxu0 0
        %1728 = vmatpush1.bf16.msra.mxu0 0
        %1729 = vmatprep.subr.bf16.mxu0 0
        %1730 = vmatpush1.bf16.msra.mxu0 0
        %1731 = vmatprep.mubr.bf16.mxu0 0
        %1732 = vmatmul.mubr.bf16.gmra.mrb[0].mxu0 %v1694
        %v1733 = vpop.f32.mrb[0].mxu0
        %v1734 = vadd.f32 0.0, %v1733
        %v1735 = vpop.f32.mrb[0].mxu0
        %v1736 = vpop.f32.mrb[0].mxu0
        %v1737 = vpop.f32.mrb[0].mxu0
        %1738 = vdwg.mxu0
        %1739 = vrot.lane.b32.xlu0 %v658, 48
        %v1740 = vpop.permute.xlu0 %1739
        %v1742 = vsel %vm491, %v1594, 0
        %v1745 = vsel %vm495, %v1740, 0
        %1747 = vmatprep.subr.bf16.mxu0 0
        %1748 = vmatpush1.bf16.msra.mxu0 %v1745
        %1749 = vmatprep.subr.bf16.mxu0 0
        %1750 = vmatpush1.bf16.msra.mxu0 0
        %1751 = vmatprep.subr.bf16.mxu0 0
        %1752 = vmatpush1.bf16.msra.mxu0 0
        %1753 = vmatprep.subr.bf16.mxu0 0
        %1754 = vmatpush1.bf16.msra.mxu0 0
        %1755 = vmatprep.subr.bf16.mxu0 0
        %1756 = vmatpush1.bf16.msra.mxu0 0
        %1757 = vmatprep.subr.bf16.mxu0 0
        %1758 = vmatpush1.bf16.msra.mxu0 0
        %1759 = vmatprep.subr.bf16.mxu0 0
        %1760 = vmatpush1.bf16.msra.mxu0 0
        %1761 = vmatprep.subr.bf16.mxu0 0
        %1762 = vmatpush1.bf16.msra.mxu0 0
        %1763 = vmatprep.subr.bf16.mxu0 0
        %1764 = vmatpush1.bf16.msra.mxu0 0
        %1765 = vmatprep.subr.bf16.mxu0 0
        %1766 = vmatpush1.bf16.msra.mxu0 0
        %1767 = vmatprep.subr.bf16.mxu0 0
        %1768 = vmatpush1.bf16.msra.mxu0 0
        %1769 = vmatprep.subr.bf16.mxu0 0
        %1770 = vmatpush1.bf16.msra.mxu0 0
        %1771 = vmatprep.subr.bf16.mxu0 0
        %1772 = vmatpush1.bf16.msra.mxu0 0
        %1773 = vmatprep.subr.bf16.mxu0 0
        %1774 = vmatpush1.bf16.msra.mxu0 0
        %1775 = vmatprep.subr.bf16.mxu0 0
        %1776 = vmatpush1.bf16.msra.mxu0 0
        %1777 = vmatprep.subr.bf16.mxu0 0
        %1778 = vmatpush1.bf16.msra.mxu0 0
        %1779 = vmatprep.mubr.bf16.mxu0 0
        %1780 = vmatmul.mubr.bf16.gmra.mrb[0].mxu0 %v1742
        %v1781 = vpop.f32.mrb[0].mxu0
        %v1782 = vadd.f32 0.0, %v1781
        %v1783 = vpop.f32.mrb[0].mxu0
        %v1784 = vpop.f32.mrb[0].mxu0
        %v1785 = vpop.f32.mrb[0].mxu0
        %1786 = vdwg.mxu0
        %1787 = vrot.lane.b32.xlu0 %v146, 104
        %v1788 = vpop.permute.xlu0 %1787
        %1789 = vrot.lane.b32.xlu0 %v147, 104
        %v1790 = vpop.permute.xlu0 %1789
        %1791 = vrot.lane.b32.xlu0 %v148, 104
        %v1792 = vpop.permute.xlu0 %1791
        %1793 = vrot.lane.b32.xlu0 %v149, 104
        %v1794 = vpop.permute.xlu0 %1793
        %v1799 = vsel %vm150, %v1788, 0.0
        %1800 = vadd.xlane.f32.xlu0 %v1799
        %v1801 = vpop.xlane.xlu0 %1800
        %v1802 = vsel %vm150, %v1790, 0.0
        %1803 = vadd.xlane.f32.xlu0 %v1802
        %v1804 = vpop.xlane.xlu0 %1803
        %v1805 = vsel %vm150, %v1792, 0.0
        %1806 = vadd.xlane.f32.xlu0 %v1805
        %v1807 = vpop.xlane.xlu0 %1806
        %v1808 = vsel %vm150, %v1794, 0.0
        %1809 = vadd.xlane.f32.xlu0 %v1808
        %v1810 = vpop.xlane.xlu0 %1809
        %v1811 = vmax.f32 %v1801, 1e-24
        %v1812 = vmax.f32 %v1804, 1e-24
        %v1813 = vmax.f32 %v1807, 1e-24
        %v1814 = vmax.f32 %v1810, 1e-24
        %v1815 = vrsqrt.pop %v1811
        %v1816 = vrsqrt.pop %v1812
        %v1817 = vrsqrt.pop %v1813
        %v1818 = vrsqrt.pop %v1814
        %v1819 = vmul.f32 %v142, %v1815
        %v1820 = vmul.f32 %v143, %v1816
        %v1821 = vmul.f32 %v144, %v1817
        %v1822 = vmul.f32 %v145, %v1818
        %1823 = vrot.lane.b32.xlu0 %v146, 72
        %v1824 = vpop.permute.xlu0 %1823
        %1825 = vrot.lane.b32.xlu0 %v147, 72
        %v1826 = vpop.permute.xlu0 %1825
        %1827 = vrot.lane.b32.xlu0 %v148, 72
        %v1828 = vpop.permute.xlu0 %1827
        %1829 = vrot.lane.b32.xlu0 %v149, 72
        %v1830 = vpop.permute.xlu0 %1829
        %v1835 = vsel %vm150, %v1824, 0.0
        %1836 = vadd.xlane.f32.xlu0 %v1835
        %v1837 = vpop.xlane.xlu0 %1836
        %v1838 = vsel %vm150, %v1826, 0.0
        %1839 = vadd.xlane.f32.xlu0 %v1838
        %v1840 = vpop.xlane.xlu0 %1839
        %v1841 = vsel %vm150, %v1828, 0.0
        %1842 = vadd.xlane.f32.xlu0 %v1841
        %v1843 = vpop.xlane.xlu0 %1842
        %v1844 = vsel %vm150, %v1830, 0.0
        %1845 = vadd.xlane.f32.xlu0 %v1844
        %v1846 = vpop.xlane.xlu0 %1845
        %v1847 = vmax.f32 %v1837, 1e-24
        %v1848 = vmax.f32 %v1840, 1e-24
        %v1849 = vmax.f32 %v1843, 1e-24
        %v1850 = vmax.f32 %v1846, 1e-24
        %v1851 = vrsqrt.pop %v1847
        %v1852 = vrsqrt.pop %v1848
        %v1853 = vrsqrt.pop %v1849
        %v1854 = vrsqrt.pop %v1850
        %v1855 = vmul.f32 %v142, %v1851
        %v1856 = vmul.f32 %v143, %v1852
        %v1857 = vmul.f32 %v144, %v1853
        %v1858 = vmul.f32 %v145, %v1854
        %v1859 = vpack.c.bf16 %v1819, %v1819
        %v1860 = vpack.c.bf16 %v1820, %v1820
        %v1861 = vpack.c.bf16 %v1821, %v1821
        %v1862 = vpack.c.bf16 %v1822, %v1822
        %v1863 = vpack.c.bf16 %v1855, %v1855
        %v1864 = vpack.c.bf16 %v1856, %v1856
        %v1865 = vpack.c.bf16 %v1857, %v1857
        %v1866 = vpack.c.bf16 %v1858, %v1858
        %1868 = vrot.lane.b32.xlu0 %v1859, 104
        %v1869 = vpop.permute.xlu0 %1868
        %1871 = vrot.lane.b32.xlu0 %v1863, 72
        %v1872 = vpop.permute.xlu0 %1871
        %v1874 = vsel %vm226, %v1869, 0
        %v1877 = vsel %vm226, %v1872, 0
        %1879 = vmatprep.subr.bf16.mxu0 0
        %1880 = vmatpush1.bf16.xpose.msra.mxu0 %v1877
        %1881 = vmatprep.subr.bf16.mxu0 0
        %1882 = vmatpush1.bf16.xpose.msra.mxu0 0
        %1883 = vmatprep.subr.bf16.mxu0 0
        %1884 = vmatpush1.bf16.xpose.msra.mxu0 0
        %1885 = vmatprep.subr.bf16.mxu0 0
        %1886 = vmatpush1.bf16.xpose.msra.mxu0 0
        %1887 = vmatprep.subr.bf16.mxu0 0
        %1888 = vmatpush1.bf16.xpose.msra.mxu0 0
        %1889 = vmatprep.subr.bf16.mxu0 0
        %1890 = vmatpush1.bf16.xpose.msra.mxu0 0
        %1891 = vmatprep.subr.bf16.mxu0 0
        %1892 = vmatpush1.bf16.xpose.msra.mxu0 0
        %1893 = vmatprep.subr.bf16.mxu0 0
        %1894 = vmatpush1.bf16.xpose.msra.mxu0 0
        %1895 = vmatprep.subr.bf16.mxu0 0
        %1896 = vmatpush1.bf16.xpose.msra.mxu0 0
        %1897 = vmatprep.subr.bf16.mxu0 0
        %1898 = vmatpush1.bf16.xpose.msra.mxu0 0
        %1899 = vmatprep.subr.bf16.mxu0 0
        %1900 = vmatpush1.bf16.xpose.msra.mxu0 0
        %1901 = vmatprep.subr.bf16.mxu0 0
        %1902 = vmatpush1.bf16.xpose.msra.mxu0 0
        %1903 = vmatprep.subr.bf16.mxu0 0
        %1904 = vmatpush1.bf16.xpose.msra.mxu0 0
        %1905 = vmatprep.subr.bf16.mxu0 0
        %1906 = vmatpush1.bf16.xpose.msra.mxu0 0
        %1907 = vmatprep.subr.bf16.mxu0 0
        %1908 = vmatpush1.bf16.xpose.msra.mxu0 0
        %1909 = vmatprep.subr.bf16.mxu0 0
        %1910 = vmatpush1.bf16.xpose.msra.mxu0 0
        %1911 = vmatprep.mubr.bf16.mxu0 0
        %1912 = vmatmul.mubr.bf16.gmra.mrb[0].mxu0 %v1874
        %v1913 = vpop.f32.mrb[0].mxu0
        %v1914 = vadd.f32 0.0, %v1913
        %v1915 = vpop.f32.mrb[0].mxu0
        %v1916 = vpop.f32.mrb[0].mxu0
        %v1917 = vpop.f32.mrb[0].mxu0
        %1918 = vdwg.mxu0
        %1920 = vrot.lane.b32.xlu0 %v1860, 104
        %v1921 = vpop.permute.xlu0 %1920
        %1923 = vrot.lane.b32.xlu0 %v1864, 72
        %v1924 = vpop.permute.xlu0 %1923
        %v1926 = vsel %vm226, %v1921, 0
        %v1929 = vsel %vm226, %v1924, 0
        %1931 = vmatprep.subr.bf16.mxu0 0
        %1932 = vmatpush1.bf16.xpose.msra.mxu0 %v1929
        %1933 = vmatprep.subr.bf16.mxu0 0
        %1934 = vmatpush1.bf16.xpose.msra.mxu0 0
        %1935 = vmatprep.subr.bf16.mxu0 0
        %1936 = vmatpush1.bf16.xpose.msra.mxu0 0
        %1937 = vmatprep.subr.bf16.mxu0 0
        %1938 = vmatpush1.bf16.xpose.msra.mxu0 0
        %1939 = vmatprep.subr.bf16.mxu0 0
        %1940 = vmatpush1.bf16.xpose.msra.mxu0 0
        %1941 = vmatprep.subr.bf16.mxu0 0
        %1942 = vmatpush1.bf16.xpose.msra.mxu0 0
        %1943 = vmatprep.subr.bf16.mxu0 0
        %1944 = vmatpush1.bf16.xpose.msra.mxu0 0
        %1945 = vmatprep.subr.bf16.mxu0 0
        %1946 = vmatpush1.bf16.xpose.msra.mxu0 0
        %1947 = vmatprep.subr.bf16.mxu0 0
        %1948 = vmatpush1.bf16.xpose.msra.mxu0 0
        %1949 = vmatprep.subr.bf16.mxu0 0
        %1950 = vmatpush1.bf16.xpose.msra.mxu0 0
        %1951 = vmatprep.subr.bf16.mxu0 0
        %1952 = vmatpush1.bf16.xpose.msra.mxu0 0
        %1953 = vmatprep.subr.bf16.mxu0 0
        %1954 = vmatpush1.bf16.xpose.msra.mxu0 0
        %1955 = vmatprep.subr.bf16.mxu0 0
        %1956 = vmatpush1.bf16.xpose.msra.mxu0 0
        %1957 = vmatprep.subr.bf16.mxu0 0
        %1958 = vmatpush1.bf16.xpose.msra.mxu0 0
        %1959 = vmatprep.subr.bf16.mxu0 0
        %1960 = vmatpush1.bf16.xpose.msra.mxu0 0
        %1961 = vmatprep.subr.bf16.mxu0 0
        %1962 = vmatpush1.bf16.xpose.msra.mxu0 0
        %1963 = vmatprep.mubr.bf16.mxu0 0
        %1964 = vmatmul.mubr.bf16.gmra.mrb[0].mxu0 %v1926
        %v1965 = vpop.f32.mrb[0].mxu0
        %v1966 = vadd.f32 0.0, %v1965
        %v1967 = vpop.f32.mrb[0].mxu0
        %v1968 = vpop.f32.mrb[0].mxu0
        %v1969 = vpop.f32.mrb[0].mxu0
        %1970 = vdwg.mxu0
        %1972 = vrot.lane.b32.xlu0 %v1861, 104
        %v1973 = vpop.permute.xlu0 %1972
        %1975 = vrot.lane.b32.xlu0 %v1865, 72
        %v1976 = vpop.permute.xlu0 %1975
        %v1978 = vsel %vm226, %v1973, 0
        %v1981 = vsel %vm226, %v1976, 0
        %1983 = vmatprep.subr.bf16.mxu0 0
        %1984 = vmatpush1.bf16.xpose.msra.mxu0 %v1981
        %1985 = vmatprep.subr.bf16.mxu0 0
        %1986 = vmatpush1.bf16.xpose.msra.mxu0 0
        %1987 = vmatprep.subr.bf16.mxu0 0
        %1988 = vmatpush1.bf16.xpose.msra.mxu0 0
        %1989 = vmatprep.subr.bf16.mxu0 0
        %1990 = vmatpush1.bf16.xpose.msra.mxu0 0
        %1991 = vmatprep.subr.bf16.mxu0 0
        %1992 = vmatpush1.bf16.xpose.msra.mxu0 0
        %1993 = vmatprep.subr.bf16.mxu0 0
        %1994 = vmatpush1.bf16.xpose.msra.mxu0 0
        %1995 = vmatprep.subr.bf16.mxu0 0
        %1996 = vmatpush1.bf16.xpose.msra.mxu0 0
        %1997 = vmatprep.subr.bf16.mxu0 0
        %1998 = vmatpush1.bf16.xpose.msra.mxu0 0
        %1999 = vmatprep.subr.bf16.mxu0 0
        %2000 = vmatpush1.bf16.xpose.msra.mxu0 0
        %2001 = vmatprep.subr.bf16.mxu0 0
        %2002 = vmatpush1.bf16.xpose.msra.mxu0 0
        %2003 = vmatprep.subr.bf16.mxu0 0
        %2004 = vmatpush1.bf16.xpose.msra.mxu0 0
        %2005 = vmatprep.subr.bf16.mxu0 0
        %2006 = vmatpush1.bf16.xpose.msra.mxu0 0
        %2007 = vmatprep.subr.bf16.mxu0 0
        %2008 = vmatpush1.bf16.xpose.msra.mxu0 0
        %2009 = vmatprep.subr.bf16.mxu0 0
        %2010 = vmatpush1.bf16.xpose.msra.mxu0 0
        %2011 = vmatprep.subr.bf16.mxu0 0
        %2012 = vmatpush1.bf16.xpose.msra.mxu0 0
        %2013 = vmatprep.subr.bf16.mxu0 0
        %2014 = vmatpush1.bf16.xpose.msra.mxu0 0
        %2015 = vmatprep.mubr.bf16.mxu0 0
        %2016 = vmatmul.mubr.bf16.gmra.mrb[0].mxu0 %v1978
        %v2017 = vpop.f32.mrb[0].mxu0
        %v2018 = vadd.f32 0.0, %v2017
        %v2019 = vpop.f32.mrb[0].mxu0
        %v2020 = vpop.f32.mrb[0].mxu0
        %v2021 = vpop.f32.mrb[0].mxu0
        %2022 = vdwg.mxu0
        %2024 = vrot.lane.b32.xlu0 %v1862, 104
        %v2025 = vpop.permute.xlu0 %2024
        %2027 = vrot.lane.b32.xlu0 %v1866, 72
        %v2028 = vpop.permute.xlu0 %2027
        %v2030 = vsel %vm226, %v2025, 0
        %v2033 = vsel %vm226, %v2028, 0
        %2035 = vmatprep.subr.bf16.mxu0 0
        %2036 = vmatpush1.bf16.xpose.msra.mxu0 %v2033
        %2037 = vmatprep.subr.bf16.mxu0 0
        %2038 = vmatpush1.bf16.xpose.msra.mxu0 0
        %2039 = vmatprep.subr.bf16.mxu0 0
        %2040 = vmatpush1.bf16.xpose.msra.mxu0 0
        %2041 = vmatprep.subr.bf16.mxu0 0
        %2042 = vmatpush1.bf16.xpose.msra.mxu0 0
        %2043 = vmatprep.subr.bf16.mxu0 0
        %2044 = vmatpush1.bf16.xpose.msra.mxu0 0
        %2045 = vmatprep.subr.bf16.mxu0 0
        %2046 = vmatpush1.bf16.xpose.msra.mxu0 0
        %2047 = vmatprep.subr.bf16.mxu0 0
        %2048 = vmatpush1.bf16.xpose.msra.mxu0 0
        %2049 = vmatprep.subr.bf16.mxu0 0
        %2050 = vmatpush1.bf16.xpose.msra.mxu0 0
        %2051 = vmatprep.subr.bf16.mxu0 0
        %2052 = vmatpush1.bf16.xpose.msra.mxu0 0
        %2053 = vmatprep.subr.bf16.mxu0 0
        %2054 = vmatpush1.bf16.xpose.msra.mxu0 0
        %2055 = vmatprep.subr.bf16.mxu0 0
        %2056 = vmatpush1.bf16.xpose.msra.mxu0 0
        %2057 = vmatprep.subr.bf16.mxu0 0
        %2058 = vmatpush1.bf16.xpose.msra.mxu0 0
        %2059 = vmatprep.subr.bf16.mxu0 0
        %2060 = vmatpush1.bf16.xpose.msra.mxu0 0
        %2061 = vmatprep.subr.bf16.mxu0 0
        %2062 = vmatpush1.bf16.xpose.msra.mxu0 0
        %2063 = vmatprep.subr.bf16.mxu0 0
        %2064 = vmatpush1.bf16.xpose.msra.mxu0 0
        %2065 = vmatprep.subr.bf16.mxu0 0
        %2066 = vmatpush1.bf16.xpose.msra.mxu0 0
        %2067 = vmatprep.mubr.bf16.mxu0 0
        %2068 = vmatmul.mubr.bf16.gmra.mrb[0].mxu0 %v2030
        %v2069 = vpop.f32.mrb[0].mxu0
        %v2070 = vadd.f32 0.0, %v2069
        %v2071 = vpop.f32.mrb[0].mxu0
        %v2072 = vpop.f32.mrb[0].mxu0
        %v2073 = vpop.f32.mrb[0].mxu0
        %2074 = vdwg.mxu0
        %v2075 = vmul.f32 %v1914, 0.35355338
        %v2076 = vmul.f32 %v1966, 0.35355338
        %v2077 = vmul.f32 %v2018, 0.35355338
        %v2078 = vmul.f32 %v2070, 0.35355338
        %v2079 = vsel %vm424, %v2075, -inf
        %2080 = vmax.xlane.f32.xlu0 %v2079
        %v2081 = vpop.xlane.xlu0 %2080
        %v2082 = vsel %vm424, %v2076, -inf
        %2083 = vmax.xlane.f32.xlu0 %v2082
        %v2084 = vpop.xlane.xlu0 %2083
        %v2085 = vsel %vm424, %v2077, -inf
        %2086 = vmax.xlane.f32.xlu0 %v2085
        %v2087 = vpop.xlane.xlu0 %2086
        %v2088 = vsel %vm424, %v2078, -inf
        %2089 = vmax.xlane.f32.xlu0 %v2088
        %v2090 = vpop.xlane.xlu0 %2089
        %v2091 = vsub.f32 %v2075, %v2081
        %v2092 = vsub.f32 %v2076, %v2084
        %v2093 = vsub.f32 %v2077, %v2087
        %v2094 = vsub.f32 %v2078, %v2090
        %v2095 = vmul.f32 %v2091, 1.442695
        %v2096 = vpow.pop %v2095
        %v2097 = vmul.f32 %v2092, 1.442695
        %v2098 = vpow.pop %v2097
        %v2099 = vmul.f32 %v2093, 1.442695
        %v2100 = vpow.pop %v2099
        %v2101 = vmul.f32 %v2094, 1.442695
        %v2102 = vpow.pop %v2101
        %v2103 = vsel %vm424, %v2096, 0.0
        %2104 = vadd.xlane.f32.xlu0 %v2103
        %v2105 = vpop.xlane.xlu0 %2104
        %v2106 = vsel %vm424, %v2098, 0.0
        %2107 = vadd.xlane.f32.xlu0 %v2106
        %v2108 = vpop.xlane.xlu0 %2107
        %v2109 = vsel %vm424, %v2100, 0.0
        %2110 = vadd.xlane.f32.xlu0 %v2109
        %v2111 = vpop.xlane.xlu0 %2110
        %v2112 = vsel %vm424, %v2102, 0.0
        %2113 = vadd.xlane.f32.xlu0 %v2112
        %v2114 = vpop.xlane.xlu0 %2113
        %v2115 = vrcp.pop %v2105
        %v2116 = vrcp.pop %v2108
        %v2117 = vrcp.pop %v2111
        %v2118 = vrcp.pop %v2114
        %v2119 = vmul.f32 %v2096, %v2115
        %v2120 = vmul.f32 %v2098, %v2116
        %v2121 = vmul.f32 %v2100, %v2117
        %v2122 = vmul.f32 %v2102, %v2118
        %v2123 = vmax.f32 %v2119, 1e-06
        %v2124 = vmax.f32 %v2120, 1e-06
        %v2125 = vmax.f32 %v2121, 1e-06
        %v2126 = vmax.f32 %v2122, 1e-06
        %v2127 = vmin.f32 %v2123, 1.0
        %v2128 = vmin.f32 %v2124, 1.0
        %v2129 = vmin.f32 %v2125, 1.0
        %v2130 = vmin.f32 %v2126, 1.0
        %v2131 = vpack.c.bf16 %v2127, %v2127
        %v2132 = vpack.c.bf16 %v2128, %v2128
        %v2133 = vpack.c.bf16 %v2129, %v2129
        %v2134 = vpack.c.bf16 %v2130, %v2130
        %2135 = vrot.lane.b32.xlu0 %v488, 40
        %v2136 = vpop.permute.xlu0 %2135
        %v2138 = vsel %vm491, %v2131, 0
        %v2141 = vsel %vm495, %v2136, 0
        %2143 = vmatprep.subr.bf16.mxu0 0
        %2144 = vmatpush1.bf16.msra.mxu0 %v2141
        %2145 = vmatprep.subr.bf16.mxu0 0
        %2146 = vmatpush1.bf16.msra.mxu0 0
        %2147 = vmatprep.subr.bf16.mxu0 0
        %2148 = vmatpush1.bf16.msra.mxu0 0
        %2149 = vmatprep.subr.bf16.mxu0 0
        %2150 = vmatpush1.bf16.msra.mxu0 0
        %2151 = vmatprep.subr.bf16.mxu0 0
        %2152 = vmatpush1.bf16.msra.mxu0 0
        %2153 = vmatprep.subr.bf16.mxu0 0
        %2154 = vmatpush1.bf16.msra.mxu0 0
        %2155 = vmatprep.subr.bf16.mxu0 0
        %2156 = vmatpush1.bf16.msra.mxu0 0
        %2157 = vmatprep.subr.bf16.mxu0 0
        %2158 = vmatpush1.bf16.msra.mxu0 0
        %2159 = vmatprep.subr.bf16.mxu0 0
        %2160 = vmatpush1.bf16.msra.mxu0 0
        %2161 = vmatprep.subr.bf16.mxu0 0
        %2162 = vmatpush1.bf16.msra.mxu0 0
        %2163 = vmatprep.subr.bf16.mxu0 0
        %2164 = vmatpush1.bf16.msra.mxu0 0
        %2165 = vmatprep.subr.bf16.mxu0 0
        %2166 = vmatpush1.bf16.msra.mxu0 0
        %2167 = vmatprep.subr.bf16.mxu0 0
        %2168 = vmatpush1.bf16.msra.mxu0 0
        %2169 = vmatprep.subr.bf16.mxu0 0
        %2170 = vmatpush1.bf16.msra.mxu0 0
        %2171 = vmatprep.subr.bf16.mxu0 0
        %2172 = vmatpush1.bf16.msra.mxu0 0
        %2173 = vmatprep.subr.bf16.mxu0 0
        %2174 = vmatpush1.bf16.msra.mxu0 0
        %2175 = vmatprep.mubr.bf16.mxu0 0
        %2176 = vmatmul.mubr.bf16.gmra.mrb[0].mxu0 %v2138
        %v2177 = vpop.f32.mrb[0].mxu0
        %v2178 = vadd.f32 0.0, %v2177
        %v2179 = vpop.f32.mrb[0].mxu0
        %v2180 = vpop.f32.mrb[0].mxu0
        %v2181 = vpop.f32.mrb[0].mxu0
        %2182 = vdwg.mxu0
        %2183 = vrot.lane.b32.xlu0 %v546, 40
        %v2184 = vpop.permute.xlu0 %2183
        %v2186 = vsel %vm491, %v2132, 0
        %v2189 = vsel %vm495, %v2184, 0
        %2191 = vmatprep.subr.bf16.mxu0 0
        %2192 = vmatpush1.bf16.msra.mxu0 %v2189
        %2193 = vmatprep.subr.bf16.mxu0 0
        %2194 = vmatpush1.bf16.msra.mxu0 0
        %2195 = vmatprep.subr.bf16.mxu0 0
        %2196 = vmatpush1.bf16.msra.mxu0 0
        %2197 = vmatprep.subr.bf16.mxu0 0
        %2198 = vmatpush1.bf16.msra.mxu0 0
        %2199 = vmatprep.subr.bf16.mxu0 0
        %2200 = vmatpush1.bf16.msra.mxu0 0
        %2201 = vmatprep.subr.bf16.mxu0 0
        %2202 = vmatpush1.bf16.msra.mxu0 0
        %2203 = vmatprep.subr.bf16.mxu0 0
        %2204 = vmatpush1.bf16.msra.mxu0 0
        %2205 = vmatprep.subr.bf16.mxu0 0
        %2206 = vmatpush1.bf16.msra.mxu0 0
        %2207 = vmatprep.subr.bf16.mxu0 0
        %2208 = vmatpush1.bf16.msra.mxu0 0
        %2209 = vmatprep.subr.bf16.mxu0 0
        %2210 = vmatpush1.bf16.msra.mxu0 0
        %2211 = vmatprep.subr.bf16.mxu0 0
        %2212 = vmatpush1.bf16.msra.mxu0 0
        %2213 = vmatprep.subr.bf16.mxu0 0
        %2214 = vmatpush1.bf16.msra.mxu0 0
        %2215 = vmatprep.subr.bf16.mxu0 0
        %2216 = vmatpush1.bf16.msra.mxu0 0
        %2217 = vmatprep.subr.bf16.mxu0 0
        %2218 = vmatpush1.bf16.msra.mxu0 0
        %2219 = vmatprep.subr.bf16.mxu0 0
        %2220 = vmatpush1.bf16.msra.mxu0 0
        %2221 = vmatprep.subr.bf16.mxu0 0
        %2222 = vmatpush1.bf16.msra.mxu0 0
        %2223 = vmatprep.mubr.bf16.mxu0 0
        %2224 = vmatmul.mubr.bf16.gmra.mrb[0].mxu0 %v2186
        %v2225 = vpop.f32.mrb[0].mxu0
        %v2226 = vadd.f32 0.0, %v2225
        %v2227 = vpop.f32.mrb[0].mxu0
        %v2228 = vpop.f32.mrb[0].mxu0
        %v2229 = vpop.f32.mrb[0].mxu0
        %2230 = vdwg.mxu0
        %2231 = vrot.lane.b32.xlu0 %v602, 40
        %v2232 = vpop.permute.xlu0 %2231
        %v2234 = vsel %vm491, %v2133, 0
        %v2237 = vsel %vm495, %v2232, 0
        %2239 = vmatprep.subr.bf16.mxu0 0
        %2240 = vmatpush1.bf16.msra.mxu0 %v2237
        %2241 = vmatprep.subr.bf16.mxu0 0
        %2242 = vmatpush1.bf16.msra.mxu0 0
        %2243 = vmatprep.subr.bf16.mxu0 0
        %2244 = vmatpush1.bf16.msra.mxu0 0
        %2245 = vmatprep.subr.bf16.mxu0 0
        %2246 = vmatpush1.bf16.msra.mxu0 0
        %2247 = vmatprep.subr.bf16.mxu0 0
        %2248 = vmatpush1.bf16.msra.mxu0 0
        %2249 = vmatprep.subr.bf16.mxu0 0
        %2250 = vmatpush1.bf16.msra.mxu0 0
        %2251 = vmatprep.subr.bf16.mxu0 0
        %2252 = vmatpush1.bf16.msra.mxu0 0
        %2253 = vmatprep.subr.bf16.mxu0 0
        %2254 = vmatpush1.bf16.msra.mxu0 0
        %2255 = vmatprep.subr.bf16.mxu0 0
        %2256 = vmatpush1.bf16.msra.mxu0 0
        %2257 = vmatprep.subr.bf16.mxu0 0
        %2258 = vmatpush1.bf16.msra.mxu0 0
        %2259 = vmatprep.subr.bf16.mxu0 0
        %2260 = vmatpush1.bf16.msra.mxu0 0
        %2261 = vmatprep.subr.bf16.mxu0 0
        %2262 = vmatpush1.bf16.msra.mxu0 0
        %2263 = vmatprep.subr.bf16.mxu0 0
        %2264 = vmatpush1.bf16.msra.mxu0 0
        %2265 = vmatprep.subr.bf16.mxu0 0
        %2266 = vmatpush1.bf16.msra.mxu0 0
        %2267 = vmatprep.subr.bf16.mxu0 0
        %2268 = vmatpush1.bf16.msra.mxu0 0
        %2269 = vmatprep.subr.bf16.mxu0 0
        %2270 = vmatpush1.bf16.msra.mxu0 0
        %2271 = vmatprep.mubr.bf16.mxu0 0
        %2272 = vmatmul.mubr.bf16.gmra.mrb[0].mxu0 %v2234
        %v2273 = vpop.f32.mrb[0].mxu0
        %v2274 = vadd.f32 0.0, %v2273
        %v2275 = vpop.f32.mrb[0].mxu0
        %v2276 = vpop.f32.mrb[0].mxu0
        %v2277 = vpop.f32.mrb[0].mxu0
        %2278 = vdwg.mxu0
        %2279 = vrot.lane.b32.xlu0 %v658, 40
        %v2280 = vpop.permute.xlu0 %2279
        %v2282 = vsel %vm491, %v2134, 0
        %v2285 = vsel %vm495, %v2280, 0
        %2287 = vmatprep.subr.bf16.mxu0 0
        %2288 = vmatpush1.bf16.msra.mxu0 %v2285
        %2289 = vmatprep.subr.bf16.mxu0 0
        %2290 = vmatpush1.bf16.msra.mxu0 0
        %2291 = vmatprep.subr.bf16.mxu0 0
        %2292 = vmatpush1.bf16.msra.mxu0 0
        %2293 = vmatprep.subr.bf16.mxu0 0
        %2294 = vmatpush1.bf16.msra.mxu0 0
        %2295 = vmatprep.subr.bf16.mxu0 0
        %2296 = vmatpush1.bf16.msra.mxu0 0
        %2297 = vmatprep.subr.bf16.mxu0 0
        %2298 = vmatpush1.bf16.msra.mxu0 0
        %2299 = vmatprep.subr.bf16.mxu0 0
        %2300 = vmatpush1.bf16.msra.mxu0 0
        %2301 = vmatprep.subr.bf16.mxu0 0
        %2302 = vmatpush1.bf16.msra.mxu0 0
        %2303 = vmatprep.subr.bf16.mxu0 0
        %2304 = vmatpush1.bf16.msra.mxu0 0
        %2305 = vmatprep.subr.bf16.mxu0 0
        %2306 = vmatpush1.bf16.msra.mxu0 0
        %2307 = vmatprep.subr.bf16.mxu0 0
        %2308 = vmatpush1.bf16.msra.mxu0 0
        %2309 = vmatprep.subr.bf16.mxu0 0
        %2310 = vmatpush1.bf16.msra.mxu0 0
        %2311 = vmatprep.subr.bf16.mxu0 0
        %2312 = vmatpush1.bf16.msra.mxu0 0
        %2313 = vmatprep.subr.bf16.mxu0 0
        %2314 = vmatpush1.bf16.msra.mxu0 0
        %2315 = vmatprep.subr.bf16.mxu0 0
        %2316 = vmatpush1.bf16.msra.mxu0 0
        %2317 = vmatprep.subr.bf16.mxu0 0
        %2318 = vmatpush1.bf16.msra.mxu0 0
        %2319 = vmatprep.mubr.bf16.mxu0 0
        %2320 = vmatmul.mubr.bf16.gmra.mrb[0].mxu0 %v2282
        %v2321 = vpop.f32.mrb[0].mxu0
        %v2322 = vadd.f32 0.0, %v2321
        %v2323 = vpop.f32.mrb[0].mxu0
        %v2324 = vpop.f32.mrb[0].mxu0
        %v2325 = vpop.f32.mrb[0].mxu0
        %2326 = vdwg.mxu0
        %2331 = vrot.lane.b32.xlu0 %v1098, 8
        %v2332 = vpop.permute.xlu0 %2331
        %2333 = vrot.lane.b32.xlu0 %v1146, 8
        %v2334 = vpop.permute.xlu0 %2333
        %2335 = vrot.lane.b32.xlu0 %v1194, 8
        %v2336 = vpop.permute.xlu0 %2335
        %2337 = vrot.lane.b32.xlu0 %v1242, 8
        %v2338 = vpop.permute.xlu0 %2337
        %2347 = vrot.lane.b32.xlu0 %v1638, 16
        %v2348 = vpop.permute.xlu0 %2347
        %2349 = vrot.lane.b32.xlu0 %v1686, 16
        %v2350 = vpop.permute.xlu0 %2349
        %2351 = vrot.lane.b32.xlu0 %v1734, 16
        %v2352 = vpop.permute.xlu0 %2351
        %2353 = vrot.lane.b32.xlu0 %v1782, 16
        %v2354 = vpop.permute.xlu0 %2353
        %2363 = vrot.lane.b32.xlu0 %v2178, 24
        %v2364 = vpop.permute.xlu0 %2363
        %2365 = vrot.lane.b32.xlu0 %v2226, 24
        %v2366 = vpop.permute.xlu0 %2365
        %2367 = vrot.lane.b32.xlu0 %v2274, 24
        %v2368 = vpop.permute.xlu0 %2367
        %2369 = vrot.lane.b32.xlu0 %v2322, 24
        %v2370 = vpop.permute.xlu0 %2369
        %v2375 = vsel %vm226, %v534, %v2332
        %v2376 = vsel %vm226, %v590, %v2334
        %v2377 = vsel %vm226, %v646, %v2336
        %v2378 = vsel %vm226, %v702, %v2338
        %vm2379 = vcmask 130048
        %v2380 = vsel %vm2379, %v2375, %v2348
        %v2381 = vsel %vm2379, %v2376, %v2350
        %v2382 = vsel %vm2379, %v2377, %v2352
        %v2383 = vsel %vm2379, %v2378, %v2354
        %vm2384 = vcmask 195584
        %v2385 = vsel %vm2384, %v2380, %v2364
        %v2386 = vsel %vm2384, %v2381, %v2366
        %v2387 = vsel %vm2384, %v2382, %v2368
        %v2388 = vsel %vm2384, %v2383, %v2370
        %v2389 = vpack.c.bf16 %v2385, %v2385
        %v2390 = vpack.c.bf16 %v2386, %v2386
        %v2391 = vpack.c.bf16 %v2387, %v2387
        %v2392 = vpack.c.bf16 %v2388, %v2388
        %vm2393 = vcmask 254976
        %2394 = vst.msk [vmem:[%s134] sm:$0x3] %vm2393, %v2389
        %2395 = vst.msk [vmem:[%s134 + $0x2] sm:$0x3] %vm2393, %v2390
        %2396 = vst.msk [vmem:[%s134 + $0x4] sm:$0x3] %vm2393, %v2391
        %2397 = vst.msk [vmem:[%s134 + $0x6] sm:$0x3] %vm2393, %v2392
        %s2398 = sand.u32 %s52, 1
        %s2399 = scalar_lea.sflag [#allocation4], %s2398
        %s2400 = sand.u32 %s52, 1
        %s2401 = smul.addr %s2400, 8
        %s2402 = scalar_lea.vmem [#allocation5], %s2401
        // Predicated region
        $region29: #{swin_backbone_forward.18} parent=23 // pred_check
          %p2403 = pneg %p62
        $region30: #{swin_backbone_forward.18} parent=23 // pred_check_branch
          %2405 = sbr.rel (%p2403) target = $region32
        $region31: #{swin_backbone_forward.18} parent=23 // pred_region
          %s2406 = smul.u32 4, %s18
          %s2408 = ssub.s32 128, 128
          %2409 = vsyncadd %s2399, %s2408
          %s2410 = smul.addr %s2406, 32
          %s2411 = scalar_lea.hbm %s1, %s2410
          %s2412 = sshll.u32 %s2402, 4
          %s2413 = int_to_ptr.vmem [resolvable:$true] %s2412
          %2418 = dma.vmem_to_hbm [thread:$0]  %s2413, 128, %s2411, %s2399, 32, 32, 2
        $region32: #{swin_backbone_forward.18} parent=23 // pred_fallthru
          _
      $region24: #{swin_backbone_forward.18} parent=5 // pred_fallthru
        _
      %p2419 = scmp.le.s32.totalorder 2, %s13
      // Predicated region
      $region33: #{swin_backbone_forward.18} parent=5 // pred_check
        %p2420 = pneg %p2419
      $region34: #{swin_backbone_forward.18} parent=5 // pred_check_branch
        %2422 = sbr.rel (%p2420) target = $region36
      $region35: #{swin_backbone_forward.18} parent=5 // pred_region
        %s2423 = ssub.s32 %s13, 2
        // Predicated region
        $region37: #{swin_backbone_forward.18} parent=35 // pred_check
          %p2424 = pneg %p68
        $region38: #{swin_backbone_forward.18} parent=35 // pred_check_branch
          %2426 = sbr.rel (%p2424) target = $region40
        $region39: #{swin_backbone_forward.18} parent=35 // pred_region
          %s2427 = sand.u32 %s53, 1
          %s2428 = scalar_lea.sflag [#allocation4], %s2427
          %s2429 = sand.u32 %s53, 1
          %s2430 = smul.addr %s2429, 8
          %s2431 = scalar_lea.vmem [#allocation5], %s2430
          %2432 = dma.done %s2428, 128
        $region40: #{swin_backbone_forward.18} parent=35 // pred_fallthru
          _
      $region36: #{swin_backbone_forward.18} parent=5 // pred_fallthru
        _
    $region6: #{swin_backbone_forward.18} parent=1 // loop_footer
      %s17 = sadd.s32 1, %s13
    $region7: #{swin_backbone_forward.18} parent=1 // loop_footer_branch
      %12 = sbr.rel target = $region3
    $region8: #{swin_backbone_forward.18} parent=1 // loop_exit
      _
    %2433 = vsyncpa [#allocation3], 1
    %s2434 = scalar_lea.sflag [#allocation3], 1
    %2435 = vsyncpa %s2434, 1
    %2436 = vsyncpa [#allocation4], 1
    %s2437 = scalar_lea.sflag [#allocation4], 1
    %2438 = vsyncpa %s2437, 1

// kernel: swin_backbone_forward.24
$region0: #{swin_backbone_forward.24}
  #allocation0 [shape = 'u32[]', space=smem, size = 0x4, offset = 0x4, fixed_abs, tag = 'smem constant byte address 0x4 - core index']
  #allocation1 [shape = 'u32[144,128]{1,0:T(1,128)}', space=vmem, size = 0x12000, scoped, tag = 'internal scratch']
  %s0 = inlined_call_operand.hbm [shape: f32[8,128], index: 0, kind: input, shape index: {}]
  %s1 = inlined_call_operand.hbm [shape: bf16[128,64], index: 1, kind: input, shape index: {}]
  %s2 = inlined_call_operand.hbm [shape: f32[1,64], index: 2, kind: input, shape index: {}]
  %s3 = inlined_call_operand.hbm [shape: f32[8,64], index: 3, kind: output, shape index: {}]
  %s4 = sld [smem:[#allocation0]]
  $region34: #{swin_backbone_forward.24} parent=0
    _
  %s6 = ssub.s32 1, %s4
  %s7 = scalar_select 0, %s6, %s4
  $region1: #{swin_backbone_forward.24} parent=0
    #allocation2 [shape = 'u8[4096]{0}', space=vmem, size = 0x1000, scoped, tag = 'input window, operand 0, single buffered']
    #allocation3 [shape = 's32[1]{0}', space=sflag, size = 0x4, scoped, tag = 'scoped memory for swin_backbone_forward.24']
    #allocation4 [shape = 's32[1]{0}', space=sflag, size = 0x4, scoped, tag = 'scoped memory for swin_backbone_forward.24']
    #allocation5 [shape = 'u8[32768]{0}', space=vmem, size = 0x8000, scoped, tag = 'input window, operand 1, single buffered']
    #allocation6 [shape = 's32[1]{0}', space=sflag, size = 0x4, scoped, tag = 'scoped memory for swin_backbone_forward.24']
    #allocation7 [shape = 'u8[512]{0}', space=vmem, size = 0x400, scoped, tag = 'input window, operand 2, single buffered']
    #allocation8 [shape = 'u8[4096]{0}', space=vmem, size = 0x1000, scoped, tag = 'output window, operand 0, single buffered']
    %8 = vsyncpa [#allocation3], 0
    %9 = vsyncpa [#allocation6], 0
    %10 = vsyncpa [#allocation4], 0
    // Predicated region
    $region2: #{swin_backbone_forward.24} parent=1 // pred_check
      _
    $region3: #{swin_backbone_forward.24} parent=1 // pred_check_branch
      %12 = sbr.rel (0) target = $region5
    $region4: #{swin_backbone_forward.24} parent=1 // pred_region
      %s14 = ssub.s32 128, 128
      %15 = vsyncadd [#allocation3], %s14
      %s17 = sshll.u32 [#allocation2], 4
      %s18 = int_to_ptr.vmem [resolvable:$true] %s17
      %20 = dma.hbm_to_vmem [thread:$0]  %s0, 128, %s18, [#allocation3]
    $region5: #{swin_backbone_forward.24} parent=1 // pred_fallthru
      _
    // Predicated region
    $region6: #{swin_backbone_forward.24} parent=1 // pred_check
      _
    $region7: #{swin_backbone_forward.24} parent=1 // pred_check_branch
      %22 = sbr.rel (0) target = $region9
    $region8: #{swin_backbone_forward.24} parent=1 // pred_region
      %s24 = ssub.s32 1024, 1024
      %25 = vsyncadd [#allocation6], %s24
      %s26 = sshll.u32 [#allocation5], 4
      %s27 = int_to_ptr.vmem [resolvable:$true] %s26
      %32 = dma.hbm_to_vmem [thread:$0]  %s1, 1024, %s27, [#allocation6], 64, 64, 4
    $region9: #{swin_backbone_forward.24} parent=1 // pred_fallthru
      _
    // Predicated region
    $region10: #{swin_backbone_forward.24} parent=1 // pred_check
      _
    $region11: #{swin_backbone_forward.24} parent=1 // pred_check_branch
      %34 = sbr.rel (0) target = $region13
    $region12: #{swin_backbone_forward.24} parent=1 // pred_region
      %s36 = ssub.s32 16, 16
      %37 = vsyncadd [#allocation6], %s36
      %s39 = sshll.u32 [#allocation7], 4
      %s40 = int_to_ptr.vmem [resolvable:$true] %s39
      %42 = dma.hbm_to_vmem [thread:$0]  %s2, 16, %s40, [#allocation6]
    $region13: #{swin_backbone_forward.24} parent=1 // pred_fallthru
      _
    // Predicated region
    $region14: #{swin_backbone_forward.24} parent=1 // pred_check
      _
    $region15: #{swin_backbone_forward.24} parent=1 // pred_check_branch
      %44 = sbr.rel (0) target = $region17
    $region16: #{swin_backbone_forward.24} parent=1 // pred_region
      %45 = dma.done [#allocation3], 128
    $region17: #{swin_backbone_forward.24} parent=1 // pred_fallthru
      _
    // Predicated region
    $region18: #{swin_backbone_forward.24} parent=1 // pred_check
      _
    $region19: #{swin_backbone_forward.24} parent=1 // pred_check_branch
      %47 = sbr.rel (0) target = $region21
    $region20: #{swin_backbone_forward.24} parent=1 // pred_region
      %48 = dma.done [#allocation6], 1024
    $region21: #{swin_backbone_forward.24} parent=1 // pred_fallthru
      _
    // Predicated region
    $region22: #{swin_backbone_forward.24} parent=1 // pred_check
      _
    $region23: #{swin_backbone_forward.24} parent=1 // pred_check_branch
      %50 = sbr.rel (0) target = $region25
    $region24: #{swin_backbone_forward.24} parent=1 // pred_region
      %51 = dma.done [#allocation6], 16
    $region25: #{swin_backbone_forward.24} parent=1 // pred_fallthru
      _
    %v53 = vld [vmem:[#allocation2] sm:$0xff]
    %v54 = vpack.c.bf16 %v53, %v53
    %v55 = vld [vmem:[#allocation5] sm:$0xf]
    %v56 = vld [vmem:[#allocation5 + $0x4] sm:$0xf]
    %v57 = vld [vmem:[#allocation5 + $0x8] sm:$0xf]
    %v58 = vld [vmem:[#allocation5 + $0xc] sm:$0xf]
    %v59 = vld [vmem:[#allocation5 + $0x10] sm:$0xf]
    %v60 = vld [vmem:[#allocation5 + $0x14] sm:$0xf]
    %v61 = vld [vmem:[#allocation5 + $0x18] sm:$0xf]
    %v62 = vld [vmem:[#allocation5 + $0x1c] sm:$0xf]
    %v63 = vld [vmem:[#allocation5 + $0x20] sm:$0xf]
    %v64 = vld [vmem:[#allocation5 + $0x24] sm:$0xf]
    %v65 = vld [vmem:[#allocation5 + $0x28] sm:$0xf]
    %v66 = vld [vmem:[#allocation5 + $0x2c] sm:$0xf]
    %v67 = vld [vmem:[#allocation5 + $0x30] sm:$0xf]
    %v68 = vld [vmem:[#allocation5 + $0x34] sm:$0xf]
    %v69 = vld [vmem:[#allocation5 + $0x38] sm:$0xf]
    %v70 = vld [vmem:[#allocation5 + $0x3c] sm:$0xf]
    %v71 = vld [vmem:[#allocation7] sm:$0x1]
    %v73 = vlaneseq
    %v74 = vshrl.u32 %v73, 7
    %v75 = vsub.s32 0, %v74
    %v76 = vrot.slane %v71, %v75
    %v94 = vunpack.c.l.b16 %v55
    %v95 = vunpack.c.l.b16 %v56
    %v96 = vunpack.c.l.b16 %v57
    %v97 = vunpack.c.l.b16 %v58
    %v98 = vunpack.c.l.b16 %v59
    %v99 = vunpack.c.l.b16 %v60
    %v100 = vunpack.c.l.b16 %v61
    %v101 = vunpack.c.l.b16 %v62
    %v102 = vunpack.c.l.b16 %v63
    %v103 = vunpack.c.l.b16 %v64
    %v104 = vunpack.c.l.b16 %v65
    %v105 = vunpack.c.l.b16 %v66
    %v106 = vunpack.c.l.b16 %v67
    %v107 = vunpack.c.l.b16 %v68
    %v108 = vunpack.c.l.b16 %v69
    %v109 = vunpack.c.l.b16 %v70
    %v110 = vpack.c.b16 %v95, %v94
    %v111 = vpack.c.b16 %v97, %v96
    %v112 = vpack.c.b16 %v99, %v98
    %v113 = vpack.c.b16 %v101, %v100
    %v114 = vpack.c.b16 %v103, %v102
    %v115 = vpack.c.b16 %v105, %v104
    %v116 = vpack.c.b16 %v107, %v106
    %v117 = vpack.c.b16 %v109, %v108
    %126 = vmatprep.subr.bf16.mxu0 0
    %127 = vmatpush1.bf16.msra.mxu0 %v110
    %128 = vmatprep.subr.bf16.mxu0 0
    %129 = vmatpush1.bf16.msra.mxu0 %v111
    %130 = vmatprep.subr.bf16.mxu0 0
    %131 = vmatpush1.bf16.msra.mxu0 %v112
    %132 = vmatprep.subr.bf16.mxu0 0
    %133 = vmatpush1.bf16.msra.mxu0 %v113
    %134 = vmatprep.subr.bf16.mxu0 0
    %135 = vmatpush1.bf16.msra.mxu0 %v114
    %136 = vmatprep.subr.bf16.mxu0 0
    %137 = vmatpush1.bf16.msra.mxu0 %v115
    %138 = vmatprep.subr.bf16.mxu0 0
    %139 = vmatpush1.bf16.msra.mxu0 %v116
    %140 = vmatprep.subr.bf16.mxu0 0
    %141 = vmatpush1.bf16.msra.mxu0 %v117
    %142 = vmatprep.subr.bf16.mxu0 0
    %143 = vmatpush1.bf16.msra.mxu0 0
    %144 = vmatprep.subr.bf16.mxu0 0
    %145 = vmatpush1.bf16.msra.mxu0 0
    %146 = vmatprep.subr.bf16.mxu0 0
    %147 = vmatpush1.bf16.msra.mxu0 0
    %148 = vmatprep.subr.bf16.mxu0 0
    %149 = vmatpush1.bf16.msra.mxu0 0
    %150 = vmatprep.subr.bf16.mxu0 0
    %151 = vmatpush1.bf16.msra.mxu0 0
    %152 = vmatprep.subr.bf16.mxu0 0
    %153 = vmatpush1.bf16.msra.mxu0 0
    %154 = vmatprep.subr.bf16.mxu0 0
    %155 = vmatpush1.bf16.msra.mxu0 0
    %156 = vmatprep.subr.bf16.mxu0 0
    %157 = vmatpush1.bf16.msra.mxu0 0
    %158 = vmatprep.mubr.bf16.mxu0 0
    %159 = vmatmul.mubr.bf16.gmra.mrb[0].mxu0 %v54
    %v160 = vpop.f32.mrb[0].mxu0
    %v161 = vadd.f32 %v76, %v160
    %v162 = vpop.f32.mrb[0].mxu0
    %v163 = vpop.f32.mrb[0].mxu0
    %v164 = vpop.f32.mrb[0].mxu0
    %165 = vdwg.mxu0
    %vm166 = vcmask 523264
    %167 = vst.msk [vmem:[#allocation8] sm:$0xff] %vm166, %v161
    // Predicated region
    $region26: #{swin_backbone_forward.24} parent=1 // pred_check
      _
    $region27: #{swin_backbone_forward.24} parent=1 // pred_check_branch
      %169 = sbr.rel (0) target = $region29
    $region28: #{swin_backbone_forward.24} parent=1 // pred_region
      %s171 = ssub.s32 128, 128
      %172 = vsyncadd [#allocation4], %s171
      %s174 = sshll.u32 [#allocation8], 4
      %s175 = int_to_ptr.vmem [resolvable:$true] %s174
      %177 = dma.vmem_to_hbm [thread:$0]  %s175, 128, %s3, [#allocation4]
    $region29: #{swin_backbone_forward.24} parent=1 // pred_fallthru
      _
    // Predicated region
    $region30: #{swin_backbone_forward.24} parent=1 // pred_check
      _
    $region31: #{swin_backbone_forward.24} parent=1 // pred_check_branch
      %179 = sbr.rel (0) target = $region33
    $region32: #{swin_backbone_forward.24} parent=1 // pred_region
      %180 = dma.done [#allocation4], 128
    $region33: #{swin_backbone_forward.24} parent=1 // pred_fallthru
      _
    %181 = vsyncpa [#allocation3], 1
    %182 = vsyncpa [#allocation6], 1
    %183 = vsyncpa [#allocation4], 1

// kernel: swin_backbone_forward.25
$region0: #{swin_backbone_forward.25}
  #allocation0 [shape = 'u32[]', space=smem, size = 0x4, offset = 0x4, fixed_abs, tag = 'smem constant byte address 0x4 - core index']
  #allocation1 [shape = 'u32[144,128]{1,0:T(1,128)}', space=vmem, size = 0x12000, scoped, tag = 'internal scratch']
  %s0 = inlined_call_operand.hbm [shape: f32[8,64], index: 0, kind: input, shape index: {}]
  %s1 = inlined_call_operand.hbm [shape: f32[1,64], index: 1, kind: input, shape index: {}]
  %s2 = inlined_call_operand.hbm [shape: f32[1,64], index: 2, kind: input, shape index: {}]
  %s3 = inlined_call_operand.hbm [shape: bf16[64,192], index: 3, kind: input, shape index: {}]
  %s4 = inlined_call_operand.hbm [shape: f32[1,192], index: 4, kind: input, shape index: {}]
  %s5 = inlined_call_operand.hbm [shape: bf16[8,192], index: 5, kind: output, shape index: {}]
  %s6 = sld [smem:[#allocation0]]
  $region50: #{swin_backbone_forward.25} parent=0
    _
  %s8 = ssub.s32 1, %s6
  %s9 = scalar_select 0, %s8, %s6
  $region1: #{swin_backbone_forward.25} parent=0
    #allocation2 [shape = 'u8[4096]{0}', space=vmem, size = 0x1000, scoped, tag = 'input window, operand 0, single buffered']
    #allocation3 [shape = 's32[1]{0}', space=sflag, size = 0x4, scoped, tag = 'scoped memory for swin_backbone_forward.25']
    #allocation4 [shape = 's32[1]{0}', space=sflag, size = 0x4, scoped, tag = 'scoped memory for swin_backbone_forward.25']
    #allocation5 [shape = 'u8[512]{0}', space=vmem, size = 0x400, scoped, tag = 'input window, operand 1, single buffered']
    #allocation6 [shape = 's32[1]{0}', space=sflag, size = 0x4, scoped, tag = 'scoped memory for swin_backbone_forward.25']
    #allocation7 [shape = 'u8[512]{0}', space=vmem, size = 0x400, scoped, tag = 'input window, operand 2, single buffered']
    #allocation8 [shape = 'u8[32768]{0}', space=vmem, size = 0x8000, scoped, tag = 'input window, operand 3, single buffered']
    #allocation9 [shape = 's32[1]{0}', space=sflag, size = 0x4, scoped, tag = 'scoped memory for swin_backbone_forward.25']
    #allocation10 [shape = 'u8[1024]{0}', space=vmem, size = 0x400, scoped, tag = 'input window, operand 4, single buffered']
    #allocation11 [shape = 'u8[4096]{0}', space=vmem, size = 0x1000, scoped, tag = 'output window, operand 0, single buffered']
    %10 = vsyncpa [#allocation3], 0
    %11 = vsyncpa [#allocation6], 0
    %12 = vsyncpa [#allocation9], 0
    %13 = vsyncpa [#allocation4], 0
    // Predicated region
    $region2: #{swin_backbone_forward.25} parent=1 // pred_check
      _
    $region3: #{swin_backbone_forward.25} parent=1 // pred_check_branch
      %15 = sbr.rel (0) target = $region5
    $region4: #{swin_backbone_forward.25} parent=1 // pred_region
      %s17 = ssub.s32 128, 128
      %18 = vsyncadd [#allocation3], %s17
      %s20 = sshll.u32 [#allocation2], 4
      %s21 = int_to_ptr.vmem [resolvable:$true] %s20
      %23 = dma.hbm_to_vmem [thread:$0]  %s0, 128, %s21, [#allocation3]
    $region5: #{swin_backbone_forward.25} parent=1 // pred_fallthru
      _
    // Predicated region
    $region6: #{swin_backbone_forward.25} parent=1 // pred_check
      _
    $region7: #{swin_backbone_forward.25} parent=1 // pred_check_branch
      %25 = sbr.rel (0) target = $region9
    $region8: #{swin_backbone_forward.25} parent=1 // pred_region
      %s27 = ssub.s32 16, 16
      %28 = vsyncadd [#allocation6], %s27
      %s30 = sshll.u32 [#allocation5], 4
      %s31 = int_to_ptr.vmem [resolvable:$true] %s30
      %33 = dma.hbm_to_vmem [thread:$0]  %s1, 16, %s31, [#allocation6]
    $region9: #{swin_backbone_forward.25} parent=1 // pred_fallthru
      _
    // Predicated region
    $region10: #{swin_backbone_forward.25} parent=1 // pred_check
      _
    $region11: #{swin_backbone_forward.25} parent=1 // pred_check_branch
      %35 = sbr.rel (0) target = $region13
    $region12: #{swin_backbone_forward.25} parent=1 // pred_region
      %s37 = ssub.s32 16, 16
      %38 = vsyncadd [#allocation6], %s37
      %s40 = sshll.u32 [#allocation7], 4
      %s41 = int_to_ptr.vmem [resolvable:$true] %s40
      %43 = dma.hbm_to_vmem [thread:$0]  %s2, 16, %s41, [#allocation6]
    $region13: #{swin_backbone_forward.25} parent=1 // pred_fallthru
      _
    // Predicated region
    $region14: #{swin_backbone_forward.25} parent=1 // pred_check
      _
    $region15: #{swin_backbone_forward.25} parent=1 // pred_check_branch
      %45 = sbr.rel (0) target = $region17
    $region16: #{swin_backbone_forward.25} parent=1 // pred_region
      %s47 = ssub.s32 1024, 1024
      %48 = vsyncadd [#allocation9], %s47
      %s49 = sshll.u32 [#allocation8], 4
      %s50 = int_to_ptr.vmem [resolvable:$true] %s49
      %55 = dma.hbm_to_vmem [thread:$0]  %s3, 1024, %s50, [#allocation9], 128, 128, 8
    $region17: #{swin_backbone_forward.25} parent=1 // pred_fallthru
      _
    // Predicated region
    $region18: #{swin_backbone_forward.25} parent=1 // pred_check
      _
    $region19: #{swin_backbone_forward.25} parent=1 // pred_check_branch
      %57 = sbr.rel (0) target = $region21
    $region20: #{swin_backbone_forward.25} parent=1 // pred_region
      %s59 = ssub.s32 32, 32
      %60 = vsyncadd [#allocation9], %s59
      %s62 = sshll.u32 [#allocation10], 4
      %s63 = int_to_ptr.vmem [resolvable:$true] %s62
      %65 = dma.hbm_to_vmem [thread:$0]  %s4, 32, %s63, [#allocation9]
    $region21: #{swin_backbone_forward.25} parent=1 // pred_fallthru
      _
    // Predicated region
    $region22: #{swin_backbone_forward.25} parent=1 // pred_check
      _
    $region23: #{swin_backbone_forward.25} parent=1 // pred_check_branch
      %67 = sbr.rel (0) target = $region25
    $region24: #{swin_backbone_forward.25} parent=1 // pred_region
      %68 = dma.done [#allocation3], 128
    $region25: #{swin_backbone_forward.25} parent=1 // pred_fallthru
      _
    // Predicated region
    $region26: #{swin_backbone_forward.25} parent=1 // pred_check
      _
    $region27: #{swin_backbone_forward.25} parent=1 // pred_check_branch
      %70 = sbr.rel (0) target = $region29
    $region28: #{swin_backbone_forward.25} parent=1 // pred_region
      %71 = dma.done [#allocation6], 16
    $region29: #{swin_backbone_forward.25} parent=1 // pred_fallthru
      _
    // Predicated region
    $region30: #{swin_backbone_forward.25} parent=1 // pred_check
      _
    $region31: #{swin_backbone_forward.25} parent=1 // pred_check_branch
      %73 = sbr.rel (0) target = $region33
    $region32: #{swin_backbone_forward.25} parent=1 // pred_region
      %74 = dma.done [#allocation6], 16
    $region33: #{swin_backbone_forward.25} parent=1 // pred_fallthru
      _
    // Predicated region
    $region34: #{swin_backbone_forward.25} parent=1 // pred_check
      _
    $region35: #{swin_backbone_forward.25} parent=1 // pred_check_branch
      %76 = sbr.rel (0) target = $region37
    $region36: #{swin_backbone_forward.25} parent=1 // pred_region
      %77 = dma.done [#allocation9], 1024
    $region37: #{swin_backbone_forward.25} parent=1 // pred_fallthru
      _
    // Predicated region
    $region38: #{swin_backbone_forward.25} parent=1 // pred_check
      _
    $region39: #{swin_backbone_forward.25} parent=1 // pred_check_branch
      %79 = sbr.rel (0) target = $region41
    $region40: #{swin_backbone_forward.25} parent=1 // pred_region
      %80 = dma.done [#allocation9], 32
    $region41: #{swin_backbone_forward.25} parent=1 // pred_fallthru
      _
    %v82 = vld [vmem:[#allocation2] sm:$0xff]
    %vm83 = vcmask 523264
    %v84 = vsel %vm83, %v82, 0.0
    %85 = vadd.xlane.f32.xlu0 %v84
    %v86 = vpop.xlane.xlu0 %85
    %v87 = vrcp.pop 64.0
    %v88 = vmul.f32 %v86, %v87
    %v89 = vsub.f32 %v82, %v88
    %v90 = vmul.f32 %v89, %v89
    %v91 = vsel %vm83, %v90, 0.0
    %92 = vadd.xlane.f32.xlu0 %v91
    %v93 = vpop.xlane.xlu0 %92
    %v94 = vmul.f32 %v93, %v87
    %v95 = vadd.f32 %v94, 1e-05
    %v96 = vrsqrt.pop %v95
    %v97 = vmul.f32 %v89, %v96
    %v98 = vld [vmem:[#allocation5] sm:$0x1]
    %v100 = vlaneseq
    %v101 = vshrl.u32 %v100, 7
    %v102 = vsub.s32 0, %v101
    %v103 = vrot.slane %v98, %v102
    %v105 = vmul.f32 %v97, %v103
    %v106 = vld [vmem:[#allocation7] sm:$0x1]
    %v108 = vlaneseq
    %v109 = vshrl.u32 %v108, 7
    %v110 = vsub.s32 0, %v109
    %v111 = vrot.slane %v106, %v110
    %v113 = vadd.f32 %v105, %v111
    %v114 = vpack.c.bf16 %v113, %v113
    %v115 = vld [vmem:[#allocation8] sm:$0xff]
    %v116 = vld [vmem:[#allocation8 + $0x8] sm:$0xff]
    %v117 = vld [vmem:[#allocation8 + $0x10] sm:$0xff]
    %v118 = vld [vmem:[#allocation8 + $0x18] sm:$0xff]
    %v119 = vld [vmem:[#allocation8 + $0x20] sm:$0xff]
    %v120 = vld [vmem:[#allocation8 + $0x28] sm:$0xff]
    %v121 = vld [vmem:[#allocation8 + $0x30] sm:$0xff]
    %v122 = vld [vmem:[#allocation8 + $0x38] sm:$0xff]
    %v123 = vld [vmem:[#allocation10] sm:$0x3]
    %v125 = vlaneseq
    %v126 = vshrl.u32 %v125, 7
    %v127 = vsub.s32 0, %v126
    %v128 = vrot.slane %v123, %v127
    %v129 = vlaneseq
    %v130 = vshrl.u32 %v129, 7
    %v131 = vsub.s32 1, %v130
    %v132 = vrot.slane %v123, %v131
    %v143 = vunpack.c.l.b16 %v115
    %v144 = vunpack.c.h.b16 %v115
    %v145 = vunpack.c.l.b16 %v116
    %v146 = vunpack.c.h.b16 %v116
    %v147 = vunpack.c.l.b16 %v117
    %v148 = vunpack.c.h.b16 %v117
    %v149 = vunpack.c.l.b16 %v118
    %v150 = vunpack.c.h.b16 %v118
    %v151 = vunpack.c.l.b16 %v119
    %v152 = vunpack.c.h.b16 %v119
    %v153 = vunpack.c.l.b16 %v120
    %v154 = vunpack.c.h.b16 %v120
    %v155 = vunpack.c.l.b16 %v121
    %v156 = vunpack.c.h.b16 %v121
    %v157 = vunpack.c.l.b16 %v122
    %v158 = vunpack.c.h.b16 %v122
    %v159 = vpack.c.b16 %v145, %v143
    %v160 = vpack.c.b16 %v146, %v144
    %v161 = vpack.c.b16 %v149, %v147
    %v162 = vpack.c.b16 %v150, %v148
    %v163 = vpack.c.b16 %v153, %v151
    %v164 = vpack.c.b16 %v154, %v152
    %v165 = vpack.c.b16 %v157, %v155
    %v166 = vpack.c.b16 %v158, %v156
    %v176 = vsel %vm83, %v114, 0
    %178 = vmatprep.subr.bf16.mxu0 %v160
    %179 = vmatpush1.bf16.msra.mxu0 %v159
    %180 = vmatprep.subr.bf16.mxu0 %v162
    %181 = vmatpush1.bf16.msra.mxu0 %v161
    %182 = vmatprep.subr.bf16.mxu0 %v164
    %183 = vmatpush1.bf16.msra.mxu0 %v163
    %184 = vmatprep.subr.bf16.mxu0 %v166
    %185 = vmatpush1.bf16.msra.mxu0 %v165
    %186 = vmatprep.subr.bf16.mxu0 0
    %187 = vmatpush1.bf16.msra.mxu0 0
    %188 = vmatprep.subr.bf16.mxu0 0
    %189 = vmatpush1.bf16.msra.mxu0 0
    %190 = vmatprep.subr.bf16.mxu0 0
    %191 = vmatpush1.bf16.msra.mxu0 0
    %192 = vmatprep.subr.bf16.mxu0 0
    %193 = vmatpush1.bf16.msra.mxu0 0
    %194 = vmatprep.subr.bf16.mxu0 0
    %195 = vmatpush1.bf16.msra.mxu0 0
    %196 = vmatprep.subr.bf16.mxu0 0
    %197 = vmatpush1.bf16.msra.mxu0 0
    %198 = vmatprep.subr.bf16.mxu0 0
    %199 = vmatpush1.bf16.msra.mxu0 0
    %200 = vmatprep.subr.bf16.mxu0 0
    %201 = vmatpush1.bf16.msra.mxu0 0
    %202 = vmatprep.subr.bf16.mxu0 0
    %203 = vmatpush1.bf16.msra.mxu0 0
    %204 = vmatprep.subr.bf16.mxu0 0
    %205 = vmatpush1.bf16.msra.mxu0 0
    %206 = vmatprep.subr.bf16.mxu0 0
    %207 = vmatpush1.bf16.msra.mxu0 0
    %208 = vmatprep.subr.bf16.mxu0 0
    %209 = vmatpush1.bf16.msra.mxu0 0
    %210 = vmatprep.mubr.bf16.mxu0 0
    %211 = vmatmul.mubr.bf16.gmra.mrb[0].mxu0 %v176
    %v212 = vpop.f32.mrb[0].mxu0
    %v213 = vadd.f32 %v128, %v212
    %v214 = vpop.f32.mrb[0].mxu0
    %v215 = vadd.f32 %v132, %v214
    %v216 = vpop.f32.mrb[0].mxu0
    %v217 = vpop.f32.mrb[0].mxu0
    %218 = vdwg.mxu0
    %v219 = vpack.c.bf16 %v213, %v213
    %v220 = vpack.c.bf16 %v215, %v215
    %v223 = vunpack.c.l.b16 %v219
    %v224 = vunpack.c.l.b16 %v220
    %v225 = vpack.c.b16 %v224, %v223
    %vm227 = vcmask 1043456
    %vm228 = vcmask 523268
    %vm229 = vmor %vm228, %vm227
    %230 = vst.msk [vmem:[#allocation11] sm:$0xff] %vm229, %v225
    // Predicated region
    $region42: #{swin_backbone_forward.25} parent=1 // pred_check
      _
    $region43: #{swin_backbone_forward.25} parent=1 // pred_check_branch
      %232 = sbr.rel (0) target = $region45
    $region44: #{swin_backbone_forward.25} parent=1 // pred_region
      %s234 = ssub.s32 128, 128
      %235 = vsyncadd [#allocation4], %s234
      %s237 = sshll.u32 [#allocation11], 4
      %s238 = int_to_ptr.vmem [resolvable:$true] %s237
      %240 = dma.vmem_to_hbm [thread:$0]  %s238, 128, %s5, [#allocation4]
    $region45: #{swin_backbone_forward.25} parent=1 // pred_fallthru
      _
    // Predicated region
    $region46: #{swin_backbone_forward.25} parent=1 // pred_check
      _
    $region47: #{swin_backbone_forward.25} parent=1 // pred_check_branch
      %242 = sbr.rel (0) target = $region49
    $region48: #{swin_backbone_forward.25} parent=1 // pred_region
      %243 = dma.done [#allocation4], 128
    $region49: #{swin_backbone_forward.25} parent=1 // pred_fallthru
      _
    %244 = vsyncpa [#allocation3], 1
    %245 = vsyncpa [#allocation6], 1
    %246 = vsyncpa [#allocation9], 1
    %247 = vsyncpa [#allocation4], 1

// kernel: swin_backbone_forward.31
$region0: #{swin_backbone_forward.31}
  #allocation0 [shape = 'u32[]', space=smem, size = 0x4, offset = 0x4, fixed_abs, tag = 'smem constant byte address 0x4 - core index']
  #allocation1 [shape = 'u32[144,128]{1,0:T(1,128)}', space=vmem, size = 0x12000, scoped, tag = 'internal scratch']
  %s0 = inlined_call_operand.hbm [shape: f32[8,64], index: 0, kind: input, shape index: {}]
  %s1 = inlined_call_operand.hbm [shape: f32[1,64], index: 1, kind: input, shape index: {}]
  %s2 = inlined_call_operand.hbm [shape: f32[1,64], index: 2, kind: input, shape index: {}]
  %s3 = inlined_call_operand.hbm [shape: f32[8,64], index: 3, kind: output, shape index: {}]
  %s4 = sld [smem:[#allocation0]]
  $region34: #{swin_backbone_forward.31} parent=0
    _
  %s6 = ssub.s32 1, %s4
  %s7 = scalar_select 0, %s6, %s4
  $region1: #{swin_backbone_forward.31} parent=0
    #allocation2 [shape = 'u8[4096]{0}', space=vmem, size = 0x1000, scoped, tag = 'input window, operand 0, single buffered']
    #allocation3 [shape = 's32[1]{0}', space=sflag, size = 0x4, scoped, tag = 'scoped memory for swin_backbone_forward.31']
    #allocation4 [shape = 's32[1]{0}', space=sflag, size = 0x4, scoped, tag = 'scoped memory for swin_backbone_forward.31']
    #allocation5 [shape = 'u8[512]{0}', space=vmem, size = 0x400, scoped, tag = 'input window, operand 1, single buffered']
    #allocation6 [shape = 's32[1]{0}', space=sflag, size = 0x4, scoped, tag = 'scoped memory for swin_backbone_forward.31']
    #allocation7 [shape = 'u8[512]{0}', space=vmem, size = 0x400, scoped, tag = 'input window, operand 2, single buffered']
    #allocation8 [shape = 'u8[4096]{0}', space=vmem, size = 0x1000, scoped, tag = 'output window, operand 0, single buffered']
    %8 = vsyncpa [#allocation3], 0
    %9 = vsyncpa [#allocation6], 0
    %10 = vsyncpa [#allocation4], 0
    // Predicated region
    $region2: #{swin_backbone_forward.31} parent=1 // pred_check
      _
    $region3: #{swin_backbone_forward.31} parent=1 // pred_check_branch
      %12 = sbr.rel (0) target = $region5
    $region4: #{swin_backbone_forward.31} parent=1 // pred_region
      %s14 = ssub.s32 128, 128
      %15 = vsyncadd [#allocation3], %s14
      %s17 = sshll.u32 [#allocation2], 4
      %s18 = int_to_ptr.vmem [resolvable:$true] %s17
      %20 = dma.hbm_to_vmem [thread:$0]  %s0, 128, %s18, [#allocation3]
    $region5: #{swin_backbone_forward.31} parent=1 // pred_fallthru
      _
    // Predicated region
    $region6: #{swin_backbone_forward.31} parent=1 // pred_check
      _
    $region7: #{swin_backbone_forward.31} parent=1 // pred_check_branch
      %22 = sbr.rel (0) target = $region9
    $region8: #{swin_backbone_forward.31} parent=1 // pred_region
      %s24 = ssub.s32 16, 16
      %25 = vsyncadd [#allocation6], %s24
      %s27 = sshll.u32 [#allocation5], 4
      %s28 = int_to_ptr.vmem [resolvable:$true] %s27
      %30 = dma.hbm_to_vmem [thread:$0]  %s1, 16, %s28, [#allocation6]
    $region9: #{swin_backbone_forward.31} parent=1 // pred_fallthru
      _
    // Predicated region
    $region10: #{swin_backbone_forward.31} parent=1 // pred_check
      _
    $region11: #{swin_backbone_forward.31} parent=1 // pred_check_branch
      %32 = sbr.rel (0) target = $region13
    $region12: #{swin_backbone_forward.31} parent=1 // pred_region
      %s34 = ssub.s32 16, 16
      %35 = vsyncadd [#allocation6], %s34
      %s37 = sshll.u32 [#allocation7], 4
      %s38 = int_to_ptr.vmem [resolvable:$true] %s37
      %40 = dma.hbm_to_vmem [thread:$0]  %s2, 16, %s38, [#allocation6]
    $region13: #{swin_backbone_forward.31} parent=1 // pred_fallthru
      _
    // Predicated region
    $region14: #{swin_backbone_forward.31} parent=1 // pred_check
      _
    $region15: #{swin_backbone_forward.31} parent=1 // pred_check_branch
      %42 = sbr.rel (0) target = $region17
    $region16: #{swin_backbone_forward.31} parent=1 // pred_region
      %43 = dma.done [#allocation3], 128
    $region17: #{swin_backbone_forward.31} parent=1 // pred_fallthru
      _
    // Predicated region
    $region18: #{swin_backbone_forward.31} parent=1 // pred_check
      _
    $region19: #{swin_backbone_forward.31} parent=1 // pred_check_branch
      %45 = sbr.rel (0) target = $region21
    $region20: #{swin_backbone_forward.31} parent=1 // pred_region
      %46 = dma.done [#allocation6], 16
    $region21: #{swin_backbone_forward.31} parent=1 // pred_fallthru
      _
    // Predicated region
    $region22: #{swin_backbone_forward.31} parent=1 // pred_check
      _
    $region23: #{swin_backbone_forward.31} parent=1 // pred_check_branch
      %48 = sbr.rel (0) target = $region25
    $region24: #{swin_backbone_forward.31} parent=1 // pred_region
      %49 = dma.done [#allocation6], 16
    $region25: #{swin_backbone_forward.31} parent=1 // pred_fallthru
      _
    %v50 = vld [vmem:[#allocation2] sm:$0xff]
    %vm51 = vcmask 523264
    %v52 = vsel %vm51, %v50, 0.0
    %53 = vadd.xlane.f32.xlu0 %v52
    %v54 = vpop.xlane.xlu0 %53
    %v55 = vrcp.pop 64.0
    %v56 = vmul.f32 %v54, %v55
    %v57 = vsub.f32 %v50, %v56
    %v58 = vmul.f32 %v57, %v57
    %v59 = vsel %vm51, %v58, 0.0
    %60 = vadd.xlane.f32.xlu0 %v59
    %v61 = vpop.xlane.xlu0 %60
    %v62 = vmul.f32 %v61, %v55
    %v63 = vadd.f32 %v62, 1e-05
    %v64 = vrsqrt.pop %v63
    %v65 = vmul.f32 %v57, %v64
    %v66 = vld [vmem:[#allocation5] sm:$0x1]
    %v68 = vlaneseq
    %v69 = vshrl.u32 %v68, 7
    %v70 = vsub.s32 0, %v69
    %v71 = vrot.slane %v66, %v70
    %v73 = vmul.f32 %v65, %v71
    %v74 = vld [vmem:[#allocation7] sm:$0x1]
    %v76 = vlaneseq
    %v77 = vshrl.u32 %v76, 7
    %v78 = vsub.s32 0, %v77
    %v79 = vrot.slane %v74, %v78
    %v81 = vadd.f32 %v73, %v79
    %82 = vst.msk [vmem:[#allocation8] sm:$0xff] %vm51, %v81
    // Predicated region
    $region26: #{swin_backbone_forward.31} parent=1 // pred_check
      _
    $region27: #{swin_backbone_forward.31} parent=1 // pred_check_branch
      %84 = sbr.rel (0) target = $region29
    $region28: #{swin_backbone_forward.31} parent=1 // pred_region
      %s86 = ssub.s32 128, 128
      %87 = vsyncadd [#allocation4], %s86
      %s89 = sshll.u32 [#allocation8], 4
      %s90 = int_to_ptr.vmem [resolvable:$true] %s89
      %92 = dma.vmem_to_hbm [thread:$0]  %s90, 128, %s3, [#allocation4]
    $region29: #{swin_backbone_forward.31} parent=1 // pred_fallthru
      _
    // Predicated region
    $region30: #{swin_backbone_forward.31} parent=1 // pred_check
      _
    $region31: #{swin_backbone_forward.31} parent=1 // pred_check_branch
      %94 = sbr.rel (0) target = $region33
    $region32: #{swin_backbone_forward.31} parent=1 // pred_region
      %95 = dma.done [#allocation4], 128
    $region33: #{swin_backbone_forward.31} parent=1 // pred_fallthru
      _
    %96 = vsyncpa [#allocation3], 1
    %97 = vsyncpa [#allocation6], 1
    %98 = vsyncpa [#allocation4], 1

// kernel: swin_backbone_forward.26
$region0: #{swin_backbone_forward.26}
  #allocation0 [shape = 'u32[]', space=smem, size = 0x4, offset = 0x4, fixed_abs, tag = 'smem constant byte address 0x4 - core index']
  #allocation1 [shape = 'u32[144,128]{1,0:T(1,128)}', space=vmem, size = 0x12000, scoped, tag = 'internal scratch']
  %s0 = inlined_call_operand.hbm [shape: bf16[2,4,192], index: 0, kind: input, shape index: {}]
  %s1 = inlined_call_operand.hbm [shape: bf16[2,4,64], index: 1, kind: output, shape index: {}]
  %s2 = sld [smem:[#allocation0]]
  $region41: #{swin_backbone_forward.26} parent=0
    _
  %s4 = ssub.s32 1, %s2
  %s5 = scalar_select 0, %s4, %s2
  $region1: #{swin_backbone_forward.26} parent=0
    #allocation2 [shape = 'u8[4096]{0}', space=vmem, size = 0x1000, scoped, tag = 'input window, operand 0']
    #allocation3 [shape = 's32[2]{0}', space=sflag, size = 0x8, scoped, tag = 'scoped memory for swin_backbone_forward.26']
    #allocation4 [shape = 's32[2]{0}', space=sflag, size = 0x8, scoped, tag = 'scoped memory for swin_backbone_forward.26']
    #allocation5 [shape = 'u8[2048]{0}', space=vmem, size = 0x800, scoped, tag = 'output window, operand 0']
    %6 = vsyncpa [#allocation3], 0
    %s7 = scalar_lea.sflag [#allocation3], 1
    %8 = vsyncpa %s7, 0
    %9 = vsyncpa [#allocation4], 0
    %s10 = scalar_lea.sflag [#allocation4], 1
    %11 = vsyncpa %s10, 0
    loop: start=0, step=1, limit=4
    $region2: #{swin_backbone_forward.26} parent=1 // loop_pre_header
      _
    $region3: #{swin_backbone_forward.26} parent=1 // loop_header
      %s13 = sphi 0, %s17
      %p14 = scmp.ge.s32.totalorder %s13, 4
      %s23 = sphi 0, %s25
      %s26 = sphi 0, %s23
      %s27 = sphi 0, %s26
      %s43 = sphi 0, %s27
      %s49 = sphi 0, %s51
      %s52 = sphi 0, %s49
      %s53 = sphi 0, %s52
      %s69 = sphi 0, %s53
    $region4: #{swin_backbone_forward.26} parent=1 // loop_header_branch
      %16 = sbr.rel (%p14) target = $region8
    $region5: #{swin_backbone_forward.26} parent=1 // loop_body
      %s18 = ssub.s32 %s13, 1
      %s19 = ssub.s32 %s13, 2
      %s20 = sadd.s32 %s13, 1
      %s21 = ssub.s32 %s13, %s20
      %p22 = scmp.eq.s32.totalorder %s21, 0
      %s24 = sadd.s32 %s23, 1
      %s25 = scalar_select %p22, %s23, %s24
      %p28 = pneg %p22
      %p29 = scmp.eq.s32.totalorder %s13, 1
      %p30 = por %p28, %p29
      %p31 = scmp.ne.s32.totalorder %s23, %s26
      %p32 = scmp.eq.s32.totalorder %s13, 0
      %p33 = por %p31, %p32
      %p34 = scmp.ne.s32.totalorder %s23, %s26
      %p35 = scmp.eq.s32.totalorder %s18, 1
      %p36 = por %p34, %p35
      %p37 = scmp.ne.s32.totalorder %s26, %s27
      %p38 = scmp.eq.s32.totalorder %s18, 0
      %p39 = por %p37, %p38
      %p40 = scmp.ne.s32.totalorder %s26, %s27
      %p41 = scmp.eq.s32.totalorder %s19, 1
      %p42 = por %p40, %p41
      %p44 = scmp.ne.s32.totalorder %s27, %s43
      %p45 = scmp.eq.s32.totalorder %s19, 0
      %p46 = por %p44, %p45
      %s47 = ssub.s32 %s13, %s20
      %p48 = scmp.eq.s32.totalorder %s47, 0
      %s50 = sadd.s32 %s49, 1
      %s51 = scalar_select %p48, %s49, %s50
      %p54 = pneg %p48
      %p55 = scmp.eq.s32.totalorder %s13, 1
      %p56 = por %p54, %p55
      %p57 = scmp.ne.s32.totalorder %s49, %s52
      %p58 = scmp.eq.s32.totalorder %s13, 0
      %p59 = por %p57, %p58
      %p60 = scmp.ne.s32.totalorder %s49, %s52
      %p61 = scmp.eq.s32.totalorder %s18, 1
      %p62 = por %p60, %p61
      %p63 = scmp.ne.s32.totalorder %s52, %s53
      %p64 = scmp.eq.s32.totalorder %s18, 0
      %p65 = por %p63, %p64
      %p66 = scmp.ne.s32.totalorder %s52, %s53
      %p67 = scmp.eq.s32.totalorder %s19, 1
      %p68 = por %p66, %p67
      %p70 = scmp.ne.s32.totalorder %s53, %s69
      %p71 = scmp.eq.s32.totalorder %s19, 0
      %p72 = por %p70, %p71
      %p73 = scmp.le.s32.totalorder 1, %s13
      %p74 = scmp.lt.s32.totalorder %s13, 3
      %p75 = pnand %p73, %p74
      %p76 = pneg %p75
      // Predicated region
      $region9: #{swin_backbone_forward.26} parent=5 // pred_check
        _
      $region10: #{swin_backbone_forward.26} parent=5 // pred_check_branch
        %78 = sbr.rel (%p75) target = $region12
      $region11: #{swin_backbone_forward.26} parent=5 // pred_region
        %s79 = ssub.s32 %s13, 1
      $region12: #{swin_backbone_forward.26} parent=5 // pred_fallthru
        _
      %p80 = scmp.lt.s32.totalorder %s13, 2
      // Predicated region
      $region13: #{swin_backbone_forward.26} parent=5 // pred_check
        %p81 = pneg %p80
      $region14: #{swin_backbone_forward.26} parent=5 // pred_check_branch
        %83 = sbr.rel (%p81) target = $region16
      $region15: #{swin_backbone_forward.26} parent=5 // pred_region
        // Predicated region
        $region17: #{swin_backbone_forward.26} parent=15 // pred_check
          %p84 = pneg %p33
        $region18: #{swin_backbone_forward.26} parent=15 // pred_check_branch
          %86 = sbr.rel (%p84) target = $region20
        $region19: #{swin_backbone_forward.26} parent=15 // pred_region
          %s87 = sand.u32 %s23, 1
          %s88 = scalar_lea.sflag [#allocation3], %s87
          %s89 = sand.u32 %s23, 1
          %s90 = smul.addr %s89, 4
          %s91 = scalar_lea.vmem [#allocation2], %s90
          %s93 = ssub.s32 64, 64
          %94 = vsyncadd %s88, %s93
          %s95 = smul.addr %s13, 2
          %s96 = smul.addr %s95, 32
          %s97 = scalar_lea.hbm %s0, %s96
          %s99 = sshll.u32 %s91, 4
          %s100 = int_to_ptr.vmem [resolvable:$true] %s99
          %102 = dma.hbm_to_vmem [thread:$0]  %s97, 64, %s100, %s88
        $region20: #{swin_backbone_forward.26} parent=15 // pred_fallthru
          _
      $region16: #{swin_backbone_forward.26} parent=5 // pred_fallthru
        _
      %p103 = scmp.le.s32.totalorder 1, %s13
      %p104 = scmp.lt.s32.totalorder %s13, 3
      %p105 = pnand %p103, %p104
      %p106 = pneg %p105
      // Predicated region
      $region21: #{swin_backbone_forward.26} parent=5 // pred_check
        _
      $region22: #{swin_backbone_forward.26} parent=5 // pred_check_branch
        %108 = sbr.rel (%p105) target = $region24
      $region23: #{swin_backbone_forward.26} parent=5 // pred_region
        %s109 = ssub.s32 %s13, 1
        %s110 = sand.u32 %s26, 1
        %s111 = scalar_lea.sflag [#allocation3], %s110
        %s112 = sand.u32 %s26, 1
        %s113 = smul.addr %s112, 4
        %s114 = scalar_lea.vmem [#allocation2], %s113
        // Predicated region
        $region25: #{swin_backbone_forward.26} parent=23 // pred_check
          %p115 = pneg %p39
        $region26: #{swin_backbone_forward.26} parent=23 // pred_check_branch
          %117 = sbr.rel (%p115) target = $region28
        $region27: #{swin_backbone_forward.26} parent=23 // pred_region
          %118 = dma.done %s111, 64
        $region28: #{swin_backbone_forward.26} parent=23 // pred_fallthru
          _
        %s119 = sand.u32 %s26, 1
        %s120 = scalar_lea.sflag [#allocation3], %s119
        %s121 = sand.u32 %s26, 1
        %s122 = smul.addr %s121, 4
        %s123 = scalar_lea.vmem [#allocation2], %s122
        %p124 = pneg %p39
        %p125 = pneg %p36
        %p126 = pneg %p65
        %p127 = pneg %p62
        %s128 = sand.u32 %s52, 1
        %s129 = scalar_lea.sflag [#allocation4], %s128
        %s130 = sand.u32 %s52, 1
        %s131 = smul.addr %s130, 2
        %s132 = scalar_lea.vmem [#allocation5], %s131
        %v134 = vld [vmem:[%s114] sm:$0xf]
        %v135 = vunpack.c.l.bf16 %v134
        %v136 = vmul.f32 %v135, %v135
        %vm137 = vcmask 125952
        %v138 = vsel %vm137, %v136, 0.0
        %139 = vadd.xlane.f32.xlu0 %v138
        %v140 = vpop.xlane.xlu0 %139
        %v141 = vmax.f32 %v140, 1e-24
        %v142 = vrsqrt.pop %v141
        %v143 = vmul.f32 %v135, %v142
        %145 = vrot.lane.b32.xlu0 %v136, 64
        %v146 = vpop.permute.xlu0 %145
        %v148 = vsel %vm137, %v146, 0.0
        %149 = vadd.xlane.f32.xlu0 %v148
        %v150 = vpop.xlane.xlu0 %149
        %v151 = vmax.f32 %v150, 1e-24
        %v152 = vrsqrt.pop %v151
        %v153 = vmul.f32 %v135, %v152
        %v154 = vpack.c.bf16 %v143, %v143
        %v155 = vpack.c.bf16 %v153, %v153
        %157 = vrot.lane.b32.xlu0 %v155, 64
        %v158 = vpop.permute.xlu0 %157
        %vm159 = vcmask 130048
        %v161 = vsel %vm159, %v154, 0
        %v164 = vsel %vm159, %v158, 0
        %166 = vmatprep.subr.bf16.mxu0 0
        %167 = vmatpush1.bf16.xpose.msra.mxu0 %v164
        %168 = vmatprep.subr.bf16.mxu0 0
        %169 = vmatpush1.bf16.xpose.msra.mxu0 0
        %170 = vmatprep.subr.bf16.mxu0 0
        %171 = vmatpush1.bf16.xpose.msra.mxu0 0
        %172 = vmatprep.subr.bf16.mxu0 0
        %173 = vmatpush1.bf16.xpose.msra.mxu0 0
        %174 = vmatprep.subr.bf16.mxu0 0
        %175 = vmatpush1.bf16.xpose.msra.mxu0 0
        %176 = vmatprep.subr.bf16.mxu0 0
        %177 = vmatpush1.bf16.xpose.msra.mxu0 0
        %178 = vmatprep.subr.bf16.mxu0 0
        %179 = vmatpush1.bf16.xpose.msra.mxu0 0
        %180 = vmatprep.subr.bf16.mxu0 0
        %181 = vmatpush1.bf16.xpose.msra.mxu0 0
        %182 = vmatprep.subr.bf16.mxu0 0
        %183 = vmatpush1.bf16.xpose.msra.mxu0 0
        %184 = vmatprep.subr.bf16.mxu0 0
        %185 = vmatpush1.bf16.xpose.msra.mxu0 0
        %186 = vmatprep.subr.bf16.mxu0 0
        %187 = vmatpush1.bf16.xpose.msra.mxu0 0
        %188 = vmatprep.subr.bf16.mxu0 0
        %189 = vmatpush1.bf16.xpose.msra.mxu0 0
        %190 = vmatprep.subr.bf16.mxu0 0
        %191 = vmatpush1.bf16.xpose.msra.mxu0 0
        %192 = vmatprep.subr.bf16.mxu0 0
        %193 = vmatpush1.bf16.xpose.msra.mxu0 0
        %194 = vmatprep.subr.bf16.mxu0 0
        %195 = vmatpush1.bf16.xpose.msra.mxu0 0
        %196 = vmatprep.subr.bf16.mxu0 0
        %197 = vmatpush1.bf16.xpose.msra.mxu0 0
        %198 = vmatprep.mubr.bf16.mxu0 0
        %199 = vmatmul.mubr.bf16.gmra.mrb[0].mxu0 %v161
        %v200 = vpop.f32.mrb[0].mxu0
        %v201 = vadd.f32 0.0, %v200
        %v202 = vpop.f32.mrb[0].mxu0
        %v203 = vpop.f32.mrb[0].mxu0
        %v204 = vpop.f32.mrb[0].mxu0
        %205 = vdwg.mxu0
        %v206 = vmul.f32 %v201, 0.25
        %vm207 = vcmask 27648
        %v208 = vsel %vm207, %v206, -inf
        %209 = vmax.xlane.f32.xlu0 %v208
        %v210 = vpop.xlane.xlu0 %209
        %v211 = vsub.f32 %v206, %v210
        %v212 = vmul.f32 %v211, 1.442695
        %v213 = vpow.pop %v212
        %v214 = vsel %vm207, %v213, 0.0
        %215 = vadd.xlane.f32.xlu0 %v214
        %v216 = vpop.xlane.xlu0 %215
        %v217 = vrcp.pop %v216
        %v218 = vmul.f32 %v213, %v217
        %v219 = vmax.f32 %v218, 1e-06
        %v220 = vmin.f32 %v219, 1.0
        %v221 = vpack.c.bf16 %v220, %v220
        %v223 = vrot.slane %v134, 2
        %vm224 = vcmask 31744
        %v226 = vsel %vm224, %v221, 0
        %vm228 = vcmask 1041408
        %v230 = vsel %vm228, %v223, 0
        %232 = vmatprep.subr.bf16.mxu0 0
        %233 = vmatpush1.bf16.msra.mxu0 %v230
        %234 = vmatprep.subr.bf16.mxu0 0
        %235 = vmatpush1.bf16.msra.mxu0 0
        %236 = vmatprep.subr.bf16.mxu0 0
        %237 = vmatpush1.bf16.msra.mxu0 0
        %238 = vmatprep.subr.bf16.mxu0 0
        %239 = vmatpush1.bf16.msra.mxu0 0
        %240 = vmatprep.subr.bf16.mxu0 0
        %241 = vmatpush1.bf16.msra.mxu0 0
        %242 = vmatprep.subr.bf16.mxu0 0
        %243 = vmatpush1.bf16.msra.mxu0 0
        %244 = vmatprep.subr.bf16.mxu0 0
        %245 = vmatpush1.bf16.msra.mxu0 0
        %246 = vmatprep.subr.bf16.mxu0 0
        %247 = vmatpush1.bf16.msra.mxu0 0
        %248 = vmatprep.subr.bf16.mxu0 0
        %249 = vmatpush1.bf16.msra.mxu0 0
        %250 = vmatprep.subr.bf16.mxu0 0
        %251 = vmatpush1.bf16.msra.mxu0 0
        %252 = vmatprep.subr.bf16.mxu0 0
        %253 = vmatpush1.bf16.msra.mxu0 0
        %254 = vmatprep.subr.bf16.mxu0 0
        %255 = vmatpush1.bf16.msra.mxu0 0
        %256 = vmatprep.subr.bf16.mxu0 0
        %257 = vmatpush1.bf16.msra.mxu0 0
        %258 = vmatprep.subr.bf16.mxu0 0
        %259 = vmatpush1.bf16.msra.mxu0 0
        %260 = vmatprep.subr.bf16.mxu0 0
        %261 = vmatpush1.bf16.msra.mxu0 0
        %262 = vmatprep.subr.bf16.mxu0 0
        %263 = vmatpush1.bf16.msra.mxu0 0
        %264 = vmatprep.mubr.bf16.mxu0 0
        %265 = vmatmul.mubr.bf16.gmra.mrb[0].mxu0 %v226
        %v266 = vpop.f32.mrb[0].mxu0
        %v267 = vadd.f32 0.0, %v266
        %v268 = vpop.f32.mrb[0].mxu0
        %v269 = vpop.f32.mrb[0].mxu0
        %v270 = vpop.f32.mrb[0].mxu0
        %271 = vdwg.mxu0
        %272 = vrot.lane.b32.xlu0 %v136, 112
        %v273 = vpop.permute.xlu0 %272
        %v275 = vsel %vm137, %v273, 0.0
        %276 = vadd.xlane.f32.xlu0 %v275
        %v277 = vpop.xlane.xlu0 %276
        %v278 = vmax.f32 %v277, 1e-24
        %v279 = vrsqrt.pop %v278
        %v280 = vmul.f32 %v135, %v279
        %281 = vrot.lane.b32.xlu0 %v136, 48
        %v282 = vpop.permute.xlu0 %281
        %v284 = vsel %vm137, %v282, 0.0
        %285 = vadd.xlane.f32.xlu0 %v284
        %v286 = vpop.xlane.xlu0 %285
        %v287 = vmax.f32 %v286, 1e-24
        %v288 = vrsqrt.pop %v287
        %v289 = vmul.f32 %v135, %v288
        %v290 = vpack.c.bf16 %v280, %v280
        %v291 = vpack.c.bf16 %v289, %v289
        %293 = vrot.lane.b32.xlu0 %v290, 112
        %v294 = vpop.permute.xlu0 %293
        %296 = vrot.lane.b32.xlu0 %v291, 48
        %v297 = vpop.permute.xlu0 %296
        %v299 = vsel %vm159, %v294, 0
        %v302 = vsel %vm159, %v297, 0
        %304 = vmatprep.subr.bf16.mxu0 0
        %305 = vmatpush1.bf16.xpose.msra.mxu0 %v302
        %306 = vmatprep.subr.bf16.mxu0 0
        %307 = vmatpush1.bf16.xpose.msra.mxu0 0
        %308 = vmatprep.subr.bf16.mxu0 0
        %309 = vmatpush1.bf16.xpose.msra.mxu0 0
        %310 = vmatprep.subr.bf16.mxu0 0
        %311 = vmatpush1.bf16.xpose.msra.mxu0 0
        %312 = vmatprep.subr.bf16.mxu0 0
        %313 = vmatpush1.bf16.xpose.msra.mxu0 0
        %314 = vmatprep.subr.bf16.mxu0 0
        %315 = vmatpush1.bf16.xpose.msra.mxu0 0
        %316 = vmatprep.subr.bf16.mxu0 0
        %317 = vmatpush1.bf16.xpose.msra.mxu0 0
        %318 = vmatprep.subr.bf16.mxu0 0
        %319 = vmatpush1.bf16.xpose.msra.mxu0 0
        %320 = vmatprep.subr.bf16.mxu0 0
        %321 = vmatpush1.bf16.xpose.msra.mxu0 0
        %322 = vmatprep.subr.bf16.mxu0 0
        %323 = vmatpush1.bf16.xpose.msra.mxu0 0
        %324 = vmatprep.subr.bf16.mxu0 0
        %325 = vmatpush1.bf16.xpose.msra.mxu0 0
        %326 = vmatprep.subr.bf16.mxu0 0
        %327 = vmatpush1.bf16.xpose.msra.mxu0 0
        %328 = vmatprep.subr.bf16.mxu0 0
        %329 = vmatpush1.bf16.xpose.msra.mxu0 0
        %330 = vmatprep.subr.bf16.mxu0 0
        %331 = vmatpush1.bf16.xpose.msra.mxu0 0
        %332 = vmatprep.subr.bf16.mxu0 0
        %333 = vmatpush1.bf16.xpose.msra.mxu0 0
        %334 = vmatprep.subr.bf16.mxu0 0
        %335 = vmatpush1.bf16.xpose.msra.mxu0 0
        %336 = vmatprep.mubr.bf16.mxu0 0
        %337 = vmatmul.mubr.bf16.gmra.mrb[0].mxu0 %v299
        %v338 = vpop.f32.mrb[0].mxu0
        %v339 = vadd.f32 0.0, %v338
        %v340 = vpop.f32.mrb[0].mxu0
        %v341 = vpop.f32.mrb[0].mxu0
        %v342 = vpop.f32.mrb[0].mxu0
        %343 = vdwg.mxu0
        %v344 = vmul.f32 %v339, 0.25
        %v345 = vsel %vm207, %v344, -inf
        %346 = vmax.xlane.f32.xlu0 %v345
        %v347 = vpop.xlane.xlu0 %346
        %v348 = vsub.f32 %v344, %v347
        %v349 = vmul.f32 %v348, 1.442695
        %v350 = vpow.pop %v349
        %v351 = vsel %vm207, %v350, 0.0
        %352 = vadd.xlane.f32.xlu0 %v351
        %v353 = vpop.xlane.xlu0 %352
        %v354 = vrcp.pop %v353
        %v355 = vmul.f32 %v350, %v354
        %v356 = vmax.f32 %v355, 1e-06
        %v357 = vmin.f32 %v356, 1.0
        %v358 = vpack.c.bf16 %v357, %v357
        %359 = vrot.lane.b32.xlu0 %v134, 112
        %v360 = vpop.permute.xlu0 %359
        %v361 = vrot.slane %v360, 2
        %v363 = vsel %vm224, %v358, 0
        %v366 = vsel %vm228, %v361, 0
        %368 = vmatprep.subr.bf16.mxu0 0
        %369 = vmatpush1.bf16.msra.mxu0 %v366
        %370 = vmatprep.subr.bf16.mxu0 0
        %371 = vmatpush1.bf16.msra.mxu0 0
        %372 = vmatprep.subr.bf16.mxu0 0
        %373 = vmatpush1.bf16.msra.mxu0 0
        %374 = vmatprep.subr.bf16.mxu0 0
        %375 = vmatpush1.bf16.msra.mxu0 0
        %376 = vmatprep.subr.bf16.mxu0 0
        %377 = vmatpush1.bf16.msra.mxu0 0
        %378 = vmatprep.subr.bf16.mxu0 0
        %379 = vmatpush1.bf16.msra.mxu0 0
        %380 = vmatprep.subr.bf16.mxu0 0
        %381 = vmatpush1.bf16.msra.mxu0 0
        %382 = vmatprep.subr.bf16.mxu0 0
        %383 = vmatpush1.bf16.msra.mxu0 0
        %384 = vmatprep.subr.bf16.mxu0 0
        %385 = vmatpush1.bf16.msra.mxu0 0
        %386 = vmatprep.subr.bf16.mxu0 0
        %387 = vmatpush1.bf16.msra.mxu0 0
        %388 = vmatprep.subr.bf16.mxu0 0
        %389 = vmatpush1.bf16.msra.mxu0 0
        %390 = vmatprep.subr.bf16.mxu0 0
        %391 = vmatpush1.bf16.msra.mxu0 0
        %392 = vmatprep.subr.bf16.mxu0 0
        %393 = vmatpush1.bf16.msra.mxu0 0
        %394 = vmatprep.subr.bf16.mxu0 0
        %395 = vmatpush1.bf16.msra.mxu0 0
        %396 = vmatprep.subr.bf16.mxu0 0
        %397 = vmatpush1.bf16.msra.mxu0 0
        %398 = vmatprep.subr.bf16.mxu0 0
        %399 = vmatpush1.bf16.msra.mxu0 0
        %400 = vmatprep.mubr.bf16.mxu0 0
        %401 = vmatmul.mubr.bf16.gmra.mrb[0].mxu0 %v363
        %v402 = vpop.f32.mrb[0].mxu0
        %v403 = vadd.f32 0.0, %v402
        %v404 = vpop.f32.mrb[0].mxu0
        %v405 = vpop.f32.mrb[0].mxu0
        %v406 = vpop.f32.mrb[0].mxu0
        %407 = vdwg.mxu0
        %408 = vrot.lane.b32.xlu0 %v136, 96
        %v409 = vpop.permute.xlu0 %408
        %v411 = vsel %vm137, %v409, 0.0
        %412 = vadd.xlane.f32.xlu0 %v411
        %v413 = vpop.xlane.xlu0 %412
        %v414 = vmax.f32 %v413, 1e-24
        %v415 = vrsqrt.pop %v414
        %v416 = vmul.f32 %v135, %v415
        %417 = vrot.lane.b32.xlu0 %v136, 32
        %v418 = vpop.permute.xlu0 %417
        %v420 = vsel %vm137, %v418, 0.0
        %421 = vadd.xlane.f32.xlu0 %v420
        %v422 = vpop.xlane.xlu0 %421
        %v423 = vmax.f32 %v422, 1e-24
        %v424 = vrsqrt.pop %v423
        %v425 = vmul.f32 %v135, %v424
        %v426 = vpack.c.bf16 %v416, %v416
        %v427 = vpack.c.bf16 %v425, %v425
        %429 = vrot.lane.b32.xlu0 %v426, 96
        %v430 = vpop.permute.xlu0 %429
        %432 = vrot.lane.b32.xlu0 %v427, 32
        %v433 = vpop.permute.xlu0 %432
        %v435 = vsel %vm159, %v430, 0
        %v438 = vsel %vm159, %v433, 0
        %440 = vmatprep.subr.bf16.mxu0 0
        %441 = vmatpush1.bf16.xpose.msra.mxu0 %v438
        %442 = vmatprep.subr.bf16.mxu0 0
        %443 = vmatpush1.bf16.xpose.msra.mxu0 0
        %444 = vmatprep.subr.bf16.mxu0 0
        %445 = vmatpush1.bf16.xpose.msra.mxu0 0
        %446 = vmatprep.subr.bf16.mxu0 0
        %447 = vmatpush1.bf16.xpose.msra.mxu0 0
        %448 = vmatprep.subr.bf16.mxu0 0
        %449 = vmatpush1.bf16.xpose.msra.mxu0 0
        %450 = vmatprep.subr.bf16.mxu0 0
        %451 = vmatpush1.bf16.xpose.msra.mxu0 0
        %452 = vmatprep.subr.bf16.mxu0 0
        %453 = vmatpush1.bf16.xpose.msra.mxu0 0
        %454 = vmatprep.subr.bf16.mxu0 0
        %455 = vmatpush1.bf16.xpose.msra.mxu0 0
        %456 = vmatprep.subr.bf16.mxu0 0
        %457 = vmatpush1.bf16.xpose.msra.mxu0 0
        %458 = vmatprep.subr.bf16.mxu0 0
        %459 = vmatpush1.bf16.xpose.msra.mxu0 0
        %460 = vmatprep.subr.bf16.mxu0 0
        %461 = vmatpush1.bf16.xpose.msra.mxu0 0
        %462 = vmatprep.subr.bf16.mxu0 0
        %463 = vmatpush1.bf16.xpose.msra.mxu0 0
        %464 = vmatprep.subr.bf16.mxu0 0
        %465 = vmatpush1.bf16.xpose.msra.mxu0 0
        %466 = vmatprep.subr.bf16.mxu0 0
        %467 = vmatpush1.bf16.xpose.msra.mxu0 0
        %468 = vmatprep.subr.bf16.mxu0 0
        %469 = vmatpush1.bf16.xpose.msra.mxu0 0
        %470 = vmatprep.subr.bf16.mxu0 0
        %471 = vmatpush1.bf16.xpose.msra.mxu0 0
        %472 = vmatprep.mubr.bf16.mxu0 0
        %473 = vmatmul.mubr.bf16.gmra.mrb[0].mxu0 %v435
        %v474 = vpop.f32.mrb[0].mxu0
        %v475 = vadd.f32 0.0, %v474
        %v476 = vpop.f32.mrb[0].mxu0
        %v477 = vpop.f32.mrb[0].mxu0
        %v478 = vpop.f32.mrb[0].mxu0
        %479 = vdwg.mxu0
        %v480 = vmul.f32 %v475, 0.25
        %v481 = vsel %vm207, %v480, -inf
        %482 = vmax.xlane.f32.xlu0 %v481
        %v483 = vpop.xlane.xlu0 %482
        %v484 = vsub.f32 %v480, %v483
        %v485 = vmul.f32 %v484, 1.442695
        %v486 = vpow.pop %v485
        %v487 = vsel %vm207, %v486, 0.0
        %488 = vadd.xlane.f32.xlu0 %v487
        %v489 = vpop.xlane.xlu0 %488
        %v490 = vrcp.pop %v489
        %v491 = vmul.f32 %v486, %v490
        %v492 = vmax.f32 %v491, 1e-06
        %v493 = vmin.f32 %v492, 1.0
        %v494 = vpack.c.bf16 %v493, %v493
        %495 = vrot.lane.b32.xlu0 %v134, 96
        %v496 = vpop.permute.xlu0 %495
        %v497 = vrot.slane %v496, 2
        %v499 = vsel %vm224, %v494, 0
        %v502 = vsel %vm228, %v497, 0
        %504 = vmatprep.subr.bf16.mxu0 0
        %505 = vmatpush1.bf16.msra.mxu0 %v502
        %506 = vmatprep.subr.bf16.mxu0 0
        %507 = vmatpush1.bf16.msra.mxu0 0
        %508 = vmatprep.subr.bf16.mxu0 0
        %509 = vmatpush1.bf16.msra.mxu0 0
        %510 = vmatprep.subr.bf16.mxu0 0
        %511 = vmatpush1.bf16.msra.mxu0 0
        %512 = vmatprep.subr.bf16.mxu0 0
        %513 = vmatpush1.bf16.msra.mxu0 0
        %514 = vmatprep.subr.bf16.mxu0 0
        %515 = vmatpush1.bf16.msra.mxu0 0
        %516 = vmatprep.subr.bf16.mxu0 0
        %517 = vmatpush1.bf16.msra.mxu0 0
        %518 = vmatprep.subr.bf16.mxu0 0
        %519 = vmatpush1.bf16.msra.mxu0 0
        %520 = vmatprep.subr.bf16.mxu0 0
        %521 = vmatpush1.bf16.msra.mxu0 0
        %522 = vmatprep.subr.bf16.mxu0 0
        %523 = vmatpush1.bf16.msra.mxu0 0
        %524 = vmatprep.subr.bf16.mxu0 0
        %525 = vmatpush1.bf16.msra.mxu0 0
        %526 = vmatprep.subr.bf16.mxu0 0
        %527 = vmatpush1.bf16.msra.mxu0 0
        %528 = vmatprep.subr.bf16.mxu0 0
        %529 = vmatpush1.bf16.msra.mxu0 0
        %530 = vmatprep.subr.bf16.mxu0 0
        %531 = vmatpush1.bf16.msra.mxu0 0
        %532 = vmatprep.subr.bf16.mxu0 0
        %533 = vmatpush1.bf16.msra.mxu0 0
        %534 = vmatprep.subr.bf16.mxu0 0
        %535 = vmatpush1.bf16.msra.mxu0 0
        %536 = vmatprep.mubr.bf16.mxu0 0
        %537 = vmatmul.mubr.bf16.gmra.mrb[0].mxu0 %v499
        %v538 = vpop.f32.mrb[0].mxu0
        %v539 = vadd.f32 0.0, %v538
        %v540 = vpop.f32.mrb[0].mxu0
        %v541 = vpop.f32.mrb[0].mxu0
        %v542 = vpop.f32.mrb[0].mxu0
        %543 = vdwg.mxu0
        %544 = vrot.lane.b32.xlu0 %v136, 80
        %v545 = vpop.permute.xlu0 %544
        %v547 = vsel %vm137, %v545, 0.0
        %548 = vadd.xlane.f32.xlu0 %v547
        %v549 = vpop.xlane.xlu0 %548
        %v550 = vmax.f32 %v549, 1e-24
        %v551 = vrsqrt.pop %v550
        %v552 = vmul.f32 %v135, %v551
        %553 = vrot.lane.b32.xlu0 %v136, 16
        %v554 = vpop.permute.xlu0 %553
        %v556 = vsel %vm137, %v554, 0.0
        %557 = vadd.xlane.f32.xlu0 %v556
        %v558 = vpop.xlane.xlu0 %557
        %v559 = vmax.f32 %v558, 1e-24
        %v560 = vrsqrt.pop %v559
        %v561 = vmul.f32 %v135, %v560
        %v562 = vpack.c.bf16 %v552, %v552
        %v563 = vpack.c.bf16 %v561, %v561
        %565 = vrot.lane.b32.xlu0 %v562, 80
        %v566 = vpop.permute.xlu0 %565
        %568 = vrot.lane.b32.xlu0 %v563, 16
        %v569 = vpop.permute.xlu0 %568
        %v571 = vsel %vm159, %v566, 0
        %v574 = vsel %vm159, %v569, 0
        %576 = vmatprep.subr.bf16.mxu0 0
        %577 = vmatpush1.bf16.xpose.msra.mxu0 %v574
        %578 = vmatprep.subr.bf16.mxu0 0
        %579 = vmatpush1.bf16.xpose.msra.mxu0 0
        %580 = vmatprep.subr.bf16.mxu0 0
        %581 = vmatpush1.bf16.xpose.msra.mxu0 0
        %582 = vmatprep.subr.bf16.mxu0 0
        %583 = vmatpush1.bf16.xpose.msra.mxu0 0
        %584 = vmatprep.subr.bf16.mxu0 0
        %585 = vmatpush1.bf16.xpose.msra.mxu0 0
        %586 = vmatprep.subr.bf16.mxu0 0
        %587 = vmatpush1.bf16.xpose.msra.mxu0 0
        %588 = vmatprep.subr.bf16.mxu0 0
        %589 = vmatpush1.bf16.xpose.msra.mxu0 0
        %590 = vmatprep.subr.bf16.mxu0 0
        %591 = vmatpush1.bf16.xpose.msra.mxu0 0
        %592 = vmatprep.subr.bf16.mxu0 0
        %593 = vmatpush1.bf16.xpose.msra.mxu0 0
        %594 = vmatprep.subr.bf16.mxu0 0
        %595 = vmatpush1.bf16.xpose.msra.mxu0 0
        %596 = vmatprep.subr.bf16.mxu0 0
        %597 = vmatpush1.bf16.xpose.msra.mxu0 0
        %598 = vmatprep.subr.bf16.mxu0 0
        %599 = vmatpush1.bf16.xpose.msra.mxu0 0
        %600 = vmatprep.subr.bf16.mxu0 0
        %601 = vmatpush1.bf16.xpose.msra.mxu0 0
        %602 = vmatprep.subr.bf16.mxu0 0
        %603 = vmatpush1.bf16.xpose.msra.mxu0 0
        %604 = vmatprep.subr.bf16.mxu0 0
        %605 = vmatpush1.bf16.xpose.msra.mxu0 0
        %606 = vmatprep.subr.bf16.mxu0 0
        %607 = vmatpush1.bf16.xpose.msra.mxu0 0
        %608 = vmatprep.mubr.bf16.mxu0 0
        %609 = vmatmul.mubr.bf16.gmra.mrb[0].mxu0 %v571
        %v610 = vpop.f32.mrb[0].mxu0
        %v611 = vadd.f32 0.0, %v610
        %v612 = vpop.f32.mrb[0].mxu0
        %v613 = vpop.f32.mrb[0].mxu0
        %v614 = vpop.f32.mrb[0].mxu0
        %615 = vdwg.mxu0
        %v616 = vmul.f32 %v611, 0.25
        %v617 = vsel %vm207, %v616, -inf
        %618 = vmax.xlane.f32.xlu0 %v617
        %v619 = vpop.xlane.xlu0 %618
        %v620 = vsub.f32 %v616, %v619
        %v621 = vmul.f32 %v620, 1.442695
        %v622 = vpow.pop %v621
        %v623 = vsel %vm207, %v622, 0.0
        %624 = vadd.xlane.f32.xlu0 %v623
        %v625 = vpop.xlane.xlu0 %624
        %v626 = vrcp.pop %v625
        %v627 = vmul.f32 %v622, %v626
        %v628 = vmax.f32 %v627, 1e-06
        %v629 = vmin.f32 %v628, 1.0
        %v630 = vpack.c.bf16 %v629, %v629
        %631 = vrot.lane.b32.xlu0 %v134, 80
        %v632 = vpop.permute.xlu0 %631
        %v633 = vrot.slane %v632, 2
        %v635 = vsel %vm224, %v630, 0
        %v638 = vsel %vm228, %v633, 0
        %640 = vmatprep.subr.bf16.mxu0 0
        %641 = vmatpush1.bf16.msra.mxu0 %v638
        %642 = vmatprep.subr.bf16.mxu0 0
        %643 = vmatpush1.bf16.msra.mxu0 0
        %644 = vmatprep.subr.bf16.mxu0 0
        %645 = vmatpush1.bf16.msra.mxu0 0
        %646 = vmatprep.subr.bf16.mxu0 0
        %647 = vmatpush1.bf16.msra.mxu0 0
        %648 = vmatprep.subr.bf16.mxu0 0
        %649 = vmatpush1.bf16.msra.mxu0 0
        %650 = vmatprep.subr.bf16.mxu0 0
        %651 = vmatpush1.bf16.msra.mxu0 0
        %652 = vmatprep.subr.bf16.mxu0 0
        %653 = vmatpush1.bf16.msra.mxu0 0
        %654 = vmatprep.subr.bf16.mxu0 0
        %655 = vmatpush1.bf16.msra.mxu0 0
        %656 = vmatprep.subr.bf16.mxu0 0
        %657 = vmatpush1.bf16.msra.mxu0 0
        %658 = vmatprep.subr.bf16.mxu0 0
        %659 = vmatpush1.bf16.msra.mxu0 0
        %660 = vmatprep.subr.bf16.mxu0 0
        %661 = vmatpush1.bf16.msra.mxu0 0
        %662 = vmatprep.subr.bf16.mxu0 0
        %663 = vmatpush1.bf16.msra.mxu0 0
        %664 = vmatprep.subr.bf16.mxu0 0
        %665 = vmatpush1.bf16.msra.mxu0 0
        %666 = vmatprep.subr.bf16.mxu0 0
        %667 = vmatpush1.bf16.msra.mxu0 0
        %668 = vmatprep.subr.bf16.mxu0 0
        %669 = vmatpush1.bf16.msra.mxu0 0
        %670 = vmatprep.subr.bf16.mxu0 0
        %671 = vmatpush1.bf16.msra.mxu0 0
        %672 = vmatprep.mubr.bf16.mxu0 0
        %673 = vmatmul.mubr.bf16.gmra.mrb[0].mxu0 %v635
        %v674 = vpop.f32.mrb[0].mxu0
        %v675 = vadd.f32 0.0, %v674
        %v676 = vpop.f32.mrb[0].mxu0
        %v677 = vpop.f32.mrb[0].mxu0
        %v678 = vpop.f32.mrb[0].mxu0
        %679 = vdwg.mxu0
        %681 = vrot.lane.b32.xlu0 %v403, 16
        %v682 = vpop.permute.xlu0 %681
        %685 = vrot.lane.b32.xlu0 %v539, 32
        %v686 = vpop.permute.xlu0 %685
        %689 = vrot.lane.b32.xlu0 %v675, 48
        %v690 = vpop.permute.xlu0 %689
        %v692 = vsel %vm159, %v267, %v682
        %vm693 = vcmask 261120
        %v694 = vsel %vm693, %v692, %v686
        %vm695 = vcmask 392192
        %v696 = vsel %vm695, %v694, %v690
        %v697 = vpack.c.bf16 %v696, %v696
        %vm698 = vcmask 517120
        %699 = vst.msk [vmem:[%s132] sm:$0x3] %vm698, %v697
        %s700 = sand.u32 %s52, 1
        %s701 = scalar_lea.sflag [#allocation4], %s700
        %s702 = sand.u32 %s52, 1
        %s703 = smul.addr %s702, 2
        %s704 = scalar_lea.vmem [#allocation5], %s703
        // Predicated region
        $region29: #{swin_backbone_forward.26} parent=23 // pred_check
          %p705 = pneg %p62
        $region30: #{swin_backbone_forward.26} parent=23 // pred_check_branch
          %707 = sbr.rel (%p705) target = $region32
        $region31: #{swin_backbone_forward.26} parent=23 // pred_region
          %s709 = ssub.s32 32, 32
          %710 = vsyncadd %s701, %s709
          %s711 = smul.addr %s18, 32
          %s712 = scalar_lea.hbm %s1, %s711
          %s714 = sshll.u32 %s704, 4
          %s715 = int_to_ptr.vmem [resolvable:$true] %s714
          %717 = dma.vmem_to_hbm [thread:$0]  %s715, 32, %s712, %s701
        $region32: #{swin_backbone_forward.26} parent=23 // pred_fallthru
          _
      $region24: #{swin_backbone_forward.26} parent=5 // pred_fallthru
        _
      %p718 = scmp.le.s32.totalorder 2, %s13
      // Predicated region
      $region33: #{swin_backbone_forward.26} parent=5 // pred_check
        %p719 = pneg %p718
      $region34: #{swin_backbone_forward.26} parent=5 // pred_check_branch
        %721 = sbr.rel (%p719) target = $region36
      $region35: #{swin_backbone_forward.26} parent=5 // pred_region
        %s722 = ssub.s32 %s13, 2
        // Predicated region
        $region37: #{swin_backbone_forward.26} parent=35 // pred_check
          %p723 = pneg %p68
        $region38: #{swin_backbone_forward.26} parent=35 // pred_check_branch
          %725 = sbr.rel (%p723) target = $region40
        $region39: #{swin_backbone_forward.26} parent=35 // pred_region
          %s726 = sand.u32 %s53, 1
          %s727 = scalar_lea.sflag [#allocation4], %s726
          %s728 = sand.u32 %s53, 1
          %s729 = smul.addr %s728, 2
          %s730 = scalar_lea.vmem [#allocation5], %s729
          %731 = dma.done %s727, 32
        $region40: #{swin_backbone_forward.26} parent=35 // pred_fallthru
          _
      $region36: #{swin_backbone_forward.26} parent=5 // pred_fallthru
        _
    $region6: #{swin_backbone_forward.26} parent=1 // loop_footer
      %s17 = sadd.s32 1, %s13
    $region7: #{swin_backbone_forward.26} parent=1 // loop_footer_branch
      %12 = sbr.rel target = $region3
    $region8: #{swin_backbone_forward.26} parent=1 // loop_exit
      _
    %732 = vsyncpa [#allocation3], 1
    %s733 = scalar_lea.sflag [#allocation3], 1
    %734 = vsyncpa %s733, 1
    %735 = vsyncpa [#allocation4], 1
    %s736 = scalar_lea.sflag [#allocation4], 1
    %737 = vsyncpa %s736, 1

// kernel: swin_backbone_forward.27
$region0: #{swin_backbone_forward.27}
  #allocation0 [shape = 'u32[]', space=smem, size = 0x4, offset = 0x4, fixed_abs, tag = 'smem constant byte address 0x4 - core index']
  #allocation1 [shape = 'u32[144,128]{1,0:T(1,128)}', space=vmem, size = 0x12000, scoped, tag = 'internal scratch']
  %s0 = inlined_call_operand.hbm [shape: f32[8,64], index: 0, kind: input, shape index: {}]
  %s1 = inlined_call_operand.hbm [shape: bf16[8,64], index: 1, kind: input, shape index: {}]
  %s2 = inlined_call_operand.hbm [shape: bf16[64,64], index: 2, kind: input, shape index: {}]
  %s3 = inlined_call_operand.hbm [shape: f32[1,64], index: 3, kind: input, shape index: {}]
  %s4 = inlined_call_operand.hbm [shape: f32[1,64], index: 4, kind: input, shape index: {}]
  %s5 = inlined_call_operand.hbm [shape: f32[1,64], index: 5, kind: input, shape index: {}]
  %s6 = inlined_call_operand.hbm [shape: bf16[64,256], index: 6, kind: input, shape index: {}]
  %s7 = inlined_call_operand.hbm [shape: f32[1,256], index: 7, kind: input, shape index: {}]
  %s8 = inlined_call_operand.hbm [shape: bf16[256,64], index: 8, kind: input, shape index: {}]
  %s9 = inlined_call_operand.hbm [shape: f32[1,64], index: 9, kind: input, shape index: {}]
  %s10 = inlined_call_operand.hbm [shape: f32[8,64], index: 10, kind: output, shape index: {}]
  %s11 = sld [smem:[#allocation0]]
  $region90: #{swin_backbone_forward.27} parent=0
    _
  %s13 = ssub.s32 1, %s11
  %s14 = scalar_select 0, %s13, %s11
  $region1: #{swin_backbone_forward.27} parent=0
    #allocation2 [shape = 'u8[4096]{0}', space=vmem, size = 0x1000, scoped, tag = 'input window, operand 0, single buffered']
    #allocation3 [shape = 's32[1]{0}', space=sflag, size = 0x4, scoped, tag = 'scoped memory for swin_backbone_forward.27']
    #allocation4 [shape = 's32[1]{0}', space=sflag, size = 0x4, scoped, tag = 'scoped memory for swin_backbone_forward.27']
    #allocation5 [shape = 'u8[2048]{0}', space=vmem, size = 0x800, scoped, tag = 'input window, operand 1, single buffered']
    #allocation6 [shape = 's32[1]{0}', space=sflag, size = 0x4, scoped, tag = 'scoped memory for swin_backbone_forward.27']
    #allocation7 [shape = 'u8[16384]{0}', space=vmem, size = 0x4000, scoped, tag = 'input window, operand 2, single buffered']
    #allocation8 [shape = 'u8[512]{0}', space=vmem, size = 0x400, scoped, tag = 'input window, operand 3, single buffered']
    #allocation9 [shape = 's32[1]{0}', space=sflag, size = 0x4, scoped, tag = 'scoped memory for swin_backbone_forward.27']
    #allocation10 [shape = 'u8[512]{0}', space=vmem, size = 0x400, scoped, tag = 'input window, operand 4, single buffered']
    #allocation11 [shape = 'u8[512]{0}', space=vmem, size = 0x400, scoped, tag = 'input window, operand 5, single buffered']
    #allocation12 [shape = 's32[1]{0}', space=sflag, size = 0x4, scoped, tag = 'scoped memory for swin_backbone_forward.27']
    #allocation13 [shape = 'u8[32768]{0}', space=vmem, size = 0x8000, scoped, tag = 'input window, operand 6, single buffered']
    #allocation14 [shape = 'u8[1024]{0}', space=vmem, size = 0x400, scoped, tag = 'input window, operand 7, single buffered']
    #allocation15 [shape = 's32[1]{0}', space=sflag, size = 0x4, scoped, tag = 'scoped memory for swin_backbone_forward.27']
    #allocation16 [shape = 'u8[65536]{0}', space=vmem, size = 0x10000, scoped, tag = 'input window, operand 8, single buffered']
    #allocation17 [shape = 'u8[512]{0}', space=vmem, size = 0x400, scoped, tag = 'input window, operand 9, single buffered']
    #allocation18 [shape = 's32[1]{0}', space=sflag, size = 0x4, scoped, tag = 'scoped memory for swin_backbone_forward.27']
    #allocation19 [shape = 'u8[4096]{0}', space=vmem, size = 0x1000, scoped, tag = 'output window, operand 0, single buffered']
    %15 = vsyncpa [#allocation3], 0
    %16 = vsyncpa [#allocation6], 0
    %17 = vsyncpa [#allocation9], 0
    %18 = vsyncpa [#allocation12], 0
    %19 = vsyncpa [#allocation15], 0
    %20 = vsyncpa [#allocation18], 0
    %21 = vsyncpa [#allocation4], 0
    // Predicated region
    $region2: #{swin_backbone_forward.27} parent=1 // pred_check
      _
    $region3: #{swin_backbone_forward.27} parent=1 // pred_check_branch
      %23 = sbr.rel (0) target = $region5
    $region4: #{swin_backbone_forward.27} parent=1 // pred_region
      %s25 = ssub.s32 128, 128
      %26 = vsyncadd [#allocation3], %s25
      %s28 = sshll.u32 [#allocation2], 4
      %s29 = int_to_ptr.vmem [resolvable:$true] %s28
      %31 = dma.hbm_to_vmem [thread:$0]  %s0, 128, %s29, [#allocation3]
    $region5: #{swin_backbone_forward.27} parent=1 // pred_fallthru
      _
    // Predicated region
    $region6: #{swin_backbone_forward.27} parent=1 // pred_check
      _
    $region7: #{swin_backbone_forward.27} parent=1 // pred_check_branch
      %33 = sbr.rel (0) target = $region9
    $region8: #{swin_backbone_forward.27} parent=1 // pred_region
      %s35 = ssub.s32 64, 64
      %36 = vsyncadd [#allocation6], %s35
      %s38 = sshll.u32 [#allocation5], 4
      %s39 = int_to_ptr.vmem [resolvable:$true] %s38
      %41 = dma.hbm_to_vmem [thread:$0]  %s1, 64, %s39, [#allocation6]
    $region9: #{swin_backbone_forward.27} parent=1 // pred_fallthru
      _
    // Predicated region
    $region10: #{swin_backbone_forward.27} parent=1 // pred_check
      _
    $region11: #{swin_backbone_forward.27} parent=1 // pred_check_branch
      %43 = sbr.rel (0) target = $region13
    $region12: #{swin_backbone_forward.27} parent=1 // pred_region
      %s45 = ssub.s32 512, 512
      %46 = vsyncadd [#allocation6], %s45
      %s47 = sshll.u32 [#allocation7], 4
      %s48 = int_to_ptr.vmem [resolvable:$true] %s47
      %53 = dma.hbm_to_vmem [thread:$0]  %s2, 512, %s48, [#allocation6], 64, 64, 4
    $region13: #{swin_backbone_forward.27} parent=1 // pred_fallthru
      _
    // Predicated region
    $region14: #{swin_backbone_forward.27} parent=1 // pred_check
      _
    $region15: #{swin_backbone_forward.27} parent=1 // pred_check_branch
      %55 = sbr.rel (0) target = $region17
    $region16: #{swin_backbone_forward.27} parent=1 // pred_region
      %s57 = ssub.s32 16, 16
      %58 = vsyncadd [#allocation9], %s57
      %s60 = sshll.u32 [#allocation8], 4
      %s61 = int_to_ptr.vmem [resolvable:$true] %s60
      %63 = dma.hbm_to_vmem [thread:$0]  %s3, 16, %s61, [#allocation9]
    $region17: #{swin_backbone_forward.27} parent=1 // pred_fallthru
      _
    // Predicated region
    $region18: #{swin_backbone_forward.27} parent=1 // pred_check
      _
    $region19: #{swin_backbone_forward.27} parent=1 // pred_check_branch
      %65 = sbr.rel (0) target = $region21
    $region20: #{swin_backbone_forward.27} parent=1 // pred_region
      %s67 = ssub.s32 16, 16
      %68 = vsyncadd [#allocation9], %s67
      %s70 = sshll.u32 [#allocation10], 4
      %s71 = int_to_ptr.vmem [resolvable:$true] %s70
      %73 = dma.hbm_to_vmem [thread:$0]  %s4, 16, %s71, [#allocation9]
    $region21: #{swin_backbone_forward.27} parent=1 // pred_fallthru
      _
    // Predicated region
    $region22: #{swin_backbone_forward.27} parent=1 // pred_check
      _
    $region23: #{swin_backbone_forward.27} parent=1 // pred_check_branch
      %75 = sbr.rel (0) target = $region25
    $region24: #{swin_backbone_forward.27} parent=1 // pred_region
      %s77 = ssub.s32 16, 16
      %78 = vsyncadd [#allocation12], %s77
      %s80 = sshll.u32 [#allocation11], 4
      %s81 = int_to_ptr.vmem [resolvable:$true] %s80
      %83 = dma.hbm_to_vmem [thread:$0]  %s5, 16, %s81, [#allocation12]
    $region25: #{swin_backbone_forward.27} parent=1 // pred_fallthru
      _
    // Predicated region
    $region26: #{swin_backbone_forward.27} parent=1 // pred_check
      _
    $region27: #{swin_backbone_forward.27} parent=1 // pred_check_branch
      %85 = sbr.rel (0) target = $region29
    $region28: #{swin_backbone_forward.27} parent=1 // pred_region
      %s87 = ssub.s32 1024, 1024
      %88 = vsyncadd [#allocation12], %s87
      %s89 = sshll.u32 [#allocation13], 4
      %s90 = int_to_ptr.vmem [resolvable:$true] %s89
      %95 = dma.hbm_to_vmem [thread:$0]  %s6, 1024, %s90, [#allocation12], 128, 128, 8
    $region29: #{swin_backbone_forward.27} parent=1 // pred_fallthru
      _
    // Predicated region
    $region30: #{swin_backbone_forward.27} parent=1 // pred_check
      _
    $region31: #{swin_backbone_forward.27} parent=1 // pred_check_branch
      %97 = sbr.rel (0) target = $region33
    $region32: #{swin_backbone_forward.27} parent=1 // pred_region
      %s99 = ssub.s32 32, 32
      %100 = vsyncadd [#allocation15], %s99
      %s102 = sshll.u32 [#allocation14], 4
      %s103 = int_to_ptr.vmem [resolvable:$true] %s102
      %105 = dma.hbm_to_vmem [thread:$0]  %s7, 32, %s103, [#allocation15]
    $region33: #{swin_backbone_forward.27} parent=1 // pred_fallthru
      _
    // Predicated region
    $region34: #{swin_backbone_forward.27} parent=1 // pred_check
      _
    $region35: #{swin_backbone_forward.27} parent=1 // pred_check_branch
      %107 = sbr.rel (0) target = $region37
    $region36: #{swin_backbone_forward.27} parent=1 // pred_region
      %s109 = ssub.s32 2048, 2048
      %110 = vsyncadd [#allocation15], %s109
      %s111 = sshll.u32 [#allocation16], 4
      %s112 = int_to_ptr.vmem [resolvable:$true] %s111
      %117 = dma.hbm_to_vmem [thread:$0]  %s8, 2048, %s112, [#allocation15], 64, 64, 4
    $region37: #{swin_backbone_forward.27} parent=1 // pred_fallthru
      _
    // Predicated region
    $region38: #{swin_backbone_forward.27} parent=1 // pred_check
      _
    $region39: #{swin_backbone_forward.27} parent=1 // pred_check_branch
      %119 = sbr.rel (0) target = $region41
    $region40: #{swin_backbone_forward.27} parent=1 // pred_region
      %s121 = ssub.s32 16, 16
      %122 = vsyncadd [#allocation18], %s121
      %s124 = sshll.u32 [#allocation17], 4
      %s125 = int_to_ptr.vmem [resolvable:$true] %s124
      %127 = dma.hbm_to_vmem [thread:$0]  %s9, 16, %s125, [#allocation18]
    $region41: #{swin_backbone_forward.27} parent=1 // pred_fallthru
      _
    // Predicated region
    $region42: #{swin_backbone_forward.27} parent=1 // pred_check
      _
    $region43: #{swin_backbone_forward.27} parent=1 // pred_check_branch
      %129 = sbr.rel (0) target = $region45
    $region44: #{swin_backbone_forward.27} parent=1 // pred_region
      %130 = dma.done [#allocation3], 128
    $region45: #{swin_backbone_forward.27} parent=1 // pred_fallthru
      _
    // Predicated region
    $region46: #{swin_backbone_forward.27} parent=1 // pred_check
      _
    $region47: #{swin_backbone_forward.27} parent=1 // pred_check_branch
      %132 = sbr.rel (0) target = $region49
    $region48: #{swin_backbone_forward.27} parent=1 // pred_region
      %133 = dma.done [#allocation6], 64
    $region49: #{swin_backbone_forward.27} parent=1 // pred_fallthru
      _
    // Predicated region
    $region50: #{swin_backbone_forward.27} parent=1 // pred_check
      _
    $region51: #{swin_backbone_forward.27} parent=1 // pred_check_branch
      %135 = sbr.rel (0) target = $region53
    $region52: #{swin_backbone_forward.27} parent=1 // pred_region
      %136 = dma.done [#allocation6], 512
    $region53: #{swin_backbone_forward.27} parent=1 // pred_fallthru
      _
    // Predicated region
    $region54: #{swin_backbone_forward.27} parent=1 // pred_check
      _
    $region55: #{swin_backbone_forward.27} parent=1 // pred_check_branch
      %138 = sbr.rel (0) target = $region57
    $region56: #{swin_backbone_forward.27} parent=1 // pred_region
      %139 = dma.done [#allocation9], 16
    $region57: #{swin_backbone_forward.27} parent=1 // pred_fallthru
      _
    // Predicated region
    $region58: #{swin_backbone_forward.27} parent=1 // pred_check
      _
    $region59: #{swin_backbone_forward.27} parent=1 // pred_check_branch
      %141 = sbr.rel (0) target = $region61
    $region60: #{swin_backbone_forward.27} parent=1 // pred_region
      %142 = dma.done [#allocation9], 16
    $region61: #{swin_backbone_forward.27} parent=1 // pred_fallthru
      _
    // Predicated region
    $region62: #{swin_backbone_forward.27} parent=1 // pred_check
      _
    $region63: #{swin_backbone_forward.27} parent=1 // pred_check_branch
      %144 = sbr.rel (0) target = $region65
    $region64: #{swin_backbone_forward.27} parent=1 // pred_region
      %145 = dma.done [#allocation12], 16
    $region65: #{swin_backbone_forward.27} parent=1 // pred_fallthru
      _
    // Predicated region
    $region66: #{swin_backbone_forward.27} parent=1 // pred_check
      _
    $region67: #{swin_backbone_forward.27} parent=1 // pred_check_branch
      %147 = sbr.rel (0) target = $region69
    $region68: #{swin_backbone_forward.27} parent=1 // pred_region
      %148 = dma.done [#allocation12], 1024
    $region69: #{swin_backbone_forward.27} parent=1 // pred_fallthru
      _
    // Predicated region
    $region70: #{swin_backbone_forward.27} parent=1 // pred_check
      _
    $region71: #{swin_backbone_forward.27} parent=1 // pred_check_branch
      %150 = sbr.rel (0) target = $region73
    $region72: #{swin_backbone_forward.27} parent=1 // pred_region
      %151 = dma.done [#allocation15], 32
    $region73: #{swin_backbone_forward.27} parent=1 // pred_fallthru
      _
    // Predicated region
    $region74: #{swin_backbone_forward.27} parent=1 // pred_check
      _
    $region75: #{swin_backbone_forward.27} parent=1 // pred_check_branch
      %153 = sbr.rel (0) target = $region77
    $region76: #{swin_backbone_forward.27} parent=1 // pred_region
      %154 = dma.done [#allocation15], 2048
    $region77: #{swin_backbone_forward.27} parent=1 // pred_fallthru
      _
    // Predicated region
    $region78: #{swin_backbone_forward.27} parent=1 // pred_check
      _
    $region79: #{swin_backbone_forward.27} parent=1 // pred_check_branch
      %156 = sbr.rel (0) target = $region81
    $region80: #{swin_backbone_forward.27} parent=1 // pred_region
      %157 = dma.done [#allocation18], 16
    $region81: #{swin_backbone_forward.27} parent=1 // pred_fallthru
      _
    %v159 = vld [vmem:[#allocation2] sm:$0xff]
    %v160 = vld [vmem:[#allocation5] sm:$0xf]
    %v161 = vld [vmem:[#allocation7] sm:$0xf]
    %v162 = vld [vmem:[#allocation7 + $0x4] sm:$0xf]
    %v163 = vld [vmem:[#allocation7 + $0x8] sm:$0xf]
    %v164 = vld [vmem:[#allocation7 + $0xc] sm:$0xf]
    %v165 = vld [vmem:[#allocation7 + $0x10] sm:$0xf]
    %v166 = vld [vmem:[#allocation7 + $0x14] sm:$0xf]
    %v167 = vld [vmem:[#allocation7 + $0x18] sm:$0xf]
    %v168 = vld [vmem:[#allocation7 + $0x1c] sm:$0xf]
    %v169 = vld [vmem:[#allocation8] sm:$0x1]
    %v171 = vlaneseq
    %v172 = vshrl.u32 %v171, 7
    %v173 = vsub.s32 0, %v172
    %v174 = vrot.slane %v169, %v173
    %v184 = vunpack.c.l.b16 %v161
    %v185 = vunpack.c.l.b16 %v162
    %v186 = vunpack.c.l.b16 %v163
    %v187 = vunpack.c.l.b16 %v164
    %v188 = vunpack.c.l.b16 %v165
    %v189 = vunpack.c.l.b16 %v166
    %v190 = vunpack.c.l.b16 %v167
    %v191 = vunpack.c.l.b16 %v168
    %v192 = vpack.c.b16 %v185, %v184
    %v193 = vpack.c.b16 %v187, %v186
    %v194 = vpack.c.b16 %v189, %v188
    %v195 = vpack.c.b16 %v191, %v190
    %vm200 = vcmask 523264
    %v202 = vsel %vm200, %v160, 0
    %204 = vmatprep.subr.bf16.mxu0 0
    %205 = vmatpush1.bf16.msra.mxu0 %v192
    %206 = vmatprep.subr.bf16.mxu0 0
    %207 = vmatpush1.bf16.msra.mxu0 %v193
    %208 = vmatprep.subr.bf16.mxu0 0
    %209 = vmatpush1.bf16.msra.mxu0 %v194
    %210 = vmatprep.subr.bf16.mxu0 0
    %211 = vmatpush1.bf16.msra.mxu0 %v195
    %212 = vmatprep.subr.bf16.mxu0 0
    %213 = vmatpush1.bf16.msra.mxu0 0
    %214 = vmatprep.subr.bf16.mxu0 0
    %215 = vmatpush1.bf16.msra.mxu0 0
    %216 = vmatprep.subr.bf16.mxu0 0
    %217 = vmatpush1.bf16.msra.mxu0 0
    %218 = vmatprep.subr.bf16.mxu0 0
    %219 = vmatpush1.bf16.msra.mxu0 0
    %220 = vmatprep.subr.bf16.mxu0 0
    %221 = vmatpush1.bf16.msra.mxu0 0
    %222 = vmatprep.subr.bf16.mxu0 0
    %223 = vmatpush1.bf16.msra.mxu0 0
    %224 = vmatprep.subr.bf16.mxu0 0
    %225 = vmatpush1.bf16.msra.mxu0 0
    %226 = vmatprep.subr.bf16.mxu0 0
    %227 = vmatpush1.bf16.msra.mxu0 0
    %228 = vmatprep.subr.bf16.mxu0 0
    %229 = vmatpush1.bf16.msra.mxu0 0
    %230 = vmatprep.subr.bf16.mxu0 0
    %231 = vmatpush1.bf16.msra.mxu0 0
    %232 = vmatprep.subr.bf16.mxu0 0
    %233 = vmatpush1.bf16.msra.mxu0 0
    %234 = vmatprep.subr.bf16.mxu0 0
    %235 = vmatpush1.bf16.msra.mxu0 0
    %236 = vmatprep.mubr.bf16.mxu0 0
    %237 = vmatmul.mubr.bf16.gmra.mrb[0].mxu0 %v202
    %v238 = vpop.f32.mrb[0].mxu0
    %v239 = vadd.f32 %v174, %v238
    %v240 = vpop.f32.mrb[0].mxu0
    %v241 = vpop.f32.mrb[0].mxu0
    %v242 = vpop.f32.mrb[0].mxu0
    %243 = vdwg.mxu0
    %v244 = vadd.f32 %v159, %v239
    %v245 = vsel %vm200, %v244, 0.0
    %246 = vadd.xlane.f32.xlu0 %v245
    %v247 = vpop.xlane.xlu0 %246
    %v248 = vrcp.pop 64.0
    %v249 = vmul.f32 %v247, %v248
    %v250 = vsub.f32 %v244, %v249
    %v251 = vmul.f32 %v250, %v250
    %v252 = vsel %vm200, %v251, 0.0
    %253 = vadd.xlane.f32.xlu0 %v252
    %v254 = vpop.xlane.xlu0 %253
    %v255 = vmul.f32 %v254, %v248
    %v256 = vadd.f32 %v255, 1e-05
    %v257 = vrsqrt.pop %v256
    %v258 = vmul.f32 %v250, %v257
    %v259 = vld [vmem:[#allocation10] sm:$0x1]
    %v261 = vlaneseq
    %v262 = vshrl.u32 %v261, 7
    %v263 = vsub.s32 0, %v262
    %v264 = vrot.slane %v259, %v263
    %v266 = vmul.f32 %v258, %v264
    %v267 = vld [vmem:[#allocation11] sm:$0x1]
    %v269 = vlaneseq
    %v270 = vshrl.u32 %v269, 7
    %v271 = vsub.s32 0, %v270
    %v272 = vrot.slane %v267, %v271
    %v274 = vadd.f32 %v266, %v272
    %v275 = vpack.c.bf16 %v274, %v274
    %v276 = vld [vmem:[#allocation13] sm:$0xff]
    %v277 = vld [vmem:[#allocation13 + $0x8] sm:$0xff]
    %v278 = vld [vmem:[#allocation13 + $0x10] sm:$0xff]
    %v279 = vld [vmem:[#allocation13 + $0x18] sm:$0xff]
    %v280 = vld [vmem:[#allocation13 + $0x20] sm:$0xff]
    %v281 = vld [vmem:[#allocation13 + $0x28] sm:$0xff]
    %v282 = vld [vmem:[#allocation13 + $0x30] sm:$0xff]
    %v283 = vld [vmem:[#allocation13 + $0x38] sm:$0xff]
    %v284 = vld [vmem:[#allocation14] sm:$0x3]
    %v286 = vlaneseq
    %v287 = vshrl.u32 %v286, 7
    %v288 = vsub.s32 0, %v287
    %v289 = vrot.slane %v284, %v288
    %v290 = vlaneseq
    %v291 = vshrl.u32 %v290, 7
    %v292 = vsub.s32 1, %v291
    %v293 = vrot.slane %v284, %v292
    %v304 = vunpack.c.l.b16 %v276
    %v305 = vunpack.c.h.b16 %v276
    %v306 = vunpack.c.l.b16 %v277
    %v307 = vunpack.c.h.b16 %v277
    %v308 = vunpack.c.l.b16 %v278
    %v309 = vunpack.c.h.b16 %v278
    %v310 = vunpack.c.l.b16 %v279
    %v311 = vunpack.c.h.b16 %v279
    %v312 = vunpack.c.l.b16 %v280
    %v313 = vunpack.c.h.b16 %v280
    %v314 = vunpack.c.l.b16 %v281
    %v315 = vunpack.c.h.b16 %v281
    %v316 = vunpack.c.l.b16 %v282
    %v317 = vunpack.c.h.b16 %v282
    %v318 = vunpack.c.l.b16 %v283
    %v319 = vunpack.c.h.b16 %v283
    %v320 = vpack.c.b16 %v306, %v304
    %v321 = vpack.c.b16 %v307, %v305
    %v322 = vpack.c.b16 %v310, %v308
    %v323 = vpack.c.b16 %v311, %v309
    %v324 = vpack.c.b16 %v314, %v312
    %v325 = vpack.c.b16 %v315, %v313
    %v326 = vpack.c.b16 %v318, %v316
    %v327 = vpack.c.b16 %v319, %v317
    %v337 = vsel %vm200, %v275, 0
    %339 = vmatprep.subr.bf16.mxu0 %v321
    %340 = vmatpush1.bf16.msra.mxu0 %v320
    %341 = vmatprep.subr.bf16.mxu0 %v323
    %342 = vmatpush1.bf16.msra.mxu0 %v322
    %343 = vmatprep.subr.bf16.mxu0 %v325
    %344 = vmatpush1.bf16.msra.mxu0 %v324
    %345 = vmatprep.subr.bf16.mxu0 %v327
    %346 = vmatpush1.bf16.msra.mxu0 %v326
    %347 = vmatprep.subr.bf16.mxu0 0
    %348 = vmatpush1.bf16.msra.mxu0 0
    %349 = vmatprep.subr.bf16.mxu0 0
    %350 = vmatpush1.bf16.msra.mxu0 0
    %351 = vmatprep.subr.bf16.mxu0 0
    %352 = vmatpush1.bf16.msra.mxu0 0
    %353 = vmatprep.subr.bf16.mxu0 0
    %354 = vmatpush1.bf16.msra.mxu0 0
    %355 = vmatprep.subr.bf16.mxu0 0
    %356 = vmatpush1.bf16.msra.mxu0 0
    %357 = vmatprep.subr.bf16.mxu0 0
    %358 = vmatpush1.bf16.msra.mxu0 0
    %359 = vmatprep.subr.bf16.mxu0 0
    %360 = vmatpush1.bf16.msra.mxu0 0
    %361 = vmatprep.subr.bf16.mxu0 0
    %362 = vmatpush1.bf16.msra.mxu0 0
    %363 = vmatprep.subr.bf16.mxu0 0
    %364 = vmatpush1.bf16.msra.mxu0 0
    %365 = vmatprep.subr.bf16.mxu0 0
    %366 = vmatpush1.bf16.msra.mxu0 0
    %367 = vmatprep.subr.bf16.mxu0 0
    %368 = vmatpush1.bf16.msra.mxu0 0
    %369 = vmatprep.subr.bf16.mxu0 0
    %370 = vmatpush1.bf16.msra.mxu0 0
    %371 = vmatprep.mubr.bf16.mxu0 0
    %372 = vmatmul.mubr.bf16.gmra.mrb[0].mxu0 %v337
    %v373 = vpop.f32.mrb[0].mxu0
    %v374 = vadd.f32 %v289, %v373
    %v375 = vpop.f32.mrb[0].mxu0
    %v376 = vadd.f32 %v293, %v375
    %v377 = vpop.f32.mrb[0].mxu0
    %v378 = vpop.f32.mrb[0].mxu0
    %379 = vdwg.mxu0
    %v380 = vmul.f32 %v374, 0.5
    %v381 = vmul.f32 %v376, 0.5
    %v382 = vmul.f32 %v374, 0.70710677
    %v383 = vmul.f32 %v376, 0.70710677
    %vm384 = vcmp.ge.f32.partialorder %v382, 0.0
    %vm385 = vcmp.ge.f32.partialorder %v383, 0.0
    %v386 = vsel %vm384, 1.0, -1.0
    %v387 = vsel %vm385, 1.0, -1.0
    %v388 = vand.u32 2147483647, %v382
    %v389 = vand.u32 2147483647, %v383
    %v390 = vmul.f32 %v388, 0.3275911
    %v391 = vmul.f32 %v389, 0.3275911
    %v392 = vadd.f32 %v390, 1.0
    %v393 = vadd.f32 %v391, 1.0
    %v394 = vrcp.pop %v392
    %v395 = vmul.f32 1.0, %v394
    %v396 = vrcp.pop %v393
    %v397 = vmul.f32 1.0, %v396
    %v398 = vmul.f32 %v395, 1.0614054
    %v399 = vmul.f32 %v397, 1.0614054
    %v400 = vadd.f32 %v398, -1.4531521
    %v401 = vadd.f32 %v399, -1.4531521
    %v402 = vmul.f32 %v395, %v400
    %v403 = vmul.f32 %v397, %v401
    %v404 = vadd.f32 %v402, 1.4214138
    %v405 = vadd.f32 %v403, 1.4214138
    %v406 = vmul.f32 %v395, %v404
    %v407 = vmul.f32 %v397, %v405
    %v408 = vadd.f32 %v406, -0.28449672
    %v409 = vadd.f32 %v407, -0.28449672
    %v410 = vmul.f32 %v395, %v408
    %v411 = vmul.f32 %v397, %v409
    %v412 = vadd.f32 %v410, 0.2548296
    %v413 = vadd.f32 %v411, 0.2548296
    %v414 = vmul.f32 %v395, %v412
    %v415 = vmul.f32 %v397, %v413
    %v416 = vsub.f32 0.0, %v388
    %v417 = vsub.f32 0.0, %v389
    %v418 = vmul.f32 %v416, %v388
    %v419 = vmul.f32 %v417, %v389
    %v420 = vmul.f32 %v418, 1.442695
    %v421 = vpow.pop %v420
    %v422 = vmul.f32 %v419, 1.442695
    %v423 = vpow.pop %v422
    %v424 = vmul.f32 %v414, %v421
    %v425 = vmul.f32 %v415, %v423
    %v426 = vsub.f32 1.0, %v424
    %v427 = vsub.f32 1.0, %v425
    %v428 = vmul.f32 %v386, %v426
    %v429 = vmul.f32 %v387, %v427
    %v430 = vadd.f32 %v428, 1.0
    %v431 = vadd.f32 %v429, 1.0
    %v432 = vmul.f32 %v380, %v430
    %v433 = vmul.f32 %v381, %v431
    %v434 = vpack.c.bf16 %v432, %v432
    %v435 = vpack.c.bf16 %v433, %v433
    %v436 = vld [vmem:[#allocation16] sm:$0xf]
    %v437 = vld [vmem:[#allocation16 + $0x4] sm:$0xf]
    %v438 = vld [vmem:[#allocation16 + $0x8] sm:$0xf]
    %v439 = vld [vmem:[#allocation16 + $0xc] sm:$0xf]
    %v440 = vld [vmem:[#allocation16 + $0x10] sm:$0xf]
    %v441 = vld [vmem:[#allocation16 + $0x14] sm:$0xf]
    %v442 = vld [vmem:[#allocation16 + $0x18] sm:$0xf]
    %v443 = vld [vmem:[#allocation16 + $0x1c] sm:$0xf]
    %v444 = vld [vmem:[#allocation16 + $0x20] sm:$0xf]
    %v445 = vld [vmem:[#allocation16 + $0x24] sm:$0xf]
    %v446 = vld [vmem:[#allocation16 + $0x28] sm:$0xf]
    %v447 = vld [vmem:[#allocation16 + $0x2c] sm:$0xf]
    %v448 = vld [vmem:[#allocation16 + $0x30] sm:$0xf]
    %v449 = vld [vmem:[#allocation16 + $0x34] sm:$0xf]
    %v450 = vld [vmem:[#allocation16 + $0x38] sm:$0xf]
    %v451 = vld [vmem:[#allocation16 + $0x3c] sm:$0xf]
    %v452 = vld [vmem:[#allocation16 + $0x40] sm:$0xf]
    %v453 = vld [vmem:[#allocation16 + $0x44] sm:$0xf]
    %v454 = vld [vmem:[#allocation16 + $0x48] sm:$0xf]
    %v455 = vld [vmem:[#allocation16 + $0x4c] sm:$0xf]
    %v456 = vld [vmem:[#allocation16 + $0x50] sm:$0xf]
    %v457 = vld [vmem:[#allocation16 + $0x54] sm:$0xf]
    %v458 = vld [vmem:[#allocation16 + $0x58] sm:$0xf]
    %v459 = vld [vmem:[#allocation16 + $0x5c] sm:$0xf]
    %v460 = vld [vmem:[#allocation16 + $0x60] sm:$0xf]
    %v461 = vld [vmem:[#allocation16 + $0x64] sm:$0xf]
    %v462 = vld [vmem:[#allocation16 + $0x68] sm:$0xf]
    %v463 = vld [vmem:[#allocation16 + $0x6c] sm:$0xf]
    %v464 = vld [vmem:[#allocation16 + $0x70] sm:$0xf]
    %v465 = vld [vmem:[#allocation16 + $0x74] sm:$0xf]
    %v466 = vld [vmem:[#allocation16 + $0x78] sm:$0xf]
    %v467 = vld [vmem:[#allocation16 + $0x7c] sm:$0xf]
    %v468 = vld [vmem:[#allocation17] sm:$0x1]
    %v470 = vlaneseq
    %v471 = vshrl.u32 %v470, 7
    %v472 = vsub.s32 0, %v471
    %v473 = vrot.slane %v468, %v472
    %v507 = vunpack.c.l.b16 %v436
    %v508 = vunpack.c.l.b16 %v437
    %v509 = vunpack.c.l.b16 %v438
    %v510 = vunpack.c.l.b16 %v439
    %v511 = vunpack.c.l.b16 %v440
    %v512 = vunpack.c.l.b16 %v441
    %v513 = vunpack.c.l.b16 %v442
    %v514 = vunpack.c.l.b16 %v443
    %v515 = vunpack.c.l.b16 %v444
    %v516 = vunpack.c.l.b16 %v445
    %v517 = vunpack.c.l.b16 %v446
    %v518 = vunpack.c.l.b16 %v447
    %v519 = vunpack.c.l.b16 %v448
    %v520 = vunpack.c.l.b16 %v449
    %v521 = vunpack.c.l.b16 %v450
    %v522 = vunpack.c.l.b16 %v451
    %v523 = vunpack.c.l.b16 %v452
    %v524 = vunpack.c.l.b16 %v453
    %v525 = vunpack.c.l.b16 %v454
    %v526 = vunpack.c.l.b16 %v455
    %v527 = vunpack.c.l.b16 %v456
    %v528 = vunpack.c.l.b16 %v457
    %v529 = vunpack.c.l.b16 %v458
    %v530 = vunpack.c.l.b16 %v459
    %v531 = vunpack.c.l.b16 %v460
    %v532 = vunpack.c.l.b16 %v461
    %v533 = vunpack.c.l.b16 %v462
    %v534 = vunpack.c.l.b16 %v463
    %v535 = vunpack.c.l.b16 %v464
    %v536 = vunpack.c.l.b16 %v465
    %v537 = vunpack.c.l.b16 %v466
    %v538 = vunpack.c.l.b16 %v467
    %v539 = vpack.c.b16 %v508, %v507
    %v540 = vpack.c.b16 %v510, %v509
    %v541 = vpack.c.b16 %v512, %v511
    %v542 = vpack.c.b16 %v514, %v513
    %v543 = vpack.c.b16 %v516, %v515
    %v544 = vpack.c.b16 %v518, %v517
    %v545 = vpack.c.b16 %v520, %v519
    %v546 = vpack.c.b16 %v522, %v521
    %v547 = vpack.c.b16 %v524, %v523
    %v548 = vpack.c.b16 %v526, %v525
    %v549 = vpack.c.b16 %v528, %v527
    %v550 = vpack.c.b16 %v530, %v529
    %v551 = vpack.c.b16 %v532, %v531
    %v552 = vpack.c.b16 %v534, %v533
    %v553 = vpack.c.b16 %v536, %v535
    %v554 = vpack.c.b16 %v538, %v537
    %571 = vmatprep.subr.bf16.mxu0 0
    %572 = vmatpush1.bf16.msra.mxu0 %v539
    %573 = vmatprep.subr.bf16.mxu0 0
    %574 = vmatpush1.bf16.msra.mxu0 %v540
    %575 = vmatprep.subr.bf16.mxu0 0
    %576 = vmatpush1.bf16.msra.mxu0 %v541
    %577 = vmatprep.subr.bf16.mxu0 0
    %578 = vmatpush1.bf16.msra.mxu0 %v542
    %579 = vmatprep.subr.bf16.mxu0 0
    %580 = vmatpush1.bf16.msra.mxu0 %v543
    %581 = vmatprep.subr.bf16.mxu0 0
    %582 = vmatpush1.bf16.msra.mxu0 %v544
    %583 = vmatprep.subr.bf16.mxu0 0
    %584 = vmatpush1.bf16.msra.mxu0 %v545
    %585 = vmatprep.subr.bf16.mxu0 0
    %586 = vmatpush1.bf16.msra.mxu0 %v546
    %587 = vmatprep.subr.bf16.mxu0 0
    %588 = vmatpush1.bf16.msra.mxu0 %v547
    %589 = vmatprep.subr.bf16.mxu0 0
    %590 = vmatpush1.bf16.msra.mxu0 %v548
    %591 = vmatprep.subr.bf16.mxu0 0
    %592 = vmatpush1.bf16.msra.mxu0 %v549
    %593 = vmatprep.subr.bf16.mxu0 0
    %594 = vmatpush1.bf16.msra.mxu0 %v550
    %595 = vmatprep.subr.bf16.mxu0 0
    %596 = vmatpush1.bf16.msra.mxu0 %v551
    %597 = vmatprep.subr.bf16.mxu0 0
    %598 = vmatpush1.bf16.msra.mxu0 %v552
    %599 = vmatprep.subr.bf16.mxu0 0
    %600 = vmatpush1.bf16.msra.mxu0 %v553
    %601 = vmatprep.subr.bf16.mxu0 0
    %602 = vmatpush1.bf16.msra.mxu0 %v554
    %603 = vmatprep.mubr.bf16.mxu0 %v435
    %604 = vmatmul.mubr.bf16.gmra.mrb[0].mxu0 %v434
    %v605 = vpop.f32.mrb[0].mxu0
    %v606 = vadd.f32 %v473, %v605
    %v607 = vpop.f32.mrb[0].mxu0
    %v608 = vpop.f32.mrb[0].mxu0
    %v609 = vpop.f32.mrb[0].mxu0
    %610 = vdwg.mxu0
    %v611 = vadd.f32 %v244, %v606
    %612 = vst.msk [vmem:[#allocation19] sm:$0xff] %vm200, %v611
    // Predicated region
    $region82: #{swin_backbone_forward.27} parent=1 // pred_check
      _
    $region83: #{swin_backbone_forward.27} parent=1 // pred_check_branch
      %614 = sbr.rel (0) target = $region85
    $region84: #{swin_backbone_forward.27} parent=1 // pred_region
      %s616 = ssub.s32 128, 128
      %617 = vsyncadd [#allocation4], %s616
      %s619 = sshll.u32 [#allocation19], 4
      %s620 = int_to_ptr.vmem [resolvable:$true] %s619
      %622 = dma.vmem_to_hbm [thread:$0]  %s620, 128, %s10, [#allocation4]
    $region85: #{swin_backbone_forward.27} parent=1 // pred_fallthru
      _
    // Predicated region
    $region86: #{swin_backbone_forward.27} parent=1 // pred_check
      _
    $region87: #{swin_backbone_forward.27} parent=1 // pred_check_branch
      %624 = sbr.rel (0) target = $region89
    $region88: #{swin_backbone_forward.27} parent=1 // pred_region
      %625 = dma.done [#allocation4], 128
    $region89: #{swin_backbone_forward.27} parent=1 // pred_fallthru
      _
    %626 = vsyncpa [#allocation3], 1
    %627 = vsyncpa [#allocation6], 1
    %628 = vsyncpa [#allocation9], 1
    %629 = vsyncpa [#allocation12], 1
    %630 = vsyncpa [#allocation15], 1
    %631 = vsyncpa [#allocation18], 1
    %632 = vsyncpa [#allocation4], 1

</llo_original>
